<compile_context>
chip_gen: v6e
topology: v6e:2x2x1
jax: 0.10.0
libtpu: 0.0.40
codegen_flags: <defaults>
</compile_context>

<pallas_src>
import math
from functools import partial

import numpy as np
import jax
import jax.numpy as jnp
from jax import lax
from jax.experimental import pallas as pl
from jax.experimental.pallas import tpu as pltpu

BASIC_DIMS = 16   # kv_dim
NUM_MODALS = 4    # query_dim
LN_EPS = 1e-6
SLAB_COLS = 128   # lane-aligned column width of the packed parameter slab


# ----------------------------- in-kernel math helpers -----------------------------

def _gelu(x, exact=True):
    if exact:
        # exact (erf) GELU, matching torch.nn.GELU() default
        return 0.5 * x * (1.0 + lax.erf(x * (1.0 / math.sqrt(2.0))))
    # tanh approximation — routes to the EUP (otherwise-idle slot); ~1e-3 rel
    # deviation from the exact form.  Off by default to keep module semantics.
    return jax.nn.gelu(x, approximate=True)


def _ln_channels(x, gamma, beta, eps=LN_EPS):
    """LayerNorm over the channel axis (axis 0) of a (C, L) tile.

    Matches nchwd2nlc2nchwd(nn.LayerNorm(C), x): per spatial location,
    normalize over channels.  gamma/beta have shape (C, 1)."""
    mu = jnp.mean(x, axis=0, keepdims=True)
    xc = x - mu
    var = jnp.mean(xc * xc, axis=0, keepdims=True)
    return xc * lax.rsqrt(var + eps) * gamma + beta


def _dw_conv3x3x3(h, w2, masks, W, D):
    """Depthwise 3x3x3 conv (zero padding 1) on a channel-first (C, L) tile.

    Cascaded shift tree: h-axis rolls of ±(W*D) masked by masks[0:2], w-axis
    rolls of ±D masked by masks[2:4], d-axis rolls of ±1 masked by masks[4:6],
    weight FMA at the 27 leaves.  Per-axis masks zero any wrap/carry
    contamination, so this is exactly the padded 3x3x3 depthwise conv.
    Tap weight column index = kh*9 + kw*3 + kd (kh = dh+1, etc.)."""
    L = h.shape[1]
    WD = W * D
    acc = jnp.zeros_like(h)
    for ih, dh in enumerate((-1, 0, 1)):
        if dh == 0:
            xh = h
        else:
            mh = masks[0:1] if dh > 0 else masks[1:2]
            xh = pltpu.roll(h, shift=(-dh * WD) % L, axis=1) * mh
        for iw, dw in enumerate((-1, 0, 1)):
            if dw == 0:
                xw = xh
            else:
                mw = masks[2:3] if dw > 0 else masks[3:4]
                xw = pltpu.roll(xh, shift=(-dw * D) % L, axis=1) * mw
            for idx, dd in enumerate((-1, 0, 1)):
                tap = ih * 9 + iw * 3 + idx
                if dd == 0:
                    xd = xw                       # centre of d-axis: no roll, no mask
                else:
                    md = masks[4:5] if dd > 0 else masks[5:6]
                    xd = pltpu.roll(xw, shift=(-dd) % L, axis=1) * md
                acc = acc + w2[:, tap:tap + 1] * xd
    return acc


def _dw_block(x, w1, w2, w3, vmid, vout, masks, H, W, D, exact_gelu):
    """DepthWiseConvBlock on a channel-first (Cin, L) tile -> (Cout, L).

    conv1(1x1x1) -> LN -> GELU -> depthwise 3x3x3 (pad 1) -> LN -> GELU
    -> conv3(1x1x1) -> LN.  Spatial dims flattened row-major: l = h*W*D + w*D + d."""
    b1, g1, be1 = vmid[:, 0:1], vmid[:, 1:2], vmid[:, 2:3]
    b2, g2, be2 = vmid[:, 3:4], vmid[:, 4:5], vmid[:, 5:6]
    b3, g3, be3 = vout[:, 0:1], vout[:, 1:2], vout[:, 2:3]

    # conv1 (1x1x1): (Cmid, Cin) @ (Cin, L) — lane-dense MXU matmul.
    h = jnp.dot(w1, x, preferred_element_type=jnp.float32) + b1
    h = _gelu(_ln_channels(h, g1, be1), exact_gelu)

    # conv2: depthwise 3x3x3 via cascaded masked rolls (XLU) + FMA leaves.
    h = _gelu(_ln_channels(_dw_conv3x3x3(h, w2, masks, W, D) + b2, g2, be2), exact_gelu)

    # conv3 (1x1x1) + LN.
    y = jnp.dot(w3, h, preferred_element_type=jnp.float32) + b3
    return _ln_channels(y, g3, be3)


# ----------------------------- fused layer kernel -----------------------------

def _attention_layer_kernel(q_ref, k_ref, v_ref, p_ref, m_ref, o_ref, *,
                            H, W, D, meta, exact_gelu):
    L = H * W * D
    slab = p_ref[...]                        # (R, 128) packed parameters, loaded once
    masks = m_ref[...]                       # (6, L) per-axis boundary masks
    xq = q_ref[0]                            # (QC, L) — also the residual

    def run_block(x, which):
        row, C, Co = meta[which]             # static Python ints
        top = slab[row:row + C, :]           # rows: [w1 | w2 | vmid]
        bot = slab[row + C:row + C + Co, :]  # rows: [w3 | vout]
        w1 = top[:, 0:C]
        w2 = top[:, C:C + 27]
        vmid = top[:, C + 27:C + 33]
        w3 = bot[:, 0:C]
        vout = bot[:, C:C + 3]
        return _dw_block(x, w1, w2, w3, vmid, vout, masks, H, W, D, exact_gelu)

    q = run_block(xq, 0)                     # query_map  (QC, L)
    k = run_block(k_ref[0], 1)               # key_map    (KC, L)

    # Score right after k so k's vregs die before value_map runs (reg pressure).
    s = lax.dot_general(q, k, (((1,), (1,)), ((), ())),
                        preferred_element_type=jnp.float32) * (float(L) ** -0.5)
    s = s - jnp.max(s, axis=-1, keepdims=True)
    e = jnp.exp(s)
    p = e / jnp.sum(e, axis=-1, keepdims=True)       # attn_drop(p=0) == identity

    v = run_block(v_ref[0], 2)               # value_map  (KC, L)
    att = jnp.dot(p, v, preferred_element_type=jnp.float32)   # (QC, L)

    y = run_block(att, 3)                    # out_project
    o_ref[0] = xq + y                        # proj_drop(p=0) == identity


# ----------------------------- host-side packing -----------------------------

def _axis_masks(H, W, D):
    """(6, H*W*D) f32 per-axis validity masks for the cascaded shift tree.

    Rows: [h+1<H, h-1>=0, w+1<W, w-1>=0, d+1<D, d-1>=0] at each flattened
    location l = h*W*D + w*D + d."""
    hg, wg, dg = np.meshgrid(np.arange(H), np.arange(W), np.arange(D), indexing='ij')
    rows = [(hg + 1 < H), (hg - 1 >= 0),
            (wg + 1 < W), (wg - 1 >= 0),
            (dg + 1 < D), (dg - 1 >= 0)]
    return jnp.asarray(np.stack([r.reshape(-1) for r in rows]).astype(np.float32))


def _pack_params(params, order=('query_map', 'key_map', 'value_map', 'out_project')):
    """Pack all 4 DepthWiseConvBlocks into one (R, 128) f32 slab.

    Per block (C = mid = in_c, Co = out_c), rows 0..C-1 hold [w1 | w2 | vmid],
    rows C..C+Co-1 hold [w3 | vout]; each block section is padded to a multiple
    of 8 rows so every in-kernel slice stays sublane-aligned."""
    sections, meta, row_off = [], [], 0
    for name in order:
        p = params[name]
        w1, w2, w3, vmid, vout = p['w1'], p['w2'], p['w3'], p['vmid'], p['vout']
        C, Co = w1.shape[0], w3.shape[0]
        assert C + 27 + 6 <= SLAB_COLS and C + 3 <= SLAB_COLS
        top = jnp.concatenate([w1, w2, vmid], axis=1)
        top = jnp.pad(top, ((0, 0), (0, SLAB_COLS - top.shape[1])))
        bot = jnp.concatenate([w3, vout], axis=1)
        bot = jnp.pad(bot, ((0, 0), (0, SLAB_COLS - bot.shape[1])))
        sec = jnp.concatenate([top, bot], axis=0)
        pad_rows = (-sec.shape[0]) % 8
        if pad_rows:
            sec = jnp.pad(sec, ((0, pad_rows), (0, 0)))
        sections.append(sec)
        meta.append((row_off, C, Co))
        row_off += sec.shape[0]
    return jnp.concatenate(sections, axis=0).astype(jnp.float32), tuple(meta)


def attention_layer(query, key, value, params, *, approximate_gelu=False):
    """query: (B, QC, H, W, D); key/value: (B, KC, H, W, D) -> (B, QC, H, W, D)."""
    B, QC, H, W, D = query.shape
    KC = key.shape[1]
    L = H * W * D

    q2 = query.reshape(B, QC, L)            # free reshapes — no transposes
    k2 = key.reshape(B, KC, L)
    v2 = value.reshape(B, KC, L)
    slab, meta = _pack_params(params)
    masks = _axis_masks(H, W, D)

    def full_spec(a):                       # grid-invariant 2-D operand, fetched once
        return pl.BlockSpec(a.shape, lambda b: (0, 0))

    in_specs = [pl.BlockSpec((1, QC, L), lambda b: (b, 0, 0)),
                pl.BlockSpec((1, KC, L), lambda b: (b, 0, 0)),
                pl.BlockSpec((1, KC, L), lambda b: (b, 0, 0)),
                full_spec(slab),
                full_spec(masks)]

    out = pl.pallas_call(
        partial(_attention_layer_kernel, H=H, W=W, D=D, meta=meta,
                exact_gelu=not approximate_gelu),
        out_shape=jax.ShapeDtypeStruct((B, QC, L), jnp.float32),
        grid=(B,),
        in_specs=in_specs,
        out_specs=pl.BlockSpec((1, QC, L), lambda b: (b, 0, 0)),
        compiler_params=pltpu.CompilerParams(
            dimension_semantics=("parallel",)),   # v7x: one batch element per TC
    )(q2, k2, v2, slab, masks)
    return out.reshape(B, QC, H, W, D)


# ----------------------------- deterministic parameter init -----------------------------

def init_block_params(key, in_c, out_c):
    """DepthWiseConvBlock params, stored in the kernel's channel-first layout."""
    mid = in_c
    ks = jax.random.split(key, 6)

    def u(k, shape, fan_in):
        bound = 1.0 / math.sqrt(fan_in)
        return jax.random.uniform(k, shape, jnp.float32, -bound, bound)

    w1 = u(ks[0], (mid, in_c), in_c)          # conv1 weight (out, in)
    b1 = u(ks[1], (mid,), in_c)
    w2 = u(ks[2], (mid, 27), 27)              # depthwise taps, column = kh*9+kw*3+kd
    b2 = u(ks[3], (mid,), 27)
    w3 = u(ks[4], (out_c, mid), mid)          # conv3 weight (out, in)
    b3 = u(ks[5], (out_c,), mid)

    ones_m = jnp.ones((mid,), jnp.float32)
    zeros_m = jnp.zeros((mid,), jnp.float32)
    ones_o = jnp.ones((out_c,), jnp.float32)
    zeros_o = jnp.zeros((out_c,), jnp.float32)
    # packed per-channel vectors: [b1, g1, be1, b2, g2, be2] and [b3, g3, be3]
    vmid = jnp.stack([b1, ones_m, zeros_m, b2, ones_m, zeros_m], axis=1)   # (mid, 6)
    vout = jnp.stack([b3, ones_o, zeros_o], axis=1)                        # (out_c, 3)
    return dict(w1=w1, w2=w2, w3=w3, vmid=vmid, vout=vout)


if __name__ == "__main__":
    B, H, W, D = 2, 8, 8, 8
    kv_dim, q_dim = BASIC_DIMS, NUM_MODALS

    root = jax.random.PRNGKey(0)
    k_in, k_par = jax.random.split(root)
    kq, kk, kv = jax.random.split(k_in, 3)

    query = jax.random.normal(kq, (B, q_dim, H, W, D), jnp.float32)
    key = jax.random.normal(kk, (B, kv_dim, H, W, D), jnp.float32)
    value = jax.random.normal(kv, (B, kv_dim, H, W, D), jnp.float32)

    pk = jax.random.split(k_par, 4)
    params = {
        'query_map': init_block_params(pk[0], q_dim, q_dim),
        'key_map': init_block_params(pk[1], kv_dim, kv_dim),
        'value_map': init_block_params(pk[2], kv_dim, kv_dim),
        'out_project': init_block_params(pk[3], q_dim, q_dim),
    }

    fwd = jax.jit(attention_layer)
    out = fwd(query, key, value, params)
    jax.block_until_ready(out)
    assert out.shape == (B, q_dim, H, W, D)
    assert bool(jnp.isfinite(out).all())
    print("KERNEL_OK")
</pallas_src>

<mosaic_0001>
module attributes {stable_mosaic.version = 11 : i64} {
  func.func @_attention_layer_kernel(%arg0: i32, %arg1: memref<1x4x512xf32, #tpu.memory_space<vmem>>, %arg2: memref<1x16x512xf32, #tpu.memory_space<vmem>>, %arg3: memref<1x16x512xf32, #tpu.memory_space<vmem>>, %arg4: memref<80x128xf32, #tpu.memory_space<vmem>>, %arg5: memref<6x512xf32, #tpu.memory_space<vmem>>, %arg6: memref<1x4x512xf32, #tpu.memory_space<vmem>>) attributes {dimension_semantics = [#tpu.dimension_semantics<parallel>], iteration_bounds = array<i64: 2>, scalar_prefetch = 0 : i64, scratch_operands = 0 : i64, tpu.core_type = #tpu.core_type<tc>, window_params = [{transform_indices = @transform_0, window_bounds = array<i64: 1, 4, 512>}, {transform_indices = @transform_1, window_bounds = array<i64: 1, 16, 512>}, {transform_indices = @transform_2, window_bounds = array<i64: 1, 16, 512>}, {pipeline_mode = #tpu.pipeline_mode<synchronous>, transform_indices = @transform_3, window_bounds = array<i64: 80, 128>}, {pipeline_mode = #tpu.pipeline_mode<synchronous>, transform_indices = @transform_4, window_bounds = array<i64: 6, 512>}, {transform_indices = @transform_5, window_bounds = array<i64: 1, 4, 512>}]} {
    %c0 = arith.constant 0 : index
    %c0_0 = arith.constant 0 : index
    %0 = vector.load %arg4[%c0, %c0_0] : memref<80x128xf32, #tpu.memory_space<vmem>>, vector<80x128xf32>
    %c0_1 = arith.constant 0 : index
    %c0_2 = arith.constant 0 : index
    %1 = vector.load %arg5[%c0_1, %c0_2] : memref<6x512xf32, #tpu.memory_space<vmem>>, vector<6x512xf32>
    %c0_3 = arith.constant 0 : index
    %c0_4 = arith.constant 0 : index
    %c0_5 = arith.constant 0 : index
    %2 = vector.load %arg1[%c0_3, %c0_4, %c0_5] : memref<1x4x512xf32, #tpu.memory_space<vmem>>, vector<1x4x512xf32>
    %3 = vector.shape_cast %2 : vector<1x4x512xf32> to vector<4x512xf32>
    %4 = vector.extract_strided_slice %0 {offsets = [0, 0], sizes = [4, 128], strides = [1, 1]} : vector<80x128xf32> to vector<4x128xf32>
    %5 = vector.extract_strided_slice %0 {offsets = [4, 0], sizes = [4, 128], strides = [1, 1]} : vector<80x128xf32> to vector<4x128xf32>
    %6 = vector.extract_strided_slice %4 {offsets = [0, 0], sizes = [4, 4], strides = [1, 1]} : vector<4x128xf32> to vector<4x4xf32>
    %7 = vector.extract_strided_slice %4 {offsets = [0, 4], sizes = [4, 27], strides = [1, 1]} : vector<4x128xf32> to vector<4x27xf32>
    %8 = vector.extract_strided_slice %4 {offsets = [0, 31], sizes = [4, 6], strides = [1, 1]} : vector<4x128xf32> to vector<4x6xf32>
    %9 = vector.extract_strided_slice %5 {offsets = [0, 0], sizes = [4, 4], strides = [1, 1]} : vector<4x128xf32> to vector<4x4xf32>
    %10 = vector.extract_strided_slice %5 {offsets = [0, 4], sizes = [4, 3], strides = [1, 1]} : vector<4x128xf32> to vector<4x3xf32>
    %11 = vector.extract_strided_slice %8 {offsets = [0, 0], sizes = [4, 1], strides = [1, 1]} : vector<4x6xf32> to vector<4x1xf32>
    %12 = vector.extract_strided_slice %8 {offsets = [0, 1], sizes = [4, 1], strides = [1, 1]} : vector<4x6xf32> to vector<4x1xf32>
    %13 = vector.extract_strided_slice %8 {offsets = [0, 2], sizes = [4, 1], strides = [1, 1]} : vector<4x6xf32> to vector<4x1xf32>
    %14 = vector.extract_strided_slice %8 {offsets = [0, 3], sizes = [4, 1], strides = [1, 1]} : vector<4x6xf32> to vector<4x1xf32>
    %15 = vector.extract_strided_slice %8 {offsets = [0, 4], sizes = [4, 1], strides = [1, 1]} : vector<4x6xf32> to vector<4x1xf32>
    %16 = vector.extract_strided_slice %8 {offsets = [0, 5], sizes = [4, 1], strides = [1, 1]} : vector<4x6xf32> to vector<4x1xf32>
    %17 = vector.extract_strided_slice %10 {offsets = [0, 0], sizes = [4, 1], strides = [1, 1]} : vector<4x3xf32> to vector<4x1xf32>
    %18 = vector.extract_strided_slice %10 {offsets = [0, 1], sizes = [4, 1], strides = [1, 1]} : vector<4x3xf32> to vector<4x1xf32>
    %19 = vector.extract_strided_slice %10 {offsets = [0, 2], sizes = [4, 1], strides = [1, 1]} : vector<4x3xf32> to vector<4x1xf32>
    %cst = arith.constant dense<0.000000e+00> : vector<4x512xf32>
    %20 = tpu.matmul %6, %3, %cst {dimension_numbers = #tpu.dot_dimension_numbers<[1], [0], [0], [1], [0, 0, 1, 1], [], []>} : vector<4x4xf32>, vector<4x512xf32>, vector<4x512xf32> -> vector<4x512xf32>
    %21 = vector.broadcast %11 : vector<4x1xf32> to vector<4x512xf32>
    %22 = arith.addf %20, %21 : vector<4x512xf32>
    %cst_6 = arith.constant dense<0.000000e+00> : vector<512xf32>
    %23 = vector.multi_reduction <add>, %22, %cst_6 [0] : vector<4x512xf32> to vector<512xf32>
    %24 = vector.shape_cast %23 : vector<512xf32> to vector<1x512xf32>
    %cst_7 = arith.constant 4.000000e+00 : f32
    %25 = vector.broadcast %cst_7 : f32 to vector<1x512xf32>
    %26 = arith.divf %24, %25 : vector<1x512xf32>
    %27 = vector.broadcast %26 : vector<1x512xf32> to vector<4x512xf32>
    %28 = arith.subf %22, %27 : vector<4x512xf32>
    %29 = arith.mulf %28, %28 : vector<4x512xf32>
    %cst_8 = arith.constant dense<0.000000e+00> : vector<512xf32>
    %30 = vector.multi_reduction <add>, %29, %cst_8 [0] : vector<4x512xf32> to vector<512xf32>
    %31 = vector.shape_cast %30 : vector<512xf32> to vector<1x512xf32>
    %cst_9 = arith.constant 4.000000e+00 : f32
    %32 = vector.broadcast %cst_9 : f32 to vector<1x512xf32>
    %33 = arith.divf %31, %32 : vector<1x512xf32>
    %cst_10 = arith.constant 9.99999997E-7 : f32
    %34 = vector.broadcast %cst_10 : f32 to vector<1x512xf32>
    %35 = arith.addf %33, %34 : vector<1x512xf32>
    %36 = math.rsqrt %35 : vector<1x512xf32>
    %37 = vector.broadcast %36 : vector<1x512xf32> to vector<4x512xf32>
    %38 = arith.mulf %28, %37 : vector<4x512xf32>
    %39 = vector.broadcast %12 : vector<4x1xf32> to vector<4x512xf32>
    %40 = arith.mulf %38, %39 : vector<4x512xf32>
    %41 = vector.broadcast %13 : vector<4x1xf32> to vector<4x512xf32>
    %42 = arith.addf %40, %41 : vector<4x512xf32>
    %cst_11 = arith.constant 5.000000e-01 : f32
    %43 = vector.broadcast %cst_11 : f32 to vector<4x512xf32>
    %44 = arith.mulf %43, %42 : vector<4x512xf32>
    %cst_12 = arith.constant 0.707106769 : f32
    %45 = vector.broadcast %cst_12 : f32 to vector<4x512xf32>
    %46 = arith.mulf %42, %45 : vector<4x512xf32>
    %47 = math.erf %46 : vector<4x512xf32>
    %cst_13 = arith.constant 1.000000e+00 : f32
    %48 = vector.broadcast %cst_13 : f32 to vector<4x512xf32>
    %49 = arith.addf %48, %47 : vector<4x512xf32>
    %50 = arith.mulf %44, %49 : vector<4x512xf32>
    %cst_14 = arith.constant 0.000000e+00 : f32
    %51 = vector.broadcast %cst_14 : f32 to vector<4x512xf32>
    %52 = vector.extract_strided_slice %1 {offsets = [1, 0], sizes = [1, 512], strides = [1, 1]} : vector<6x512xf32> to vector<1x512xf32>
    %c64_i32 = arith.constant 64 : i32
    %53 = tpu.dynamic_rotate %50 by %c64_i32 dim 1 : vector<4x512xf32>, i32 -> vector<4x512xf32>
    %54 = vector.broadcast %52 : vector<1x512xf32> to vector<4x512xf32>
    %55 = arith.mulf %53, %54 : vector<4x512xf32>
    %56 = vector.extract_strided_slice %1 {offsets = [3, 0], sizes = [1, 512], strides = [1, 1]} : vector<6x512xf32> to vector<1x512xf32>
    %c8_i32 = arith.constant 8 : i32
    %57 = tpu.dynamic_rotate %55 by %c8_i32 dim 1 : vector<4x512xf32>, i32 -> vector<4x512xf32>
    %58 = vector.broadcast %56 : vector<1x512xf32> to vector<4x512xf32>
    %59 = arith.mulf %57, %58 : vector<4x512xf32>
    %60 = vector.extract_strided_slice %1 {offsets = [5, 0], sizes = [1, 512], strides = [1, 1]} : vector<6x512xf32> to vector<1x512xf32>
    %c1_i32 = arith.constant 1 : i32
    %61 = tpu.dynamic_rotate %59 by %c1_i32 dim 1 : vector<4x512xf32>, i32 -> vector<4x512xf32>
    %62 = vector.broadcast %60 : vector<1x512xf32> to vector<4x512xf32>
    %63 = arith.mulf %61, %62 : vector<4x512xf32>
    %64 = vector.extract_strided_slice %7 {offsets = [0, 0], sizes = [4, 1], strides = [1, 1]} : vector<4x27xf32> to vector<4x1xf32>
    %65 = vector.broadcast %64 : vector<4x1xf32> to vector<4x512xf32>
    %66 = arith.mulf %65, %63 : vector<4x512xf32>
    %67 = arith.addf %51, %66 : vector<4x512xf32>
    %68 = vector.extract_strided_slice %7 {offsets = [0, 1], sizes = [4, 1], strides = [1, 1]} : vector<4x27xf32> to vector<4x1xf32>
    %69 = vector.broadcast %68 : vector<4x1xf32> to vector<4x512xf32>
    %70 = arith.mulf %69, %59 : vector<4x512xf32>
    %71 = arith.addf %67, %70 : vector<4x512xf32>
    %72 = vector.extract_strided_slice %1 {offsets = [4, 0], sizes = [1, 512], strides = [1, 1]} : vector<6x512xf32> to vector<1x512xf32>
    %c511_i32 = arith.constant 511 : i32
    %73 = tpu.dynamic_rotate %59 by %c511_i32 dim 1 : vector<4x512xf32>, i32 -> vector<4x512xf32>
    %74 = vector.broadcast %72 : vector<1x512xf32> to vector<4x512xf32>
    %75 = arith.mulf %73, %74 : vector<4x512xf32>
    %76 = vector.extract_strided_slice %7 {offsets = [0, 2], sizes = [4, 1], strides = [1, 1]} : vector<4x27xf32> to vector<4x1xf32>
    %77 = vector.broadcast %76 : vector<4x1xf32> to vector<4x512xf32>
    %78 = arith.mulf %77, %75 : vector<4x512xf32>
    %79 = arith.addf %71, %78 : vector<4x512xf32>
    %80 = vector.extract_strided_slice %1 {offsets = [5, 0], sizes = [1, 512], strides = [1, 1]} : vector<6x512xf32> to vector<1x512xf32>
    %c1_i32_15 = arith.constant 1 : i32
    %81 = tpu.dynamic_rotate %55 by %c1_i32_15 dim 1 : vector<4x512xf32>, i32 -> vector<4x512xf32>
    %82 = vector.broadcast %80 : vector<1x512xf32> to vector<4x512xf32>
    %83 = arith.mulf %81, %82 : vector<4x512xf32>
    %84 = vector.extract_strided_slice %7 {offsets = [0, 3], sizes = [4, 1], strides = [1, 1]} : vector<4x27xf32> to vector<4x1xf32>
    %85 = vector.broadcast %84 : vector<4x1xf32> to vector<4x512xf32>
    %86 = arith.mulf %85, %83 : vector<4x512xf32>
    %87 = arith.addf %79, %86 : vector<4x512xf32>
    %88 = vector.extract_strided_slice %7 {offsets = [0, 4], sizes = [4, 1], strides = [1, 1]} : vector<4x27xf32> to vector<4x1xf32>
    %89 = vector.broadcast %88 : vector<4x1xf32> to vector<4x512xf32>
    %90 = arith.mulf %89, %55 : vector<4x512xf32>
    %91 = arith.addf %87, %90 : vector<4x512xf32>
    %92 = vector.extract_strided_slice %1 {offsets = [4, 0], sizes = [1, 512], strides = [1, 1]} : vector<6x512xf32> to vector<1x512xf32>
    %c511_i32_16 = arith.constant 511 : i32
    %93 = tpu.dynamic_rotate %55 by %c511_i32_16 dim 1 : vector<4x512xf32>, i32 -> vector<4x512xf32>
    %94 = vector.broadcast %92 : vector<1x512xf32> to vector<4x512xf32>
    %95 = arith.mulf %93, %94 : vector<4x512xf32>
    %96 = vector.extract_strided_slice %7 {offsets = [0, 5], sizes = [4, 1], strides = [1, 1]} : vector<4x27xf32> to vector<4x1xf32>
    %97 = vector.broadcast %96 : vector<4x1xf32> to vector<4x512xf32>
    %98 = arith.mulf %97, %95 : vector<4x512xf32>
    %99 = arith.addf %91, %98 : vector<4x512xf32>
    %100 = vector.extract_strided_slice %1 {offsets = [2, 0], sizes = [1, 512], strides = [1, 1]} : vector<6x512xf32> to vector<1x512xf32>
    %c504_i32 = arith.constant 504 : i32
    %101 = tpu.dynamic_rotate %55 by %c504_i32 dim 1 : vector<4x512xf32>, i32 -> vector<4x512xf32>
    %102 = vector.broadcast %100 : vector<1x512xf32> to vector<4x512xf32>
    %103 = arith.mulf %101, %102 : vector<4x512xf32>
    %104 = vector.extract_strided_slice %1 {offsets = [5, 0], sizes = [1, 512], strides = [1, 1]} : vector<6x512xf32> to vector<1x512xf32>
    %c1_i32_17 = arith.constant 1 : i32
    %105 = tpu.dynamic_rotate %103 by %c1_i32_17 dim 1 : vector<4x512xf32>, i32 -> vector<4x512xf32>
    %106 = vector.broadcast %104 : vector<1x512xf32> to vector<4x512xf32>
    %107 = arith.mulf %105, %106 : vector<4x512xf32>
    %108 = vector.extract_strided_slice %7 {offsets = [0, 6], sizes = [4, 1], strides = [1, 1]} : vector<4x27xf32> to vector<4x1xf32>
    %109 = vector.broadcast %108 : vector<4x1xf32> to vector<4x512xf32>
    %110 = arith.mulf %109, %107 : vector<4x512xf32>
    %111 = arith.addf %99, %110 : vector<4x512xf32>
    %112 = vector.extract_strided_slice %7 {offsets = [0, 7], sizes = [4, 1], strides = [1, 1]} : vector<4x27xf32> to vector<4x1xf32>
    %113 = vector.broadcast %112 : vector<4x1xf32> to vector<4x512xf32>
    %114 = arith.mulf %113, %103 : vector<4x512xf32>
    %115 = arith.addf %111, %114 : vector<4x512xf32>
    %116 = vector.extract_strided_slice %1 {offsets = [4, 0], sizes = [1, 512], strides = [1, 1]} : vector<6x512xf32> to vector<1x512xf32>
    %c511_i32_18 = arith.constant 511 : i32
    %117 = tpu.dynamic_rotate %103 by %c511_i32_18 dim 1 : vector<4x512xf32>, i32 -> vector<4x512xf32>
    %118 = vector.broadcast %116 : vector<1x512xf32> to vector<4x512xf32>
    %119 = arith.mulf %117, %118 : vector<4x512xf32>
    %120 = vector.extract_strided_slice %7 {offsets = [0, 8], sizes = [4, 1], strides = [1, 1]} : vector<4x27xf32> to vector<4x1xf32>
    %121 = vector.broadcast %120 : vector<4x1xf32> to vector<4x512xf32>
    %122 = arith.mulf %121, %119 : vector<4x512xf32>
    %123 = arith.addf %115, %122 : vector<4x512xf32>
    %124 = vector.extract_strided_slice %1 {offsets = [3, 0], sizes = [1, 512], strides = [1, 1]} : vector<6x512xf32> to vector<1x512xf32>
    %c8_i32_19 = arith.constant 8 : i32
    %125 = tpu.dynamic_rotate %50 by %c8_i32_19 dim 1 : vector<4x512xf32>, i32 -> vector<4x512xf32>
    %126 = vector.broadcast %124 : vector<1x512xf32> to vector<4x512xf32>
    %127 = arith.mulf %125, %126 : vector<4x512xf32>
    %128 = vector.extract_strided_slice %1 {offsets = [5, 0], sizes = [1, 512], strides = [1, 1]} : vector<6x512xf32> to vector<1x512xf32>
    %c1_i32_20 = arith.constant 1 : i32
    %129 = tpu.dynamic_rotate %127 by %c1_i32_20 dim 1 : vector<4x512xf32>, i32 -> vector<4x512xf32>
    %130 = vector.broadcast %128 : vector<1x512xf32> to vector<4x512xf32>
    %131 = arith.mulf %129, %130 : vector<4x512xf32>
    %132 = vector.extract_strided_slice %7 {offsets = [0, 9], sizes = [4, 1], strides = [1, 1]} : vector<4x27xf32> to vector<4x1xf32>
    %133 = vector.broadcast %132 : vector<4x1xf32> to vector<4x512xf32>
    %134 = arith.mulf %133, %131 : vector<4x512xf32>
    %135 = arith.addf %123, %134 : vector<4x512xf32>
    %136 = vector.extract_strided_slice %7 {offsets = [0, 10], sizes = [4, 1], strides = [1, 1]} : vector<4x27xf32> to vector<4x1xf32>
    %137 = vector.broadcast %136 : vector<4x1xf32> to vector<4x512xf32>
    %138 = arith.mulf %137, %127 : vector<4x512xf32>
    %139 = arith.addf %135, %138 : vector<4x512xf32>
    %140 = vector.extract_strided_slice %1 {offsets = [4, 0], sizes = [1, 512], strides = [1, 1]} : vector<6x512xf32> to vector<1x512xf32>
    %c511_i32_21 = arith.constant 511 : i32
    %141 = tpu.dynamic_rotate %127 by %c511_i32_21 dim 1 : vector<4x512xf32>, i32 -> vector<4x512xf32>
    %142 = vector.broadcast %140 : vector<1x512xf32> to vector<4x512xf32>
    %143 = arith.mulf %141, %142 : vector<4x512xf32>
    %144 = vector.extract_strided_slice %7 {offsets = [0, 11], sizes = [4, 1], strides = [1, 1]} : vector<4x27xf32> to vector<4x1xf32>
    %145 = vector.broadcast %144 : vector<4x1xf32> to vector<4x512xf32>
    %146 = arith.mulf %145, %143 : vector<4x512xf32>
    %147 = arith.addf %139, %146 : vector<4x512xf32>
    %148 = vector.extract_strided_slice %1 {offsets = [5, 0], sizes = [1, 512], strides = [1, 1]} : vector<6x512xf32> to vector<1x512xf32>
    %c1_i32_22 = arith.constant 1 : i32
    %149 = tpu.dynamic_rotate %50 by %c1_i32_22 dim 1 : vector<4x512xf32>, i32 -> vector<4x512xf32>
    %150 = vector.broadcast %148 : vector<1x512xf32> to vector<4x512xf32>
    %151 = arith.mulf %149, %150 : vector<4x512xf32>
    %152 = vector.extract_strided_slice %7 {offsets = [0, 12], sizes = [4, 1], strides = [1, 1]} : vector<4x27xf32> to vector<4x1xf32>
    %153 = vector.broadcast %152 : vector<4x1xf32> to vector<4x512xf32>
    %154 = arith.mulf %153, %151 : vector<4x512xf32>
    %155 = arith.addf %147, %154 : vector<4x512xf32>
    %156 = vector.extract_strided_slice %7 {offsets = [0, 13], sizes = [4, 1], strides = [1, 1]} : vector<4x27xf32> to vector<4x1xf32>
    %157 = vector.broadcast %156 : vector<4x1xf32> to vector<4x512xf32>
    %158 = arith.mulf %157, %50 : vector<4x512xf32>
    %159 = arith.addf %155, %158 : vector<4x512xf32>
    %160 = vector.extract_strided_slice %1 {offsets = [4, 0], sizes = [1, 512], strides = [1, 1]} : vector<6x512xf32> to vector<1x512xf32>
    %c511_i32_23 = arith.constant 511 : i32
    %161 = tpu.dynamic_rotate %50 by %c511_i32_23 dim 1 : vector<4x512xf32>, i32 -> vector<4x512xf32>
    %162 = vector.broadcast %160 : vector<1x512xf32> to vector<4x512xf32>
    %163 = arith.mulf %161, %162 : vector<4x512xf32>
    %164 = vector.extract_strided_slice %7 {offsets = [0, 14], sizes = [4, 1], strides = [1, 1]} : vector<4x27xf32> to vector<4x1xf32>
    %165 = vector.broadcast %164 : vector<4x1xf32> to vector<4x512xf32>
    %166 = arith.mulf %165, %163 : vector<4x512xf32>
    %167 = arith.addf %159, %166 : vector<4x512xf32>
    %168 = vector.extract_strided_slice %1 {offsets = [2, 0], sizes = [1, 512], strides = [1, 1]} : vector<6x512xf32> to vector<1x512xf32>
    %c504_i32_24 = arith.constant 504 : i32
    %169 = tpu.dynamic_rotate %50 by %c504_i32_24 dim 1 : vector<4x512xf32>, i32 -> vector<4x512xf32>
    %170 = vector.broadcast %168 : vector<1x512xf32> to vector<4x512xf32>
    %171 = arith.mulf %169, %170 : vector<4x512xf32>
    %172 = vector.extract_strided_slice %1 {offsets = [5, 0], sizes = [1, 512], strides = [1, 1]} : vector<6x512xf32> to vector<1x512xf32>
    %c1_i32_25 = arith.constant 1 : i32
    %173 = tpu.dynamic_rotate %171 by %c1_i32_25 dim 1 : vector<4x512xf32>, i32 -> vector<4x512xf32>
    %174 = vector.broadcast %172 : vector<1x512xf32> to vector<4x512xf32>
    %175 = arith.mulf %173, %174 : vector<4x512xf32>
    %176 = vector.extract_strided_slice %7 {offsets = [0, 15], sizes = [4, 1], strides = [1, 1]} : vector<4x27xf32> to vector<4x1xf32>
    %177 = vector.broadcast %176 : vector<4x1xf32> to vector<4x512xf32>
    %178 = arith.mulf %177, %175 : vector<4x512xf32>
    %179 = arith.addf %167, %178 : vector<4x512xf32>
    %180 = vector.extract_strided_slice %7 {offsets = [0, 16], sizes = [4, 1], strides = [1, 1]} : vector<4x27xf32> to vector<4x1xf32>
    %181 = vector.broadcast %180 : vector<4x1xf32> to vector<4x512xf32>
    %182 = arith.mulf %181, %171 : vector<4x512xf32>
    %183 = arith.addf %179, %182 : vector<4x512xf32>
    %184 = vector.extract_strided_slice %1 {offsets = [4, 0], sizes = [1, 512], strides = [1, 1]} : vector<6x512xf32> to vector<1x512xf32>
    %c511_i32_26 = arith.constant 511 : i32
    %185 = tpu.dynamic_rotate %171 by %c511_i32_26 dim 1 : vector<4x512xf32>, i32 -> vector<4x512xf32>
    %186 = vector.broadcast %184 : vector<1x512xf32> to vector<4x512xf32>
    %187 = arith.mulf %185, %186 : vector<4x512xf32>
    %188 = vector.extract_strided_slice %7 {offsets = [0, 17], sizes = [4, 1], strides = [1, 1]} : vector<4x27xf32> to vector<4x1xf32>
    %189 = vector.broadcast %188 : vector<4x1xf32> to vector<4x512xf32>
    %190 = arith.mulf %189, %187 : vector<4x512xf32>
    %191 = arith.addf %183, %190 : vector<4x512xf32>
    %192 = vector.extract_strided_slice %1 {offsets = [0, 0], sizes = [1, 512], strides = [1, 1]} : vector<6x512xf32> to vector<1x512xf32>
    %c448_i32 = arith.constant 448 : i32
    %193 = tpu.dynamic_rotate %50 by %c448_i32 dim 1 : vector<4x512xf32>, i32 -> vector<4x512xf32>
    %194 = vector.broadcast %192 : vector<1x512xf32> to vector<4x512xf32>
    %195 = arith.mulf %193, %194 : vector<4x512xf32>
    %196 = vector.extract_strided_slice %1 {offsets = [3, 0], sizes = [1, 512], strides = [1, 1]} : vector<6x512xf32> to vector<1x512xf32>
    %c8_i32_27 = arith.constant 8 : i32
    %197 = tpu.dynamic_rotate %195 by %c8_i32_27 dim 1 : vector<4x512xf32>, i32 -> vector<4x512xf32>
    %198 = vector.broadcast %196 : vector<1x512xf32> to vector<4x512xf32>
    %199 = arith.mulf %197, %198 : vector<4x512xf32>
    %200 = vector.extract_strided_slice %1 {offsets = [5, 0], sizes = [1, 512], strides = [1, 1]} : vector<6x512xf32> to vector<1x512xf32>
    %c1_i32_28 = arith.constant 1 : i32
    %201 = tpu.dynamic_rotate %199 by %c1_i32_28 dim 1 : vector<4x512xf32>, i32 -> vector<4x512xf32>
    %202 = vector.broadcast %200 : vector<1x512xf32> to vector<4x512xf32>
    %203 = arith.mulf %201, %202 : vector<4x512xf32>
    %204 = vector.extract_strided_slice %7 {offsets = [0, 18], sizes = [4, 1], strides = [1, 1]} : vector<4x27xf32> to vector<4x1xf32>
    %205 = vector.broadcast %204 : vector<4x1xf32> to vector<4x512xf32>
    %206 = arith.mulf %205, %203 : vector<4x512xf32>
    %207 = arith.addf %191, %206 : vector<4x512xf32>
    %208 = vector.extract_strided_slice %7 {offsets = [0, 19], sizes = [4, 1], strides = [1, 1]} : vector<4x27xf32> to vector<4x1xf32>
    %209 = vector.broadcast %208 : vector<4x1xf32> to vector<4x512xf32>
    %210 = arith.mulf %209, %199 : vector<4x512xf32>
    %211 = arith.addf %207, %210 : vector<4x512xf32>
    %212 = vector.extract_strided_slice %1 {offsets = [4, 0], sizes = [1, 512], strides = [1, 1]} : vector<6x512xf32> to vector<1x512xf32>
    %c511_i32_29 = arith.constant 511 : i32
    %213 = tpu.dynamic_rotate %199 by %c511_i32_29 dim 1 : vector<4x512xf32>, i32 -> vector<4x512xf32>
    %214 = vector.broadcast %212 : vector<1x512xf32> to vector<4x512xf32>
    %215 = arith.mulf %213, %214 : vector<4x512xf32>
    %216 = vector.extract_strided_slice %7 {offsets = [0, 20], sizes = [4, 1], strides = [1, 1]} : vector<4x27xf32> to vector<4x1xf32>
    %217 = vector.broadcast %216 : vector<4x1xf32> to vector<4x512xf32>
    %218 = arith.mulf %217, %215 : vector<4x512xf32>
    %219 = arith.addf %211, %218 : vector<4x512xf32>
    %220 = vector.extract_strided_slice %1 {offsets = [5, 0], sizes = [1, 512], strides = [1, 1]} : vector<6x512xf32> to vector<1x512xf32>
    %c1_i32_30 = arith.constant 1 : i32
    %221 = tpu.dynamic_rotate %195 by %c1_i32_30 dim 1 : vector<4x512xf32>, i32 -> vector<4x512xf32>
    %222 = vector.broadcast %220 : vector<1x512xf32> to vector<4x512xf32>
    %223 = arith.mulf %221, %222 : vector<4x512xf32>
    %224 = vector.extract_strided_slice %7 {offsets = [0, 21], sizes = [4, 1], strides = [1, 1]} : vector<4x27xf32> to vector<4x1xf32>
    %225 = vector.broadcast %224 : vector<4x1xf32> to vector<4x512xf32>
    %226 = arith.mulf %225, %223 : vector<4x512xf32>
    %227 = arith.addf %219, %226 : vector<4x512xf32>
    %228 = vector.extract_strided_slice %7 {offsets = [0, 22], sizes = [4, 1], strides = [1, 1]} : vector<4x27xf32> to vector<4x1xf32>
    %229 = vector.broadcast %228 : vector<4x1xf32> to vector<4x512xf32>
    %230 = arith.mulf %229, %195 : vector<4x512xf32>
    %231 = arith.addf %227, %230 : vector<4x512xf32>
    %232 = vector.extract_strided_slice %1 {offsets = [4, 0], sizes = [1, 512], strides = [1, 1]} : vector<6x512xf32> to vector<1x512xf32>
    %c511_i32_31 = arith.constant 511 : i32
    %233 = tpu.dynamic_rotate %195 by %c511_i32_31 dim 1 : vector<4x512xf32>, i32 -> vector<4x512xf32>
    %234 = vector.broadcast %232 : vector<1x512xf32> to vector<4x512xf32>
    %235 = arith.mulf %233, %234 : vector<4x512xf32>
    %236 = vector.extract_strided_slice %7 {offsets = [0, 23], sizes = [4, 1], strides = [1, 1]} : vector<4x27xf32> to vector<4x1xf32>
    %237 = vector.broadcast %236 : vector<4x1xf32> to vector<4x512xf32>
    %238 = arith.mulf %237, %235 : vector<4x512xf32>
    %239 = arith.addf %231, %238 : vector<4x512xf32>
    %240 = vector.extract_strided_slice %1 {offsets = [2, 0], sizes = [1, 512], strides = [1, 1]} : vector<6x512xf32> to vector<1x512xf32>
    %c504_i32_32 = arith.constant 504 : i32
    %241 = tpu.dynamic_rotate %195 by %c504_i32_32 dim 1 : vector<4x512xf32>, i32 -> vector<4x512xf32>
    %242 = vector.broadcast %240 : vector<1x512xf32> to vector<4x512xf32>
    %243 = arith.mulf %241, %242 : vector<4x512xf32>
    %244 = vector.extract_strided_slice %1 {offsets = [5, 0], sizes = [1, 512], strides = [1, 1]} : vector<6x512xf32> to vector<1x512xf32>
    %c1_i32_33 = arith.constant 1 : i32
    %245 = tpu.dynamic_rotate %243 by %c1_i32_33 dim 1 : vector<4x512xf32>, i32 -> vector<4x512xf32>
    %246 = vector.broadcast %244 : vector<1x512xf32> to vector<4x512xf32>
    %247 = arith.mulf %245, %246 : vector<4x512xf32>
    %248 = vector.extract_strided_slice %7 {offsets = [0, 24], sizes = [4, 1], strides = [1, 1]} : vector<4x27xf32> to vector<4x1xf32>
    %249 = vector.broadcast %248 : vector<4x1xf32> to vector<4x512xf32>
    %250 = arith.mulf %249, %247 : vector<4x512xf32>
    %251 = arith.addf %239, %250 : vector<4x512xf32>
    %252 = vector.extract_strided_slice %7 {offsets = [0, 25], sizes = [4, 1], strides = [1, 1]} : vector<4x27xf32> to vector<4x1xf32>
    %253 = vector.broadcast %252 : vector<4x1xf32> to vector<4x512xf32>
    %254 = arith.mulf %253, %243 : vector<4x512xf32>
    %255 = arith.addf %251, %254 : vector<4x512xf32>
    %256 = vector.extract_strided_slice %1 {offsets = [4, 0], sizes = [1, 512], strides = [1, 1]} : vector<6x512xf32> to vector<1x512xf32>
    %c511_i32_34 = arith.constant 511 : i32
    %257 = tpu.dynamic_rotate %243 by %c511_i32_34 dim 1 : vector<4x512xf32>, i32 -> vector<4x512xf32>
    %258 = vector.broadcast %256 : vector<1x512xf32> to vector<4x512xf32>
    %259 = arith.mulf %257, %258 : vector<4x512xf32>
    %260 = vector.extract_strided_slice %7 {offsets = [0, 26], sizes = [4, 1], strides = [1, 1]} : vector<4x27xf32> to vector<4x1xf32>
    %261 = vector.broadcast %260 : vector<4x1xf32> to vector<4x512xf32>
    %262 = arith.mulf %261, %259 : vector<4x512xf32>
    %263 = arith.addf %255, %262 : vector<4x512xf32>
    %264 = vector.broadcast %14 : vector<4x1xf32> to vector<4x512xf32>
    %265 = arith.addf %263, %264 : vector<4x512xf32>
    %cst_35 = arith.constant dense<0.000000e+00> : vector<512xf32>
    %266 = vector.multi_reduction <add>, %265, %cst_35 [0] : vector<4x512xf32> to vector<512xf32>
    %267 = vector.shape_cast %266 : vector<512xf32> to vector<1x512xf32>
    %cst_36 = arith.constant 4.000000e+00 : f32
    %268 = vector.broadcast %cst_36 : f32 to vector<1x512xf32>
    %269 = arith.divf %267, %268 : vector<1x512xf32>
    %270 = vector.broadcast %269 : vector<1x512xf32> to vector<4x512xf32>
    %271 = arith.subf %265, %270 : vector<4x512xf32>
    %272 = arith.mulf %271, %271 : vector<4x512xf32>
    %cst_37 = arith.constant dense<0.000000e+00> : vector<512xf32>
    %273 = vector.multi_reduction <add>, %272, %cst_37 [0] : vector<4x512xf32> to vector<512xf32>
    %274 = vector.shape_cast %273 : vector<512xf32> to vector<1x512xf32>
    %cst_38 = arith.constant 4.000000e+00 : f32
    %275 = vector.broadcast %cst_38 : f32 to vector<1x512xf32>
    %276 = arith.divf %274, %275 : vector<1x512xf32>
    %cst_39 = arith.constant 9.99999997E-7 : f32
    %277 = vector.broadcast %cst_39 : f32 to vector<1x512xf32>
    %278 = arith.addf %276, %277 : vector<1x512xf32>
    %279 = math.rsqrt %278 : vector<1x512xf32>
    %280 = vector.broadcast %279 : vector<1x512xf32> to vector<4x512xf32>
    %281 = arith.mulf %271, %280 : vector<4x512xf32>
    %282 = vector.broadcast %15 : vector<4x1xf32> to vector<4x512xf32>
    %283 = arith.mulf %281, %282 : vector<4x512xf32>
    %284 = vector.broadcast %16 : vector<4x1xf32> to vector<4x512xf32>
    %285 = arith.addf %283, %284 : vector<4x512xf32>
    %cst_40 = arith.constant 5.000000e-01 : f32
    %286 = vector.broadcast %cst_40 : f32 to vector<4x512xf32>
    %287 = arith.mulf %286, %285 : vector<4x512xf32>
    %cst_41 = arith.constant 0.707106769 : f32
    %288 = vector.broadcast %cst_41 : f32 to vector<4x512xf32>
    %289 = arith.mulf %285, %288 : vector<4x512xf32>
    %290 = math.erf %289 : vector<4x512xf32>
    %cst_42 = arith.constant 1.000000e+00 : f32
    %291 = vector.broadcast %cst_42 : f32 to vector<4x512xf32>
    %292 = arith.addf %291, %290 : vector<4x512xf32>
    %293 = arith.mulf %287, %292 : vector<4x512xf32>
    %cst_43 = arith.constant dense<0.000000e+00> : vector<4x512xf32>
    %294 = tpu.matmul %9, %293, %cst_43 {dimension_numbers = #tpu.dot_dimension_numbers<[1], [0], [0], [1], [0, 0, 1, 1], [], []>} : vector<4x4xf32>, vector<4x512xf32>, vector<4x512xf32> -> vector<4x512xf32>
    %295 = vector.broadcast %17 : vector<4x1xf32> to vector<4x512xf32>
    %296 = arith.addf %294, %295 : vector<4x512xf32>
    %cst_44 = arith.constant dense<0.000000e+00> : vector<512xf32>
    %297 = vector.multi_reduction <add>, %296, %cst_44 [0] : vector<4x512xf32> to vector<512xf32>
    %298 = vector.shape_cast %297 : vector<512xf32> to vector<1x512xf32>
    %cst_45 = arith.constant 4.000000e+00 : f32
    %299 = vector.broadcast %cst_45 : f32 to vector<1x512xf32>
    %300 = arith.divf %298, %299 : vector<1x512xf32>
    %301 = vector.broadcast %300 : vector<1x512xf32> to vector<4x512xf32>
    %302 = arith.subf %296, %301 : vector<4x512xf32>
    %303 = arith.mulf %302, %302 : vector<4x512xf32>
    %cst_46 = arith.constant dense<0.000000e+00> : vector<512xf32>
    %304 = vector.multi_reduction <add>, %303, %cst_46 [0] : vector<4x512xf32> to vector<512xf32>
    %305 = vector.shape_cast %304 : vector<512xf32> to vector<1x512xf32>
    %cst_47 = arith.constant 4.000000e+00 : f32
    %306 = vector.broadcast %cst_47 : f32 to vector<1x512xf32>
    %307 = arith.divf %305, %306 : vector<1x512xf32>
    %cst_48 = arith.constant 9.99999997E-7 : f32
    %308 = vector.broadcast %cst_48 : f32 to vector<1x512xf32>
    %309 = arith.addf %307, %308 : vector<1x512xf32>
    %310 = math.rsqrt %309 : vector<1x512xf32>
    %311 = vector.broadcast %310 : vector<1x512xf32> to vector<4x512xf32>
    %312 = arith.mulf %302, %311 : vector<4x512xf32>
    %313 = vector.broadcast %18 : vector<4x1xf32> to vector<4x512xf32>
    %314 = arith.mulf %312, %313 : vector<4x512xf32>
    %315 = vector.broadcast %19 : vector<4x1xf32> to vector<4x512xf32>
    %316 = arith.addf %314, %315 : vector<4x512xf32>
    %c0_49 = arith.constant 0 : index
    %c0_50 = arith.constant 0 : index
    %c0_51 = arith.constant 0 : index
    %317 = vector.load %arg2[%c0_49, %c0_50, %c0_51] : memref<1x16x512xf32, #tpu.memory_space<vmem>>, vector<1x16x512xf32>
    %318 = vector.shape_cast %317 : vector<1x16x512xf32> to vector<16x512xf32>
    %319 = vector.extract_strided_slice %0 {offsets = [8, 0], sizes = [16, 128], strides = [1, 1]} : vector<80x128xf32> to vector<16x128xf32>
    %320 = vector.extract_strided_slice %0 {offsets = [24, 0], sizes = [16, 128], strides = [1, 1]} : vector<80x128xf32> to vector<16x128xf32>
    %321 = vector.extract_strided_slice %319 {offsets = [0, 0], sizes = [16, 16], strides = [1, 1]} : vector<16x128xf32> to vector<16x16xf32>
    %322 = vector.extract_strided_slice %319 {offsets = [0, 16], sizes = [16, 27], strides = [1, 1]} : vector<16x128xf32> to vector<16x27xf32>
    %323 = vector.extract_strided_slice %319 {offsets = [0, 43], sizes = [16, 6], strides = [1, 1]} : vector<16x128xf32> to vector<16x6xf32>
    %324 = vector.extract_strided_slice %320 {offsets = [0, 0], sizes = [16, 16], strides = [1, 1]} : vector<16x128xf32> to vector<16x16xf32>
    %325 = vector.extract_strided_slice %320 {offsets = [0, 16], sizes = [16, 3], strides = [1, 1]} : vector<16x128xf32> to vector<16x3xf32>
    %326 = vector.extract_strided_slice %323 {offsets = [0, 0], sizes = [16, 1], strides = [1, 1]} : vector<16x6xf32> to vector<16x1xf32>
    %327 = vector.extract_strided_slice %323 {offsets = [0, 1], sizes = [16, 1], strides = [1, 1]} : vector<16x6xf32> to vector<16x1xf32>
    %328 = vector.extract_strided_slice %323 {offsets = [0, 2], sizes = [16, 1], strides = [1, 1]} : vector<16x6xf32> to vector<16x1xf32>
    %329 = vector.extract_strided_slice %323 {offsets = [0, 3], sizes = [16, 1], strides = [1, 1]} : vector<16x6xf32> to vector<16x1xf32>
    %330 = vector.extract_strided_slice %323 {offsets = [0, 4], sizes = [16, 1], strides = [1, 1]} : vector<16x6xf32> to vector<16x1xf32>
    %331 = vector.extract_strided_slice %323 {offsets = [0, 5], sizes = [16, 1], strides = [1, 1]} : vector<16x6xf32> to vector<16x1xf32>
    %332 = vector.extract_strided_slice %325 {offsets = [0, 0], sizes = [16, 1], strides = [1, 1]} : vector<16x3xf32> to vector<16x1xf32>
    %333 = vector.extract_strided_slice %325 {offsets = [0, 1], sizes = [16, 1], strides = [1, 1]} : vector<16x3xf32> to vector<16x1xf32>
    %334 = vector.extract_strided_slice %325 {offsets = [0, 2], sizes = [16, 1], strides = [1, 1]} : vector<16x3xf32> to vector<16x1xf32>
    %cst_52 = arith.constant dense<0.000000e+00> : vector<16x512xf32>
    %335 = tpu.matmul %321, %318, %cst_52 {dimension_numbers = #tpu.dot_dimension_numbers<[1], [0], [0], [1], [0, 0, 1, 1], [], []>} : vector<16x16xf32>, vector<16x512xf32>, vector<16x512xf32> -> vector<16x512xf32>
    %336 = vector.broadcast %326 : vector<16x1xf32> to vector<16x512xf32>
    %337 = arith.addf %335, %336 : vector<16x512xf32>
    %cst_53 = arith.constant dense<0.000000e+00> : vector<512xf32>
    %338 = vector.multi_reduction <add>, %337, %cst_53 [0] : vector<16x512xf32> to vector<512xf32>
    %339 = vector.shape_cast %338 : vector<512xf32> to vector<1x512xf32>
    %cst_54 = arith.constant 1.600000e+01 : f32
    %340 = vector.broadcast %cst_54 : f32 to vector<1x512xf32>
    %341 = arith.divf %339, %340 : vector<1x512xf32>
    %342 = vector.broadcast %341 : vector<1x512xf32> to vector<16x512xf32>
    %343 = arith.subf %337, %342 : vector<16x512xf32>
    %344 = arith.mulf %343, %343 : vector<16x512xf32>
    %cst_55 = arith.constant dense<0.000000e+00> : vector<512xf32>
    %345 = vector.multi_reduction <add>, %344, %cst_55 [0] : vector<16x512xf32> to vector<512xf32>
    %346 = vector.shape_cast %345 : vector<512xf32> to vector<1x512xf32>
    %cst_56 = arith.constant 1.600000e+01 : f32
    %347 = vector.broadcast %cst_56 : f32 to vector<1x512xf32>
    %348 = arith.divf %346, %347 : vector<1x512xf32>
    %cst_57 = arith.constant 9.99999997E-7 : f32
    %349 = vector.broadcast %cst_57 : f32 to vector<1x512xf32>
    %350 = arith.addf %348, %349 : vector<1x512xf32>
    %351 = math.rsqrt %350 : vector<1x512xf32>
    %352 = vector.broadcast %351 : vector<1x512xf32> to vector<16x512xf32>
    %353 = arith.mulf %343, %352 : vector<16x512xf32>
    %354 = vector.broadcast %327 : vector<16x1xf32> to vector<16x512xf32>
    %355 = arith.mulf %353, %354 : vector<16x512xf32>
    %356 = vector.broadcast %328 : vector<16x1xf32> to vector<16x512xf32>
    %357 = arith.addf %355, %356 : vector<16x512xf32>
    %cst_58 = arith.constant 5.000000e-01 : f32
    %358 = vector.broadcast %cst_58 : f32 to vector<16x512xf32>
    %359 = arith.mulf %358, %357 : vector<16x512xf32>
    %cst_59 = arith.constant 0.707106769 : f32
    %360 = vector.broadcast %cst_59 : f32 to vector<16x512xf32>
    %361 = arith.mulf %357, %360 : vector<16x512xf32>
    %362 = math.erf %361 : vector<16x512xf32>
    %cst_60 = arith.constant 1.000000e+00 : f32
    %363 = vector.broadcast %cst_60 : f32 to vector<16x512xf32>
    %364 = arith.addf %363, %362 : vector<16x512xf32>
    %365 = arith.mulf %359, %364 : vector<16x512xf32>
    %cst_61 = arith.constant 0.000000e+00 : f32
    %366 = vector.broadcast %cst_61 : f32 to vector<16x512xf32>
    %367 = vector.extract_strided_slice %1 {offsets = [1, 0], sizes = [1, 512], strides = [1, 1]} : vector<6x512xf32> to vector<1x512xf32>
    %c64_i32_62 = arith.constant 64 : i32
    %368 = tpu.dynamic_rotate %365 by %c64_i32_62 dim 1 : vector<16x512xf32>, i32 -> vector<16x512xf32>
    %369 = vector.broadcast %367 : vector<1x512xf32> to vector<16x512xf32>
    %370 = arith.mulf %368, %369 : vector<16x512xf32>
    %371 = vector.extract_strided_slice %1 {offsets = [3, 0], sizes = [1, 512], strides = [1, 1]} : vector<6x512xf32> to vector<1x512xf32>
    %c8_i32_63 = arith.constant 8 : i32
    %372 = tpu.dynamic_rotate %370 by %c8_i32_63 dim 1 : vector<16x512xf32>, i32 -> vector<16x512xf32>
    %373 = vector.broadcast %371 : vector<1x512xf32> to vector<16x512xf32>
    %374 = arith.mulf %372, %373 : vector<16x512xf32>
    %375 = vector.extract_strided_slice %1 {offsets = [5, 0], sizes = [1, 512], strides = [1, 1]} : vector<6x512xf32> to vector<1x512xf32>
    %c1_i32_64 = arith.constant 1 : i32
    %376 = tpu.dynamic_rotate %374 by %c1_i32_64 dim 1 : vector<16x512xf32>, i32 -> vector<16x512xf32>
    %377 = vector.broadcast %375 : vector<1x512xf32> to vector<16x512xf32>
    %378 = arith.mulf %376, %377 : vector<16x512xf32>
    %379 = vector.extract_strided_slice %322 {offsets = [0, 0], sizes = [16, 1], strides = [1, 1]} : vector<16x27xf32> to vector<16x1xf32>
    %380 = vector.broadcast %379 : vector<16x1xf32> to vector<16x512xf32>
    %381 = arith.mulf %380, %378 : vector<16x512xf32>
    %382 = arith.addf %366, %381 : vector<16x512xf32>
    %383 = vector.extract_strided_slice %322 {offsets = [0, 1], sizes = [16, 1], strides = [1, 1]} : vector<16x27xf32> to vector<16x1xf32>
    %384 = vector.broadcast %383 : vector<16x1xf32> to vector<16x512xf32>
    %385 = arith.mulf %384, %374 : vector<16x512xf32>
    %386 = arith.addf %382, %385 : vector<16x512xf32>
    %387 = vector.extract_strided_slice %1 {offsets = [4, 0], sizes = [1, 512], strides = [1, 1]} : vector<6x512xf32> to vector<1x512xf32>
    %c511_i32_65 = arith.constant 511 : i32
    %388 = tpu.dynamic_rotate %374 by %c511_i32_65 dim 1 : vector<16x512xf32>, i32 -> vector<16x512xf32>
    %389 = vector.broadcast %387 : vector<1x512xf32> to vector<16x512xf32>
    %390 = arith.mulf %388, %389 : vector<16x512xf32>
    %391 = vector.extract_strided_slice %322 {offsets = [0, 2], sizes = [16, 1], strides = [1, 1]} : vector<16x27xf32> to vector<16x1xf32>
    %392 = vector.broadcast %391 : vector<16x1xf32> to vector<16x512xf32>
    %393 = arith.mulf %392, %390 : vector<16x512xf32>
    %394 = arith.addf %386, %393 : vector<16x512xf32>
    %395 = vector.extract_strided_slice %1 {offsets = [5, 0], sizes = [1, 512], strides = [1, 1]} : vector<6x512xf32> to vector<1x512xf32>
    %c1_i32_66 = arith.constant 1 : i32
    %396 = tpu.dynamic_rotate %370 by %c1_i32_66 dim 1 : vector<16x512xf32>, i32 -> vector<16x512xf32>
    %397 = vector.broadcast %395 : vector<1x512xf32> to vector<16x512xf32>
    %398 = arith.mulf %396, %397 : vector<16x512xf32>
    %399 = vector.extract_strided_slice %322 {offsets = [0, 3], sizes = [16, 1], strides = [1, 1]} : vector<16x27xf32> to vector<16x1xf32>
    %400 = vector.broadcast %399 : vector<16x1xf32> to vector<16x512xf32>
    %401 = arith.mulf %400, %398 : vector<16x512xf32>
    %402 = arith.addf %394, %401 : vector<16x512xf32>
    %403 = vector.extract_strided_slice %322 {offsets = [0, 4], sizes = [16, 1], strides = [1, 1]} : vector<16x27xf32> to vector<16x1xf32>
    %404 = vector.broadcast %403 : vector<16x1xf32> to vector<16x512xf32>
    %405 = arith.mulf %404, %370 : vector<16x512xf32>
    %406 = arith.addf %402, %405 : vector<16x512xf32>
    %407 = vector.extract_strided_slice %1 {offsets = [4, 0], sizes = [1, 512], strides = [1, 1]} : vector<6x512xf32> to vector<1x512xf32>
    %c511_i32_67 = arith.constant 511 : i32
    %408 = tpu.dynamic_rotate %370 by %c511_i32_67 dim 1 : vector<16x512xf32>, i32 -> vector<16x512xf32>
    %409 = vector.broadcast %407 : vector<1x512xf32> to vector<16x512xf32>
    %410 = arith.mulf %408, %409 : vector<16x512xf32>
    %411 = vector.extract_strided_slice %322 {offsets = [0, 5], sizes = [16, 1], strides = [1, 1]} : vector<16x27xf32> to vector<16x1xf32>
    %412 = vector.broadcast %411 : vector<16x1xf32> to vector<16x512xf32>
    %413 = arith.mulf %412, %410 : vector<16x512xf32>
    %414 = arith.addf %406, %413 : vector<16x512xf32>
    %415 = vector.extract_strided_slice %1 {offsets = [2, 0], sizes = [1, 512], strides = [1, 1]} : vector<6x512xf32> to vector<1x512xf32>
    %c504_i32_68 = arith.constant 504 : i32
    %416 = tpu.dynamic_rotate %370 by %c504_i32_68 dim 1 : vector<16x512xf32>, i32 -> vector<16x512xf32>
    %417 = vector.broadcast %415 : vector<1x512xf32> to vector<16x512xf32>
    %418 = arith.mulf %416, %417 : vector<16x512xf32>
    %419 = vector.extract_strided_slice %1 {offsets = [5, 0], sizes = [1, 512], strides = [1, 1]} : vector<6x512xf32> to vector<1x512xf32>
    %c1_i32_69 = arith.constant 1 : i32
    %420 = tpu.dynamic_rotate %418 by %c1_i32_69 dim 1 : vector<16x512xf32>, i32 -> vector<16x512xf32>
    %421 = vector.broadcast %419 : vector<1x512xf32> to vector<16x512xf32>
    %422 = arith.mulf %420, %421 : vector<16x512xf32>
    %423 = vector.extract_strided_slice %322 {offsets = [0, 6], sizes = [16, 1], strides = [1, 1]} : vector<16x27xf32> to vector<16x1xf32>
    %424 = vector.broadcast %423 : vector<16x1xf32> to vector<16x512xf32>
    %425 = arith.mulf %424, %422 : vector<16x512xf32>
    %426 = arith.addf %414, %425 : vector<16x512xf32>
    %427 = vector.extract_strided_slice %322 {offsets = [0, 7], sizes = [16, 1], strides = [1, 1]} : vector<16x27xf32> to vector<16x1xf32>
    %428 = vector.broadcast %427 : vector<16x1xf32> to vector<16x512xf32>
    %429 = arith.mulf %428, %418 : vector<16x512xf32>
    %430 = arith.addf %426, %429 : vector<16x512xf32>
    %431 = vector.extract_strided_slice %1 {offsets = [4, 0], sizes = [1, 512], strides = [1, 1]} : vector<6x512xf32> to vector<1x512xf32>
    %c511_i32_70 = arith.constant 511 : i32
    %432 = tpu.dynamic_rotate %418 by %c511_i32_70 dim 1 : vector<16x512xf32>, i32 -> vector<16x512xf32>
    %433 = vector.broadcast %431 : vector<1x512xf32> to vector<16x512xf32>
    %434 = arith.mulf %432, %433 : vector<16x512xf32>
    %435 = vector.extract_strided_slice %322 {offsets = [0, 8], sizes = [16, 1], strides = [1, 1]} : vector<16x27xf32> to vector<16x1xf32>
    %436 = vector.broadcast %435 : vector<16x1xf32> to vector<16x512xf32>
    %437 = arith.mulf %436, %434 : vector<16x512xf32>
    %438 = arith.addf %430, %437 : vector<16x512xf32>
    %439 = vector.extract_strided_slice %1 {offsets = [3, 0], sizes = [1, 512], strides = [1, 1]} : vector<6x512xf32> to vector<1x512xf32>
    %c8_i32_71 = arith.constant 8 : i32
    %440 = tpu.dynamic_rotate %365 by %c8_i32_71 dim 1 : vector<16x512xf32>, i32 -> vector<16x512xf32>
    %441 = vector.broadcast %439 : vector<1x512xf32> to vector<16x512xf32>
    %442 = arith.mulf %440, %441 : vector<16x512xf32>
    %443 = vector.extract_strided_slice %1 {offsets = [5, 0], sizes = [1, 512], strides = [1, 1]} : vector<6x512xf32> to vector<1x512xf32>
    %c1_i32_72 = arith.constant 1 : i32
    %444 = tpu.dynamic_rotate %442 by %c1_i32_72 dim 1 : vector<16x512xf32>, i32 -> vector<16x512xf32>
    %445 = vector.broadcast %443 : vector<1x512xf32> to vector<16x512xf32>
    %446 = arith.mulf %444, %445 : vector<16x512xf32>
    %447 = vector.extract_strided_slice %322 {offsets = [0, 9], sizes = [16, 1], strides = [1, 1]} : vector<16x27xf32> to vector<16x1xf32>
    %448 = vector.broadcast %447 : vector<16x1xf32> to vector<16x512xf32>
    %449 = arith.mulf %448, %446 : vector<16x512xf32>
    %450 = arith.addf %438, %449 : vector<16x512xf32>
    %451 = vector.extract_strided_slice %322 {offsets = [0, 10], sizes = [16, 1], strides = [1, 1]} : vector<16x27xf32> to vector<16x1xf32>
    %452 = vector.broadcast %451 : vector<16x1xf32> to vector<16x512xf32>
    %453 = arith.mulf %452, %442 : vector<16x512xf32>
    %454 = arith.addf %450, %453 : vector<16x512xf32>
    %455 = vector.extract_strided_slice %1 {offsets = [4, 0], sizes = [1, 512], strides = [1, 1]} : vector<6x512xf32> to vector<1x512xf32>
    %c511_i32_73 = arith.constant 511 : i32
    %456 = tpu.dynamic_rotate %442 by %c511_i32_73 dim 1 : vector<16x512xf32>, i32 -> vector<16x512xf32>
    %457 = vector.broadcast %455 : vector<1x512xf32> to vector<16x512xf32>
    %458 = arith.mulf %456, %457 : vector<16x512xf32>
    %459 = vector.extract_strided_slice %322 {offsets = [0, 11], sizes = [16, 1], strides = [1, 1]} : vector<16x27xf32> to vector<16x1xf32>
    %460 = vector.broadcast %459 : vector<16x1xf32> to vector<16x512xf32>
    %461 = arith.mulf %460, %458 : vector<16x512xf32>
    %462 = arith.addf %454, %461 : vector<16x512xf32>
    %463 = vector.extract_strided_slice %1 {offsets = [5, 0], sizes = [1, 512], strides = [1, 1]} : vector<6x512xf32> to vector<1x512xf32>
    %c1_i32_74 = arith.constant 1 : i32
    %464 = tpu.dynamic_rotate %365 by %c1_i32_74 dim 1 : vector<16x512xf32>, i32 -> vector<16x512xf32>
    %465 = vector.broadcast %463 : vector<1x512xf32> to vector<16x512xf32>
    %466 = arith.mulf %464, %465 : vector<16x512xf32>
    %467 = vector.extract_strided_slice %322 {offsets = [0, 12], sizes = [16, 1], strides = [1, 1]} : vector<16x27xf32> to vector<16x1xf32>
    %468 = vector.broadcast %467 : vector<16x1xf32> to vector<16x512xf32>
    %469 = arith.mulf %468, %466 : vector<16x512xf32>
    %470 = arith.addf %462, %469 : vector<16x512xf32>
    %471 = vector.extract_strided_slice %322 {offsets = [0, 13], sizes = [16, 1], strides = [1, 1]} : vector<16x27xf32> to vector<16x1xf32>
    %472 = vector.broadcast %471 : vector<16x1xf32> to vector<16x512xf32>
    %473 = arith.mulf %472, %365 : vector<16x512xf32>
    %474 = arith.addf %470, %473 : vector<16x512xf32>
    %475 = vector.extract_strided_slice %1 {offsets = [4, 0], sizes = [1, 512], strides = [1, 1]} : vector<6x512xf32> to vector<1x512xf32>
    %c511_i32_75 = arith.constant 511 : i32
    %476 = tpu.dynamic_rotate %365 by %c511_i32_75 dim 1 : vector<16x512xf32>, i32 -> vector<16x512xf32>
    %477 = vector.broadcast %475 : vector<1x512xf32> to vector<16x512xf32>
    %478 = arith.mulf %476, %477 : vector<16x512xf32>
    %479 = vector.extract_strided_slice %322 {offsets = [0, 14], sizes = [16, 1], strides = [1, 1]} : vector<16x27xf32> to vector<16x1xf32>
    %480 = vector.broadcast %479 : vector<16x1xf32> to vector<16x512xf32>
    %481 = arith.mulf %480, %478 : vector<16x512xf32>
    %482 = arith.addf %474, %481 : vector<16x512xf32>
    %483 = vector.extract_strided_slice %1 {offsets = [2, 0], sizes = [1, 512], strides = [1, 1]} : vector<6x512xf32> to vector<1x512xf32>
    %c504_i32_76 = arith.constant 504 : i32
    %484 = tpu.dynamic_rotate %365 by %c504_i32_76 dim 1 : vector<16x512xf32>, i32 -> vector<16x512xf32>
    %485 = vector.broadcast %483 : vector<1x512xf32> to vector<16x512xf32>
    %486 = arith.mulf %484, %485 : vector<16x512xf32>
    %487 = vector.extract_strided_slice %1 {offsets = [5, 0], sizes = [1, 512], strides = [1, 1]} : vector<6x512xf32> to vector<1x512xf32>
    %c1_i32_77 = arith.constant 1 : i32
    %488 = tpu.dynamic_rotate %486 by %c1_i32_77 dim 1 : vector<16x512xf32>, i32 -> vector<16x512xf32>
    %489 = vector.broadcast %487 : vector<1x512xf32> to vector<16x512xf32>
    %490 = arith.mulf %488, %489 : vector<16x512xf32>
    %491 = vector.extract_strided_slice %322 {offsets = [0, 15], sizes = [16, 1], strides = [1, 1]} : vector<16x27xf32> to vector<16x1xf32>
    %492 = vector.broadcast %491 : vector<16x1xf32> to vector<16x512xf32>
    %493 = arith.mulf %492, %490 : vector<16x512xf32>
    %494 = arith.addf %482, %493 : vector<16x512xf32>
    %495 = vector.extract_strided_slice %322 {offsets = [0, 16], sizes = [16, 1], strides = [1, 1]} : vector<16x27xf32> to vector<16x1xf32>
    %496 = vector.broadcast %495 : vector<16x1xf32> to vector<16x512xf32>
    %497 = arith.mulf %496, %486 : vector<16x512xf32>
    %498 = arith.addf %494, %497 : vector<16x512xf32>
    %499 = vector.extract_strided_slice %1 {offsets = [4, 0], sizes = [1, 512], strides = [1, 1]} : vector<6x512xf32> to vector<1x512xf32>
    %c511_i32_78 = arith.constant 511 : i32
    %500 = tpu.dynamic_rotate %486 by %c511_i32_78 dim 1 : vector<16x512xf32>, i32 -> vector<16x512xf32>
    %501 = vector.broadcast %499 : vector<1x512xf32> to vector<16x512xf32>
    %502 = arith.mulf %500, %501 : vector<16x512xf32>
    %503 = vector.extract_strided_slice %322 {offsets = [0, 17], sizes = [16, 1], strides = [1, 1]} : vector<16x27xf32> to vector<16x1xf32>
    %504 = vector.broadcast %503 : vector<16x1xf32> to vector<16x512xf32>
    %505 = arith.mulf %504, %502 : vector<16x512xf32>
    %506 = arith.addf %498, %505 : vector<16x512xf32>
    %507 = vector.extract_strided_slice %1 {offsets = [0, 0], sizes = [1, 512], strides = [1, 1]} : vector<6x512xf32> to vector<1x512xf32>
    %c448_i32_79 = arith.constant 448 : i32
    %508 = tpu.dynamic_rotate %365 by %c448_i32_79 dim 1 : vector<16x512xf32>, i32 -> vector<16x512xf32>
    %509 = vector.broadcast %507 : vector<1x512xf32> to vector<16x512xf32>
    %510 = arith.mulf %508, %509 : vector<16x512xf32>
    %511 = vector.extract_strided_slice %1 {offsets = [3, 0], sizes = [1, 512], strides = [1, 1]} : vector<6x512xf32> to vector<1x512xf32>
    %c8_i32_80 = arith.constant 8 : i32
    %512 = tpu.dynamic_rotate %510 by %c8_i32_80 dim 1 : vector<16x512xf32>, i32 -> vector<16x512xf32>
    %513 = vector.broadcast %511 : vector<1x512xf32> to vector<16x512xf32>
    %514 = arith.mulf %512, %513 : vector<16x512xf32>
    %515 = vector.extract_strided_slice %1 {offsets = [5, 0], sizes = [1, 512], strides = [1, 1]} : vector<6x512xf32> to vector<1x512xf32>
    %c1_i32_81 = arith.constant 1 : i32
    %516 = tpu.dynamic_rotate %514 by %c1_i32_81 dim 1 : vector<16x512xf32>, i32 -> vector<16x512xf32>
    %517 = vector.broadcast %515 : vector<1x512xf32> to vector<16x512xf32>
    %518 = arith.mulf %516, %517 : vector<16x512xf32>
    %519 = vector.extract_strided_slice %322 {offsets = [0, 18], sizes = [16, 1], strides = [1, 1]} : vector<16x27xf32> to vector<16x1xf32>
    %520 = vector.broadcast %519 : vector<16x1xf32> to vector<16x512xf32>
    %521 = arith.mulf %520, %518 : vector<16x512xf32>
    %522 = arith.addf %506, %521 : vector<16x512xf32>
    %523 = vector.extract_strided_slice %322 {offsets = [0, 19], sizes = [16, 1], strides = [1, 1]} : vector<16x27xf32> to vector<16x1xf32>
    %524 = vector.broadcast %523 : vector<16x1xf32> to vector<16x512xf32>
    %525 = arith.mulf %524, %514 : vector<16x512xf32>
    %526 = arith.addf %522, %525 : vector<16x512xf32>
    %527 = vector.extract_strided_slice %1 {offsets = [4, 0], sizes = [1, 512], strides = [1, 1]} : vector<6x512xf32> to vector<1x512xf32>
    %c511_i32_82 = arith.constant 511 : i32
    %528 = tpu.dynamic_rotate %514 by %c511_i32_82 dim 1 : vector<16x512xf32>, i32 -> vector<16x512xf32>
    %529 = vector.broadcast %527 : vector<1x512xf32> to vector<16x512xf32>
    %530 = arith.mulf %528, %529 : vector<16x512xf32>
    %531 = vector.extract_strided_slice %322 {offsets = [0, 20], sizes = [16, 1], strides = [1, 1]} : vector<16x27xf32> to vector<16x1xf32>
    %532 = vector.broadcast %531 : vector<16x1xf32> to vector<16x512xf32>
    %533 = arith.mulf %532, %530 : vector<16x512xf32>
    %534 = arith.addf %526, %533 : vector<16x512xf32>
    %535 = vector.extract_strided_slice %1 {offsets = [5, 0], sizes = [1, 512], strides = [1, 1]} : vector<6x512xf32> to vector<1x512xf32>
    %c1_i32_83 = arith.constant 1 : i32
    %536 = tpu.dynamic_rotate %510 by %c1_i32_83 dim 1 : vector<16x512xf32>, i32 -> vector<16x512xf32>
    %537 = vector.broadcast %535 : vector<1x512xf32> to vector<16x512xf32>
    %538 = arith.mulf %536, %537 : vector<16x512xf32>
    %539 = vector.extract_strided_slice %322 {offsets = [0, 21], sizes = [16, 1], strides = [1, 1]} : vector<16x27xf32> to vector<16x1xf32>
    %540 = vector.broadcast %539 : vector<16x1xf32> to vector<16x512xf32>
    %541 = arith.mulf %540, %538 : vector<16x512xf32>
    %542 = arith.addf %534, %541 : vector<16x512xf32>
    %543 = vector.extract_strided_slice %322 {offsets = [0, 22], sizes = [16, 1], strides = [1, 1]} : vector<16x27xf32> to vector<16x1xf32>
    %544 = vector.broadcast %543 : vector<16x1xf32> to vector<16x512xf32>
    %545 = arith.mulf %544, %510 : vector<16x512xf32>
    %546 = arith.addf %542, %545 : vector<16x512xf32>
    %547 = vector.extract_strided_slice %1 {offsets = [4, 0], sizes = [1, 512], strides = [1, 1]} : vector<6x512xf32> to vector<1x512xf32>
    %c511_i32_84 = arith.constant 511 : i32
    %548 = tpu.dynamic_rotate %510 by %c511_i32_84 dim 1 : vector<16x512xf32>, i32 -> vector<16x512xf32>
    %549 = vector.broadcast %547 : vector<1x512xf32> to vector<16x512xf32>
    %550 = arith.mulf %548, %549 : vector<16x512xf32>
    %551 = vector.extract_strided_slice %322 {offsets = [0, 23], sizes = [16, 1], strides = [1, 1]} : vector<16x27xf32> to vector<16x1xf32>
    %552 = vector.broadcast %551 : vector<16x1xf32> to vector<16x512xf32>
    %553 = arith.mulf %552, %550 : vector<16x512xf32>
    %554 = arith.addf %546, %553 : vector<16x512xf32>
    %555 = vector.extract_strided_slice %1 {offsets = [2, 0], sizes = [1, 512], strides = [1, 1]} : vector<6x512xf32> to vector<1x512xf32>
    %c504_i32_85 = arith.constant 504 : i32
    %556 = tpu.dynamic_rotate %510 by %c504_i32_85 dim 1 : vector<16x512xf32>, i32 -> vector<16x512xf32>
    %557 = vector.broadcast %555 : vector<1x512xf32> to vector<16x512xf32>
    %558 = arith.mulf %556, %557 : vector<16x512xf32>
    %559 = vector.extract_strided_slice %1 {offsets = [5, 0], sizes = [1, 512], strides = [1, 1]} : vector<6x512xf32> to vector<1x512xf32>
    %c1_i32_86 = arith.constant 1 : i32
    %560 = tpu.dynamic_rotate %558 by %c1_i32_86 dim 1 : vector<16x512xf32>, i32 -> vector<16x512xf32>
    %561 = vector.broadcast %559 : vector<1x512xf32> to vector<16x512xf32>
    %562 = arith.mulf %560, %561 : vector<16x512xf32>
    %563 = vector.extract_strided_slice %322 {offsets = [0, 24], sizes = [16, 1], strides = [1, 1]} : vector<16x27xf32> to vector<16x1xf32>
    %564 = vector.broadcast %563 : vector<16x1xf32> to vector<16x512xf32>
    %565 = arith.mulf %564, %562 : vector<16x512xf32>
    %566 = arith.addf %554, %565 : vector<16x512xf32>
    %567 = vector.extract_strided_slice %322 {offsets = [0, 25], sizes = [16, 1], strides = [1, 1]} : vector<16x27xf32> to vector<16x1xf32>
    %568 = vector.broadcast %567 : vector<16x1xf32> to vector<16x512xf32>
    %569 = arith.mulf %568, %558 : vector<16x512xf32>
    %570 = arith.addf %566, %569 : vector<16x512xf32>
    %571 = vector.extract_strided_slice %1 {offsets = [4, 0], sizes = [1, 512], strides = [1, 1]} : vector<6x512xf32> to vector<1x512xf32>
    %c511_i32_87 = arith.constant 511 : i32
    %572 = tpu.dynamic_rotate %558 by %c511_i32_87 dim 1 : vector<16x512xf32>, i32 -> vector<16x512xf32>
    %573 = vector.broadcast %571 : vector<1x512xf32> to vector<16x512xf32>
    %574 = arith.mulf %572, %573 : vector<16x512xf32>
    %575 = vector.extract_strided_slice %322 {offsets = [0, 26], sizes = [16, 1], strides = [1, 1]} : vector<16x27xf32> to vector<16x1xf32>
    %576 = vector.broadcast %575 : vector<16x1xf32> to vector<16x512xf32>
    %577 = arith.mulf %576, %574 : vector<16x512xf32>
    %578 = arith.addf %570, %577 : vector<16x512xf32>
    %579 = vector.broadcast %329 : vector<16x1xf32> to vector<16x512xf32>
    %580 = arith.addf %578, %579 : vector<16x512xf32>
    %cst_88 = arith.constant dense<0.000000e+00> : vector<512xf32>
    %581 = vector.multi_reduction <add>, %580, %cst_88 [0] : vector<16x512xf32> to vector<512xf32>
    %582 = vector.shape_cast %581 : vector<512xf32> to vector<1x512xf32>
    %cst_89 = arith.constant 1.600000e+01 : f32
    %583 = vector.broadcast %cst_89 : f32 to vector<1x512xf32>
    %584 = arith.divf %582, %583 : vector<1x512xf32>
    %585 = vector.broadcast %584 : vector<1x512xf32> to vector<16x512xf32>
    %586 = arith.subf %580, %585 : vector<16x512xf32>
    %587 = arith.mulf %586, %586 : vector<16x512xf32>
    %cst_90 = arith.constant dense<0.000000e+00> : vector<512xf32>
    %588 = vector.multi_reduction <add>, %587, %cst_90 [0] : vector<16x512xf32> to vector<512xf32>
    %589 = vector.shape_cast %588 : vector<512xf32> to vector<1x512xf32>
    %cst_91 = arith.constant 1.600000e+01 : f32
    %590 = vector.broadcast %cst_91 : f32 to vector<1x512xf32>
    %591 = arith.divf %589, %590 : vector<1x512xf32>
    %cst_92 = arith.constant 9.99999997E-7 : f32
    %592 = vector.broadcast %cst_92 : f32 to vector<1x512xf32>
    %593 = arith.addf %591, %592 : vector<1x512xf32>
    %594 = math.rsqrt %593 : vector<1x512xf32>
    %595 = vector.broadcast %594 : vector<1x512xf32> to vector<16x512xf32>
    %596 = arith.mulf %586, %595 : vector<16x512xf32>
    %597 = vector.broadcast %330 : vector<16x1xf32> to vector<16x512xf32>
    %598 = arith.mulf %596, %597 : vector<16x512xf32>
    %599 = vector.broadcast %331 : vector<16x1xf32> to vector<16x512xf32>
    %600 = arith.addf %598, %599 : vector<16x512xf32>
    %cst_93 = arith.constant 5.000000e-01 : f32
    %601 = vector.broadcast %cst_93 : f32 to vector<16x512xf32>
    %602 = arith.mulf %601, %600 : vector<16x512xf32>
    %cst_94 = arith.constant 0.707106769 : f32
    %603 = vector.broadcast %cst_94 : f32 to vector<16x512xf32>
    %604 = arith.mulf %600, %603 : vector<16x512xf32>
    %605 = math.erf %604 : vector<16x512xf32>
    %cst_95 = arith.constant 1.000000e+00 : f32
    %606 = vector.broadcast %cst_95 : f32 to vector<16x512xf32>
    %607 = arith.addf %606, %605 : vector<16x512xf32>
    %608 = arith.mulf %602, %607 : vector<16x512xf32>
    %cst_96 = arith.constant dense<0.000000e+00> : vector<16x512xf32>
    %609 = tpu.matmul %324, %608, %cst_96 {dimension_numbers = #tpu.dot_dimension_numbers<[1], [0], [0], [1], [0, 0, 1, 1], [], []>} : vector<16x16xf32>, vector<16x512xf32>, vector<16x512xf32> -> vector<16x512xf32>
    %610 = vector.broadcast %332 : vector<16x1xf32> to vector<16x512xf32>
    %611 = arith.addf %609, %610 : vector<16x512xf32>
    %cst_97 = arith.constant dense<0.000000e+00> : vector<512xf32>
    %612 = vector.multi_reduction <add>, %611, %cst_97 [0] : vector<16x512xf32> to vector<512xf32>
    %613 = vector.shape_cast %612 : vector<512xf32> to vector<1x512xf32>
    %cst_98 = arith.constant 1.600000e+01 : f32
    %614 = vector.broadcast %cst_98 : f32 to vector<1x512xf32>
    %615 = arith.divf %613, %614 : vector<1x512xf32>
    %616 = vector.broadcast %615 : vector<1x512xf32> to vector<16x512xf32>
    %617 = arith.subf %611, %616 : vector<16x512xf32>
    %618 = arith.mulf %617, %617 : vector<16x512xf32>
    %cst_99 = arith.constant dense<0.000000e+00> : vector<512xf32>
    %619 = vector.multi_reduction <add>, %618, %cst_99 [0] : vector<16x512xf32> to vector<512xf32>
    %620 = vector.shape_cast %619 : vector<512xf32> to vector<1x512xf32>
    %cst_100 = arith.constant 1.600000e+01 : f32
    %621 = vector.broadcast %cst_100 : f32 to vector<1x512xf32>
    %622 = arith.divf %620, %621 : vector<1x512xf32>
    %cst_101 = arith.constant 9.99999997E-7 : f32
    %623 = vector.broadcast %cst_101 : f32 to vector<1x512xf32>
    %624 = arith.addf %622, %623 : vector<1x512xf32>
    %625 = math.rsqrt %624 : vector<1x512xf32>
    %626 = vector.broadcast %625 : vector<1x512xf32> to vector<16x512xf32>
    %627 = arith.mulf %617, %626 : vector<16x512xf32>
    %628 = vector.broadcast %333 : vector<16x1xf32> to vector<16x512xf32>
    %629 = arith.mulf %627, %628 : vector<16x512xf32>
    %630 = vector.broadcast %334 : vector<16x1xf32> to vector<16x512xf32>
    %631 = arith.addf %629, %630 : vector<16x512xf32>
    %cst_102 = arith.constant dense<0.000000e+00> : vector<4x16xf32>
    %632 = tpu.matmul %316, %631, %cst_102 {dimension_numbers = #tpu.dot_dimension_numbers<[1], [1], [0], [0], [0, 0, 1, 0], [], []>} : vector<4x512xf32>, vector<16x512xf32>, vector<4x16xf32> -> vector<4x16xf32>
    %cst_103 = arith.constant 0.0441941731 : f32
    %633 = vector.broadcast %cst_103 : f32 to vector<4x16xf32>
    %634 = arith.mulf %632, %633 : vector<4x16xf32>
    %cst_104 = arith.constant dense<0xFF800000> : vector<4xf32>
    %635 = vector.multi_reduction <maximumf>, %634, %cst_104 [1] : vector<4x16xf32> to vector<4xf32>
    %636 = vector.shape_cast %635 : vector<4xf32> to vector<4x1xf32>
    %637 = vector.broadcast %636 : vector<4x1xf32> to vector<4x16xf32>
    %638 = arith.subf %634, %637 : vector<4x16xf32>
    %639 = math.exp %638 : vector<4x16xf32>
    %cst_105 = arith.constant dense<0.000000e+00> : vector<4xf32>
    %640 = vector.multi_reduction <add>, %639, %cst_105 [1] : vector<4x16xf32> to vector<4xf32>
    %641 = vector.shape_cast %640 : vector<4xf32> to vector<4x1xf32>
    %642 = vector.broadcast %641 : vector<4x1xf32> to vector<4x16xf32>
    %643 = arith.divf %639, %642 : vector<4x16xf32>
    %c0_106 = arith.constant 0 : index
    %c0_107 = arith.constant 0 : index
    %c0_108 = arith.constant 0 : index
    %644 = vector.load %arg3[%c0_106, %c0_107, %c0_108] : memref<1x16x512xf32, #tpu.memory_space<vmem>>, vector<1x16x512xf32>
    %645 = vector.shape_cast %644 : vector<1x16x512xf32> to vector<16x512xf32>
    %646 = vector.extract_strided_slice %0 {offsets = [40, 0], sizes = [16, 128], strides = [1, 1]} : vector<80x128xf32> to vector<16x128xf32>
    %647 = vector.extract_strided_slice %0 {offsets = [56, 0], sizes = [16, 128], strides = [1, 1]} : vector<80x128xf32> to vector<16x128xf32>
    %648 = vector.extract_strided_slice %646 {offsets = [0, 0], sizes = [16, 16], strides = [1, 1]} : vector<16x128xf32> to vector<16x16xf32>
    %649 = vector.extract_strided_slice %646 {offsets = [0, 16], sizes = [16, 27], strides = [1, 1]} : vector<16x128xf32> to vector<16x27xf32>
    %650 = vector.extract_strided_slice %646 {offsets = [0, 43], sizes = [16, 6], strides = [1, 1]} : vector<16x128xf32> to vector<16x6xf32>
    %651 = vector.extract_strided_slice %647 {offsets = [0, 0], sizes = [16, 16], strides = [1, 1]} : vector<16x128xf32> to vector<16x16xf32>
    %652 = vector.extract_strided_slice %647 {offsets = [0, 16], sizes = [16, 3], strides = [1, 1]} : vector<16x128xf32> to vector<16x3xf32>
    %653 = vector.extract_strided_slice %650 {offsets = [0, 0], sizes = [16, 1], strides = [1, 1]} : vector<16x6xf32> to vector<16x1xf32>
    %654 = vector.extract_strided_slice %650 {offsets = [0, 1], sizes = [16, 1], strides = [1, 1]} : vector<16x6xf32> to vector<16x1xf32>
    %655 = vector.extract_strided_slice %650 {offsets = [0, 2], sizes = [16, 1], strides = [1, 1]} : vector<16x6xf32> to vector<16x1xf32>
    %656 = vector.extract_strided_slice %650 {offsets = [0, 3], sizes = [16, 1], strides = [1, 1]} : vector<16x6xf32> to vector<16x1xf32>
    %657 = vector.extract_strided_slice %650 {offsets = [0, 4], sizes = [16, 1], strides = [1, 1]} : vector<16x6xf32> to vector<16x1xf32>
    %658 = vector.extract_strided_slice %650 {offsets = [0, 5], sizes = [16, 1], strides = [1, 1]} : vector<16x6xf32> to vector<16x1xf32>
    %659 = vector.extract_strided_slice %652 {offsets = [0, 0], sizes = [16, 1], strides = [1, 1]} : vector<16x3xf32> to vector<16x1xf32>
    %660 = vector.extract_strided_slice %652 {offsets = [0, 1], sizes = [16, 1], strides = [1, 1]} : vector<16x3xf32> to vector<16x1xf32>
    %661 = vector.extract_strided_slice %652 {offsets = [0, 2], sizes = [16, 1], strides = [1, 1]} : vector<16x3xf32> to vector<16x1xf32>
    %cst_109 = arith.constant dense<0.000000e+00> : vector<16x512xf32>
    %662 = tpu.matmul %648, %645, %cst_109 {dimension_numbers = #tpu.dot_dimension_numbers<[1], [0], [0], [1], [0, 0, 1, 1], [], []>} : vector<16x16xf32>, vector<16x512xf32>, vector<16x512xf32> -> vector<16x512xf32>
    %663 = vector.broadcast %653 : vector<16x1xf32> to vector<16x512xf32>
    %664 = arith.addf %662, %663 : vector<16x512xf32>
    %cst_110 = arith.constant dense<0.000000e+00> : vector<512xf32>
    %665 = vector.multi_reduction <add>, %664, %cst_110 [0] : vector<16x512xf32> to vector<512xf32>
    %666 = vector.shape_cast %665 : vector<512xf32> to vector<1x512xf32>
    %cst_111 = arith.constant 1.600000e+01 : f32
    %667 = vector.broadcast %cst_111 : f32 to vector<1x512xf32>
    %668 = arith.divf %666, %667 : vector<1x512xf32>
    %669 = vector.broadcast %668 : vector<1x512xf32> to vector<16x512xf32>
    %670 = arith.subf %664, %669 : vector<16x512xf32>
    %671 = arith.mulf %670, %670 : vector<16x512xf32>
    %cst_112 = arith.constant dense<0.000000e+00> : vector<512xf32>
    %672 = vector.multi_reduction <add>, %671, %cst_112 [0] : vector<16x512xf32> to vector<512xf32>
    %673 = vector.shape_cast %672 : vector<512xf32> to vector<1x512xf32>
    %cst_113 = arith.constant 1.600000e+01 : f32
    %674 = vector.broadcast %cst_113 : f32 to vector<1x512xf32>
    %675 = arith.divf %673, %674 : vector<1x512xf32>
    %cst_114 = arith.constant 9.99999997E-7 : f32
    %676 = vector.broadcast %cst_114 : f32 to vector<1x512xf32>
    %677 = arith.addf %675, %676 : vector<1x512xf32>
    %678 = math.rsqrt %677 : vector<1x512xf32>
    %679 = vector.broadcast %678 : vector<1x512xf32> to vector<16x512xf32>
    %680 = arith.mulf %670, %679 : vector<16x512xf32>
    %681 = vector.broadcast %654 : vector<16x1xf32> to vector<16x512xf32>
    %682 = arith.mulf %680, %681 : vector<16x512xf32>
    %683 = vector.broadcast %655 : vector<16x1xf32> to vector<16x512xf32>
    %684 = arith.addf %682, %683 : vector<16x512xf32>
    %cst_115 = arith.constant 5.000000e-01 : f32
    %685 = vector.broadcast %cst_115 : f32 to vector<16x512xf32>
    %686 = arith.mulf %685, %684 : vector<16x512xf32>
    %cst_116 = arith.constant 0.707106769 : f32
    %687 = vector.broadcast %cst_116 : f32 to vector<16x512xf32>
    %688 = arith.mulf %684, %687 : vector<16x512xf32>
    %689 = math.erf %688 : vector<16x512xf32>
    %cst_117 = arith.constant 1.000000e+00 : f32
    %690 = vector.broadcast %cst_117 : f32 to vector<16x512xf32>
    %691 = arith.addf %690, %689 : vector<16x512xf32>
    %692 = arith.mulf %686, %691 : vector<16x512xf32>
    %cst_118 = arith.constant 0.000000e+00 : f32
    %693 = vector.broadcast %cst_118 : f32 to vector<16x512xf32>
    %694 = vector.extract_strided_slice %1 {offsets = [1, 0], sizes = [1, 512], strides = [1, 1]} : vector<6x512xf32> to vector<1x512xf32>
    %c64_i32_119 = arith.constant 64 : i32
    %695 = tpu.dynamic_rotate %692 by %c64_i32_119 dim 1 : vector<16x512xf32>, i32 -> vector<16x512xf32>
    %696 = vector.broadcast %694 : vector<1x512xf32> to vector<16x512xf32>
    %697 = arith.mulf %695, %696 : vector<16x512xf32>
    %698 = vector.extract_strided_slice %1 {offsets = [3, 0], sizes = [1, 512], strides = [1, 1]} : vector<6x512xf32> to vector<1x512xf32>
    %c8_i32_120 = arith.constant 8 : i32
    %699 = tpu.dynamic_rotate %697 by %c8_i32_120 dim 1 : vector<16x512xf32>, i32 -> vector<16x512xf32>
    %700 = vector.broadcast %698 : vector<1x512xf32> to vector<16x512xf32>
    %701 = arith.mulf %699, %700 : vector<16x512xf32>
    %702 = vector.extract_strided_slice %1 {offsets = [5, 0], sizes = [1, 512], strides = [1, 1]} : vector<6x512xf32> to vector<1x512xf32>
    %c1_i32_121 = arith.constant 1 : i32
    %703 = tpu.dynamic_rotate %701 by %c1_i32_121 dim 1 : vector<16x512xf32>, i32 -> vector<16x512xf32>
    %704 = vector.broadcast %702 : vector<1x512xf32> to vector<16x512xf32>
    %705 = arith.mulf %703, %704 : vector<16x512xf32>
    %706 = vector.extract_strided_slice %649 {offsets = [0, 0], sizes = [16, 1], strides = [1, 1]} : vector<16x27xf32> to vector<16x1xf32>
    %707 = vector.broadcast %706 : vector<16x1xf32> to vector<16x512xf32>
    %708 = arith.mulf %707, %705 : vector<16x512xf32>
    %709 = arith.addf %693, %708 : vector<16x512xf32>
    %710 = vector.extract_strided_slice %649 {offsets = [0, 1], sizes = [16, 1], strides = [1, 1]} : vector<16x27xf32> to vector<16x1xf32>
    %711 = vector.broadcast %710 : vector<16x1xf32> to vector<16x512xf32>
    %712 = arith.mulf %711, %701 : vector<16x512xf32>
    %713 = arith.addf %709, %712 : vector<16x512xf32>
    %714 = vector.extract_strided_slice %1 {offsets = [4, 0], sizes = [1, 512], strides = [1, 1]} : vector<6x512xf32> to vector<1x512xf32>
    %c511_i32_122 = arith.constant 511 : i32
    %715 = tpu.dynamic_rotate %701 by %c511_i32_122 dim 1 : vector<16x512xf32>, i32 -> vector<16x512xf32>
    %716 = vector.broadcast %714 : vector<1x512xf32> to vector<16x512xf32>
    %717 = arith.mulf %715, %716 : vector<16x512xf32>
    %718 = vector.extract_strided_slice %649 {offsets = [0, 2], sizes = [16, 1], strides = [1, 1]} : vector<16x27xf32> to vector<16x1xf32>
    %719 = vector.broadcast %718 : vector<16x1xf32> to vector<16x512xf32>
    %720 = arith.mulf %719, %717 : vector<16x512xf32>
    %721 = arith.addf %713, %720 : vector<16x512xf32>
    %722 = vector.extract_strided_slice %1 {offsets = [5, 0], sizes = [1, 512], strides = [1, 1]} : vector<6x512xf32> to vector<1x512xf32>
    %c1_i32_123 = arith.constant 1 : i32
    %723 = tpu.dynamic_rotate %697 by %c1_i32_123 dim 1 : vector<16x512xf32>, i32 -> vector<16x512xf32>
    %724 = vector.broadcast %722 : vector<1x512xf32> to vector<16x512xf32>
    %725 = arith.mulf %723, %724 : vector<16x512xf32>
    %726 = vector.extract_strided_slice %649 {offsets = [0, 3], sizes = [16, 1], strides = [1, 1]} : vector<16x27xf32> to vector<16x1xf32>
    %727 = vector.broadcast %726 : vector<16x1xf32> to vector<16x512xf32>
    %728 = arith.mulf %727, %725 : vector<16x512xf32>
    %729 = arith.addf %721, %728 : vector<16x512xf32>
    %730 = vector.extract_strided_slice %649 {offsets = [0, 4], sizes = [16, 1], strides = [1, 1]} : vector<16x27xf32> to vector<16x1xf32>
    %731 = vector.broadcast %730 : vector<16x1xf32> to vector<16x512xf32>
    %732 = arith.mulf %731, %697 : vector<16x512xf32>
    %733 = arith.addf %729, %732 : vector<16x512xf32>
    %734 = vector.extract_strided_slice %1 {offsets = [4, 0], sizes = [1, 512], strides = [1, 1]} : vector<6x512xf32> to vector<1x512xf32>
    %c511_i32_124 = arith.constant 511 : i32
    %735 = tpu.dynamic_rotate %697 by %c511_i32_124 dim 1 : vector<16x512xf32>, i32 -> vector<16x512xf32>
    %736 = vector.broadcast %734 : vector<1x512xf32> to vector<16x512xf32>
    %737 = arith.mulf %735, %736 : vector<16x512xf32>
    %738 = vector.extract_strided_slice %649 {offsets = [0, 5], sizes = [16, 1], strides = [1, 1]} : vector<16x27xf32> to vector<16x1xf32>
    %739 = vector.broadcast %738 : vector<16x1xf32> to vector<16x512xf32>
    %740 = arith.mulf %739, %737 : vector<16x512xf32>
    %741 = arith.addf %733, %740 : vector<16x512xf32>
    %742 = vector.extract_strided_slice %1 {offsets = [2, 0], sizes = [1, 512], strides = [1, 1]} : vector<6x512xf32> to vector<1x512xf32>
    %c504_i32_125 = arith.constant 504 : i32
    %743 = tpu.dynamic_rotate %697 by %c504_i32_125 dim 1 : vector<16x512xf32>, i32 -> vector<16x512xf32>
    %744 = vector.broadcast %742 : vector<1x512xf32> to vector<16x512xf32>
    %745 = arith.mulf %743, %744 : vector<16x512xf32>
    %746 = vector.extract_strided_slice %1 {offsets = [5, 0], sizes = [1, 512], strides = [1, 1]} : vector<6x512xf32> to vector<1x512xf32>
    %c1_i32_126 = arith.constant 1 : i32
    %747 = tpu.dynamic_rotate %745 by %c1_i32_126 dim 1 : vector<16x512xf32>, i32 -> vector<16x512xf32>
    %748 = vector.broadcast %746 : vector<1x512xf32> to vector<16x512xf32>
    %749 = arith.mulf %747, %748 : vector<16x512xf32>
    %750 = vector.extract_strided_slice %649 {offsets = [0, 6], sizes = [16, 1], strides = [1, 1]} : vector<16x27xf32> to vector<16x1xf32>
    %751 = vector.broadcast %750 : vector<16x1xf32> to vector<16x512xf32>
    %752 = arith.mulf %751, %749 : vector<16x512xf32>
    %753 = arith.addf %741, %752 : vector<16x512xf32>
    %754 = vector.extract_strided_slice %649 {offsets = [0, 7], sizes = [16, 1], strides = [1, 1]} : vector<16x27xf32> to vector<16x1xf32>
    %755 = vector.broadcast %754 : vector<16x1xf32> to vector<16x512xf32>
    %756 = arith.mulf %755, %745 : vector<16x512xf32>
    %757 = arith.addf %753, %756 : vector<16x512xf32>
    %758 = vector.extract_strided_slice %1 {offsets = [4, 0], sizes = [1, 512], strides = [1, 1]} : vector<6x512xf32> to vector<1x512xf32>
    %c511_i32_127 = arith.constant 511 : i32
    %759 = tpu.dynamic_rotate %745 by %c511_i32_127 dim 1 : vector<16x512xf32>, i32 -> vector<16x512xf32>
    %760 = vector.broadcast %758 : vector<1x512xf32> to vector<16x512xf32>
    %761 = arith.mulf %759, %760 : vector<16x512xf32>
    %762 = vector.extract_strided_slice %649 {offsets = [0, 8], sizes = [16, 1], strides = [1, 1]} : vector<16x27xf32> to vector<16x1xf32>
    %763 = vector.broadcast %762 : vector<16x1xf32> to vector<16x512xf32>
    %764 = arith.mulf %763, %761 : vector<16x512xf32>
    %765 = arith.addf %757, %764 : vector<16x512xf32>
    %766 = vector.extract_strided_slice %1 {offsets = [3, 0], sizes = [1, 512], strides = [1, 1]} : vector<6x512xf32> to vector<1x512xf32>
    %c8_i32_128 = arith.constant 8 : i32
    %767 = tpu.dynamic_rotate %692 by %c8_i32_128 dim 1 : vector<16x512xf32>, i32 -> vector<16x512xf32>
    %768 = vector.broadcast %766 : vector<1x512xf32> to vector<16x512xf32>
    %769 = arith.mulf %767, %768 : vector<16x512xf32>
    %770 = vector.extract_strided_slice %1 {offsets = [5, 0], sizes = [1, 512], strides = [1, 1]} : vector<6x512xf32> to vector<1x512xf32>
    %c1_i32_129 = arith.constant 1 : i32
    %771 = tpu.dynamic_rotate %769 by %c1_i32_129 dim 1 : vector<16x512xf32>, i32 -> vector<16x512xf32>
    %772 = vector.broadcast %770 : vector<1x512xf32> to vector<16x512xf32>
    %773 = arith.mulf %771, %772 : vector<16x512xf32>
    %774 = vector.extract_strided_slice %649 {offsets = [0, 9], sizes = [16, 1], strides = [1, 1]} : vector<16x27xf32> to vector<16x1xf32>
    %775 = vector.broadcast %774 : vector<16x1xf32> to vector<16x512xf32>
    %776 = arith.mulf %775, %773 : vector<16x512xf32>
    %777 = arith.addf %765, %776 : vector<16x512xf32>
    %778 = vector.extract_strided_slice %649 {offsets = [0, 10], sizes = [16, 1], strides = [1, 1]} : vector<16x27xf32> to vector<16x1xf32>
    %779 = vector.broadcast %778 : vector<16x1xf32> to vector<16x512xf32>
    %780 = arith.mulf %779, %769 : vector<16x512xf32>
    %781 = arith.addf %777, %780 : vector<16x512xf32>
    %782 = vector.extract_strided_slice %1 {offsets = [4, 0], sizes = [1, 512], strides = [1, 1]} : vector<6x512xf32> to vector<1x512xf32>
    %c511_i32_130 = arith.constant 511 : i32
    %783 = tpu.dynamic_rotate %769 by %c511_i32_130 dim 1 : vector<16x512xf32>, i32 -> vector<16x512xf32>
    %784 = vector.broadcast %782 : vector<1x512xf32> to vector<16x512xf32>
    %785 = arith.mulf %783, %784 : vector<16x512xf32>
    %786 = vector.extract_strided_slice %649 {offsets = [0, 11], sizes = [16, 1], strides = [1, 1]} : vector<16x27xf32> to vector<16x1xf32>
    %787 = vector.broadcast %786 : vector<16x1xf32> to vector<16x512xf32>
    %788 = arith.mulf %787, %785 : vector<16x512xf32>
    %789 = arith.addf %781, %788 : vector<16x512xf32>
    %790 = vector.extract_strided_slice %1 {offsets = [5, 0], sizes = [1, 512], strides = [1, 1]} : vector<6x512xf32> to vector<1x512xf32>
    %c1_i32_131 = arith.constant 1 : i32
    %791 = tpu.dynamic_rotate %692 by %c1_i32_131 dim 1 : vector<16x512xf32>, i32 -> vector<16x512xf32>
    %792 = vector.broadcast %790 : vector<1x512xf32> to vector<16x512xf32>
    %793 = arith.mulf %791, %792 : vector<16x512xf32>
    %794 = vector.extract_strided_slice %649 {offsets = [0, 12], sizes = [16, 1], strides = [1, 1]} : vector<16x27xf32> to vector<16x1xf32>
    %795 = vector.broadcast %794 : vector<16x1xf32> to vector<16x512xf32>
    %796 = arith.mulf %795, %793 : vector<16x512xf32>
    %797 = arith.addf %789, %796 : vector<16x512xf32>
    %798 = vector.extract_strided_slice %649 {offsets = [0, 13], sizes = [16, 1], strides = [1, 1]} : vector<16x27xf32> to vector<16x1xf32>
    %799 = vector.broadcast %798 : vector<16x1xf32> to vector<16x512xf32>
    %800 = arith.mulf %799, %692 : vector<16x512xf32>
    %801 = arith.addf %797, %800 : vector<16x512xf32>
    %802 = vector.extract_strided_slice %1 {offsets = [4, 0], sizes = [1, 512], strides = [1, 1]} : vector<6x512xf32> to vector<1x512xf32>
    %c511_i32_132 = arith.constant 511 : i32
    %803 = tpu.dynamic_rotate %692 by %c511_i32_132 dim 1 : vector<16x512xf32>, i32 -> vector<16x512xf32>
    %804 = vector.broadcast %802 : vector<1x512xf32> to vector<16x512xf32>
    %805 = arith.mulf %803, %804 : vector<16x512xf32>
    %806 = vector.extract_strided_slice %649 {offsets = [0, 14], sizes = [16, 1], strides = [1, 1]} : vector<16x27xf32> to vector<16x1xf32>
    %807 = vector.broadcast %806 : vector<16x1xf32> to vector<16x512xf32>
    %808 = arith.mulf %807, %805 : vector<16x512xf32>
    %809 = arith.addf %801, %808 : vector<16x512xf32>
    %810 = vector.extract_strided_slice %1 {offsets = [2, 0], sizes = [1, 512], strides = [1, 1]} : vector<6x512xf32> to vector<1x512xf32>
    %c504_i32_133 = arith.constant 504 : i32
    %811 = tpu.dynamic_rotate %692 by %c504_i32_133 dim 1 : vector<16x512xf32>, i32 -> vector<16x512xf32>
    %812 = vector.broadcast %810 : vector<1x512xf32> to vector<16x512xf32>
    %813 = arith.mulf %811, %812 : vector<16x512xf32>
    %814 = vector.extract_strided_slice %1 {offsets = [5, 0], sizes = [1, 512], strides = [1, 1]} : vector<6x512xf32> to vector<1x512xf32>
    %c1_i32_134 = arith.constant 1 : i32
    %815 = tpu.dynamic_rotate %813 by %c1_i32_134 dim 1 : vector<16x512xf32>, i32 -> vector<16x512xf32>
    %816 = vector.broadcast %814 : vector<1x512xf32> to vector<16x512xf32>
    %817 = arith.mulf %815, %816 : vector<16x512xf32>
    %818 = vector.extract_strided_slice %649 {offsets = [0, 15], sizes = [16, 1], strides = [1, 1]} : vector<16x27xf32> to vector<16x1xf32>
    %819 = vector.broadcast %818 : vector<16x1xf32> to vector<16x512xf32>
    %820 = arith.mulf %819, %817 : vector<16x512xf32>
    %821 = arith.addf %809, %820 : vector<16x512xf32>
    %822 = vector.extract_strided_slice %649 {offsets = [0, 16], sizes = [16, 1], strides = [1, 1]} : vector<16x27xf32> to vector<16x1xf32>
    %823 = vector.broadcast %822 : vector<16x1xf32> to vector<16x512xf32>
    %824 = arith.mulf %823, %813 : vector<16x512xf32>
    %825 = arith.addf %821, %824 : vector<16x512xf32>
    %826 = vector.extract_strided_slice %1 {offsets = [4, 0], sizes = [1, 512], strides = [1, 1]} : vector<6x512xf32> to vector<1x512xf32>
    %c511_i32_135 = arith.constant 511 : i32
    %827 = tpu.dynamic_rotate %813 by %c511_i32_135 dim 1 : vector<16x512xf32>, i32 -> vector<16x512xf32>
    %828 = vector.broadcast %826 : vector<1x512xf32> to vector<16x512xf32>
    %829 = arith.mulf %827, %828 : vector<16x512xf32>
    %830 = vector.extract_strided_slice %649 {offsets = [0, 17], sizes = [16, 1], strides = [1, 1]} : vector<16x27xf32> to vector<16x1xf32>
    %831 = vector.broadcast %830 : vector<16x1xf32> to vector<16x512xf32>
    %832 = arith.mulf %831, %829 : vector<16x512xf32>
    %833 = arith.addf %825, %832 : vector<16x512xf32>
    %834 = vector.extract_strided_slice %1 {offsets = [0, 0], sizes = [1, 512], strides = [1, 1]} : vector<6x512xf32> to vector<1x512xf32>
    %c448_i32_136 = arith.constant 448 : i32
    %835 = tpu.dynamic_rotate %692 by %c448_i32_136 dim 1 : vector<16x512xf32>, i32 -> vector<16x512xf32>
    %836 = vector.broadcast %834 : vector<1x512xf32> to vector<16x512xf32>
    %837 = arith.mulf %835, %836 : vector<16x512xf32>
    %838 = vector.extract_strided_slice %1 {offsets = [3, 0], sizes = [1, 512], strides = [1, 1]} : vector<6x512xf32> to vector<1x512xf32>
    %c8_i32_137 = arith.constant 8 : i32
    %839 = tpu.dynamic_rotate %837 by %c8_i32_137 dim 1 : vector<16x512xf32>, i32 -> vector<16x512xf32>
    %840 = vector.broadcast %838 : vector<1x512xf32> to vector<16x512xf32>
    %841 = arith.mulf %839, %840 : vector<16x512xf32>
    %842 = vector.extract_strided_slice %1 {offsets = [5, 0], sizes = [1, 512], strides = [1, 1]} : vector<6x512xf32> to vector<1x512xf32>
    %c1_i32_138 = arith.constant 1 : i32
    %843 = tpu.dynamic_rotate %841 by %c1_i32_138 dim 1 : vector<16x512xf32>, i32 -> vector<16x512xf32>
    %844 = vector.broadcast %842 : vector<1x512xf32> to vector<16x512xf32>
    %845 = arith.mulf %843, %844 : vector<16x512xf32>
    %846 = vector.extract_strided_slice %649 {offsets = [0, 18], sizes = [16, 1], strides = [1, 1]} : vector<16x27xf32> to vector<16x1xf32>
    %847 = vector.broadcast %846 : vector<16x1xf32> to vector<16x512xf32>
    %848 = arith.mulf %847, %845 : vector<16x512xf32>
    %849 = arith.addf %833, %848 : vector<16x512xf32>
    %850 = vector.extract_strided_slice %649 {offsets = [0, 19], sizes = [16, 1], strides = [1, 1]} : vector<16x27xf32> to vector<16x1xf32>
    %851 = vector.broadcast %850 : vector<16x1xf32> to vector<16x512xf32>
    %852 = arith.mulf %851, %841 : vector<16x512xf32>
    %853 = arith.addf %849, %852 : vector<16x512xf32>
    %854 = vector.extract_strided_slice %1 {offsets = [4, 0], sizes = [1, 512], strides = [1, 1]} : vector<6x512xf32> to vector<1x512xf32>
    %c511_i32_139 = arith.constant 511 : i32
    %855 = tpu.dynamic_rotate %841 by %c511_i32_139 dim 1 : vector<16x512xf32>, i32 -> vector<16x512xf32>
    %856 = vector.broadcast %854 : vector<1x512xf32> to vector<16x512xf32>
    %857 = arith.mulf %855, %856 : vector<16x512xf32>
    %858 = vector.extract_strided_slice %649 {offsets = [0, 20], sizes = [16, 1], strides = [1, 1]} : vector<16x27xf32> to vector<16x1xf32>
    %859 = vector.broadcast %858 : vector<16x1xf32> to vector<16x512xf32>
    %860 = arith.mulf %859, %857 : vector<16x512xf32>
    %861 = arith.addf %853, %860 : vector<16x512xf32>
    %862 = vector.extract_strided_slice %1 {offsets = [5, 0], sizes = [1, 512], strides = [1, 1]} : vector<6x512xf32> to vector<1x512xf32>
    %c1_i32_140 = arith.constant 1 : i32
    %863 = tpu.dynamic_rotate %837 by %c1_i32_140 dim 1 : vector<16x512xf32>, i32 -> vector<16x512xf32>
    %864 = vector.broadcast %862 : vector<1x512xf32> to vector<16x512xf32>
    %865 = arith.mulf %863, %864 : vector<16x512xf32>
    %866 = vector.extract_strided_slice %649 {offsets = [0, 21], sizes = [16, 1], strides = [1, 1]} : vector<16x27xf32> to vector<16x1xf32>
    %867 = vector.broadcast %866 : vector<16x1xf32> to vector<16x512xf32>
    %868 = arith.mulf %867, %865 : vector<16x512xf32>
    %869 = arith.addf %861, %868 : vector<16x512xf32>
    %870 = vector.extract_strided_slice %649 {offsets = [0, 22], sizes = [16, 1], strides = [1, 1]} : vector<16x27xf32> to vector<16x1xf32>
    %871 = vector.broadcast %870 : vector<16x1xf32> to vector<16x512xf32>
    %872 = arith.mulf %871, %837 : vector<16x512xf32>
    %873 = arith.addf %869, %872 : vector<16x512xf32>
    %874 = vector.extract_strided_slice %1 {offsets = [4, 0], sizes = [1, 512], strides = [1, 1]} : vector<6x512xf32> to vector<1x512xf32>
    %c511_i32_141 = arith.constant 511 : i32
    %875 = tpu.dynamic_rotate %837 by %c511_i32_141 dim 1 : vector<16x512xf32>, i32 -> vector<16x512xf32>
    %876 = vector.broadcast %874 : vector<1x512xf32> to vector<16x512xf32>
    %877 = arith.mulf %875, %876 : vector<16x512xf32>
    %878 = vector.extract_strided_slice %649 {offsets = [0, 23], sizes = [16, 1], strides = [1, 1]} : vector<16x27xf32> to vector<16x1xf32>
    %879 = vector.broadcast %878 : vector<16x1xf32> to vector<16x512xf32>
    %880 = arith.mulf %879, %877 : vector<16x512xf32>
    %881 = arith.addf %873, %880 : vector<16x512xf32>
    %882 = vector.extract_strided_slice %1 {offsets = [2, 0], sizes = [1, 512], strides = [1, 1]} : vector<6x512xf32> to vector<1x512xf32>
    %c504_i32_142 = arith.constant 504 : i32
    %883 = tpu.dynamic_rotate %837 by %c504_i32_142 dim 1 : vector<16x512xf32>, i32 -> vector<16x512xf32>
    %884 = vector.broadcast %882 : vector<1x512xf32> to vector<16x512xf32>
    %885 = arith.mulf %883, %884 : vector<16x512xf32>
    %886 = vector.extract_strided_slice %1 {offsets = [5, 0], sizes = [1, 512], strides = [1, 1]} : vector<6x512xf32> to vector<1x512xf32>
    %c1_i32_143 = arith.constant 1 : i32
    %887 = tpu.dynamic_rotate %885 by %c1_i32_143 dim 1 : vector<16x512xf32>, i32 -> vector<16x512xf32>
    %888 = vector.broadcast %886 : vector<1x512xf32> to vector<16x512xf32>
    %889 = arith.mulf %887, %888 : vector<16x512xf32>
    %890 = vector.extract_strided_slice %649 {offsets = [0, 24], sizes = [16, 1], strides = [1, 1]} : vector<16x27xf32> to vector<16x1xf32>
    %891 = vector.broadcast %890 : vector<16x1xf32> to vector<16x512xf32>
    %892 = arith.mulf %891, %889 : vector<16x512xf32>
    %893 = arith.addf %881, %892 : vector<16x512xf32>
    %894 = vector.extract_strided_slice %649 {offsets = [0, 25], sizes = [16, 1], strides = [1, 1]} : vector<16x27xf32> to vector<16x1xf32>
    %895 = vector.broadcast %894 : vector<16x1xf32> to vector<16x512xf32>
    %896 = arith.mulf %895, %885 : vector<16x512xf32>
    %897 = arith.addf %893, %896 : vector<16x512xf32>
    %898 = vector.extract_strided_slice %1 {offsets = [4, 0], sizes = [1, 512], strides = [1, 1]} : vector<6x512xf32> to vector<1x512xf32>
    %c511_i32_144 = arith.constant 511 : i32
    %899 = tpu.dynamic_rotate %885 by %c511_i32_144 dim 1 : vector<16x512xf32>, i32 -> vector<16x512xf32>
    %900 = vector.broadcast %898 : vector<1x512xf32> to vector<16x512xf32>
    %901 = arith.mulf %899, %900 : vector<16x512xf32>
    %902 = vector.extract_strided_slice %649 {offsets = [0, 26], sizes = [16, 1], strides = [1, 1]} : vector<16x27xf32> to vector<16x1xf32>
    %903 = vector.broadcast %902 : vector<16x1xf32> to vector<16x512xf32>
    %904 = arith.mulf %903, %901 : vector<16x512xf32>
    %905 = arith.addf %897, %904 : vector<16x512xf32>
    %906 = vector.broadcast %656 : vector<16x1xf32> to vector<16x512xf32>
    %907 = arith.addf %905, %906 : vector<16x512xf32>
    %cst_145 = arith.constant dense<0.000000e+00> : vector<512xf32>
    %908 = vector.multi_reduction <add>, %907, %cst_145 [0] : vector<16x512xf32> to vector<512xf32>
    %909 = vector.shape_cast %908 : vector<512xf32> to vector<1x512xf32>
    %cst_146 = arith.constant 1.600000e+01 : f32
    %910 = vector.broadcast %cst_146 : f32 to vector<1x512xf32>
    %911 = arith.divf %909, %910 : vector<1x512xf32>
    %912 = vector.broadcast %911 : vector<1x512xf32> to vector<16x512xf32>
    %913 = arith.subf %907, %912 : vector<16x512xf32>
    %914 = arith.mulf %913, %913 : vector<16x512xf32>
    %cst_147 = arith.constant dense<0.000000e+00> : vector<512xf32>
    %915 = vector.multi_reduction <add>, %914, %cst_147 [0] : vector<16x512xf32> to vector<512xf32>
    %916 = vector.shape_cast %915 : vector<512xf32> to vector<1x512xf32>
    %cst_148 = arith.constant 1.600000e+01 : f32
    %917 = vector.broadcast %cst_148 : f32 to vector<1x512xf32>
    %918 = arith.divf %916, %917 : vector<1x512xf32>
    %cst_149 = arith.constant 9.99999997E-7 : f32
    %919 = vector.broadcast %cst_149 : f32 to vector<1x512xf32>
    %920 = arith.addf %918, %919 : vector<1x512xf32>
    %921 = math.rsqrt %920 : vector<1x512xf32>
    %922 = vector.broadcast %921 : vector<1x512xf32> to vector<16x512xf32>
    %923 = arith.mulf %913, %922 : vector<16x512xf32>
    %924 = vector.broadcast %657 : vector<16x1xf32> to vector<16x512xf32>
    %925 = arith.mulf %923, %924 : vector<16x512xf32>
    %926 = vector.broadcast %658 : vector<16x1xf32> to vector<16x512xf32>
    %927 = arith.addf %925, %926 : vector<16x512xf32>
    %cst_150 = arith.constant 5.000000e-01 : f32
    %928 = vector.broadcast %cst_150 : f32 to vector<16x512xf32>
    %929 = arith.mulf %928, %927 : vector<16x512xf32>
    %cst_151 = arith.constant 0.707106769 : f32
    %930 = vector.broadcast %cst_151 : f32 to vector<16x512xf32>
    %931 = arith.mulf %927, %930 : vector<16x512xf32>
    %932 = math.erf %931 : vector<16x512xf32>
    %cst_152 = arith.constant 1.000000e+00 : f32
    %933 = vector.broadcast %cst_152 : f32 to vector<16x512xf32>
    %934 = arith.addf %933, %932 : vector<16x512xf32>
    %935 = arith.mulf %929, %934 : vector<16x512xf32>
    %cst_153 = arith.constant dense<0.000000e+00> : vector<16x512xf32>
    %936 = tpu.matmul %651, %935, %cst_153 {dimension_numbers = #tpu.dot_dimension_numbers<[1], [0], [0], [1], [0, 0, 1, 1], [], []>} : vector<16x16xf32>, vector<16x512xf32>, vector<16x512xf32> -> vector<16x512xf32>
    %937 = vector.broadcast %659 : vector<16x1xf32> to vector<16x512xf32>
    %938 = arith.addf %936, %937 : vector<16x512xf32>
    %cst_154 = arith.constant dense<0.000000e+00> : vector<512xf32>
    %939 = vector.multi_reduction <add>, %938, %cst_154 [0] : vector<16x512xf32> to vector<512xf32>
    %940 = vector.shape_cast %939 : vector<512xf32> to vector<1x512xf32>
    %cst_155 = arith.constant 1.600000e+01 : f32
    %941 = vector.broadcast %cst_155 : f32 to vector<1x512xf32>
    %942 = arith.divf %940, %941 : vector<1x512xf32>
    %943 = vector.broadcast %942 : vector<1x512xf32> to vector<16x512xf32>
    %944 = arith.subf %938, %943 : vector<16x512xf32>
    %945 = arith.mulf %944, %944 : vector<16x512xf32>
    %cst_156 = arith.constant dense<0.000000e+00> : vector<512xf32>
    %946 = vector.multi_reduction <add>, %945, %cst_156 [0] : vector<16x512xf32> to vector<512xf32>
    %947 = vector.shape_cast %946 : vector<512xf32> to vector<1x512xf32>
    %cst_157 = arith.constant 1.600000e+01 : f32
    %948 = vector.broadcast %cst_157 : f32 to vector<1x512xf32>
    %949 = arith.divf %947, %948 : vector<1x512xf32>
    %cst_158 = arith.constant 9.99999997E-7 : f32
    %950 = vector.broadcast %cst_158 : f32 to vector<1x512xf32>
    %951 = arith.addf %949, %950 : vector<1x512xf32>
    %952 = math.rsqrt %951 : vector<1x512xf32>
    %953 = vector.broadcast %952 : vector<1x512xf32> to vector<16x512xf32>
    %954 = arith.mulf %944, %953 : vector<16x512xf32>
    %955 = vector.broadcast %660 : vector<16x1xf32> to vector<16x512xf32>
    %956 = arith.mulf %954, %955 : vector<16x512xf32>
    %957 = vector.broadcast %661 : vector<16x1xf32> to vector<16x512xf32>
    %958 = arith.addf %956, %957 : vector<16x512xf32>
    %cst_159 = arith.constant dense<0.000000e+00> : vector<4x512xf32>
    %959 = tpu.matmul %643, %958, %cst_159 {dimension_numbers = #tpu.dot_dimension_numbers<[1], [0], [0], [1], [0, 0, 1, 1], [], []>} : vector<4x16xf32>, vector<16x512xf32>, vector<4x512xf32> -> vector<4x512xf32>
    %960 = vector.extract_strided_slice %0 {offsets = [72, 0], sizes = [4, 128], strides = [1, 1]} : vector<80x128xf32> to vector<4x128xf32>
    %961 = vector.extract_strided_slice %0 {offsets = [76, 0], sizes = [4, 128], strides = [1, 1]} : vector<80x128xf32> to vector<4x128xf32>
    %962 = vector.extract_strided_slice %960 {offsets = [0, 0], sizes = [4, 4], strides = [1, 1]} : vector<4x128xf32> to vector<4x4xf32>
    %963 = vector.extract_strided_slice %960 {offsets = [0, 4], sizes = [4, 27], strides = [1, 1]} : vector<4x128xf32> to vector<4x27xf32>
    %964 = vector.extract_strided_slice %960 {offsets = [0, 31], sizes = [4, 6], strides = [1, 1]} : vector<4x128xf32> to vector<4x6xf32>
    %965 = vector.extract_strided_slice %961 {offsets = [0, 0], sizes = [4, 4], strides = [1, 1]} : vector<4x128xf32> to vector<4x4xf32>
    %966 = vector.extract_strided_slice %961 {offsets = [0, 4], sizes = [4, 3], strides = [1, 1]} : vector<4x128xf32> to vector<4x3xf32>
    %967 = vector.extract_strided_slice %964 {offsets = [0, 0], sizes = [4, 1], strides = [1, 1]} : vector<4x6xf32> to vector<4x1xf32>
    %968 = vector.extract_strided_slice %964 {offsets = [0, 1], sizes = [4, 1], strides = [1, 1]} : vector<4x6xf32> to vector<4x1xf32>
    %969 = vector.extract_strided_slice %964 {offsets = [0, 2], sizes = [4, 1], strides = [1, 1]} : vector<4x6xf32> to vector<4x1xf32>
    %970 = vector.extract_strided_slice %964 {offsets = [0, 3], sizes = [4, 1], strides = [1, 1]} : vector<4x6xf32> to vector<4x1xf32>
    %971 = vector.extract_strided_slice %964 {offsets = [0, 4], sizes = [4, 1], strides = [1, 1]} : vector<4x6xf32> to vector<4x1xf32>
    %972 = vector.extract_strided_slice %964 {offsets = [0, 5], sizes = [4, 1], strides = [1, 1]} : vector<4x6xf32> to vector<4x1xf32>
    %973 = vector.extract_strided_slice %966 {offsets = [0, 0], sizes = [4, 1], strides = [1, 1]} : vector<4x3xf32> to vector<4x1xf32>
    %974 = vector.extract_strided_slice %966 {offsets = [0, 1], sizes = [4, 1], strides = [1, 1]} : vector<4x3xf32> to vector<4x1xf32>
    %975 = vector.extract_strided_slice %966 {offsets = [0, 2], sizes = [4, 1], strides = [1, 1]} : vector<4x3xf32> to vector<4x1xf32>
    %cst_160 = arith.constant dense<0.000000e+00> : vector<4x512xf32>
    %976 = tpu.matmul %962, %959, %cst_160 {dimension_numbers = #tpu.dot_dimension_numbers<[1], [0], [0], [1], [0, 0, 1, 1], [], []>} : vector<4x4xf32>, vector<4x512xf32>, vector<4x512xf32> -> vector<4x512xf32>
    %977 = vector.broadcast %967 : vector<4x1xf32> to vector<4x512xf32>
    %978 = arith.addf %976, %977 : vector<4x512xf32>
    %cst_161 = arith.constant dense<0.000000e+00> : vector<512xf32>
    %979 = vector.multi_reduction <add>, %978, %cst_161 [0] : vector<4x512xf32> to vector<512xf32>
    %980 = vector.shape_cast %979 : vector<512xf32> to vector<1x512xf32>
    %cst_162 = arith.constant 4.000000e+00 : f32
    %981 = vector.broadcast %cst_162 : f32 to vector<1x512xf32>
    %982 = arith.divf %980, %981 : vector<1x512xf32>
    %983 = vector.broadcast %982 : vector<1x512xf32> to vector<4x512xf32>
    %984 = arith.subf %978, %983 : vector<4x512xf32>
    %985 = arith.mulf %984, %984 : vector<4x512xf32>
    %cst_163 = arith.constant dense<0.000000e+00> : vector<512xf32>
    %986 = vector.multi_reduction <add>, %985, %cst_163 [0] : vector<4x512xf32> to vector<512xf32>
    %987 = vector.shape_cast %986 : vector<512xf32> to vector<1x512xf32>
    %cst_164 = arith.constant 4.000000e+00 : f32
    %988 = vector.broadcast %cst_164 : f32 to vector<1x512xf32>
    %989 = arith.divf %987, %988 : vector<1x512xf32>
    %cst_165 = arith.constant 9.99999997E-7 : f32
    %990 = vector.broadcast %cst_165 : f32 to vector<1x512xf32>
    %991 = arith.addf %989, %990 : vector<1x512xf32>
    %992 = math.rsqrt %991 : vector<1x512xf32>
    %993 = vector.broadcast %992 : vector<1x512xf32> to vector<4x512xf32>
    %994 = arith.mulf %984, %993 : vector<4x512xf32>
    %995 = vector.broadcast %968 : vector<4x1xf32> to vector<4x512xf32>
    %996 = arith.mulf %994, %995 : vector<4x512xf32>
    %997 = vector.broadcast %969 : vector<4x1xf32> to vector<4x512xf32>
    %998 = arith.addf %996, %997 : vector<4x512xf32>
    %cst_166 = arith.constant 5.000000e-01 : f32
    %999 = vector.broadcast %cst_166 : f32 to vector<4x512xf32>
    %1000 = arith.mulf %999, %998 : vector<4x512xf32>
    %cst_167 = arith.constant 0.707106769 : f32
    %1001 = vector.broadcast %cst_167 : f32 to vector<4x512xf32>
    %1002 = arith.mulf %998, %1001 : vector<4x512xf32>
    %1003 = math.erf %1002 : vector<4x512xf32>
    %cst_168 = arith.constant 1.000000e+00 : f32
    %1004 = vector.broadcast %cst_168 : f32 to vector<4x512xf32>
    %1005 = arith.addf %1004, %1003 : vector<4x512xf32>
    %1006 = arith.mulf %1000, %1005 : vector<4x512xf32>
    %cst_169 = arith.constant 0.000000e+00 : f32
    %1007 = vector.broadcast %cst_169 : f32 to vector<4x512xf32>
    %1008 = vector.extract_strided_slice %1 {offsets = [1, 0], sizes = [1, 512], strides = [1, 1]} : vector<6x512xf32> to vector<1x512xf32>
    %c64_i32_170 = arith.constant 64 : i32
    %1009 = tpu.dynamic_rotate %1006 by %c64_i32_170 dim 1 : vector<4x512xf32>, i32 -> vector<4x512xf32>
    %1010 = vector.broadcast %1008 : vector<1x512xf32> to vector<4x512xf32>
    %1011 = arith.mulf %1009, %1010 : vector<4x512xf32>
    %1012 = vector.extract_strided_slice %1 {offsets = [3, 0], sizes = [1, 512], strides = [1, 1]} : vector<6x512xf32> to vector<1x512xf32>
    %c8_i32_171 = arith.constant 8 : i32
    %1013 = tpu.dynamic_rotate %1011 by %c8_i32_171 dim 1 : vector<4x512xf32>, i32 -> vector<4x512xf32>
    %1014 = vector.broadcast %1012 : vector<1x512xf32> to vector<4x512xf32>
    %1015 = arith.mulf %1013, %1014 : vector<4x512xf32>
    %1016 = vector.extract_strided_slice %1 {offsets = [5, 0], sizes = [1, 512], strides = [1, 1]} : vector<6x512xf32> to vector<1x512xf32>
    %c1_i32_172 = arith.constant 1 : i32
    %1017 = tpu.dynamic_rotate %1015 by %c1_i32_172 dim 1 : vector<4x512xf32>, i32 -> vector<4x512xf32>
    %1018 = vector.broadcast %1016 : vector<1x512xf32> to vector<4x512xf32>
    %1019 = arith.mulf %1017, %1018 : vector<4x512xf32>
    %1020 = vector.extract_strided_slice %963 {offsets = [0, 0], sizes = [4, 1], strides = [1, 1]} : vector<4x27xf32> to vector<4x1xf32>
    %1021 = vector.broadcast %1020 : vector<4x1xf32> to vector<4x512xf32>
    %1022 = arith.mulf %1021, %1019 : vector<4x512xf32>
    %1023 = arith.addf %1007, %1022 : vector<4x512xf32>
    %1024 = vector.extract_strided_slice %963 {offsets = [0, 1], sizes = [4, 1], strides = [1, 1]} : vector<4x27xf32> to vector<4x1xf32>
    %1025 = vector.broadcast %1024 : vector<4x1xf32> to vector<4x512xf32>
    %1026 = arith.mulf %1025, %1015 : vector<4x512xf32>
    %1027 = arith.addf %1023, %1026 : vector<4x512xf32>
    %1028 = vector.extract_strided_slice %1 {offsets = [4, 0], sizes = [1, 512], strides = [1, 1]} : vector<6x512xf32> to vector<1x512xf32>
    %c511_i32_173 = arith.constant 511 : i32
    %1029 = tpu.dynamic_rotate %1015 by %c511_i32_173 dim 1 : vector<4x512xf32>, i32 -> vector<4x512xf32>
    %1030 = vector.broadcast %1028 : vector<1x512xf32> to vector<4x512xf32>
    %1031 = arith.mulf %1029, %1030 : vector<4x512xf32>
    %1032 = vector.extract_strided_slice %963 {offsets = [0, 2], sizes = [4, 1], strides = [1, 1]} : vector<4x27xf32> to vector<4x1xf32>
    %1033 = vector.broadcast %1032 : vector<4x1xf32> to vector<4x512xf32>
    %1034 = arith.mulf %1033, %1031 : vector<4x512xf32>
    %1035 = arith.addf %1027, %1034 : vector<4x512xf32>
    %1036 = vector.extract_strided_slice %1 {offsets = [5, 0], sizes = [1, 512], strides = [1, 1]} : vector<6x512xf32> to vector<1x512xf32>
    %c1_i32_174 = arith.constant 1 : i32
    %1037 = tpu.dynamic_rotate %1011 by %c1_i32_174 dim 1 : vector<4x512xf32>, i32 -> vector<4x512xf32>
    %1038 = vector.broadcast %1036 : vector<1x512xf32> to vector<4x512xf32>
    %1039 = arith.mulf %1037, %1038 : vector<4x512xf32>
    %1040 = vector.extract_strided_slice %963 {offsets = [0, 3], sizes = [4, 1], strides = [1, 1]} : vector<4x27xf32> to vector<4x1xf32>
    %1041 = vector.broadcast %1040 : vector<4x1xf32> to vector<4x512xf32>
    %1042 = arith.mulf %1041, %1039 : vector<4x512xf32>
    %1043 = arith.addf %1035, %1042 : vector<4x512xf32>
    %1044 = vector.extract_strided_slice %963 {offsets = [0, 4], sizes = [4, 1], strides = [1, 1]} : vector<4x27xf32> to vector<4x1xf32>
    %1045 = vector.broadcast %1044 : vector<4x1xf32> to vector<4x512xf32>
    %1046 = arith.mulf %1045, %1011 : vector<4x512xf32>
    %1047 = arith.addf %1043, %1046 : vector<4x512xf32>
    %1048 = vector.extract_strided_slice %1 {offsets = [4, 0], sizes = [1, 512], strides = [1, 1]} : vector<6x512xf32> to vector<1x512xf32>
    %c511_i32_175 = arith.constant 511 : i32
    %1049 = tpu.dynamic_rotate %1011 by %c511_i32_175 dim 1 : vector<4x512xf32>, i32 -> vector<4x512xf32>
    %1050 = vector.broadcast %1048 : vector<1x512xf32> to vector<4x512xf32>
    %1051 = arith.mulf %1049, %1050 : vector<4x512xf32>
    %1052 = vector.extract_strided_slice %963 {offsets = [0, 5], sizes = [4, 1], strides = [1, 1]} : vector<4x27xf32> to vector<4x1xf32>
    %1053 = vector.broadcast %1052 : vector<4x1xf32> to vector<4x512xf32>
    %1054 = arith.mulf %1053, %1051 : vector<4x512xf32>
    %1055 = arith.addf %1047, %1054 : vector<4x512xf32>
    %1056 = vector.extract_strided_slice %1 {offsets = [2, 0], sizes = [1, 512], strides = [1, 1]} : vector<6x512xf32> to vector<1x512xf32>
    %c504_i32_176 = arith.constant 504 : i32
    %1057 = tpu.dynamic_rotate %1011 by %c504_i32_176 dim 1 : vector<4x512xf32>, i32 -> vector<4x512xf32>
    %1058 = vector.broadcast %1056 : vector<1x512xf32> to vector<4x512xf32>
    %1059 = arith.mulf %1057, %1058 : vector<4x512xf32>
    %1060 = vector.extract_strided_slice %1 {offsets = [5, 0], sizes = [1, 512], strides = [1, 1]} : vector<6x512xf32> to vector<1x512xf32>
    %c1_i32_177 = arith.constant 1 : i32
    %1061 = tpu.dynamic_rotate %1059 by %c1_i32_177 dim 1 : vector<4x512xf32>, i32 -> vector<4x512xf32>
    %1062 = vector.broadcast %1060 : vector<1x512xf32> to vector<4x512xf32>
    %1063 = arith.mulf %1061, %1062 : vector<4x512xf32>
    %1064 = vector.extract_strided_slice %963 {offsets = [0, 6], sizes = [4, 1], strides = [1, 1]} : vector<4x27xf32> to vector<4x1xf32>
    %1065 = vector.broadcast %1064 : vector<4x1xf32> to vector<4x512xf32>
    %1066 = arith.mulf %1065, %1063 : vector<4x512xf32>
    %1067 = arith.addf %1055, %1066 : vector<4x512xf32>
    %1068 = vector.extract_strided_slice %963 {offsets = [0, 7], sizes = [4, 1], strides = [1, 1]} : vector<4x27xf32> to vector<4x1xf32>
    %1069 = vector.broadcast %1068 : vector<4x1xf32> to vector<4x512xf32>
    %1070 = arith.mulf %1069, %1059 : vector<4x512xf32>
    %1071 = arith.addf %1067, %1070 : vector<4x512xf32>
    %1072 = vector.extract_strided_slice %1 {offsets = [4, 0], sizes = [1, 512], strides = [1, 1]} : vector<6x512xf32> to vector<1x512xf32>
    %c511_i32_178 = arith.constant 511 : i32
    %1073 = tpu.dynamic_rotate %1059 by %c511_i32_178 dim 1 : vector<4x512xf32>, i32 -> vector<4x512xf32>
    %1074 = vector.broadcast %1072 : vector<1x512xf32> to vector<4x512xf32>
    %1075 = arith.mulf %1073, %1074 : vector<4x512xf32>
    %1076 = vector.extract_strided_slice %963 {offsets = [0, 8], sizes = [4, 1], strides = [1, 1]} : vector<4x27xf32> to vector<4x1xf32>
    %1077 = vector.broadcast %1076 : vector<4x1xf32> to vector<4x512xf32>
    %1078 = arith.mulf %1077, %1075 : vector<4x512xf32>
    %1079 = arith.addf %1071, %1078 : vector<4x512xf32>
    %1080 = vector.extract_strided_slice %1 {offsets = [3, 0], sizes = [1, 512], strides = [1, 1]} : vector<6x512xf32> to vector<1x512xf32>
    %c8_i32_179 = arith.constant 8 : i32
    %1081 = tpu.dynamic_rotate %1006 by %c8_i32_179 dim 1 : vector<4x512xf32>, i32 -> vector<4x512xf32>
    %1082 = vector.broadcast %1080 : vector<1x512xf32> to vector<4x512xf32>
    %1083 = arith.mulf %1081, %1082 : vector<4x512xf32>
    %1084 = vector.extract_strided_slice %1 {offsets = [5, 0], sizes = [1, 512], strides = [1, 1]} : vector<6x512xf32> to vector<1x512xf32>
    %c1_i32_180 = arith.constant 1 : i32
    %1085 = tpu.dynamic_rotate %1083 by %c1_i32_180 dim 1 : vector<4x512xf32>, i32 -> vector<4x512xf32>
    %1086 = vector.broadcast %1084 : vector<1x512xf32> to vector<4x512xf32>
    %1087 = arith.mulf %1085, %1086 : vector<4x512xf32>
    %1088 = vector.extract_strided_slice %963 {offsets = [0, 9], sizes = [4, 1], strides = [1, 1]} : vector<4x27xf32> to vector<4x1xf32>
    %1089 = vector.broadcast %1088 : vector<4x1xf32> to vector<4x512xf32>
    %1090 = arith.mulf %1089, %1087 : vector<4x512xf32>
    %1091 = arith.addf %1079, %1090 : vector<4x512xf32>
    %1092 = vector.extract_strided_slice %963 {offsets = [0, 10], sizes = [4, 1], strides = [1, 1]} : vector<4x27xf32> to vector<4x1xf32>
    %1093 = vector.broadcast %1092 : vector<4x1xf32> to vector<4x512xf32>
    %1094 = arith.mulf %1093, %1083 : vector<4x512xf32>
    %1095 = arith.addf %1091, %1094 : vector<4x512xf32>
    %1096 = vector.extract_strided_slice %1 {offsets = [4, 0], sizes = [1, 512], strides = [1, 1]} : vector<6x512xf32> to vector<1x512xf32>
    %c511_i32_181 = arith.constant 511 : i32
    %1097 = tpu.dynamic_rotate %1083 by %c511_i32_181 dim 1 : vector<4x512xf32>, i32 -> vector<4x512xf32>
    %1098 = vector.broadcast %1096 : vector<1x512xf32> to vector<4x512xf32>
    %1099 = arith.mulf %1097, %1098 : vector<4x512xf32>
    %1100 = vector.extract_strided_slice %963 {offsets = [0, 11], sizes = [4, 1], strides = [1, 1]} : vector<4x27xf32> to vector<4x1xf32>
    %1101 = vector.broadcast %1100 : vector<4x1xf32> to vector<4x512xf32>
    %1102 = arith.mulf %1101, %1099 : vector<4x512xf32>
    %1103 = arith.addf %1095, %1102 : vector<4x512xf32>
    %1104 = vector.extract_strided_slice %1 {offsets = [5, 0], sizes = [1, 512], strides = [1, 1]} : vector<6x512xf32> to vector<1x512xf32>
    %c1_i32_182 = arith.constant 1 : i32
    %1105 = tpu.dynamic_rotate %1006 by %c1_i32_182 dim 1 : vector<4x512xf32>, i32 -> vector<4x512xf32>
    %1106 = vector.broadcast %1104 : vector<1x512xf32> to vector<4x512xf32>
    %1107 = arith.mulf %1105, %1106 : vector<4x512xf32>
    %1108 = vector.extract_strided_slice %963 {offsets = [0, 12], sizes = [4, 1], strides = [1, 1]} : vector<4x27xf32> to vector<4x1xf32>
    %1109 = vector.broadcast %1108 : vector<4x1xf32> to vector<4x512xf32>
    %1110 = arith.mulf %1109, %1107 : vector<4x512xf32>
    %1111 = arith.addf %1103, %1110 : vector<4x512xf32>
    %1112 = vector.extract_strided_slice %963 {offsets = [0, 13], sizes = [4, 1], strides = [1, 1]} : vector<4x27xf32> to vector<4x1xf32>
    %1113 = vector.broadcast %1112 : vector<4x1xf32> to vector<4x512xf32>
    %1114 = arith.mulf %1113, %1006 : vector<4x512xf32>
    %1115 = arith.addf %1111, %1114 : vector<4x512xf32>
    %1116 = vector.extract_strided_slice %1 {offsets = [4, 0], sizes = [1, 512], strides = [1, 1]} : vector<6x512xf32> to vector<1x512xf32>
    %c511_i32_183 = arith.constant 511 : i32
    %1117 = tpu.dynamic_rotate %1006 by %c511_i32_183 dim 1 : vector<4x512xf32>, i32 -> vector<4x512xf32>
    %1118 = vector.broadcast %1116 : vector<1x512xf32> to vector<4x512xf32>
    %1119 = arith.mulf %1117, %1118 : vector<4x512xf32>
    %1120 = vector.extract_strided_slice %963 {offsets = [0, 14], sizes = [4, 1], strides = [1, 1]} : vector<4x27xf32> to vector<4x1xf32>
    %1121 = vector.broadcast %1120 : vector<4x1xf32> to vector<4x512xf32>
    %1122 = arith.mulf %1121, %1119 : vector<4x512xf32>
    %1123 = arith.addf %1115, %1122 : vector<4x512xf32>
    %1124 = vector.extract_strided_slice %1 {offsets = [2, 0], sizes = [1, 512], strides = [1, 1]} : vector<6x512xf32> to vector<1x512xf32>
    %c504_i32_184 = arith.constant 504 : i32
    %1125 = tpu.dynamic_rotate %1006 by %c504_i32_184 dim 1 : vector<4x512xf32>, i32 -> vector<4x512xf32>
    %1126 = vector.broadcast %1124 : vector<1x512xf32> to vector<4x512xf32>
    %1127 = arith.mulf %1125, %1126 : vector<4x512xf32>
    %1128 = vector.extract_strided_slice %1 {offsets = [5, 0], sizes = [1, 512], strides = [1, 1]} : vector<6x512xf32> to vector<1x512xf32>
    %c1_i32_185 = arith.constant 1 : i32
    %1129 = tpu.dynamic_rotate %1127 by %c1_i32_185 dim 1 : vector<4x512xf32>, i32 -> vector<4x512xf32>
    %1130 = vector.broadcast %1128 : vector<1x512xf32> to vector<4x512xf32>
    %1131 = arith.mulf %1129, %1130 : vector<4x512xf32>
    %1132 = vector.extract_strided_slice %963 {offsets = [0, 15], sizes = [4, 1], strides = [1, 1]} : vector<4x27xf32> to vector<4x1xf32>
    %1133 = vector.broadcast %1132 : vector<4x1xf32> to vector<4x512xf32>
    %1134 = arith.mulf %1133, %1131 : vector<4x512xf32>
    %1135 = arith.addf %1123, %1134 : vector<4x512xf32>
    %1136 = vector.extract_strided_slice %963 {offsets = [0, 16], sizes = [4, 1], strides = [1, 1]} : vector<4x27xf32> to vector<4x1xf32>
    %1137 = vector.broadcast %1136 : vector<4x1xf32> to vector<4x512xf32>
    %1138 = arith.mulf %1137, %1127 : vector<4x512xf32>
    %1139 = arith.addf %1135, %1138 : vector<4x512xf32>
    %1140 = vector.extract_strided_slice %1 {offsets = [4, 0], sizes = [1, 512], strides = [1, 1]} : vector<6x512xf32> to vector<1x512xf32>
    %c511_i32_186 = arith.constant 511 : i32
    %1141 = tpu.dynamic_rotate %1127 by %c511_i32_186 dim 1 : vector<4x512xf32>, i32 -> vector<4x512xf32>
    %1142 = vector.broadcast %1140 : vector<1x512xf32> to vector<4x512xf32>
    %1143 = arith.mulf %1141, %1142 : vector<4x512xf32>
    %1144 = vector.extract_strided_slice %963 {offsets = [0, 17], sizes = [4, 1], strides = [1, 1]} : vector<4x27xf32> to vector<4x1xf32>
    %1145 = vector.broadcast %1144 : vector<4x1xf32> to vector<4x512xf32>
    %1146 = arith.mulf %1145, %1143 : vector<4x512xf32>
    %1147 = arith.addf %1139, %1146 : vector<4x512xf32>
    %1148 = vector.extract_strided_slice %1 {offsets = [0, 0], sizes = [1, 512], strides = [1, 1]} : vector<6x512xf32> to vector<1x512xf32>
    %c448_i32_187 = arith.constant 448 : i32
    %1149 = tpu.dynamic_rotate %1006 by %c448_i32_187 dim 1 : vector<4x512xf32>, i32 -> vector<4x512xf32>
    %1150 = vector.broadcast %1148 : vector<1x512xf32> to vector<4x512xf32>
    %1151 = arith.mulf %1149, %1150 : vector<4x512xf32>
    %1152 = vector.extract_strided_slice %1 {offsets = [3, 0], sizes = [1, 512], strides = [1, 1]} : vector<6x512xf32> to vector<1x512xf32>
    %c8_i32_188 = arith.constant 8 : i32
    %1153 = tpu.dynamic_rotate %1151 by %c8_i32_188 dim 1 : vector<4x512xf32>, i32 -> vector<4x512xf32>
    %1154 = vector.broadcast %1152 : vector<1x512xf32> to vector<4x512xf32>
    %1155 = arith.mulf %1153, %1154 : vector<4x512xf32>
    %1156 = vector.extract_strided_slice %1 {offsets = [5, 0], sizes = [1, 512], strides = [1, 1]} : vector<6x512xf32> to vector<1x512xf32>
    %c1_i32_189 = arith.constant 1 : i32
    %1157 = tpu.dynamic_rotate %1155 by %c1_i32_189 dim 1 : vector<4x512xf32>, i32 -> vector<4x512xf32>
    %1158 = vector.broadcast %1156 : vector<1x512xf32> to vector<4x512xf32>
    %1159 = arith.mulf %1157, %1158 : vector<4x512xf32>
    %1160 = vector.extract_strided_slice %963 {offsets = [0, 18], sizes = [4, 1], strides = [1, 1]} : vector<4x27xf32> to vector<4x1xf32>
    %1161 = vector.broadcast %1160 : vector<4x1xf32> to vector<4x512xf32>
    %1162 = arith.mulf %1161, %1159 : vector<4x512xf32>
    %1163 = arith.addf %1147, %1162 : vector<4x512xf32>
    %1164 = vector.extract_strided_slice %963 {offsets = [0, 19], sizes = [4, 1], strides = [1, 1]} : vector<4x27xf32> to vector<4x1xf32>
    %1165 = vector.broadcast %1164 : vector<4x1xf32> to vector<4x512xf32>
    %1166 = arith.mulf %1165, %1155 : vector<4x512xf32>
    %1167 = arith.addf %1163, %1166 : vector<4x512xf32>
    %1168 = vector.extract_strided_slice %1 {offsets = [4, 0], sizes = [1, 512], strides = [1, 1]} : vector<6x512xf32> to vector<1x512xf32>
    %c511_i32_190 = arith.constant 511 : i32
    %1169 = tpu.dynamic_rotate %1155 by %c511_i32_190 dim 1 : vector<4x512xf32>, i32 -> vector<4x512xf32>
    %1170 = vector.broadcast %1168 : vector<1x512xf32> to vector<4x512xf32>
    %1171 = arith.mulf %1169, %1170 : vector<4x512xf32>
    %1172 = vector.extract_strided_slice %963 {offsets = [0, 20], sizes = [4, 1], strides = [1, 1]} : vector<4x27xf32> to vector<4x1xf32>
    %1173 = vector.broadcast %1172 : vector<4x1xf32> to vector<4x512xf32>
    %1174 = arith.mulf %1173, %1171 : vector<4x512xf32>
    %1175 = arith.addf %1167, %1174 : vector<4x512xf32>
    %1176 = vector.extract_strided_slice %1 {offsets = [5, 0], sizes = [1, 512], strides = [1, 1]} : vector<6x512xf32> to vector<1x512xf32>
    %c1_i32_191 = arith.constant 1 : i32
    %1177 = tpu.dynamic_rotate %1151 by %c1_i32_191 dim 1 : vector<4x512xf32>, i32 -> vector<4x512xf32>
    %1178 = vector.broadcast %1176 : vector<1x512xf32> to vector<4x512xf32>
    %1179 = arith.mulf %1177, %1178 : vector<4x512xf32>
    %1180 = vector.extract_strided_slice %963 {offsets = [0, 21], sizes = [4, 1], strides = [1, 1]} : vector<4x27xf32> to vector<4x1xf32>
    %1181 = vector.broadcast %1180 : vector<4x1xf32> to vector<4x512xf32>
    %1182 = arith.mulf %1181, %1179 : vector<4x512xf32>
    %1183 = arith.addf %1175, %1182 : vector<4x512xf32>
    %1184 = vector.extract_strided_slice %963 {offsets = [0, 22], sizes = [4, 1], strides = [1, 1]} : vector<4x27xf32> to vector<4x1xf32>
    %1185 = vector.broadcast %1184 : vector<4x1xf32> to vector<4x512xf32>
    %1186 = arith.mulf %1185, %1151 : vector<4x512xf32>
    %1187 = arith.addf %1183, %1186 : vector<4x512xf32>
    %1188 = vector.extract_strided_slice %1 {offsets = [4, 0], sizes = [1, 512], strides = [1, 1]} : vector<6x512xf32> to vector<1x512xf32>
    %c511_i32_192 = arith.constant 511 : i32
    %1189 = tpu.dynamic_rotate %1151 by %c511_i32_192 dim 1 : vector<4x512xf32>, i32 -> vector<4x512xf32>
    %1190 = vector.broadcast %1188 : vector<1x512xf32> to vector<4x512xf32>
    %1191 = arith.mulf %1189, %1190 : vector<4x512xf32>
    %1192 = vector.extract_strided_slice %963 {offsets = [0, 23], sizes = [4, 1], strides = [1, 1]} : vector<4x27xf32> to vector<4x1xf32>
    %1193 = vector.broadcast %1192 : vector<4x1xf32> to vector<4x512xf32>
    %1194 = arith.mulf %1193, %1191 : vector<4x512xf32>
    %1195 = arith.addf %1187, %1194 : vector<4x512xf32>
    %1196 = vector.extract_strided_slice %1 {offsets = [2, 0], sizes = [1, 512], strides = [1, 1]} : vector<6x512xf32> to vector<1x512xf32>
    %c504_i32_193 = arith.constant 504 : i32
    %1197 = tpu.dynamic_rotate %1151 by %c504_i32_193 dim 1 : vector<4x512xf32>, i32 -> vector<4x512xf32>
    %1198 = vector.broadcast %1196 : vector<1x512xf32> to vector<4x512xf32>
    %1199 = arith.mulf %1197, %1198 : vector<4x512xf32>
    %1200 = vector.extract_strided_slice %1 {offsets = [5, 0], sizes = [1, 512], strides = [1, 1]} : vector<6x512xf32> to vector<1x512xf32>
    %c1_i32_194 = arith.constant 1 : i32
    %1201 = tpu.dynamic_rotate %1199 by %c1_i32_194 dim 1 : vector<4x512xf32>, i32 -> vector<4x512xf32>
    %1202 = vector.broadcast %1200 : vector<1x512xf32> to vector<4x512xf32>
    %1203 = arith.mulf %1201, %1202 : vector<4x512xf32>
    %1204 = vector.extract_strided_slice %963 {offsets = [0, 24], sizes = [4, 1], strides = [1, 1]} : vector<4x27xf32> to vector<4x1xf32>
    %1205 = vector.broadcast %1204 : vector<4x1xf32> to vector<4x512xf32>
    %1206 = arith.mulf %1205, %1203 : vector<4x512xf32>
    %1207 = arith.addf %1195, %1206 : vector<4x512xf32>
    %1208 = vector.extract_strided_slice %963 {offsets = [0, 25], sizes = [4, 1], strides = [1, 1]} : vector<4x27xf32> to vector<4x1xf32>
    %1209 = vector.broadcast %1208 : vector<4x1xf32> to vector<4x512xf32>
    %1210 = arith.mulf %1209, %1199 : vector<4x512xf32>
    %1211 = arith.addf %1207, %1210 : vector<4x512xf32>
    %1212 = vector.extract_strided_slice %1 {offsets = [4, 0], sizes = [1, 512], strides = [1, 1]} : vector<6x512xf32> to vector<1x512xf32>
    %c511_i32_195 = arith.constant 511 : i32
    %1213 = tpu.dynamic_rotate %1199 by %c511_i32_195 dim 1 : vector<4x512xf32>, i32 -> vector<4x512xf32>
    %1214 = vector.broadcast %1212 : vector<1x512xf32> to vector<4x512xf32>
    %1215 = arith.mulf %1213, %1214 : vector<4x512xf32>
    %1216 = vector.extract_strided_slice %963 {offsets = [0, 26], sizes = [4, 1], strides = [1, 1]} : vector<4x27xf32> to vector<4x1xf32>
    %1217 = vector.broadcast %1216 : vector<4x1xf32> to vector<4x512xf32>
    %1218 = arith.mulf %1217, %1215 : vector<4x512xf32>
    %1219 = arith.addf %1211, %1218 : vector<4x512xf32>
    %1220 = vector.broadcast %970 : vector<4x1xf32> to vector<4x512xf32>
    %1221 = arith.addf %1219, %1220 : vector<4x512xf32>
    %cst_196 = arith.constant dense<0.000000e+00> : vector<512xf32>
    %1222 = vector.multi_reduction <add>, %1221, %cst_196 [0] : vector<4x512xf32> to vector<512xf32>
    %1223 = vector.shape_cast %1222 : vector<512xf32> to vector<1x512xf32>
    %cst_197 = arith.constant 4.000000e+00 : f32
    %1224 = vector.broadcast %cst_197 : f32 to vector<1x512xf32>
    %1225 = arith.divf %1223, %1224 : vector<1x512xf32>
    %1226 = vector.broadcast %1225 : vector<1x512xf32> to vector<4x512xf32>
    %1227 = arith.subf %1221, %1226 : vector<4x512xf32>
    %1228 = arith.mulf %1227, %1227 : vector<4x512xf32>
    %cst_198 = arith.constant dense<0.000000e+00> : vector<512xf32>
    %1229 = vector.multi_reduction <add>, %1228, %cst_198 [0] : vector<4x512xf32> to vector<512xf32>
    %1230 = vector.shape_cast %1229 : vector<512xf32> to vector<1x512xf32>
    %cst_199 = arith.constant 4.000000e+00 : f32
    %1231 = vector.broadcast %cst_199 : f32 to vector<1x512xf32>
    %1232 = arith.divf %1230, %1231 : vector<1x512xf32>
    %cst_200 = arith.constant 9.99999997E-7 : f32
    %1233 = vector.broadcast %cst_200 : f32 to vector<1x512xf32>
    %1234 = arith.addf %1232, %1233 : vector<1x512xf32>
    %1235 = math.rsqrt %1234 : vector<1x512xf32>
    %1236 = vector.broadcast %1235 : vector<1x512xf32> to vector<4x512xf32>
    %1237 = arith.mulf %1227, %1236 : vector<4x512xf32>
    %1238 = vector.broadcast %971 : vector<4x1xf32> to vector<4x512xf32>
    %1239 = arith.mulf %1237, %1238 : vector<4x512xf32>
    %1240 = vector.broadcast %972 : vector<4x1xf32> to vector<4x512xf32>
    %1241 = arith.addf %1239, %1240 : vector<4x512xf32>
    %cst_201 = arith.constant 5.000000e-01 : f32
    %1242 = vector.broadcast %cst_201 : f32 to vector<4x512xf32>
    %1243 = arith.mulf %1242, %1241 : vector<4x512xf32>
    %cst_202 = arith.constant 0.707106769 : f32
    %1244 = vector.broadcast %cst_202 : f32 to vector<4x512xf32>
    %1245 = arith.mulf %1241, %1244 : vector<4x512xf32>
    %1246 = math.erf %1245 : vector<4x512xf32>
    %cst_203 = arith.constant 1.000000e+00 : f32
    %1247 = vector.broadcast %cst_203 : f32 to vector<4x512xf32>
    %1248 = arith.addf %1247, %1246 : vector<4x512xf32>
    %1249 = arith.mulf %1243, %1248 : vector<4x512xf32>
    %cst_204 = arith.constant dense<0.000000e+00> : vector<4x512xf32>
    %1250 = tpu.matmul %965, %1249, %cst_204 {dimension_numbers = #tpu.dot_dimension_numbers<[1], [0], [0], [1], [0, 0, 1, 1], [], []>} : vector<4x4xf32>, vector<4x512xf32>, vector<4x512xf32> -> vector<4x512xf32>
    %1251 = vector.broadcast %973 : vector<4x1xf32> to vector<4x512xf32>
    %1252 = arith.addf %1250, %1251 : vector<4x512xf32>
    %cst_205 = arith.constant dense<0.000000e+00> : vector<512xf32>
    %1253 = vector.multi_reduction <add>, %1252, %cst_205 [0] : vector<4x512xf32> to vector<512xf32>
    %1254 = vector.shape_cast %1253 : vector<512xf32> to vector<1x512xf32>
    %cst_206 = arith.constant 4.000000e+00 : f32
    %1255 = vector.broadcast %cst_206 : f32 to vector<1x512xf32>
    %1256 = arith.divf %1254, %1255 : vector<1x512xf32>
    %1257 = vector.broadcast %1256 : vector<1x512xf32> to vector<4x512xf32>
    %1258 = arith.subf %1252, %1257 : vector<4x512xf32>
    %1259 = arith.mulf %1258, %1258 : vector<4x512xf32>
    %cst_207 = arith.constant dense<0.000000e+00> : vector<512xf32>
    %1260 = vector.multi_reduction <add>, %1259, %cst_207 [0] : vector<4x512xf32> to vector<512xf32>
    %1261 = vector.shape_cast %1260 : vector<512xf32> to vector<1x512xf32>
    %cst_208 = arith.constant 4.000000e+00 : f32
    %1262 = vector.broadcast %cst_208 : f32 to vector<1x512xf32>
    %1263 = arith.divf %1261, %1262 : vector<1x512xf32>
    %cst_209 = arith.constant 9.99999997E-7 : f32
    %1264 = vector.broadcast %cst_209 : f32 to vector<1x512xf32>
    %1265 = arith.addf %1263, %1264 : vector<1x512xf32>
    %1266 = math.rsqrt %1265 : vector<1x512xf32>
    %1267 = vector.broadcast %1266 : vector<1x512xf32> to vector<4x512xf32>
    %1268 = arith.mulf %1258, %1267 : vector<4x512xf32>
    %1269 = vector.broadcast %974 : vector<4x1xf32> to vector<4x512xf32>
    %1270 = arith.mulf %1268, %1269 : vector<4x512xf32>
    %1271 = vector.broadcast %975 : vector<4x1xf32> to vector<4x512xf32>
    %1272 = arith.addf %1270, %1271 : vector<4x512xf32>
    %1273 = arith.addf %3, %1272 : vector<4x512xf32>
    %c0_210 = arith.constant 0 : index
    %c0_211 = arith.constant 0 : index
    %c0_212 = arith.constant 0 : index
    %1274 = vector.load %arg6[%c0_210, %c0_211, %c0_212] : memref<1x4x512xf32, #tpu.memory_space<vmem>>, vector<1x4x512xf32>
    %1275 = vector.shape_cast %1274 : vector<1x4x512xf32> to vector<4x512xf32>
    %1276 = vector.shape_cast %1273 : vector<4x512xf32> to vector<1x4x512xf32>
    tpu.vector_store %arg6[%c0_210, %c0_211, %c0_212], %1276 {strides = array<i32>} : memref<1x4x512xf32, #tpu.memory_space<vmem>>, vector<1x4x512xf32>,
    return
  }
  func.func @transform_0(%arg0: i32) -> (i32, i32, i32) {
    %c0_i32 = arith.constant 0 : i32
    %c0_i32_0 = arith.constant 0 : i32
    %c0_i32_1 = arith.constant 0 : i32
    return %arg0, %c0_i32, %c0_i32_0 : i32, i32, i32
  }
  func.func @transform_1(%arg0: i32) -> (i32, i32, i32) {
    %c0_i32 = arith.constant 0 : i32
    %c0_i32_0 = arith.constant 0 : i32
    %c0_i32_1 = arith.constant 0 : i32
    return %arg0, %c0_i32, %c0_i32_0 : i32, i32, i32
  }
  func.func @transform_2(%arg0: i32) -> (i32, i32, i32) {
    %c0_i32 = arith.constant 0 : i32
    %c0_i32_0 = arith.constant 0 : i32
    %c0_i32_1 = arith.constant 0 : i32
    return %arg0, %c0_i32, %c0_i32_0 : i32, i32, i32
  }
  func.func @transform_3(%arg0: i32) -> (i32, i32) {
    %c0_i32 = arith.constant 0 : i32
    %c0_i32_0 = arith.constant 0 : i32
    %c0_i32_1 = arith.constant 0 : i32
    return %c0_i32, %c0_i32_0 : i32, i32
  }
  func.func @transform_4(%arg0: i32) -> (i32, i32) {
    %c0_i32 = arith.constant 0 : i32
    %c0_i32_0 = arith.constant 0 : i32
    %c0_i32_1 = arith.constant 0 : i32
    return %c0_i32, %c0_i32_0 : i32, i32
  }
  func.func @transform_5(%arg0: i32) -> (i32, i32, i32) {
    %c0_i32 = arith.constant 0 : i32
    %c0_i32_0 = arith.constant 0 : i32
    %c0_i32_1 = arith.constant 0 : i32
    return %arg0, %c0_i32, %c0_i32_0 : i32, i32, i32
  }
}

</mosaic_0001>

<llo_original>
// kernel: attention_layer.1
$region0: #{attention_layer.1}
  #allocation0 [shape = 'u32[]', space=smem, size = 0x4, offset = 0x4, fixed_abs, tag = 'smem constant byte address 0x4 - core index']
  #allocation1 [shape = 'u32[144,128]{1,0:T(1,128)}', space=vmem, size = 0x12000, scoped, tag = 'internal scratch']
  %s0 = inlined_call_operand.vmem [shape: f32[2,4,512], index: 0, kind: input, shape index: {}]
  %s1 = inlined_call_operand.vmem [shape: f32[2,16,512], index: 1, kind: input, shape index: {}]
  %s2 = inlined_call_operand.vmem [shape: f32[2,16,512], index: 2, kind: input, shape index: {}]
  %s3 = inlined_call_operand.vmem [shape: f32[80,128], index: 3, kind: input, shape index: {}]
  %s4 = inlined_call_operand.vmem [shape: f32[6,512], index: 4, kind: input, shape index: {}]
  %s5 = inlined_call_operand.vmem [shape: f32[2,4,512], index: 5, kind: output, shape index: {}]
  %s6 = sld [smem:[#allocation0]]
  $region53: #{attention_layer.1} parent=0
    _
  %s8 = ssub.s32 1, %s6
  %s9 = scalar_select 0, %s8, %s6
  loop: start=0, step=1, limit=4
  $region2: #{attention_layer.1} parent=0 // loop_pre_header
    _
  $region3: #{attention_layer.1} parent=0 // loop_header
    %s11 = sphi 0, %s15
    %p12 = scmp.ge.s32.totalorder %s11, 4
    %s21 = sphi 0, %s23
    %s24 = sphi 0, %s21
    %s25 = sphi 0, %s24
    %s41 = sphi 0, %s25
    %s47 = sphi 0, %s49
    %s50 = sphi 0, %s47
    %s51 = sphi 0, %s50
    %s67 = sphi 0, %s51
    %s73 = sphi 0, %s75
    %s76 = sphi 0, %s73
    %s77 = sphi 0, %s76
    %s93 = sphi 0, %s77
    %s97 = sphi 0, %s97
    %s99 = sphi 0, %s97
    %s100 = sphi 0, %s99
    %s114 = sphi 0, %s100
    %s118 = sphi 0, %s118
    %s120 = sphi 0, %s118
    %s121 = sphi 0, %s120
    %s135 = sphi 0, %s121
    %s141 = sphi 0, %s143
    %s144 = sphi 0, %s141
    %s145 = sphi 0, %s144
    %s161 = sphi 0, %s145
  $region4: #{attention_layer.1} parent=0 // loop_header_branch
    %14 = sbr.rel (%p12) target = $region8
  $region5: #{attention_layer.1} parent=0 // loop_body
    %s16 = ssub.s32 %s11, 1
    %s17 = ssub.s32 %s11, 2
    %s18 = sadd.s32 %s11, 1
    %s19 = ssub.s32 %s11, %s18
    %p20 = scmp.eq.s32.totalorder %s19, 0
    %s22 = sadd.s32 %s21, 1
    %s23 = scalar_select %p20, %s21, %s22
    %p26 = pneg %p20
    %p27 = scmp.eq.s32.totalorder %s11, 1
    %p28 = por %p26, %p27
    %p29 = scmp.ne.s32.totalorder %s21, %s24
    %p30 = scmp.eq.s32.totalorder %s11, 0
    %p31 = por %p29, %p30
    %p32 = scmp.ne.s32.totalorder %s21, %s24
    %p33 = scmp.eq.s32.totalorder %s16, 1
    %p34 = por %p32, %p33
    %p35 = scmp.ne.s32.totalorder %s24, %s25
    %p36 = scmp.eq.s32.totalorder %s16, 0
    %p37 = por %p35, %p36
    %p38 = scmp.ne.s32.totalorder %s24, %s25
    %p39 = scmp.eq.s32.totalorder %s17, 1
    %p40 = por %p38, %p39
    %p42 = scmp.ne.s32.totalorder %s25, %s41
    %p43 = scmp.eq.s32.totalorder %s17, 0
    %p44 = por %p42, %p43
    %s45 = ssub.s32 %s11, %s18
    %p46 = scmp.eq.s32.totalorder %s45, 0
    %s48 = sadd.s32 %s47, 1
    %s49 = scalar_select %p46, %s47, %s48
    %p52 = pneg %p46
    %p53 = scmp.eq.s32.totalorder %s11, 1
    %p54 = por %p52, %p53
    %p55 = scmp.ne.s32.totalorder %s47, %s50
    %p56 = scmp.eq.s32.totalorder %s11, 0
    %p57 = por %p55, %p56
    %p58 = scmp.ne.s32.totalorder %s47, %s50
    %p59 = scmp.eq.s32.totalorder %s16, 1
    %p60 = por %p58, %p59
    %p61 = scmp.ne.s32.totalorder %s50, %s51
    %p62 = scmp.eq.s32.totalorder %s16, 0
    %p63 = por %p61, %p62
    %p64 = scmp.ne.s32.totalorder %s50, %s51
    %p65 = scmp.eq.s32.totalorder %s17, 1
    %p66 = por %p64, %p65
    %p68 = scmp.ne.s32.totalorder %s51, %s67
    %p69 = scmp.eq.s32.totalorder %s17, 0
    %p70 = por %p68, %p69
    %s71 = ssub.s32 %s11, %s18
    %p72 = scmp.eq.s32.totalorder %s71, 0
    %s74 = sadd.s32 %s73, 1
    %s75 = scalar_select %p72, %s73, %s74
    %p78 = pneg %p72
    %p79 = scmp.eq.s32.totalorder %s11, 1
    %p80 = por %p78, %p79
    %p81 = scmp.ne.s32.totalorder %s73, %s76
    %p82 = scmp.eq.s32.totalorder %s11, 0
    %p83 = por %p81, %p82
    %p84 = scmp.ne.s32.totalorder %s73, %s76
    %p85 = scmp.eq.s32.totalorder %s16, 1
    %p86 = por %p84, %p85
    %p87 = scmp.ne.s32.totalorder %s76, %s77
    %p88 = scmp.eq.s32.totalorder %s16, 0
    %p89 = por %p87, %p88
    %p90 = scmp.ne.s32.totalorder %s76, %s77
    %p91 = scmp.eq.s32.totalorder %s17, 1
    %p92 = por %p90, %p91
    %p94 = scmp.ne.s32.totalorder %s77, %s93
    %p95 = scmp.eq.s32.totalorder %s17, 0
    %p96 = por %p94, %p95
    %s98 = sadd.s32 %s97, 1
    %p101 = scmp.eq.s32.totalorder %s11, 1
    %p102 = scmp.ne.s32.totalorder %s97, %s99
    %p103 = scmp.eq.s32.totalorder %s11, 0
    %p104 = por %p102, %p103
    %p105 = scmp.ne.s32.totalorder %s97, %s99
    %p106 = scmp.eq.s32.totalorder %s16, 1
    %p107 = por %p105, %p106
    %p108 = scmp.ne.s32.totalorder %s99, %s100
    %p109 = scmp.eq.s32.totalorder %s16, 0
    %p110 = por %p108, %p109
    %p111 = scmp.ne.s32.totalorder %s99, %s100
    %p112 = scmp.eq.s32.totalorder %s17, 1
    %p113 = por %p111, %p112
    %p115 = scmp.ne.s32.totalorder %s100, %s114
    %p116 = scmp.eq.s32.totalorder %s17, 0
    %p117 = por %p115, %p116
    %s119 = sadd.s32 %s118, 1
    %p122 = scmp.eq.s32.totalorder %s11, 1
    %p123 = scmp.ne.s32.totalorder %s118, %s120
    %p124 = scmp.eq.s32.totalorder %s11, 0
    %p125 = por %p123, %p124
    %p126 = scmp.ne.s32.totalorder %s118, %s120
    %p127 = scmp.eq.s32.totalorder %s16, 1
    %p128 = por %p126, %p127
    %p129 = scmp.ne.s32.totalorder %s120, %s121
    %p130 = scmp.eq.s32.totalorder %s16, 0
    %p131 = por %p129, %p130
    %p132 = scmp.ne.s32.totalorder %s120, %s121
    %p133 = scmp.eq.s32.totalorder %s17, 1
    %p134 = por %p132, %p133
    %p136 = scmp.ne.s32.totalorder %s121, %s135
    %p137 = scmp.eq.s32.totalorder %s17, 0
    %p138 = por %p136, %p137
    %s139 = ssub.s32 %s11, %s18
    %p140 = scmp.eq.s32.totalorder %s139, 0
    %s142 = sadd.s32 %s141, 1
    %s143 = scalar_select %p140, %s141, %s142
    %p146 = pneg %p140
    %p147 = scmp.eq.s32.totalorder %s11, 1
    %p148 = por %p146, %p147
    %p149 = scmp.ne.s32.totalorder %s141, %s144
    %p150 = scmp.eq.s32.totalorder %s11, 0
    %p151 = por %p149, %p150
    %p152 = scmp.ne.s32.totalorder %s141, %s144
    %p153 = scmp.eq.s32.totalorder %s16, 1
    %p154 = por %p152, %p153
    %p155 = scmp.ne.s32.totalorder %s144, %s145
    %p156 = scmp.eq.s32.totalorder %s16, 0
    %p157 = por %p155, %p156
    %p158 = scmp.ne.s32.totalorder %s144, %s145
    %p159 = scmp.eq.s32.totalorder %s17, 1
    %p160 = por %p158, %p159
    %p162 = scmp.ne.s32.totalorder %s145, %s161
    %p163 = scmp.eq.s32.totalorder %s17, 0
    %p164 = por %p162, %p163
    %p165 = scmp.le.s32.totalorder 1, %s11
    %p166 = scmp.lt.s32.totalorder %s11, 3
    %p167 = pnand %p165, %p166
    %p168 = pneg %p167
    // Predicated region
    $region9: #{attention_layer.1} parent=5 // pred_check
      _
    $region10: #{attention_layer.1} parent=5 // pred_check_branch
      %170 = sbr.rel (%p167) target = $region12
    $region11: #{attention_layer.1} parent=5 // pred_region
      %s171 = ssub.s32 %s11, 1
      // Predicated region
      $region13: #{attention_layer.1} parent=11 // pred_check
        %p172 = pneg %p110
      $region14: #{attention_layer.1} parent=11 // pred_check_branch
        %174 = sbr.rel (%p172) target = $region16
      $region15: #{attention_layer.1} parent=11 // pred_region
        _
      $region16: #{attention_layer.1} parent=11 // pred_fallthru
        _
      // Predicated region
      $region17: #{attention_layer.1} parent=11 // pred_check
        %p175 = pneg %p131
      $region18: #{attention_layer.1} parent=11 // pred_check_branch
        %177 = sbr.rel (%p175) target = $region20
      $region19: #{attention_layer.1} parent=11 // pred_region
        _
      $region20: #{attention_layer.1} parent=11 // pred_fallthru
        _
    $region12: #{attention_layer.1} parent=5 // pred_fallthru
      _
    %p178 = scmp.lt.s32.totalorder %s11, 2
    // Predicated region
    $region21: #{attention_layer.1} parent=5 // pred_check
      %p179 = pneg %p178
    $region22: #{attention_layer.1} parent=5 // pred_check_branch
      %181 = sbr.rel (%p179) target = $region24
    $region23: #{attention_layer.1} parent=5 // pred_region
      // Predicated region
      $region25: #{attention_layer.1} parent=23 // pred_check
        %p182 = pneg %p31
      $region26: #{attention_layer.1} parent=23 // pred_check_branch
        %184 = sbr.rel (%p182) target = $region28
      $region27: #{attention_layer.1} parent=23 // pred_region
        %p185 = scmp.lt.s32.totalorder %s11, 1
        %s186 = scalar_select %p185, %s11, 1
        %s187 = smul.addr %s186, 4
        %s188 = smul.addr %s187, 4
        %s189 = scalar_lea.vmem %s0, %s188
      $region28: #{attention_layer.1} parent=23 // pred_fallthru
        _
      // Predicated region
      $region29: #{attention_layer.1} parent=23 // pred_check
        %p190 = pneg %p57
      $region30: #{attention_layer.1} parent=23 // pred_check_branch
        %192 = sbr.rel (%p190) target = $region32
      $region31: #{attention_layer.1} parent=23 // pred_region
        %p193 = scmp.lt.s32.totalorder %s11, 1
        %s194 = scalar_select %p193, %s11, 1
        %s195 = smul.addr %s194, 8
        %s196 = smul.addr %s195, 8
        %s197 = scalar_lea.vmem %s1, %s196
      $region32: #{attention_layer.1} parent=23 // pred_fallthru
        _
      // Predicated region
      $region33: #{attention_layer.1} parent=23 // pred_check
        %p198 = pneg %p83
      $region34: #{attention_layer.1} parent=23 // pred_check_branch
        %200 = sbr.rel (%p198) target = $region36
      $region35: #{attention_layer.1} parent=23 // pred_region
        %p201 = scmp.lt.s32.totalorder %s11, 1
        %s202 = scalar_select %p201, %s11, 1
        %s203 = smul.addr %s202, 8
        %s204 = smul.addr %s203, 8
        %s205 = scalar_lea.vmem %s2, %s204
      $region36: #{attention_layer.1} parent=23 // pred_fallthru
        _
    $region24: #{attention_layer.1} parent=5 // pred_fallthru
      _
    %p206 = scmp.le.s32.totalorder 1, %s11
    %p207 = scmp.lt.s32.totalorder %s11, 3
    %p208 = pnand %p206, %p207
    %p209 = pneg %p208
    // Predicated region
    $region37: #{attention_layer.1} parent=5 // pred_check
      _
    $region38: #{attention_layer.1} parent=5 // pred_check_branch
      %211 = sbr.rel (%p208) target = $region40
    $region39: #{attention_layer.1} parent=5 // pred_region
      %s212 = ssub.s32 %s11, 1
      %p213 = scmp.lt.s32.totalorder %s16, 1
      %s214 = scalar_select %p213, %s16, 1
      %s215 = smul.addr %s214, 4
      %s216 = smul.addr %s215, 4
      %s217 = scalar_lea.vmem %s0, %s216
      %p218 = pneg %p37
      %p219 = pneg %p34
      %p220 = scmp.lt.s32.totalorder %s16, 1
      %s221 = scalar_select %p220, %s16, 1
      %s222 = smul.addr %s221, 8
      %s223 = smul.addr %s222, 8
      %s224 = scalar_lea.vmem %s1, %s223
      %p225 = pneg %p63
      %p226 = pneg %p60
      %p227 = scmp.lt.s32.totalorder %s16, 1
      %s228 = scalar_select %p227, %s16, 1
      %s229 = smul.addr %s228, 8
      %s230 = smul.addr %s229, 8
      %s231 = scalar_lea.vmem %s2, %s230
      %p232 = pneg %p89
      %p233 = pneg %p86
      %p234 = pneg %p110
      %p235 = pneg %p107
      %p236 = pneg %p131
      %p237 = pneg %p128
      %p238 = pneg %p157
      %p239 = pneg %p154
      %p240 = scmp.lt.s32.totalorder %s16, 1
      %s241 = scalar_select %p240, %s16, 1
      %s242 = smul.addr %s241, 4
      %s243 = smul.addr %s242, 4
      %s244 = scalar_lea.vmem %s5, %s243
      %p245 = scmp.lt.s32.totalorder %s16, 1
      %s246 = scalar_select %p245, %s16, 1
      %s247 = smul.addr %s246, 4
      %s248 = smul.addr %s247, 4
      %s249 = scalar_lea.vmem %s0, %s248
      %p250 = scmp.lt.s32.totalorder %s16, 1
      %s251 = scalar_select %p250, %s16, 1
      %s252 = smul.addr %s251, 8
      %s253 = smul.addr %s252, 8
      %s254 = scalar_lea.vmem %s1, %s253
      %p255 = scmp.lt.s32.totalorder %s16, 1
      %s256 = scalar_select %p255, %s16, 1
      %s257 = smul.addr %s256, 8
      %s258 = smul.addr %s257, 8
      %s259 = scalar_lea.vmem %s2, %s258
      %p260 = scmp.lt.s32.totalorder %s16, 1
      %s261 = scalar_select %p260, %s16, 1
      %s262 = smul.addr %s261, 4
      %s263 = smul.addr %s262, 4
      %s264 = scalar_lea.vmem %s5, %s263
      %v265 = vld [vmem:[%s3] sm:$0xff]
      %v266 = vld [vmem:[%s3 + $0x8] sm:$0xff]
      %v267 = vld [vmem:[%s3 + $0x10] sm:$0xff]
      %v268 = vld [vmem:[%s3 + $0x18] sm:$0xff]
      %v269 = vld [vmem:[%s3 + $0x20] sm:$0xff]
      %v270 = vld [vmem:[%s3 + $0x28] sm:$0xff]
      %v271 = vld [vmem:[%s3 + $0x30] sm:$0xff]
      %v272 = vld [vmem:[%s3 + $0x38] sm:$0xff]
      %v273 = vld [vmem:[%s3 + $0x40] sm:$0xff]
      %v274 = vld [vmem:[%s3 + $0x48] sm:$0xff]
      %v275 = vld [vmem:[%s4] sm:$0x3f]
      %v276 = vld [vmem:[%s4 + $0x8] sm:$0x3f]
      %v277 = vld [vmem:[%s4 + $0x10] sm:$0x3f]
      %v278 = vld [vmem:[%s4 + $0x18] sm:$0x3f]
      %v279 = vld [vmem:[%s249] sm:$0xff]
      %v280 = vld [vmem:[%s249 + $0x8] sm:$0xff]
      %282 = vset.pattern.permute.xlu0 31
      %283 = vperm.xlu0 %282, %v265
      %v284 = vpop.permute.xlu0 %283
      %v288 = vcombine.high %v279, %v279
      %v289 = vcombine.high %v280, %v280
      %vm290 = vcmask 31744
      %v291 = vsel %vm290, %v265, 0
      %vm293 = vcmask 1043456
      %v294 = vsel %vm293, %v279, 0
      %v296 = vsel %vm293, %v288, 0
      %v298 = vsel %vm293, %v280, 0
      %v300 = vsel %vm293, %v289, 0
      %302 = vmatprep.subr.mxu0 0.0
      %303 = vmatpush1.msra.mxu0 0.0
      %304 = vmatprep.subr.mxu0 0.0
      %305 = vmatpush1.msra.mxu0 0.0
      %306 = vmatprep.subr.mxu0 0.0
      %307 = vmatpush1.msra.mxu0 0.0
      %308 = vmatprep.subr.mxu0 0.0
      %309 = vmatpush1.msra.mxu0 0.0
      %310 = vmatprep.subr.mxu0 0.0
      %311 = vmatpush1.msra.mxu0 0.0
      %312 = vmatprep.subr.mxu0 0.0
      %313 = vmatpush1.msra.mxu0 0.0
      %314 = vmatprep.subr.mxu0 0.0
      %315 = vmatpush1.msra.mxu0 0.0
      %316 = vmatprep.subr.mxu0 0.0
      %317 = vmatpush1.msra.mxu0 0.0
      %318 = vmatprep.subr.mxu0 0.0
      %319 = vmatpush1.msra.mxu0 0.0
      %320 = vmatprep.subr.mxu0 0.0
      %321 = vmatpush1.msra.mxu0 0.0
      %322 = vmatprep.subr.mxu0 0.0
      %323 = vmatpush1.msra.mxu0 0.0
      %324 = vmatprep.subr.mxu0 0.0
      %325 = vmatpush1.msra.mxu0 0.0
      %326 = vmatprep.subr.mxu0 0.0
      %327 = vmatpush1.msra.mxu0 0.0
      %328 = vmatprep.subr.mxu0 0.0
      %329 = vmatpush1.msra.mxu0 0.0
      %330 = vmatprep.subr.mxu0 0.0
      %331 = vmatpush1.msra.mxu0 0.0
      %332 = vmatprep.subr.mxu0 %v296
      %333 = vmatpush1.msra.mxu0 %v294
      %334 = vmatprep.subr.mxu0 0.0
      %335 = vmatpush2.msra.mxu0 0.0
      %336 = vmatprep.subr.mxu0 0.0
      %337 = vmatpush2.msra.mxu0 0.0
      %338 = vmatprep.subr.mxu0 0.0
      %339 = vmatpush2.msra.mxu0 0.0
      %340 = vmatprep.subr.mxu0 0.0
      %341 = vmatpush2.msra.mxu0 0.0
      %342 = vmatprep.subr.mxu0 0.0
      %343 = vmatpush2.msra.mxu0 0.0
      %344 = vmatprep.subr.mxu0 0.0
      %345 = vmatpush2.msra.mxu0 0.0
      %346 = vmatprep.subr.mxu0 0.0
      %347 = vmatpush2.msra.mxu0 0.0
      %348 = vmatprep.subr.mxu0 0.0
      %349 = vmatpush2.msra.mxu0 0.0
      %350 = vmatprep.subr.mxu0 0.0
      %351 = vmatpush2.msra.mxu0 0.0
      %352 = vmatprep.subr.mxu0 0.0
      %353 = vmatpush2.msra.mxu0 0.0
      %354 = vmatprep.subr.mxu0 0.0
      %355 = vmatpush2.msra.mxu0 0.0
      %356 = vmatprep.subr.mxu0 0.0
      %357 = vmatpush2.msra.mxu0 0.0
      %358 = vmatprep.subr.mxu0 0.0
      %359 = vmatpush2.msra.mxu0 0.0
      %360 = vmatprep.subr.mxu0 0.0
      %361 = vmatpush2.msra.mxu0 0.0
      %362 = vmatprep.subr.mxu0 0.0
      %363 = vmatpush2.msra.mxu0 0.0
      %364 = vmatprep.subr.mxu0 0.0
      %365 = vmatpush2.msra.mxu0 0.0
      %366 = vmatprep.mubr.f32.mxu0 0.0
      %367 = vmatmul.mubr.f32.gmra.mxu0 %v291
      %v368 = vpop.f32.mrf.mxu0
      %v369 = vadd.f32 %v284, %v368
      %v370 = vpop.f32.mrf.mxu0
      %v371 = vadd.f32 %v284, %v370
      %372 = vdwg.mxu0
      %373 = vmatprep.subr.mxu0 0.0
      %374 = vmatpush1.msra.mxu0 0.0
      %375 = vmatprep.subr.mxu0 0.0
      %376 = vmatpush1.msra.mxu0 0.0
      %377 = vmatprep.subr.mxu0 0.0
      %378 = vmatpush1.msra.mxu0 0.0
      %379 = vmatprep.subr.mxu0 0.0
      %380 = vmatpush1.msra.mxu0 0.0
      %381 = vmatprep.subr.mxu0 0.0
      %382 = vmatpush1.msra.mxu0 0.0
      %383 = vmatprep.subr.mxu0 0.0
      %384 = vmatpush1.msra.mxu0 0.0
      %385 = vmatprep.subr.mxu0 0.0
      %386 = vmatpush1.msra.mxu0 0.0
      %387 = vmatprep.subr.mxu0 0.0
      %388 = vmatpush1.msra.mxu0 0.0
      %389 = vmatprep.subr.mxu0 0.0
      %390 = vmatpush1.msra.mxu0 0.0
      %391 = vmatprep.subr.mxu0 0.0
      %392 = vmatpush1.msra.mxu0 0.0
      %393 = vmatprep.subr.mxu0 0.0
      %394 = vmatpush1.msra.mxu0 0.0
      %395 = vmatprep.subr.mxu0 0.0
      %396 = vmatpush1.msra.mxu0 0.0
      %397 = vmatprep.subr.mxu0 0.0
      %398 = vmatpush1.msra.mxu0 0.0
      %399 = vmatprep.subr.mxu0 0.0
      %400 = vmatpush1.msra.mxu0 0.0
      %401 = vmatprep.subr.mxu0 0.0
      %402 = vmatpush1.msra.mxu0 0.0
      %403 = vmatprep.subr.mxu0 %v300
      %404 = vmatpush1.msra.mxu0 %v298
      %405 = vmatprep.subr.mxu0 0.0
      %406 = vmatpush2.msra.mxu0 0.0
      %407 = vmatprep.subr.mxu0 0.0
      %408 = vmatpush2.msra.mxu0 0.0
      %409 = vmatprep.subr.mxu0 0.0
      %410 = vmatpush2.msra.mxu0 0.0
      %411 = vmatprep.subr.mxu0 0.0
      %412 = vmatpush2.msra.mxu0 0.0
      %413 = vmatprep.subr.mxu0 0.0
      %414 = vmatpush2.msra.mxu0 0.0
      %415 = vmatprep.subr.mxu0 0.0
      %416 = vmatpush2.msra.mxu0 0.0
      %417 = vmatprep.subr.mxu0 0.0
      %418 = vmatpush2.msra.mxu0 0.0
      %419 = vmatprep.subr.mxu0 0.0
      %420 = vmatpush2.msra.mxu0 0.0
      %421 = vmatprep.subr.mxu0 0.0
      %422 = vmatpush2.msra.mxu0 0.0
      %423 = vmatprep.subr.mxu0 0.0
      %424 = vmatpush2.msra.mxu0 0.0
      %425 = vmatprep.subr.mxu0 0.0
      %426 = vmatpush2.msra.mxu0 0.0
      %427 = vmatprep.subr.mxu0 0.0
      %428 = vmatpush2.msra.mxu0 0.0
      %429 = vmatprep.subr.mxu0 0.0
      %430 = vmatpush2.msra.mxu0 0.0
      %431 = vmatprep.subr.mxu0 0.0
      %432 = vmatpush2.msra.mxu0 0.0
      %433 = vmatprep.subr.mxu0 0.0
      %434 = vmatpush2.msra.mxu0 0.0
      %435 = vmatprep.subr.mxu0 0.0
      %436 = vmatpush2.msra.mxu0 0.0
      %437 = vmatprep.mubr.f32.mxu0 0.0
      %438 = vmatmul.mubr.f32.gmra.mxu0 %v291
      %v439 = vpop.f32.mrf.mxu0
      %v440 = vadd.f32 %v284, %v439
      %v441 = vpop.f32.mrf.mxu0
      %v442 = vadd.f32 %v284, %v441
      %443 = vdwg.mxu0
      %v444 = vsel %vm293, %v369, 0.0
      %v445 = vrot.slane %v444, 4
      %v446 = vadd.f32 %v444, %v445
      %v447 = vrot.slane %v446, 2
      %v448 = vadd.f32 %v446, %v447
      %v449 = vrot.slane %v448, 1
      %v450 = vadd.f32 %v448, %v449
      %v451 = vsel %vm293, %v371, 0.0
      %v452 = vrot.slane %v451, 4
      %v453 = vadd.f32 %v451, %v452
      %v454 = vrot.slane %v453, 2
      %v455 = vadd.f32 %v453, %v454
      %v456 = vrot.slane %v455, 1
      %v457 = vadd.f32 %v455, %v456
      %v458 = vsel %vm293, %v440, 0.0
      %v459 = vrot.slane %v458, 4
      %v460 = vadd.f32 %v458, %v459
      %v461 = vrot.slane %v460, 2
      %v462 = vadd.f32 %v460, %v461
      %v463 = vrot.slane %v462, 1
      %v464 = vadd.f32 %v462, %v463
      %v465 = vsel %vm293, %v442, 0.0
      %v466 = vrot.slane %v465, 4
      %v467 = vadd.f32 %v465, %v466
      %v468 = vrot.slane %v467, 2
      %v469 = vadd.f32 %v467, %v468
      %v470 = vrot.slane %v469, 1
      %v471 = vadd.f32 %v469, %v470
      %v472 = vrcp.pop 4.0
      %v473 = vmul.f32 %v450, %v472
      %v474 = vmul.f32 %v457, %v472
      %v475 = vmul.f32 %v464, %v472
      %v476 = vmul.f32 %v471, %v472
      %v477 = vsub.f32 %v369, %v473
      %v478 = vsub.f32 %v371, %v474
      %v479 = vsub.f32 %v440, %v475
      %v480 = vsub.f32 %v442, %v476
      %v481 = vmul.f32 %v477, %v477
      %v482 = vmul.f32 %v478, %v478
      %v483 = vmul.f32 %v479, %v479
      %v484 = vmul.f32 %v480, %v480
      %v485 = vsel %vm293, %v481, 0.0
      %v486 = vrot.slane %v485, 4
      %v487 = vadd.f32 %v485, %v486
      %v488 = vrot.slane %v487, 2
      %v489 = vadd.f32 %v487, %v488
      %v490 = vrot.slane %v489, 1
      %v491 = vadd.f32 %v489, %v490
      %v492 = vsel %vm293, %v482, 0.0
      %v493 = vrot.slane %v492, 4
      %v494 = vadd.f32 %v492, %v493
      %v495 = vrot.slane %v494, 2
      %v496 = vadd.f32 %v494, %v495
      %v497 = vrot.slane %v496, 1
      %v498 = vadd.f32 %v496, %v497
      %v499 = vsel %vm293, %v483, 0.0
      %v500 = vrot.slane %v499, 4
      %v501 = vadd.f32 %v499, %v500
      %v502 = vrot.slane %v501, 2
      %v503 = vadd.f32 %v501, %v502
      %v504 = vrot.slane %v503, 1
      %v505 = vadd.f32 %v503, %v504
      %v506 = vsel %vm293, %v484, 0.0
      %v507 = vrot.slane %v506, 4
      %v508 = vadd.f32 %v506, %v507
      %v509 = vrot.slane %v508, 2
      %v510 = vadd.f32 %v508, %v509
      %v511 = vrot.slane %v510, 1
      %v512 = vadd.f32 %v510, %v511
      %v513 = vmul.f32 %v491, %v472
      %v514 = vmul.f32 %v498, %v472
      %v515 = vmul.f32 %v505, %v472
      %v516 = vmul.f32 %v512, %v472
      %v517 = vadd.f32 %v513, 1e-06
      %v518 = vadd.f32 %v514, 1e-06
      %v519 = vadd.f32 %v515, 1e-06
      %v520 = vadd.f32 %v516, 1e-06
      %v521 = vrsqrt.pop %v517
      %v522 = vrsqrt.pop %v518
      %v523 = vrsqrt.pop %v519
      %v524 = vrsqrt.pop %v520
      %v525 = vmul.f32 %v477, %v521
      %v526 = vmul.f32 %v478, %v522
      %v527 = vmul.f32 %v479, %v523
      %v528 = vmul.f32 %v480, %v524
      %529 = vset.pattern.permute.xlu0 32
      %530 = vperm.xlu0 %529, %v265
      %v531 = vpop.permute.xlu0 %530
      %v533 = vmul.f32 %v525, %v531
      %v534 = vmul.f32 %v526, %v531
      %v535 = vmul.f32 %v527, %v531
      %v536 = vmul.f32 %v528, %v531
      %537 = vset.pattern.permute.xlu0 33
      %538 = vperm.xlu0 %537, %v265
      %v539 = vpop.permute.xlu0 %538
      %v541 = vadd.f32 %v533, %v539
      %v542 = vadd.f32 %v534, %v539
      %v543 = vadd.f32 %v535, %v539
      %v544 = vadd.f32 %v536, %v539
      %v545 = vmul.f32 %v541, 0.5
      %v546 = vmul.f32 %v542, 0.5
      %v547 = vmul.f32 %v543, 0.5
      %v548 = vmul.f32 %v544, 0.5
      %v549 = vmul.f32 %v541, 0.70710677
      %v550 = vmul.f32 %v542, 0.70710677
      %v551 = vmul.f32 %v543, 0.70710677
      %v552 = vmul.f32 %v544, 0.70710677
      %v553 = verf.f32.pop %v549
      %v554 = verf.f32.pop %v550
      %v555 = verf.f32.pop %v551
      %v556 = verf.f32.pop %v552
      %v557 = vadd.f32 %v553, 1.0
      %v558 = vadd.f32 %v554, 1.0
      %v559 = vadd.f32 %v555, 1.0
      %v560 = vadd.f32 %v556, 1.0
      %v561 = vmul.f32 %v545, %v557
      %v562 = vmul.f32 %v546, %v558
      %v563 = vmul.f32 %v547, %v559
      %v564 = vmul.f32 %v548, %v560
      %565 = vrot.lane.b32.xlu0 %v561, 64
      %v566 = vpop.permute.xlu0 %565
      %567 = vrot.lane.b32.xlu0 %v562, 64
      %v568 = vpop.permute.xlu0 %567
      %569 = vrot.lane.b32.xlu0 %v563, 64
      %v570 = vpop.permute.xlu0 %569
      %571 = vrot.lane.b32.xlu0 %v564, 64
      %v572 = vpop.permute.xlu0 %571
      %v573 = vlaneseq
      %v574 = vand.u32 %v573, 127
      %vm575 = vcmp.lt.s32.totalorder %v574, 64
      %v576 = vsel %vm575, %v570, %v572
      %v577 = vsel %vm575, %v568, %v570
      %v578 = vsel %vm575, %v566, %v568
      %v579 = vsel %vm575, %v572, %v566
      %v580 = vlaneseq
      %v581 = vshrl.u32 %v580, 7
      %v582 = vsub.s32 1, %v581
      %v583 = vrot.slane %v275, %v582
      %v584 = vlaneseq
      %v585 = vshrl.u32 %v584, 7
      %v586 = vsub.s32 1, %v585
      %v587 = vrot.slane %v276, %v586
      %v588 = vlaneseq
      %v589 = vshrl.u32 %v588, 7
      %v590 = vsub.s32 1, %v589
      %v591 = vrot.slane %v277, %v590
      %v592 = vlaneseq
      %v593 = vshrl.u32 %v592, 7
      %v594 = vsub.s32 1, %v593
      %v595 = vrot.slane %v278, %v594
      %v596 = vmul.f32 %v579, %v583
      %v597 = vmul.f32 %v578, %v587
      %v598 = vmul.f32 %v577, %v591
      %v599 = vmul.f32 %v576, %v595
      %600 = vrot.lane.b32.xlu0 %v596, 8
      %v601 = vpop.permute.xlu0 %600
      %602 = vrot.lane.b32.xlu0 %v597, 8
      %v603 = vpop.permute.xlu0 %602
      %604 = vrot.lane.b32.xlu0 %v598, 8
      %v605 = vpop.permute.xlu0 %604
      %606 = vrot.lane.b32.xlu0 %v599, 8
      %v607 = vpop.permute.xlu0 %606
      %vm608 = vcmp.lt.s32.totalorder %v574, 8
      %v609 = vsel %vm608, %v605, %v607
      %v610 = vsel %vm608, %v603, %v605
      %v611 = vsel %vm608, %v601, %v603
      %v612 = vsel %vm608, %v607, %v601
      %v613 = vlaneseq
      %v614 = vshrl.u32 %v613, 7
      %v615 = vsub.s32 3, %v614
      %v616 = vrot.slane %v275, %v615
      %v617 = vlaneseq
      %v618 = vshrl.u32 %v617, 7
      %v619 = vsub.s32 3, %v618
      %v620 = vrot.slane %v276, %v619
      %v621 = vlaneseq
      %v622 = vshrl.u32 %v621, 7
      %v623 = vsub.s32 3, %v622
      %v624 = vrot.slane %v277, %v623
      %v625 = vlaneseq
      %v626 = vshrl.u32 %v625, 7
      %v627 = vsub.s32 3, %v626
      %v628 = vrot.slane %v278, %v627
      %v629 = vmul.f32 %v612, %v616
      %v630 = vmul.f32 %v611, %v620
      %v631 = vmul.f32 %v610, %v624
      %v632 = vmul.f32 %v609, %v628
      %633 = vrot.lane.b32.xlu0 %v629, 1
      %v634 = vpop.permute.xlu0 %633
      %635 = vrot.lane.b32.xlu0 %v630, 1
      %v636 = vpop.permute.xlu0 %635
      %637 = vrot.lane.b32.xlu0 %v631, 1
      %v638 = vpop.permute.xlu0 %637
      %639 = vrot.lane.b32.xlu0 %v632, 1
      %v640 = vpop.permute.xlu0 %639
      %vm641 = vcmp.lt.s32.totalorder %v574, 1
      %v642 = vsel %vm641, %v638, %v640
      %v643 = vsel %vm641, %v636, %v638
      %v644 = vsel %vm641, %v634, %v636
      %v645 = vsel %vm641, %v640, %v634
      %v646 = vlaneseq
      %v647 = vshrl.u32 %v646, 7
      %v648 = vsub.s32 5, %v647
      %v649 = vrot.slane %v275, %v648
      %v650 = vlaneseq
      %v651 = vshrl.u32 %v650, 7
      %v652 = vsub.s32 5, %v651
      %v653 = vrot.slane %v276, %v652
      %v654 = vlaneseq
      %v655 = vshrl.u32 %v654, 7
      %v656 = vsub.s32 5, %v655
      %v657 = vrot.slane %v277, %v656
      %v658 = vlaneseq
      %v659 = vshrl.u32 %v658, 7
      %v660 = vsub.s32 5, %v659
      %v661 = vrot.slane %v278, %v660
      %v662 = vmul.f32 %v645, %v649
      %v663 = vmul.f32 %v644, %v653
      %v664 = vmul.f32 %v643, %v657
      %v665 = vmul.f32 %v642, %v661
      %666 = vset.pattern.permute.xlu0 4
      %667 = vperm.xlu0 %666, %v265
      %v668 = vpop.permute.xlu0 %667
      %v670 = vmul.f32 %v668, %v662
      %v671 = vmul.f32 %v668, %v663
      %v672 = vmul.f32 %v668, %v664
      %v673 = vmul.f32 %v668, %v665
      %v674 = vadd.f32 %v670, 0.0
      %v675 = vadd.f32 %v671, 0.0
      %v676 = vadd.f32 %v672, 0.0
      %v677 = vadd.f32 %v673, 0.0
      %678 = vset.pattern.permute.xlu0 5
      %679 = vperm.xlu0 %678, %v265
      %v680 = vpop.permute.xlu0 %679
      %v682 = vmul.f32 %v680, %v629
      %v683 = vmul.f32 %v680, %v630
      %v684 = vmul.f32 %v680, %v631
      %v685 = vmul.f32 %v680, %v632
      %v686 = vadd.f32 %v674, %v682
      %v687 = vadd.f32 %v675, %v683
      %v688 = vadd.f32 %v676, %v684
      %v689 = vadd.f32 %v677, %v685
      %690 = vrot.lane.b32.xlu0 %v629, 127
      %v691 = vpop.permute.xlu0 %690
      %692 = vrot.lane.b32.xlu0 %v630, 127
      %v693 = vpop.permute.xlu0 %692
      %694 = vrot.lane.b32.xlu0 %v631, 127
      %v695 = vpop.permute.xlu0 %694
      %696 = vrot.lane.b32.xlu0 %v632, 127
      %v697 = vpop.permute.xlu0 %696
      %vm698 = vcmp.lt.s32.totalorder %v574, 127
      %v699 = vsel %vm698, %v695, %v697
      %v700 = vsel %vm698, %v693, %v695
      %v701 = vsel %vm698, %v691, %v693
      %v702 = vsel %vm698, %v697, %v691
      %v703 = vlaneseq
      %v704 = vshrl.u32 %v703, 7
      %v705 = vsub.s32 4, %v704
      %v706 = vrot.slane %v275, %v705
      %v707 = vlaneseq
      %v708 = vshrl.u32 %v707, 7
      %v709 = vsub.s32 4, %v708
      %v710 = vrot.slane %v276, %v709
      %v711 = vlaneseq
      %v712 = vshrl.u32 %v711, 7
      %v713 = vsub.s32 4, %v712
      %v714 = vrot.slane %v277, %v713
      %v715 = vlaneseq
      %v716 = vshrl.u32 %v715, 7
      %v717 = vsub.s32 4, %v716
      %v718 = vrot.slane %v278, %v717
      %v719 = vmul.f32 %v701, %v706
      %v720 = vmul.f32 %v700, %v710
      %v721 = vmul.f32 %v699, %v714
      %v722 = vmul.f32 %v702, %v718
      %723 = vset.pattern.permute.xlu0 6
      %724 = vperm.xlu0 %723, %v265
      %v725 = vpop.permute.xlu0 %724
      %v727 = vmul.f32 %v725, %v719
      %v728 = vmul.f32 %v725, %v720
      %v729 = vmul.f32 %v725, %v721
      %v730 = vmul.f32 %v725, %v722
      %v731 = vadd.f32 %v686, %v727
      %v732 = vadd.f32 %v687, %v728
      %v733 = vadd.f32 %v688, %v729
      %v734 = vadd.f32 %v689, %v730
      %735 = vrot.lane.b32.xlu0 %v596, 1
      %v736 = vpop.permute.xlu0 %735
      %737 = vrot.lane.b32.xlu0 %v597, 1
      %v738 = vpop.permute.xlu0 %737
      %739 = vrot.lane.b32.xlu0 %v598, 1
      %v740 = vpop.permute.xlu0 %739
      %741 = vrot.lane.b32.xlu0 %v599, 1
      %v742 = vpop.permute.xlu0 %741
      %v743 = vsel %vm641, %v740, %v742
      %v744 = vsel %vm641, %v738, %v740
      %v745 = vsel %vm641, %v736, %v738
      %v746 = vsel %vm641, %v742, %v736
      %v747 = vmul.f32 %v746, %v649
      %v748 = vmul.f32 %v745, %v653
      %v749 = vmul.f32 %v744, %v657
      %v750 = vmul.f32 %v743, %v661
      %751 = vset.pattern.permute.xlu0 7
      %752 = vperm.xlu0 %751, %v265
      %v753 = vpop.permute.xlu0 %752
      %v755 = vmul.f32 %v753, %v747
      %v756 = vmul.f32 %v753, %v748
      %v757 = vmul.f32 %v753, %v749
      %v758 = vmul.f32 %v753, %v750
      %v759 = vadd.f32 %v731, %v755
      %v760 = vadd.f32 %v732, %v756
      %v761 = vadd.f32 %v733, %v757
      %v762 = vadd.f32 %v734, %v758
      %763 = vset.pattern.permute.xlu0 8
      %764 = vperm.xlu0 %763, %v265
      %v765 = vpop.permute.xlu0 %764
      %v767 = vmul.f32 %v765, %v596
      %v768 = vmul.f32 %v765, %v597
      %v769 = vmul.f32 %v765, %v598
      %v770 = vmul.f32 %v765, %v599
      %v771 = vadd.f32 %v759, %v767
      %v772 = vadd.f32 %v760, %v768
      %v773 = vadd.f32 %v761, %v769
      %v774 = vadd.f32 %v762, %v770
      %775 = vrot.lane.b32.xlu0 %v596, 127
      %v776 = vpop.permute.xlu0 %775
      %777 = vrot.lane.b32.xlu0 %v597, 127
      %v778 = vpop.permute.xlu0 %777
      %779 = vrot.lane.b32.xlu0 %v598, 127
      %v780 = vpop.permute.xlu0 %779
      %781 = vrot.lane.b32.xlu0 %v599, 127
      %v782 = vpop.permute.xlu0 %781
      %v783 = vsel %vm698, %v780, %v782
      %v784 = vsel %vm698, %v778, %v780
      %v785 = vsel %vm698, %v776, %v778
      %v786 = vsel %vm698, %v782, %v776
      %v787 = vmul.f32 %v785, %v706
      %v788 = vmul.f32 %v784, %v710
      %v789 = vmul.f32 %v783, %v714
      %v790 = vmul.f32 %v786, %v718
      %791 = vset.pattern.permute.xlu0 9
      %792 = vperm.xlu0 %791, %v265
      %v793 = vpop.permute.xlu0 %792
      %v795 = vmul.f32 %v793, %v787
      %v796 = vmul.f32 %v793, %v788
      %v797 = vmul.f32 %v793, %v789
      %v798 = vmul.f32 %v793, %v790
      %v799 = vadd.f32 %v771, %v795
      %v800 = vadd.f32 %v772, %v796
      %v801 = vadd.f32 %v773, %v797
      %v802 = vadd.f32 %v774, %v798
      %803 = vrot.lane.b32.xlu0 %v596, 120
      %v804 = vpop.permute.xlu0 %803
      %805 = vrot.lane.b32.xlu0 %v597, 120
      %v806 = vpop.permute.xlu0 %805
      %807 = vrot.lane.b32.xlu0 %v598, 120
      %v808 = vpop.permute.xlu0 %807
      %809 = vrot.lane.b32.xlu0 %v599, 120
      %v810 = vpop.permute.xlu0 %809
      %vm811 = vcmp.lt.s32.totalorder %v574, 120
      %v812 = vsel %vm811, %v808, %v810
      %v813 = vsel %vm811, %v806, %v808
      %v814 = vsel %vm811, %v804, %v806
      %v815 = vsel %vm811, %v810, %v804
      %v816 = vlaneseq
      %v817 = vshrl.u32 %v816, 7
      %v818 = vsub.s32 2, %v817
      %v819 = vrot.slane %v275, %v818
      %v820 = vlaneseq
      %v821 = vshrl.u32 %v820, 7
      %v822 = vsub.s32 2, %v821
      %v823 = vrot.slane %v276, %v822
      %v824 = vlaneseq
      %v825 = vshrl.u32 %v824, 7
      %v826 = vsub.s32 2, %v825
      %v827 = vrot.slane %v277, %v826
      %v828 = vlaneseq
      %v829 = vshrl.u32 %v828, 7
      %v830 = vsub.s32 2, %v829
      %v831 = vrot.slane %v278, %v830
      %v832 = vmul.f32 %v814, %v819
      %v833 = vmul.f32 %v813, %v823
      %v834 = vmul.f32 %v812, %v827
      %v835 = vmul.f32 %v815, %v831
      %836 = vrot.lane.b32.xlu0 %v832, 1
      %v837 = vpop.permute.xlu0 %836
      %838 = vrot.lane.b32.xlu0 %v833, 1
      %v839 = vpop.permute.xlu0 %838
      %840 = vrot.lane.b32.xlu0 %v834, 1
      %v841 = vpop.permute.xlu0 %840
      %842 = vrot.lane.b32.xlu0 %v835, 1
      %v843 = vpop.permute.xlu0 %842
      %v844 = vsel %vm641, %v841, %v843
      %v845 = vsel %vm641, %v839, %v841
      %v846 = vsel %vm641, %v837, %v839
      %v847 = vsel %vm641, %v843, %v837
      %v848 = vmul.f32 %v847, %v649
      %v849 = vmul.f32 %v846, %v653
      %v850 = vmul.f32 %v845, %v657
      %v851 = vmul.f32 %v844, %v661
      %852 = vset.pattern.permute.xlu0 10
      %853 = vperm.xlu0 %852, %v265
      %v854 = vpop.permute.xlu0 %853
      %v856 = vmul.f32 %v854, %v848
      %v857 = vmul.f32 %v854, %v849
      %v858 = vmul.f32 %v854, %v850
      %v859 = vmul.f32 %v854, %v851
      %v860 = vadd.f32 %v799, %v856
      %v861 = vadd.f32 %v800, %v857
      %v862 = vadd.f32 %v801, %v858
      %v863 = vadd.f32 %v802, %v859
      %864 = vset.pattern.permute.xlu0 11
      %865 = vperm.xlu0 %864, %v265
      %v866 = vpop.permute.xlu0 %865
      %v868 = vmul.f32 %v866, %v832
      %v869 = vmul.f32 %v866, %v833
      %v870 = vmul.f32 %v866, %v834
      %v871 = vmul.f32 %v866, %v835
      %v872 = vadd.f32 %v860, %v868
      %v873 = vadd.f32 %v861, %v869
      %v874 = vadd.f32 %v862, %v870
      %v875 = vadd.f32 %v863, %v871
      %876 = vrot.lane.b32.xlu0 %v832, 127
      %v877 = vpop.permute.xlu0 %876
      %878 = vrot.lane.b32.xlu0 %v833, 127
      %v879 = vpop.permute.xlu0 %878
      %880 = vrot.lane.b32.xlu0 %v834, 127
      %v881 = vpop.permute.xlu0 %880
      %882 = vrot.lane.b32.xlu0 %v835, 127
      %v883 = vpop.permute.xlu0 %882
      %v884 = vsel %vm698, %v881, %v883
      %v885 = vsel %vm698, %v879, %v881
      %v886 = vsel %vm698, %v877, %v879
      %v887 = vsel %vm698, %v883, %v877
      %v888 = vmul.f32 %v886, %v706
      %v889 = vmul.f32 %v885, %v710
      %v890 = vmul.f32 %v884, %v714
      %v891 = vmul.f32 %v887, %v718
      %892 = vset.pattern.permute.xlu0 12
      %893 = vperm.xlu0 %892, %v265
      %v894 = vpop.permute.xlu0 %893
      %v896 = vmul.f32 %v894, %v888
      %v897 = vmul.f32 %v894, %v889
      %v898 = vmul.f32 %v894, %v890
      %v899 = vmul.f32 %v894, %v891
      %v900 = vadd.f32 %v872, %v896
      %v901 = vadd.f32 %v873, %v897
      %v902 = vadd.f32 %v874, %v898
      %v903 = vadd.f32 %v875, %v899
      %904 = vrot.lane.b32.xlu0 %v561, 8
      %v905 = vpop.permute.xlu0 %904
      %906 = vrot.lane.b32.xlu0 %v562, 8
      %v907 = vpop.permute.xlu0 %906
      %908 = vrot.lane.b32.xlu0 %v563, 8
      %v909 = vpop.permute.xlu0 %908
      %910 = vrot.lane.b32.xlu0 %v564, 8
      %v911 = vpop.permute.xlu0 %910
      %v912 = vsel %vm608, %v909, %v911
      %v913 = vsel %vm608, %v907, %v909
      %v914 = vsel %vm608, %v905, %v907
      %v915 = vsel %vm608, %v911, %v905
      %v916 = vmul.f32 %v915, %v616
      %v917 = vmul.f32 %v914, %v620
      %v918 = vmul.f32 %v913, %v624
      %v919 = vmul.f32 %v912, %v628
      %920 = vrot.lane.b32.xlu0 %v916, 1
      %v921 = vpop.permute.xlu0 %920
      %922 = vrot.lane.b32.xlu0 %v917, 1
      %v923 = vpop.permute.xlu0 %922
      %924 = vrot.lane.b32.xlu0 %v918, 1
      %v925 = vpop.permute.xlu0 %924
      %926 = vrot.lane.b32.xlu0 %v919, 1
      %v927 = vpop.permute.xlu0 %926
      %v928 = vsel %vm641, %v925, %v927
      %v929 = vsel %vm641, %v923, %v925
      %v930 = vsel %vm641, %v921, %v923
      %v931 = vsel %vm641, %v927, %v921
      %v932 = vmul.f32 %v931, %v649
      %v933 = vmul.f32 %v930, %v653
      %v934 = vmul.f32 %v929, %v657
      %v935 = vmul.f32 %v928, %v661
      %936 = vset.pattern.permute.xlu0 13
      %937 = vperm.xlu0 %936, %v265
      %v938 = vpop.permute.xlu0 %937
      %v940 = vmul.f32 %v938, %v932
      %v941 = vmul.f32 %v938, %v933
      %v942 = vmul.f32 %v938, %v934
      %v943 = vmul.f32 %v938, %v935
      %v944 = vadd.f32 %v900, %v940
      %v945 = vadd.f32 %v901, %v941
      %v946 = vadd.f32 %v902, %v942
      %v947 = vadd.f32 %v903, %v943
      %948 = vset.pattern.permute.xlu0 14
      %949 = vperm.xlu0 %948, %v265
      %v950 = vpop.permute.xlu0 %949
      %v952 = vmul.f32 %v950, %v916
      %v953 = vmul.f32 %v950, %v917
      %v954 = vmul.f32 %v950, %v918
      %v955 = vmul.f32 %v950, %v919
      %v956 = vadd.f32 %v944, %v952
      %v957 = vadd.f32 %v945, %v953
      %v958 = vadd.f32 %v946, %v954
      %v959 = vadd.f32 %v947, %v955
      %960 = vrot.lane.b32.xlu0 %v916, 127
      %v961 = vpop.permute.xlu0 %960
      %962 = vrot.lane.b32.xlu0 %v917, 127
      %v963 = vpop.permute.xlu0 %962
      %964 = vrot.lane.b32.xlu0 %v918, 127
      %v965 = vpop.permute.xlu0 %964
      %966 = vrot.lane.b32.xlu0 %v919, 127
      %v967 = vpop.permute.xlu0 %966
      %v968 = vsel %vm698, %v965, %v967
      %v969 = vsel %vm698, %v963, %v965
      %v970 = vsel %vm698, %v961, %v963
      %v971 = vsel %vm698, %v967, %v961
      %v972 = vmul.f32 %v970, %v706
      %v973 = vmul.f32 %v969, %v710
      %v974 = vmul.f32 %v968, %v714
      %v975 = vmul.f32 %v971, %v718
      %976 = vset.pattern.permute.xlu0 15
      %977 = vperm.xlu0 %976, %v265
      %v978 = vpop.permute.xlu0 %977
      %v980 = vmul.f32 %v978, %v972
      %v981 = vmul.f32 %v978, %v973
      %v982 = vmul.f32 %v978, %v974
      %v983 = vmul.f32 %v978, %v975
      %v984 = vadd.f32 %v956, %v980
      %v985 = vadd.f32 %v957, %v981
      %v986 = vadd.f32 %v958, %v982
      %v987 = vadd.f32 %v959, %v983
      %988 = vrot.lane.b32.xlu0 %v561, 1
      %v989 = vpop.permute.xlu0 %988
      %990 = vrot.lane.b32.xlu0 %v562, 1
      %v991 = vpop.permute.xlu0 %990
      %992 = vrot.lane.b32.xlu0 %v563, 1
      %v993 = vpop.permute.xlu0 %992
      %994 = vrot.lane.b32.xlu0 %v564, 1
      %v995 = vpop.permute.xlu0 %994
      %v996 = vsel %vm641, %v993, %v995
      %v997 = vsel %vm641, %v991, %v993
      %v998 = vsel %vm641, %v989, %v991
      %v999 = vsel %vm641, %v995, %v989
      %v1000 = vmul.f32 %v999, %v649
      %v1001 = vmul.f32 %v998, %v653
      %v1002 = vmul.f32 %v997, %v657
      %v1003 = vmul.f32 %v996, %v661
      %1004 = vset.pattern.permute.xlu0 16
      %1005 = vperm.xlu0 %1004, %v265
      %v1006 = vpop.permute.xlu0 %1005
      %v1008 = vmul.f32 %v1006, %v1000
      %v1009 = vmul.f32 %v1006, %v1001
      %v1010 = vmul.f32 %v1006, %v1002
      %v1011 = vmul.f32 %v1006, %v1003
      %v1012 = vadd.f32 %v984, %v1008
      %v1013 = vadd.f32 %v985, %v1009
      %v1014 = vadd.f32 %v986, %v1010
      %v1015 = vadd.f32 %v987, %v1011
      %1016 = vset.pattern.permute.xlu0 17
      %1017 = vperm.xlu0 %1016, %v265
      %v1018 = vpop.permute.xlu0 %1017
      %v1020 = vmul.f32 %v1018, %v561
      %v1021 = vmul.f32 %v1018, %v562
      %v1022 = vmul.f32 %v1018, %v563
      %v1023 = vmul.f32 %v1018, %v564
      %v1024 = vadd.f32 %v1012, %v1020
      %v1025 = vadd.f32 %v1013, %v1021
      %v1026 = vadd.f32 %v1014, %v1022
      %v1027 = vadd.f32 %v1015, %v1023
      %1028 = vrot.lane.b32.xlu0 %v561, 127
      %v1029 = vpop.permute.xlu0 %1028
      %1030 = vrot.lane.b32.xlu0 %v562, 127
      %v1031 = vpop.permute.xlu0 %1030
      %1032 = vrot.lane.b32.xlu0 %v563, 127
      %v1033 = vpop.permute.xlu0 %1032
      %1034 = vrot.lane.b32.xlu0 %v564, 127
      %v1035 = vpop.permute.xlu0 %1034
      %v1036 = vsel %vm698, %v1033, %v1035
      %v1037 = vsel %vm698, %v1031, %v1033
      %v1038 = vsel %vm698, %v1029, %v1031
      %v1039 = vsel %vm698, %v1035, %v1029
      %v1040 = vmul.f32 %v1038, %v706
      %v1041 = vmul.f32 %v1037, %v710
      %v1042 = vmul.f32 %v1036, %v714
      %v1043 = vmul.f32 %v1039, %v718
      %1044 = vset.pattern.permute.xlu0 18
      %1045 = vperm.xlu0 %1044, %v265
      %v1046 = vpop.permute.xlu0 %1045
      %v1048 = vmul.f32 %v1046, %v1040
      %v1049 = vmul.f32 %v1046, %v1041
      %v1050 = vmul.f32 %v1046, %v1042
      %v1051 = vmul.f32 %v1046, %v1043
      %v1052 = vadd.f32 %v1024, %v1048
      %v1053 = vadd.f32 %v1025, %v1049
      %v1054 = vadd.f32 %v1026, %v1050
      %v1055 = vadd.f32 %v1027, %v1051
      %1056 = vrot.lane.b32.xlu0 %v561, 120
      %v1057 = vpop.permute.xlu0 %1056
      %1058 = vrot.lane.b32.xlu0 %v562, 120
      %v1059 = vpop.permute.xlu0 %1058
      %1060 = vrot.lane.b32.xlu0 %v563, 120
      %v1061 = vpop.permute.xlu0 %1060
      %1062 = vrot.lane.b32.xlu0 %v564, 120
      %v1063 = vpop.permute.xlu0 %1062
      %v1064 = vsel %vm811, %v1061, %v1063
      %v1065 = vsel %vm811, %v1059, %v1061
      %v1066 = vsel %vm811, %v1057, %v1059
      %v1067 = vsel %vm811, %v1063, %v1057
      %v1068 = vmul.f32 %v1066, %v819
      %v1069 = vmul.f32 %v1065, %v823
      %v1070 = vmul.f32 %v1064, %v827
      %v1071 = vmul.f32 %v1067, %v831
      %1072 = vrot.lane.b32.xlu0 %v1068, 1
      %v1073 = vpop.permute.xlu0 %1072
      %1074 = vrot.lane.b32.xlu0 %v1069, 1
      %v1075 = vpop.permute.xlu0 %1074
      %1076 = vrot.lane.b32.xlu0 %v1070, 1
      %v1077 = vpop.permute.xlu0 %1076
      %1078 = vrot.lane.b32.xlu0 %v1071, 1
      %v1079 = vpop.permute.xlu0 %1078
      %v1080 = vsel %vm641, %v1077, %v1079
      %v1081 = vsel %vm641, %v1075, %v1077
      %v1082 = vsel %vm641, %v1073, %v1075
      %v1083 = vsel %vm641, %v1079, %v1073
      %v1084 = vmul.f32 %v1083, %v649
      %v1085 = vmul.f32 %v1082, %v653
      %v1086 = vmul.f32 %v1081, %v657
      %v1087 = vmul.f32 %v1080, %v661
      %1088 = vset.pattern.permute.xlu0 19
      %1089 = vperm.xlu0 %1088, %v265
      %v1090 = vpop.permute.xlu0 %1089
      %v1092 = vmul.f32 %v1090, %v1084
      %v1093 = vmul.f32 %v1090, %v1085
      %v1094 = vmul.f32 %v1090, %v1086
      %v1095 = vmul.f32 %v1090, %v1087
      %v1096 = vadd.f32 %v1052, %v1092
      %v1097 = vadd.f32 %v1053, %v1093
      %v1098 = vadd.f32 %v1054, %v1094
      %v1099 = vadd.f32 %v1055, %v1095
      %1100 = vset.pattern.permute.xlu0 20
      %1101 = vperm.xlu0 %1100, %v265
      %v1102 = vpop.permute.xlu0 %1101
      %v1104 = vmul.f32 %v1102, %v1068
      %v1105 = vmul.f32 %v1102, %v1069
      %v1106 = vmul.f32 %v1102, %v1070
      %v1107 = vmul.f32 %v1102, %v1071
      %v1108 = vadd.f32 %v1096, %v1104
      %v1109 = vadd.f32 %v1097, %v1105
      %v1110 = vadd.f32 %v1098, %v1106
      %v1111 = vadd.f32 %v1099, %v1107
      %1112 = vrot.lane.b32.xlu0 %v1068, 127
      %v1113 = vpop.permute.xlu0 %1112
      %1114 = vrot.lane.b32.xlu0 %v1069, 127
      %v1115 = vpop.permute.xlu0 %1114
      %1116 = vrot.lane.b32.xlu0 %v1070, 127
      %v1117 = vpop.permute.xlu0 %1116
      %1118 = vrot.lane.b32.xlu0 %v1071, 127
      %v1119 = vpop.permute.xlu0 %1118
      %v1120 = vsel %vm698, %v1117, %v1119
      %v1121 = vsel %vm698, %v1115, %v1117
      %v1122 = vsel %vm698, %v1113, %v1115
      %v1123 = vsel %vm698, %v1119, %v1113
      %v1124 = vmul.f32 %v1122, %v706
      %v1125 = vmul.f32 %v1121, %v710
      %v1126 = vmul.f32 %v1120, %v714
      %v1127 = vmul.f32 %v1123, %v718
      %1128 = vset.pattern.permute.xlu0 21
      %1129 = vperm.xlu0 %1128, %v265
      %v1130 = vpop.permute.xlu0 %1129
      %v1132 = vmul.f32 %v1130, %v1124
      %v1133 = vmul.f32 %v1130, %v1125
      %v1134 = vmul.f32 %v1130, %v1126
      %v1135 = vmul.f32 %v1130, %v1127
      %v1136 = vadd.f32 %v1108, %v1132
      %v1137 = vadd.f32 %v1109, %v1133
      %v1138 = vadd.f32 %v1110, %v1134
      %v1139 = vadd.f32 %v1111, %v1135
      %v1140 = vlaneseq
      %v1141 = vshrl.u32 %v1140, 7
      %v1142 = vsub.s32 0, %v1141
      %v1143 = vrot.slane %v275, %v1142
      %v1144 = vlaneseq
      %v1145 = vshrl.u32 %v1144, 7
      %v1146 = vsub.s32 0, %v1145
      %v1147 = vrot.slane %v276, %v1146
      %v1148 = vlaneseq
      %v1149 = vshrl.u32 %v1148, 7
      %v1150 = vsub.s32 0, %v1149
      %v1151 = vrot.slane %v277, %v1150
      %v1152 = vlaneseq
      %v1153 = vshrl.u32 %v1152, 7
      %v1154 = vsub.s32 0, %v1153
      %v1155 = vrot.slane %v278, %v1154
      %v1156 = vmul.f32 %v578, %v1143
      %v1157 = vmul.f32 %v577, %v1147
      %v1158 = vmul.f32 %v576, %v1151
      %v1159 = vmul.f32 %v579, %v1155
      %1160 = vrot.lane.b32.xlu0 %v1156, 8
      %v1161 = vpop.permute.xlu0 %1160
      %1162 = vrot.lane.b32.xlu0 %v1157, 8
      %v1163 = vpop.permute.xlu0 %1162
      %1164 = vrot.lane.b32.xlu0 %v1158, 8
      %v1165 = vpop.permute.xlu0 %1164
      %1166 = vrot.lane.b32.xlu0 %v1159, 8
      %v1167 = vpop.permute.xlu0 %1166
      %v1168 = vsel %vm608, %v1165, %v1167
      %v1169 = vsel %vm608, %v1163, %v1165
      %v1170 = vsel %vm608, %v1161, %v1163
      %v1171 = vsel %vm608, %v1167, %v1161
      %v1172 = vmul.f32 %v1171, %v616
      %v1173 = vmul.f32 %v1170, %v620
      %v1174 = vmul.f32 %v1169, %v624
      %v1175 = vmul.f32 %v1168, %v628
      %1176 = vrot.lane.b32.xlu0 %v1172, 1
      %v1177 = vpop.permute.xlu0 %1176
      %1178 = vrot.lane.b32.xlu0 %v1173, 1
      %v1179 = vpop.permute.xlu0 %1178
      %1180 = vrot.lane.b32.xlu0 %v1174, 1
      %v1181 = vpop.permute.xlu0 %1180
      %1182 = vrot.lane.b32.xlu0 %v1175, 1
      %v1183 = vpop.permute.xlu0 %1182
      %v1184 = vsel %vm641, %v1181, %v1183
      %v1185 = vsel %vm641, %v1179, %v1181
      %v1186 = vsel %vm641, %v1177, %v1179
      %v1187 = vsel %vm641, %v1183, %v1177
      %v1188 = vmul.f32 %v1187, %v649
      %v1189 = vmul.f32 %v1186, %v653
      %v1190 = vmul.f32 %v1185, %v657
      %v1191 = vmul.f32 %v1184, %v661
      %1192 = vset.pattern.permute.xlu0 22
      %1193 = vperm.xlu0 %1192, %v265
      %v1194 = vpop.permute.xlu0 %1193
      %v1196 = vmul.f32 %v1194, %v1188
      %v1197 = vmul.f32 %v1194, %v1189
      %v1198 = vmul.f32 %v1194, %v1190
      %v1199 = vmul.f32 %v1194, %v1191
      %v1200 = vadd.f32 %v1136, %v1196
      %v1201 = vadd.f32 %v1137, %v1197
      %v1202 = vadd.f32 %v1138, %v1198
      %v1203 = vadd.f32 %v1139, %v1199
      %1204 = vset.pattern.permute.xlu0 23
      %1205 = vperm.xlu0 %1204, %v265
      %v1206 = vpop.permute.xlu0 %1205
      %v1208 = vmul.f32 %v1206, %v1172
      %v1209 = vmul.f32 %v1206, %v1173
      %v1210 = vmul.f32 %v1206, %v1174
      %v1211 = vmul.f32 %v1206, %v1175
      %v1212 = vadd.f32 %v1200, %v1208
      %v1213 = vadd.f32 %v1201, %v1209
      %v1214 = vadd.f32 %v1202, %v1210
      %v1215 = vadd.f32 %v1203, %v1211
      %1216 = vrot.lane.b32.xlu0 %v1172, 127
      %v1217 = vpop.permute.xlu0 %1216
      %1218 = vrot.lane.b32.xlu0 %v1173, 127
      %v1219 = vpop.permute.xlu0 %1218
      %1220 = vrot.lane.b32.xlu0 %v1174, 127
      %v1221 = vpop.permute.xlu0 %1220
      %1222 = vrot.lane.b32.xlu0 %v1175, 127
      %v1223 = vpop.permute.xlu0 %1222
      %v1224 = vsel %vm698, %v1221, %v1223
      %v1225 = vsel %vm698, %v1219, %v1221
      %v1226 = vsel %vm698, %v1217, %v1219
      %v1227 = vsel %vm698, %v1223, %v1217
      %v1228 = vmul.f32 %v1226, %v706
      %v1229 = vmul.f32 %v1225, %v710
      %v1230 = vmul.f32 %v1224, %v714
      %v1231 = vmul.f32 %v1227, %v718
      %1232 = vset.pattern.permute.xlu0 24
      %1233 = vperm.xlu0 %1232, %v265
      %v1234 = vpop.permute.xlu0 %1233
      %v1236 = vmul.f32 %v1234, %v1228
      %v1237 = vmul.f32 %v1234, %v1229
      %v1238 = vmul.f32 %v1234, %v1230
      %v1239 = vmul.f32 %v1234, %v1231
      %v1240 = vadd.f32 %v1212, %v1236
      %v1241 = vadd.f32 %v1213, %v1237
      %v1242 = vadd.f32 %v1214, %v1238
      %v1243 = vadd.f32 %v1215, %v1239
      %1244 = vrot.lane.b32.xlu0 %v1156, 1
      %v1245 = vpop.permute.xlu0 %1244
      %1246 = vrot.lane.b32.xlu0 %v1157, 1
      %v1247 = vpop.permute.xlu0 %1246
      %1248 = vrot.lane.b32.xlu0 %v1158, 1
      %v1249 = vpop.permute.xlu0 %1248
      %1250 = vrot.lane.b32.xlu0 %v1159, 1
      %v1251 = vpop.permute.xlu0 %1250
      %v1252 = vsel %vm641, %v1249, %v1251
      %v1253 = vsel %vm641, %v1247, %v1249
      %v1254 = vsel %vm641, %v1245, %v1247
      %v1255 = vsel %vm641, %v1251, %v1245
      %v1256 = vmul.f32 %v1255, %v649
      %v1257 = vmul.f32 %v1254, %v653
      %v1258 = vmul.f32 %v1253, %v657
      %v1259 = vmul.f32 %v1252, %v661
      %1260 = vset.pattern.permute.xlu0 25
      %1261 = vperm.xlu0 %1260, %v265
      %v1262 = vpop.permute.xlu0 %1261
      %v1264 = vmul.f32 %v1262, %v1256
      %v1265 = vmul.f32 %v1262, %v1257
      %v1266 = vmul.f32 %v1262, %v1258
      %v1267 = vmul.f32 %v1262, %v1259
      %v1268 = vadd.f32 %v1240, %v1264
      %v1269 = vadd.f32 %v1241, %v1265
      %v1270 = vadd.f32 %v1242, %v1266
      %v1271 = vadd.f32 %v1243, %v1267
      %1272 = vset.pattern.permute.xlu0 26
      %1273 = vperm.xlu0 %1272, %v265
      %v1274 = vpop.permute.xlu0 %1273
      %v1276 = vmul.f32 %v1274, %v1156
      %v1277 = vmul.f32 %v1274, %v1157
      %v1278 = vmul.f32 %v1274, %v1158
      %v1279 = vmul.f32 %v1274, %v1159
      %v1280 = vadd.f32 %v1268, %v1276
      %v1281 = vadd.f32 %v1269, %v1277
      %v1282 = vadd.f32 %v1270, %v1278
      %v1283 = vadd.f32 %v1271, %v1279
      %1284 = vrot.lane.b32.xlu0 %v1156, 127
      %v1285 = vpop.permute.xlu0 %1284
      %1286 = vrot.lane.b32.xlu0 %v1157, 127
      %v1287 = vpop.permute.xlu0 %1286
      %1288 = vrot.lane.b32.xlu0 %v1158, 127
      %v1289 = vpop.permute.xlu0 %1288
      %1290 = vrot.lane.b32.xlu0 %v1159, 127
      %v1291 = vpop.permute.xlu0 %1290
      %v1292 = vsel %vm698, %v1289, %v1291
      %v1293 = vsel %vm698, %v1287, %v1289
      %v1294 = vsel %vm698, %v1285, %v1287
      %v1295 = vsel %vm698, %v1291, %v1285
      %v1296 = vmul.f32 %v1294, %v706
      %v1297 = vmul.f32 %v1293, %v710
      %v1298 = vmul.f32 %v1292, %v714
      %v1299 = vmul.f32 %v1295, %v718
      %1300 = vset.pattern.permute.xlu0 27
      %1301 = vperm.xlu0 %1300, %v265
      %v1302 = vpop.permute.xlu0 %1301
      %v1304 = vmul.f32 %v1302, %v1296
      %v1305 = vmul.f32 %v1302, %v1297
      %v1306 = vmul.f32 %v1302, %v1298
      %v1307 = vmul.f32 %v1302, %v1299
      %v1308 = vadd.f32 %v1280, %v1304
      %v1309 = vadd.f32 %v1281, %v1305
      %v1310 = vadd.f32 %v1282, %v1306
      %v1311 = vadd.f32 %v1283, %v1307
      %1312 = vrot.lane.b32.xlu0 %v1156, 120
      %v1313 = vpop.permute.xlu0 %1312
      %1314 = vrot.lane.b32.xlu0 %v1157, 120
      %v1315 = vpop.permute.xlu0 %1314
      %1316 = vrot.lane.b32.xlu0 %v1158, 120
      %v1317 = vpop.permute.xlu0 %1316
      %1318 = vrot.lane.b32.xlu0 %v1159, 120
      %v1319 = vpop.permute.xlu0 %1318
      %v1320 = vsel %vm811, %v1317, %v1319
      %v1321 = vsel %vm811, %v1315, %v1317
      %v1322 = vsel %vm811, %v1313, %v1315
      %v1323 = vsel %vm811, %v1319, %v1313
      %v1324 = vmul.f32 %v1322, %v819
      %v1325 = vmul.f32 %v1321, %v823
      %v1326 = vmul.f32 %v1320, %v827
      %v1327 = vmul.f32 %v1323, %v831
      %1328 = vrot.lane.b32.xlu0 %v1324, 1
      %v1329 = vpop.permute.xlu0 %1328
      %1330 = vrot.lane.b32.xlu0 %v1325, 1
      %v1331 = vpop.permute.xlu0 %1330
      %1332 = vrot.lane.b32.xlu0 %v1326, 1
      %v1333 = vpop.permute.xlu0 %1332
      %1334 = vrot.lane.b32.xlu0 %v1327, 1
      %v1335 = vpop.permute.xlu0 %1334
      %v1336 = vsel %vm641, %v1333, %v1335
      %v1337 = vsel %vm641, %v1331, %v1333
      %v1338 = vsel %vm641, %v1329, %v1331
      %v1339 = vsel %vm641, %v1335, %v1329
      %v1340 = vmul.f32 %v1339, %v649
      %v1341 = vmul.f32 %v1338, %v653
      %v1342 = vmul.f32 %v1337, %v657
      %v1343 = vmul.f32 %v1336, %v661
      %1344 = vset.pattern.permute.xlu0 28
      %1345 = vperm.xlu0 %1344, %v265
      %v1346 = vpop.permute.xlu0 %1345
      %v1348 = vmul.f32 %v1346, %v1340
      %v1349 = vmul.f32 %v1346, %v1341
      %v1350 = vmul.f32 %v1346, %v1342
      %v1351 = vmul.f32 %v1346, %v1343
      %v1352 = vadd.f32 %v1308, %v1348
      %v1353 = vadd.f32 %v1309, %v1349
      %v1354 = vadd.f32 %v1310, %v1350
      %v1355 = vadd.f32 %v1311, %v1351
      %1356 = vset.pattern.permute.xlu0 29
      %1357 = vperm.xlu0 %1356, %v265
      %v1358 = vpop.permute.xlu0 %1357
      %v1360 = vmul.f32 %v1358, %v1324
      %v1361 = vmul.f32 %v1358, %v1325
      %v1362 = vmul.f32 %v1358, %v1326
      %v1363 = vmul.f32 %v1358, %v1327
      %v1364 = vadd.f32 %v1352, %v1360
      %v1365 = vadd.f32 %v1353, %v1361
      %v1366 = vadd.f32 %v1354, %v1362
      %v1367 = vadd.f32 %v1355, %v1363
      %1368 = vrot.lane.b32.xlu0 %v1324, 127
      %v1369 = vpop.permute.xlu0 %1368
      %1370 = vrot.lane.b32.xlu0 %v1325, 127
      %v1371 = vpop.permute.xlu0 %1370
      %1372 = vrot.lane.b32.xlu0 %v1326, 127
      %v1373 = vpop.permute.xlu0 %1372
      %1374 = vrot.lane.b32.xlu0 %v1327, 127
      %v1375 = vpop.permute.xlu0 %1374
      %v1376 = vsel %vm698, %v1373, %v1375
      %v1377 = vsel %vm698, %v1371, %v1373
      %v1378 = vsel %vm698, %v1369, %v1371
      %v1379 = vsel %vm698, %v1375, %v1369
      %v1380 = vmul.f32 %v1378, %v706
      %v1381 = vmul.f32 %v1377, %v710
      %v1382 = vmul.f32 %v1376, %v714
      %v1383 = vmul.f32 %v1379, %v718
      %1384 = vset.pattern.permute.xlu0 30
      %1385 = vperm.xlu0 %1384, %v265
      %v1386 = vpop.permute.xlu0 %1385
      %v1388 = vmul.f32 %v1386, %v1380
      %v1389 = vmul.f32 %v1386, %v1381
      %v1390 = vmul.f32 %v1386, %v1382
      %v1391 = vmul.f32 %v1386, %v1383
      %v1392 = vadd.f32 %v1364, %v1388
      %v1393 = vadd.f32 %v1365, %v1389
      %v1394 = vadd.f32 %v1366, %v1390
      %v1395 = vadd.f32 %v1367, %v1391
      %1396 = vset.pattern.permute.xlu0 34
      %1397 = vperm.xlu0 %1396, %v265
      %v1398 = vpop.permute.xlu0 %1397
      %v1400 = vadd.f32 %v1392, %v1398
      %v1401 = vadd.f32 %v1393, %v1398
      %v1402 = vadd.f32 %v1394, %v1398
      %v1403 = vadd.f32 %v1395, %v1398
      %v1404 = vsel %vm293, %v1400, 0.0
      %v1405 = vrot.slane %v1404, 4
      %v1406 = vadd.f32 %v1404, %v1405
      %v1407 = vrot.slane %v1406, 2
      %v1408 = vadd.f32 %v1406, %v1407
      %v1409 = vrot.slane %v1408, 1
      %v1410 = vadd.f32 %v1408, %v1409
      %v1411 = vsel %vm293, %v1401, 0.0
      %v1412 = vrot.slane %v1411, 4
      %v1413 = vadd.f32 %v1411, %v1412
      %v1414 = vrot.slane %v1413, 2
      %v1415 = vadd.f32 %v1413, %v1414
      %v1416 = vrot.slane %v1415, 1
      %v1417 = vadd.f32 %v1415, %v1416
      %v1418 = vsel %vm293, %v1402, 0.0
      %v1419 = vrot.slane %v1418, 4
      %v1420 = vadd.f32 %v1418, %v1419
      %v1421 = vrot.slane %v1420, 2
      %v1422 = vadd.f32 %v1420, %v1421
      %v1423 = vrot.slane %v1422, 1
      %v1424 = vadd.f32 %v1422, %v1423
      %v1425 = vsel %vm293, %v1403, 0.0
      %v1426 = vrot.slane %v1425, 4
      %v1427 = vadd.f32 %v1425, %v1426
      %v1428 = vrot.slane %v1427, 2
      %v1429 = vadd.f32 %v1427, %v1428
      %v1430 = vrot.slane %v1429, 1
      %v1431 = vadd.f32 %v1429, %v1430
      %v1432 = vmul.f32 %v1410, %v472
      %v1433 = vmul.f32 %v1417, %v472
      %v1434 = vmul.f32 %v1424, %v472
      %v1435 = vmul.f32 %v1431, %v472
      %v1436 = vsub.f32 %v1400, %v1432
      %v1437 = vsub.f32 %v1401, %v1433
      %v1438 = vsub.f32 %v1402, %v1434
      %v1439 = vsub.f32 %v1403, %v1435
      %v1440 = vmul.f32 %v1436, %v1436
      %v1441 = vmul.f32 %v1437, %v1437
      %v1442 = vmul.f32 %v1438, %v1438
      %v1443 = vmul.f32 %v1439, %v1439
      %v1444 = vsel %vm293, %v1440, 0.0
      %v1445 = vrot.slane %v1444, 4
      %v1446 = vadd.f32 %v1444, %v1445
      %v1447 = vrot.slane %v1446, 2
      %v1448 = vadd.f32 %v1446, %v1447
      %v1449 = vrot.slane %v1448, 1
      %v1450 = vadd.f32 %v1448, %v1449
      %v1451 = vsel %vm293, %v1441, 0.0
      %v1452 = vrot.slane %v1451, 4
      %v1453 = vadd.f32 %v1451, %v1452
      %v1454 = vrot.slane %v1453, 2
      %v1455 = vadd.f32 %v1453, %v1454
      %v1456 = vrot.slane %v1455, 1
      %v1457 = vadd.f32 %v1455, %v1456
      %v1458 = vsel %vm293, %v1442, 0.0
      %v1459 = vrot.slane %v1458, 4
      %v1460 = vadd.f32 %v1458, %v1459
      %v1461 = vrot.slane %v1460, 2
      %v1462 = vadd.f32 %v1460, %v1461
      %v1463 = vrot.slane %v1462, 1
      %v1464 = vadd.f32 %v1462, %v1463
      %v1465 = vsel %vm293, %v1443, 0.0
      %v1466 = vrot.slane %v1465, 4
      %v1467 = vadd.f32 %v1465, %v1466
      %v1468 = vrot.slane %v1467, 2
      %v1469 = vadd.f32 %v1467, %v1468
      %v1470 = vrot.slane %v1469, 1
      %v1471 = vadd.f32 %v1469, %v1470
      %v1472 = vmul.f32 %v1450, %v472
      %v1473 = vmul.f32 %v1457, %v472
      %v1474 = vmul.f32 %v1464, %v472
      %v1475 = vmul.f32 %v1471, %v472
      %v1476 = vadd.f32 %v1472, 1e-06
      %v1477 = vadd.f32 %v1473, 1e-06
      %v1478 = vadd.f32 %v1474, 1e-06
      %v1479 = vadd.f32 %v1475, 1e-06
      %v1480 = vrsqrt.pop %v1476
      %v1481 = vrsqrt.pop %v1477
      %v1482 = vrsqrt.pop %v1478
      %v1483 = vrsqrt.pop %v1479
      %v1484 = vmul.f32 %v1436, %v1480
      %v1485 = vmul.f32 %v1437, %v1481
      %v1486 = vmul.f32 %v1438, %v1482
      %v1487 = vmul.f32 %v1439, %v1483
      %1488 = vset.pattern.permute.xlu0 35
      %1489 = vperm.xlu0 %1488, %v265
      %v1490 = vpop.permute.xlu0 %1489
      %v1492 = vmul.f32 %v1484, %v1490
      %v1493 = vmul.f32 %v1485, %v1490
      %v1494 = vmul.f32 %v1486, %v1490
      %v1495 = vmul.f32 %v1487, %v1490
      %1496 = vset.pattern.permute.xlu0 36
      %1497 = vperm.xlu0 %1496, %v265
      %v1498 = vpop.permute.xlu0 %1497
      %v1500 = vadd.f32 %v1492, %v1498
      %v1501 = vadd.f32 %v1493, %v1498
      %v1502 = vadd.f32 %v1494, %v1498
      %v1503 = vadd.f32 %v1495, %v1498
      %v1504 = vmul.f32 %v1500, 0.5
      %v1505 = vmul.f32 %v1501, 0.5
      %v1506 = vmul.f32 %v1502, 0.5
      %v1507 = vmul.f32 %v1503, 0.5
      %v1508 = vmul.f32 %v1500, 0.70710677
      %v1509 = vmul.f32 %v1501, 0.70710677
      %v1510 = vmul.f32 %v1502, 0.70710677
      %v1511 = vmul.f32 %v1503, 0.70710677
      %v1512 = verf.f32.pop %v1508
      %v1513 = verf.f32.pop %v1509
      %v1514 = verf.f32.pop %v1510
      %v1515 = verf.f32.pop %v1511
      %v1516 = vadd.f32 %v1512, 1.0
      %v1517 = vadd.f32 %v1513, 1.0
      %v1518 = vadd.f32 %v1514, 1.0
      %v1519 = vadd.f32 %v1515, 1.0
      %v1520 = vmul.f32 %v1504, %v1516
      %v1521 = vmul.f32 %v1505, %v1517
      %v1522 = vmul.f32 %v1506, %v1518
      %v1523 = vmul.f32 %v1507, %v1519
      %v1524 = vrot.slane %v265, 4
      %v1525 = vrot.slane %v668, 4
      %v1527 = vsel %vm290, %v1524, 0
      %v1530 = vsel %vm293, %v1520, 0
      %v1533 = vsel %vm293, %v1521, 0
      %v1536 = vsel %vm293, %v1522, 0
      %v1539 = vsel %vm293, %v1523, 0
      %1541 = vmatprep.subr.mxu0 0.0
      %1542 = vmatpush1.msra.mxu0 0.0
      %1543 = vmatprep.subr.mxu0 0.0
      %1544 = vmatpush1.msra.mxu0 0.0
      %1545 = vmatprep.subr.mxu0 0.0
      %1546 = vmatpush1.msra.mxu0 0.0
      %1547 = vmatprep.subr.mxu0 0.0
      %1548 = vmatpush1.msra.mxu0 0.0
      %1549 = vmatprep.subr.mxu0 0.0
      %1550 = vmatpush1.msra.mxu0 0.0
      %1551 = vmatprep.subr.mxu0 0.0
      %1552 = vmatpush1.msra.mxu0 0.0
      %1553 = vmatprep.subr.mxu0 0.0
      %1554 = vmatpush1.msra.mxu0 0.0
      %1555 = vmatprep.subr.mxu0 0.0
      %1556 = vmatpush1.msra.mxu0 0.0
      %1557 = vmatprep.subr.mxu0 0.0
      %1558 = vmatpush1.msra.mxu0 0.0
      %1559 = vmatprep.subr.mxu0 0.0
      %1560 = vmatpush1.msra.mxu0 0.0
      %1561 = vmatprep.subr.mxu0 0.0
      %1562 = vmatpush1.msra.mxu0 0.0
      %1563 = vmatprep.subr.mxu0 0.0
      %1564 = vmatpush1.msra.mxu0 0.0
      %1565 = vmatprep.subr.mxu0 0.0
      %1566 = vmatpush1.msra.mxu0 0.0
      %1567 = vmatprep.subr.mxu0 0.0
      %1568 = vmatpush1.msra.mxu0 0.0
      %1569 = vmatprep.subr.mxu0 0.0
      %1570 = vmatpush1.msra.mxu0 0.0
      %1571 = vmatprep.subr.mxu0 %v1533
      %1572 = vmatpush1.msra.mxu0 %v1530
      %1573 = vmatprep.subr.mxu0 0.0
      %1574 = vmatpush2.msra.mxu0 0.0
      %1575 = vmatprep.subr.mxu0 0.0
      %1576 = vmatpush2.msra.mxu0 0.0
      %1577 = vmatprep.subr.mxu0 0.0
      %1578 = vmatpush2.msra.mxu0 0.0
      %1579 = vmatprep.subr.mxu0 0.0
      %1580 = vmatpush2.msra.mxu0 0.0
      %1581 = vmatprep.subr.mxu0 0.0
      %1582 = vmatpush2.msra.mxu0 0.0
      %1583 = vmatprep.subr.mxu0 0.0
      %1584 = vmatpush2.msra.mxu0 0.0
      %1585 = vmatprep.subr.mxu0 0.0
      %1586 = vmatpush2.msra.mxu0 0.0
      %1587 = vmatprep.subr.mxu0 0.0
      %1588 = vmatpush2.msra.mxu0 0.0
      %1589 = vmatprep.subr.mxu0 0.0
      %1590 = vmatpush2.msra.mxu0 0.0
      %1591 = vmatprep.subr.mxu0 0.0
      %1592 = vmatpush2.msra.mxu0 0.0
      %1593 = vmatprep.subr.mxu0 0.0
      %1594 = vmatpush2.msra.mxu0 0.0
      %1595 = vmatprep.subr.mxu0 0.0
      %1596 = vmatpush2.msra.mxu0 0.0
      %1597 = vmatprep.subr.mxu0 0.0
      %1598 = vmatpush2.msra.mxu0 0.0
      %1599 = vmatprep.subr.mxu0 0.0
      %1600 = vmatpush2.msra.mxu0 0.0
      %1601 = vmatprep.subr.mxu0 0.0
      %1602 = vmatpush2.msra.mxu0 0.0
      %1603 = vmatprep.subr.mxu0 0.0
      %1604 = vmatpush2.msra.mxu0 0.0
      %1605 = vmatprep.mubr.f32.mxu0 0.0
      %1606 = vmatmul.mubr.f32.gmra.mxu0 %v1527
      %v1607 = vpop.f32.mrf.mxu0
      %v1608 = vadd.f32 %v1525, %v1607
      %v1609 = vpop.f32.mrf.mxu0
      %v1610 = vadd.f32 %v1525, %v1609
      %1611 = vdwg.mxu0
      %1612 = vmatprep.subr.mxu0 0.0
      %1613 = vmatpush1.msra.mxu0 0.0
      %1614 = vmatprep.subr.mxu0 0.0
      %1615 = vmatpush1.msra.mxu0 0.0
      %1616 = vmatprep.subr.mxu0 0.0
      %1617 = vmatpush1.msra.mxu0 0.0
      %1618 = vmatprep.subr.mxu0 0.0
      %1619 = vmatpush1.msra.mxu0 0.0
      %1620 = vmatprep.subr.mxu0 0.0
      %1621 = vmatpush1.msra.mxu0 0.0
      %1622 = vmatprep.subr.mxu0 0.0
      %1623 = vmatpush1.msra.mxu0 0.0
      %1624 = vmatprep.subr.mxu0 0.0
      %1625 = vmatpush1.msra.mxu0 0.0
      %1626 = vmatprep.subr.mxu0 0.0
      %1627 = vmatpush1.msra.mxu0 0.0
      %1628 = vmatprep.subr.mxu0 0.0
      %1629 = vmatpush1.msra.mxu0 0.0
      %1630 = vmatprep.subr.mxu0 0.0
      %1631 = vmatpush1.msra.mxu0 0.0
      %1632 = vmatprep.subr.mxu0 0.0
      %1633 = vmatpush1.msra.mxu0 0.0
      %1634 = vmatprep.subr.mxu0 0.0
      %1635 = vmatpush1.msra.mxu0 0.0
      %1636 = vmatprep.subr.mxu0 0.0
      %1637 = vmatpush1.msra.mxu0 0.0
      %1638 = vmatprep.subr.mxu0 0.0
      %1639 = vmatpush1.msra.mxu0 0.0
      %1640 = vmatprep.subr.mxu0 0.0
      %1641 = vmatpush1.msra.mxu0 0.0
      %1642 = vmatprep.subr.mxu0 %v1539
      %1643 = vmatpush1.msra.mxu0 %v1536
      %1644 = vmatprep.subr.mxu0 0.0
      %1645 = vmatpush2.msra.mxu0 0.0
      %1646 = vmatprep.subr.mxu0 0.0
      %1647 = vmatpush2.msra.mxu0 0.0
      %1648 = vmatprep.subr.mxu0 0.0
      %1649 = vmatpush2.msra.mxu0 0.0
      %1650 = vmatprep.subr.mxu0 0.0
      %1651 = vmatpush2.msra.mxu0 0.0
      %1652 = vmatprep.subr.mxu0 0.0
      %1653 = vmatpush2.msra.mxu0 0.0
      %1654 = vmatprep.subr.mxu0 0.0
      %1655 = vmatpush2.msra.mxu0 0.0
      %1656 = vmatprep.subr.mxu0 0.0
      %1657 = vmatpush2.msra.mxu0 0.0
      %1658 = vmatprep.subr.mxu0 0.0
      %1659 = vmatpush2.msra.mxu0 0.0
      %1660 = vmatprep.subr.mxu0 0.0
      %1661 = vmatpush2.msra.mxu0 0.0
      %1662 = vmatprep.subr.mxu0 0.0
      %1663 = vmatpush2.msra.mxu0 0.0
      %1664 = vmatprep.subr.mxu0 0.0
      %1665 = vmatpush2.msra.mxu0 0.0
      %1666 = vmatprep.subr.mxu0 0.0
      %1667 = vmatpush2.msra.mxu0 0.0
      %1668 = vmatprep.subr.mxu0 0.0
      %1669 = vmatpush2.msra.mxu0 0.0
      %1670 = vmatprep.subr.mxu0 0.0
      %1671 = vmatpush2.msra.mxu0 0.0
      %1672 = vmatprep.subr.mxu0 0.0
      %1673 = vmatpush2.msra.mxu0 0.0
      %1674 = vmatprep.subr.mxu0 0.0
      %1675 = vmatpush2.msra.mxu0 0.0
      %1676 = vmatprep.mubr.f32.mxu0 0.0
      %1677 = vmatmul.mubr.f32.gmra.mxu0 %v1527
      %v1678 = vpop.f32.mrf.mxu0
      %v1679 = vadd.f32 %v1525, %v1678
      %v1680 = vpop.f32.mrf.mxu0
      %v1681 = vadd.f32 %v1525, %v1680
      %1682 = vdwg.mxu0
      %v1683 = vsel %vm293, %v1608, 0.0
      %v1684 = vrot.slane %v1683, 4
      %v1685 = vadd.f32 %v1683, %v1684
      %v1686 = vrot.slane %v1685, 2
      %v1687 = vadd.f32 %v1685, %v1686
      %v1688 = vrot.slane %v1687, 1
      %v1689 = vadd.f32 %v1687, %v1688
      %v1690 = vsel %vm293, %v1610, 0.0
      %v1691 = vrot.slane %v1690, 4
      %v1692 = vadd.f32 %v1690, %v1691
      %v1693 = vrot.slane %v1692, 2
      %v1694 = vadd.f32 %v1692, %v1693
      %v1695 = vrot.slane %v1694, 1
      %v1696 = vadd.f32 %v1694, %v1695
      %v1697 = vsel %vm293, %v1679, 0.0
      %v1698 = vrot.slane %v1697, 4
      %v1699 = vadd.f32 %v1697, %v1698
      %v1700 = vrot.slane %v1699, 2
      %v1701 = vadd.f32 %v1699, %v1700
      %v1702 = vrot.slane %v1701, 1
      %v1703 = vadd.f32 %v1701, %v1702
      %v1704 = vsel %vm293, %v1681, 0.0
      %v1705 = vrot.slane %v1704, 4
      %v1706 = vadd.f32 %v1704, %v1705
      %v1707 = vrot.slane %v1706, 2
      %v1708 = vadd.f32 %v1706, %v1707
      %v1709 = vrot.slane %v1708, 1
      %v1710 = vadd.f32 %v1708, %v1709
      %v1711 = vmul.f32 %v1689, %v472
      %v1712 = vmul.f32 %v1696, %v472
      %v1713 = vmul.f32 %v1703, %v472
      %v1714 = vmul.f32 %v1710, %v472
      %v1715 = vsub.f32 %v1608, %v1711
      %v1716 = vsub.f32 %v1610, %v1712
      %v1717 = vsub.f32 %v1679, %v1713
      %v1718 = vsub.f32 %v1681, %v1714
      %v1719 = vmul.f32 %v1715, %v1715
      %v1720 = vmul.f32 %v1716, %v1716
      %v1721 = vmul.f32 %v1717, %v1717
      %v1722 = vmul.f32 %v1718, %v1718
      %v1723 = vsel %vm293, %v1719, 0.0
      %v1724 = vrot.slane %v1723, 4
      %v1725 = vadd.f32 %v1723, %v1724
      %v1726 = vrot.slane %v1725, 2
      %v1727 = vadd.f32 %v1725, %v1726
      %v1728 = vrot.slane %v1727, 1
      %v1729 = vadd.f32 %v1727, %v1728
      %v1730 = vsel %vm293, %v1720, 0.0
      %v1731 = vrot.slane %v1730, 4
      %v1732 = vadd.f32 %v1730, %v1731
      %v1733 = vrot.slane %v1732, 2
      %v1734 = vadd.f32 %v1732, %v1733
      %v1735 = vrot.slane %v1734, 1
      %v1736 = vadd.f32 %v1734, %v1735
      %v1737 = vsel %vm293, %v1721, 0.0
      %v1738 = vrot.slane %v1737, 4
      %v1739 = vadd.f32 %v1737, %v1738
      %v1740 = vrot.slane %v1739, 2
      %v1741 = vadd.f32 %v1739, %v1740
      %v1742 = vrot.slane %v1741, 1
      %v1743 = vadd.f32 %v1741, %v1742
      %v1744 = vsel %vm293, %v1722, 0.0
      %v1745 = vrot.slane %v1744, 4
      %v1746 = vadd.f32 %v1744, %v1745
      %v1747 = vrot.slane %v1746, 2
      %v1748 = vadd.f32 %v1746, %v1747
      %v1749 = vrot.slane %v1748, 1
      %v1750 = vadd.f32 %v1748, %v1749
      %v1751 = vmul.f32 %v1729, %v472
      %v1752 = vmul.f32 %v1736, %v472
      %v1753 = vmul.f32 %v1743, %v472
      %v1754 = vmul.f32 %v1750, %v472
      %v1755 = vadd.f32 %v1751, 1e-06
      %v1756 = vadd.f32 %v1752, 1e-06
      %v1757 = vadd.f32 %v1753, 1e-06
      %v1758 = vadd.f32 %v1754, 1e-06
      %v1759 = vrsqrt.pop %v1755
      %v1760 = vrsqrt.pop %v1756
      %v1761 = vrsqrt.pop %v1757
      %v1762 = vrsqrt.pop %v1758
      %v1763 = vmul.f32 %v1715, %v1759
      %v1764 = vmul.f32 %v1716, %v1760
      %v1765 = vmul.f32 %v1717, %v1761
      %v1766 = vmul.f32 %v1718, %v1762
      %v1767 = vrot.slane %v680, 4
      %v1769 = vmul.f32 %v1763, %v1767
      %v1770 = vmul.f32 %v1764, %v1767
      %v1771 = vmul.f32 %v1765, %v1767
      %v1772 = vmul.f32 %v1766, %v1767
      %v1773 = vrot.slane %v725, 4
      %v1775 = vadd.f32 %v1769, %v1773
      %v1776 = vadd.f32 %v1770, %v1773
      %v1777 = vadd.f32 %v1771, %v1773
      %v1778 = vadd.f32 %v1772, %v1773
      %v1779 = vld [vmem:[%s254] sm:$0xff]
      %v1780 = vld [vmem:[%s254 + $0x8] sm:$0xff]
      %v1781 = vld [vmem:[%s254 + $0x10] sm:$0xff]
      %v1782 = vld [vmem:[%s254 + $0x18] sm:$0xff]
      %v1783 = vld [vmem:[%s254 + $0x20] sm:$0xff]
      %v1784 = vld [vmem:[%s254 + $0x28] sm:$0xff]
      %v1785 = vld [vmem:[%s254 + $0x30] sm:$0xff]
      %v1786 = vld [vmem:[%s254 + $0x38] sm:$0xff]
      %1788 = vset.pattern.permute.xlu0 43
      %1789 = vperm.xlu0 %1788, %v266
      %v1790 = vpop.permute.xlu0 %1789
      %1793 = vset.pattern.permute.xlu0 43
      %1794 = vperm.xlu0 %1793, %v267
      %v1795 = vpop.permute.xlu0 %1794
      %vm1797 = vcmask 130048
      %v1798 = vsel %vm1797, %v266, 0
      %v1800 = vsel %vm1797, %v267, 0
      %1802 = vmatprep.subr.mxu0 0.0
      %1803 = vmatpush1.msra.mxu0 0.0
      %1804 = vmatprep.subr.mxu0 0.0
      %1805 = vmatpush1.msra.mxu0 0.0
      %1806 = vmatprep.subr.mxu0 0.0
      %1807 = vmatpush1.msra.mxu0 0.0
      %1808 = vmatprep.subr.mxu0 0.0
      %1809 = vmatpush1.msra.mxu0 0.0
      %1810 = vmatprep.subr.mxu0 0.0
      %1811 = vmatpush1.msra.mxu0 0.0
      %1812 = vmatprep.subr.mxu0 0.0
      %1813 = vmatpush1.msra.mxu0 0.0
      %1814 = vmatprep.subr.mxu0 0.0
      %1815 = vmatpush1.msra.mxu0 0.0
      %1816 = vmatprep.subr.mxu0 0.0
      %1817 = vmatpush1.msra.mxu0 0.0
      %1818 = vmatprep.subr.mxu0 0.0
      %1819 = vmatpush1.msra.mxu0 0.0
      %1820 = vmatprep.subr.mxu0 0.0
      %1821 = vmatpush1.msra.mxu0 0.0
      %1822 = vmatprep.subr.mxu0 0.0
      %1823 = vmatpush1.msra.mxu0 0.0
      %1824 = vmatprep.subr.mxu0 0.0
      %1825 = vmatpush1.msra.mxu0 0.0
      %1826 = vmatprep.subr.mxu0 0.0
      %1827 = vmatpush1.msra.mxu0 0.0
      %1828 = vmatprep.subr.mxu0 0.0
      %1829 = vmatpush1.msra.mxu0 0.0
      %1830 = vmatprep.subr.mxu0 %v1784
      %1831 = vmatpush1.msra.mxu0 %v1783
      %1832 = vmatprep.subr.mxu0 %v1780
      %1833 = vmatpush1.msra.mxu0 %v1779
      %1834 = vmatprep.subr.mxu0 0.0
      %1835 = vmatpush2.msra.mxu0 0.0
      %1836 = vmatprep.subr.mxu0 0.0
      %1837 = vmatpush2.msra.mxu0 0.0
      %1838 = vmatprep.subr.mxu0 0.0
      %1839 = vmatpush2.msra.mxu0 0.0
      %1840 = vmatprep.subr.mxu0 0.0
      %1841 = vmatpush2.msra.mxu0 0.0
      %1842 = vmatprep.subr.mxu0 0.0
      %1843 = vmatpush2.msra.mxu0 0.0
      %1844 = vmatprep.subr.mxu0 0.0
      %1845 = vmatpush2.msra.mxu0 0.0
      %1846 = vmatprep.subr.mxu0 0.0
      %1847 = vmatpush2.msra.mxu0 0.0
      %1848 = vmatprep.subr.mxu0 0.0
      %1849 = vmatpush2.msra.mxu0 0.0
      %1850 = vmatprep.subr.mxu0 0.0
      %1851 = vmatpush2.msra.mxu0 0.0
      %1852 = vmatprep.subr.mxu0 0.0
      %1853 = vmatpush2.msra.mxu0 0.0
      %1854 = vmatprep.subr.mxu0 0.0
      %1855 = vmatpush2.msra.mxu0 0.0
      %1856 = vmatprep.subr.mxu0 0.0
      %1857 = vmatpush2.msra.mxu0 0.0
      %1858 = vmatprep.subr.mxu0 0.0
      %1859 = vmatpush2.msra.mxu0 0.0
      %1860 = vmatprep.subr.mxu0 0.0
      %1861 = vmatpush2.msra.mxu0 0.0
      %1862 = vmatprep.subr.mxu0 0.0
      %1863 = vmatpush2.msra.mxu0 0.0
      %1864 = vmatprep.subr.mxu0 0.0
      %1865 = vmatpush2.msra.mxu0 0.0
      %1866 = vmatprep.mubr.f32.mxu0 0.0
      %1867 = vmatmul.mubr.f32.gmra.mxu0 %v1798
      %v1868 = vpop.f32.mrf.mxu0
      %v1869 = vadd.f32 %v1790, %v1868
      %v1870 = vpop.f32.mrf.mxu0
      %v1871 = vadd.f32 %v1790, %v1870
      %1872 = vmatprep.mubr.f32.mxu0 0.0
      %1873 = vmatmul.mubr.f32.gmra.mxu0 %v1800
      %v1874 = vpop.f32.mrf.mxu0
      %v1875 = vadd.f32 %v1795, %v1874
      %v1876 = vpop.f32.mrf.mxu0
      %v1877 = vadd.f32 %v1795, %v1876
      %1878 = vdwg.mxu0
      %1879 = vmatprep.subr.mxu0 0.0
      %1880 = vmatpush1.msra.mxu0 0.0
      %1881 = vmatprep.subr.mxu0 0.0
      %1882 = vmatpush1.msra.mxu0 0.0
      %1883 = vmatprep.subr.mxu0 0.0
      %1884 = vmatpush1.msra.mxu0 0.0
      %1885 = vmatprep.subr.mxu0 0.0
      %1886 = vmatpush1.msra.mxu0 0.0
      %1887 = vmatprep.subr.mxu0 0.0
      %1888 = vmatpush1.msra.mxu0 0.0
      %1889 = vmatprep.subr.mxu0 0.0
      %1890 = vmatpush1.msra.mxu0 0.0
      %1891 = vmatprep.subr.mxu0 0.0
      %1892 = vmatpush1.msra.mxu0 0.0
      %1893 = vmatprep.subr.mxu0 0.0
      %1894 = vmatpush1.msra.mxu0 0.0
      %1895 = vmatprep.subr.mxu0 0.0
      %1896 = vmatpush1.msra.mxu0 0.0
      %1897 = vmatprep.subr.mxu0 0.0
      %1898 = vmatpush1.msra.mxu0 0.0
      %1899 = vmatprep.subr.mxu0 0.0
      %1900 = vmatpush1.msra.mxu0 0.0
      %1901 = vmatprep.subr.mxu0 0.0
      %1902 = vmatpush1.msra.mxu0 0.0
      %1903 = vmatprep.subr.mxu0 0.0
      %1904 = vmatpush1.msra.mxu0 0.0
      %1905 = vmatprep.subr.mxu0 0.0
      %1906 = vmatpush1.msra.mxu0 0.0
      %1907 = vmatprep.subr.mxu0 %v1786
      %1908 = vmatpush1.msra.mxu0 %v1785
      %1909 = vmatprep.subr.mxu0 %v1782
      %1910 = vmatpush1.msra.mxu0 %v1781
      %1911 = vmatprep.subr.mxu0 0.0
      %1912 = vmatpush2.msra.mxu0 0.0
      %1913 = vmatprep.subr.mxu0 0.0
      %1914 = vmatpush2.msra.mxu0 0.0
      %1915 = vmatprep.subr.mxu0 0.0
      %1916 = vmatpush2.msra.mxu0 0.0
      %1917 = vmatprep.subr.mxu0 0.0
      %1918 = vmatpush2.msra.mxu0 0.0
      %1919 = vmatprep.subr.mxu0 0.0
      %1920 = vmatpush2.msra.mxu0 0.0
      %1921 = vmatprep.subr.mxu0 0.0
      %1922 = vmatpush2.msra.mxu0 0.0
      %1923 = vmatprep.subr.mxu0 0.0
      %1924 = vmatpush2.msra.mxu0 0.0
      %1925 = vmatprep.subr.mxu0 0.0
      %1926 = vmatpush2.msra.mxu0 0.0
      %1927 = vmatprep.subr.mxu0 0.0
      %1928 = vmatpush2.msra.mxu0 0.0
      %1929 = vmatprep.subr.mxu0 0.0
      %1930 = vmatpush2.msra.mxu0 0.0
      %1931 = vmatprep.subr.mxu0 0.0
      %1932 = vmatpush2.msra.mxu0 0.0
      %1933 = vmatprep.subr.mxu0 0.0
      %1934 = vmatpush2.msra.mxu0 0.0
      %1935 = vmatprep.subr.mxu0 0.0
      %1936 = vmatpush2.msra.mxu0 0.0
      %1937 = vmatprep.subr.mxu0 0.0
      %1938 = vmatpush2.msra.mxu0 0.0
      %1939 = vmatprep.subr.mxu0 0.0
      %1940 = vmatpush2.msra.mxu0 0.0
      %1941 = vmatprep.subr.mxu0 0.0
      %1942 = vmatpush2.msra.mxu0 0.0
      %1943 = vmatprep.mubr.f32.mxu0 0.0
      %1944 = vmatmul.mubr.f32.gmra.mxu0 %v1798
      %v1945 = vpop.f32.mrf.mxu0
      %v1946 = vadd.f32 %v1790, %v1945
      %v1947 = vpop.f32.mrf.mxu0
      %v1948 = vadd.f32 %v1790, %v1947
      %1949 = vmatprep.mubr.f32.mxu0 0.0
      %1950 = vmatmul.mubr.f32.gmra.mxu0 %v1800
      %v1951 = vpop.f32.mrf.mxu0
      %v1952 = vadd.f32 %v1795, %v1951
      %v1953 = vpop.f32.mrf.mxu0
      %v1954 = vadd.f32 %v1795, %v1953
      %1955 = vdwg.mxu0
      %v1956 = vadd.f32 %v1869, %v1875
      %v1957 = vrot.slane %v1956, 4
      %v1958 = vadd.f32 %v1956, %v1957
      %v1959 = vrot.slane %v1958, 2
      %v1960 = vadd.f32 %v1958, %v1959
      %v1961 = vrot.slane %v1960, 1
      %v1962 = vadd.f32 %v1960, %v1961
      %v1963 = vadd.f32 %v1871, %v1877
      %v1964 = vrot.slane %v1963, 4
      %v1965 = vadd.f32 %v1963, %v1964
      %v1966 = vrot.slane %v1965, 2
      %v1967 = vadd.f32 %v1965, %v1966
      %v1968 = vrot.slane %v1967, 1
      %v1969 = vadd.f32 %v1967, %v1968
      %v1970 = vadd.f32 %v1946, %v1952
      %v1971 = vrot.slane %v1970, 4
      %v1972 = vadd.f32 %v1970, %v1971
      %v1973 = vrot.slane %v1972, 2
      %v1974 = vadd.f32 %v1972, %v1973
      %v1975 = vrot.slane %v1974, 1
      %v1976 = vadd.f32 %v1974, %v1975
      %v1977 = vadd.f32 %v1948, %v1954
      %v1978 = vrot.slane %v1977, 4
      %v1979 = vadd.f32 %v1977, %v1978
      %v1980 = vrot.slane %v1979, 2
      %v1981 = vadd.f32 %v1979, %v1980
      %v1982 = vrot.slane %v1981, 1
      %v1983 = vadd.f32 %v1981, %v1982
      %v1984 = vrcp.pop 16.0
      %v1985 = vmul.f32 %v1962, %v1984
      %v1986 = vmul.f32 %v1969, %v1984
      %v1987 = vmul.f32 %v1976, %v1984
      %v1988 = vmul.f32 %v1983, %v1984
      %v1989 = vsub.f32 %v1869, %v1985
      %v1990 = vsub.f32 %v1871, %v1986
      %v1991 = vsub.f32 %v1946, %v1987
      %v1992 = vsub.f32 %v1948, %v1988
      %v1993 = vsub.f32 %v1875, %v1985
      %v1994 = vsub.f32 %v1877, %v1986
      %v1995 = vsub.f32 %v1952, %v1987
      %v1996 = vsub.f32 %v1954, %v1988
      %v1997 = vmul.f32 %v1989, %v1989
      %v1998 = vmul.f32 %v1990, %v1990
      %v1999 = vmul.f32 %v1991, %v1991
      %v2000 = vmul.f32 %v1992, %v1992
      %v2001 = vmul.f32 %v1993, %v1993
      %v2002 = vmul.f32 %v1994, %v1994
      %v2003 = vmul.f32 %v1995, %v1995
      %v2004 = vmul.f32 %v1996, %v1996
      %v2005 = vadd.f32 %v1997, %v2001
      %v2006 = vrot.slane %v2005, 4
      %v2007 = vadd.f32 %v2005, %v2006
      %v2008 = vrot.slane %v2007, 2
      %v2009 = vadd.f32 %v2007, %v2008
      %v2010 = vrot.slane %v2009, 1
      %v2011 = vadd.f32 %v2009, %v2010
      %v2012 = vadd.f32 %v1998, %v2002
      %v2013 = vrot.slane %v2012, 4
      %v2014 = vadd.f32 %v2012, %v2013
      %v2015 = vrot.slane %v2014, 2
      %v2016 = vadd.f32 %v2014, %v2015
      %v2017 = vrot.slane %v2016, 1
      %v2018 = vadd.f32 %v2016, %v2017
      %v2019 = vadd.f32 %v1999, %v2003
      %v2020 = vrot.slane %v2019, 4
      %v2021 = vadd.f32 %v2019, %v2020
      %v2022 = vrot.slane %v2021, 2
      %v2023 = vadd.f32 %v2021, %v2022
      %v2024 = vrot.slane %v2023, 1
      %v2025 = vadd.f32 %v2023, %v2024
      %v2026 = vadd.f32 %v2000, %v2004
      %v2027 = vrot.slane %v2026, 4
      %v2028 = vadd.f32 %v2026, %v2027
      %v2029 = vrot.slane %v2028, 2
      %v2030 = vadd.f32 %v2028, %v2029
      %v2031 = vrot.slane %v2030, 1
      %v2032 = vadd.f32 %v2030, %v2031
      %v2033 = vmul.f32 %v2011, %v1984
      %v2034 = vmul.f32 %v2018, %v1984
      %v2035 = vmul.f32 %v2025, %v1984
      %v2036 = vmul.f32 %v2032, %v1984
      %v2037 = vadd.f32 %v2033, 1e-06
      %v2038 = vadd.f32 %v2034, 1e-06
      %v2039 = vadd.f32 %v2035, 1e-06
      %v2040 = vadd.f32 %v2036, 1e-06
      %v2041 = vrsqrt.pop %v2037
      %v2042 = vrsqrt.pop %v2038
      %v2043 = vrsqrt.pop %v2039
      %v2044 = vrsqrt.pop %v2040
      %v2045 = vmul.f32 %v1989, %v2041
      %v2046 = vmul.f32 %v1990, %v2042
      %v2047 = vmul.f32 %v1991, %v2043
      %v2048 = vmul.f32 %v1992, %v2044
      %v2049 = vmul.f32 %v1993, %v2041
      %v2050 = vmul.f32 %v1994, %v2042
      %v2051 = vmul.f32 %v1995, %v2043
      %v2052 = vmul.f32 %v1996, %v2044
      %2053 = vset.pattern.permute.xlu0 44
      %2054 = vperm.xlu0 %2053, %v266
      %v2055 = vpop.permute.xlu0 %2054
      %2057 = vset.pattern.permute.xlu0 44
      %2058 = vperm.xlu0 %2057, %v267
      %v2059 = vpop.permute.xlu0 %2058
      %v2061 = vmul.f32 %v2045, %v2055
      %v2062 = vmul.f32 %v2046, %v2055
      %v2063 = vmul.f32 %v2047, %v2055
      %v2064 = vmul.f32 %v2048, %v2055
      %v2065 = vmul.f32 %v2049, %v2059
      %v2066 = vmul.f32 %v2050, %v2059
      %v2067 = vmul.f32 %v2051, %v2059
      %v2068 = vmul.f32 %v2052, %v2059
      %2069 = vset.pattern.permute.xlu0 45
      %2070 = vperm.xlu0 %2069, %v266
      %v2071 = vpop.permute.xlu0 %2070
      %2073 = vset.pattern.permute.xlu0 45
      %2074 = vperm.xlu0 %2073, %v267
      %v2075 = vpop.permute.xlu0 %2074
      %v2077 = vadd.f32 %v2061, %v2071
      %v2078 = vadd.f32 %v2062, %v2071
      %v2079 = vadd.f32 %v2063, %v2071
      %v2080 = vadd.f32 %v2064, %v2071
      %v2081 = vadd.f32 %v2065, %v2075
      %v2082 = vadd.f32 %v2066, %v2075
      %v2083 = vadd.f32 %v2067, %v2075
      %v2084 = vadd.f32 %v2068, %v2075
      %v2085 = vmul.f32 %v2077, 0.5
      %v2086 = vmul.f32 %v2078, 0.5
      %v2087 = vmul.f32 %v2079, 0.5
      %v2088 = vmul.f32 %v2080, 0.5
      %v2089 = vmul.f32 %v2081, 0.5
      %v2090 = vmul.f32 %v2082, 0.5
      %v2091 = vmul.f32 %v2083, 0.5
      %v2092 = vmul.f32 %v2084, 0.5
      %v2093 = vmul.f32 %v2077, 0.70710677
      %v2094 = vmul.f32 %v2078, 0.70710677
      %v2095 = vmul.f32 %v2079, 0.70710677
      %v2096 = vmul.f32 %v2080, 0.70710677
      %v2097 = vmul.f32 %v2081, 0.70710677
      %v2098 = vmul.f32 %v2082, 0.70710677
      %v2099 = vmul.f32 %v2083, 0.70710677
      %v2100 = vmul.f32 %v2084, 0.70710677
      %v2101 = verf.f32.pop %v2093
      %v2102 = verf.f32.pop %v2094
      %v2103 = verf.f32.pop %v2095
      %v2104 = verf.f32.pop %v2096
      %v2105 = verf.f32.pop %v2097
      %v2106 = verf.f32.pop %v2098
      %v2107 = verf.f32.pop %v2099
      %v2108 = verf.f32.pop %v2100
      %v2109 = vadd.f32 %v2101, 1.0
      %v2110 = vadd.f32 %v2102, 1.0
      %v2111 = vadd.f32 %v2103, 1.0
      %v2112 = vadd.f32 %v2104, 1.0
      %v2113 = vadd.f32 %v2105, 1.0
      %v2114 = vadd.f32 %v2106, 1.0
      %v2115 = vadd.f32 %v2107, 1.0
      %v2116 = vadd.f32 %v2108, 1.0
      %v2117 = vmul.f32 %v2085, %v2109
      %v2118 = vmul.f32 %v2086, %v2110
      %v2119 = vmul.f32 %v2087, %v2111
      %v2120 = vmul.f32 %v2088, %v2112
      %v2121 = vmul.f32 %v2089, %v2113
      %v2122 = vmul.f32 %v2090, %v2114
      %v2123 = vmul.f32 %v2091, %v2115
      %v2124 = vmul.f32 %v2092, %v2116
      %2125 = vrot.lane.b32.xlu0 %v2117, 64
      %v2126 = vpop.permute.xlu0 %2125
      %2127 = vrot.lane.b32.xlu0 %v2121, 64
      %v2128 = vpop.permute.xlu0 %2127
      %2129 = vrot.lane.b32.xlu0 %v2118, 64
      %v2130 = vpop.permute.xlu0 %2129
      %2131 = vrot.lane.b32.xlu0 %v2122, 64
      %v2132 = vpop.permute.xlu0 %2131
      %2133 = vrot.lane.b32.xlu0 %v2119, 64
      %v2134 = vpop.permute.xlu0 %2133
      %2135 = vrot.lane.b32.xlu0 %v2123, 64
      %v2136 = vpop.permute.xlu0 %2135
      %2137 = vrot.lane.b32.xlu0 %v2120, 64
      %v2138 = vpop.permute.xlu0 %2137
      %2139 = vrot.lane.b32.xlu0 %v2124, 64
      %v2140 = vpop.permute.xlu0 %2139
      %v2141 = vsel %vm575, %v2134, %v2138
      %v2142 = vsel %vm575, %v2136, %v2140
      %v2143 = vsel %vm575, %v2130, %v2134
      %v2144 = vsel %vm575, %v2132, %v2136
      %v2145 = vsel %vm575, %v2126, %v2130
      %v2146 = vsel %vm575, %v2128, %v2132
      %v2147 = vsel %vm575, %v2138, %v2126
      %v2148 = vsel %vm575, %v2140, %v2128
      %v2149 = vmul.f32 %v2147, %v583
      %v2150 = vmul.f32 %v2145, %v587
      %v2151 = vmul.f32 %v2143, %v591
      %v2152 = vmul.f32 %v2141, %v595
      %v2153 = vmul.f32 %v2148, %v583
      %v2154 = vmul.f32 %v2146, %v587
      %v2155 = vmul.f32 %v2144, %v591
      %v2156 = vmul.f32 %v2142, %v595
      %2157 = vrot.lane.b32.xlu0 %v2149, 8
      %v2158 = vpop.permute.xlu0 %2157
      %2159 = vrot.lane.b32.xlu0 %v2153, 8
      %v2160 = vpop.permute.xlu0 %2159
      %2161 = vrot.lane.b32.xlu0 %v2150, 8
      %v2162 = vpop.permute.xlu0 %2161
      %2163 = vrot.lane.b32.xlu0 %v2154, 8
      %v2164 = vpop.permute.xlu0 %2163
      %2165 = vrot.lane.b32.xlu0 %v2151, 8
      %v2166 = vpop.permute.xlu0 %2165
      %2167 = vrot.lane.b32.xlu0 %v2155, 8
      %v2168 = vpop.permute.xlu0 %2167
      %2169 = vrot.lane.b32.xlu0 %v2152, 8
      %v2170 = vpop.permute.xlu0 %2169
      %2171 = vrot.lane.b32.xlu0 %v2156, 8
      %v2172 = vpop.permute.xlu0 %2171
      %v2173 = vsel %vm608, %v2166, %v2170
      %v2174 = vsel %vm608, %v2168, %v2172
      %v2175 = vsel %vm608, %v2162, %v2166
      %v2176 = vsel %vm608, %v2164, %v2168
      %v2177 = vsel %vm608, %v2158, %v2162
      %v2178 = vsel %vm608, %v2160, %v2164
      %v2179 = vsel %vm608, %v2170, %v2158
      %v2180 = vsel %vm608, %v2172, %v2160
      %v2181 = vmul.f32 %v2179, %v616
      %v2182 = vmul.f32 %v2177, %v620
      %v2183 = vmul.f32 %v2175, %v624
      %v2184 = vmul.f32 %v2173, %v628
      %v2185 = vmul.f32 %v2180, %v616
      %v2186 = vmul.f32 %v2178, %v620
      %v2187 = vmul.f32 %v2176, %v624
      %v2188 = vmul.f32 %v2174, %v628
      %2189 = vrot.lane.b32.xlu0 %v2181, 1
      %v2190 = vpop.permute.xlu0 %2189
      %2191 = vrot.lane.b32.xlu0 %v2185, 1
      %v2192 = vpop.permute.xlu0 %2191
      %2193 = vrot.lane.b32.xlu0 %v2182, 1
      %v2194 = vpop.permute.xlu0 %2193
      %2195 = vrot.lane.b32.xlu0 %v2186, 1
      %v2196 = vpop.permute.xlu0 %2195
      %2197 = vrot.lane.b32.xlu0 %v2183, 1
      %v2198 = vpop.permute.xlu0 %2197
      %2199 = vrot.lane.b32.xlu0 %v2187, 1
      %v2200 = vpop.permute.xlu0 %2199
      %2201 = vrot.lane.b32.xlu0 %v2184, 1
      %v2202 = vpop.permute.xlu0 %2201
      %2203 = vrot.lane.b32.xlu0 %v2188, 1
      %v2204 = vpop.permute.xlu0 %2203
      %v2205 = vsel %vm641, %v2198, %v2202
      %v2206 = vsel %vm641, %v2200, %v2204
      %v2207 = vsel %vm641, %v2194, %v2198
      %v2208 = vsel %vm641, %v2196, %v2200
      %v2209 = vsel %vm641, %v2190, %v2194
      %v2210 = vsel %vm641, %v2192, %v2196
      %v2211 = vsel %vm641, %v2202, %v2190
      %v2212 = vsel %vm641, %v2204, %v2192
      %v2213 = vmul.f32 %v2211, %v649
      %v2214 = vmul.f32 %v2209, %v653
      %v2215 = vmul.f32 %v2207, %v657
      %v2216 = vmul.f32 %v2205, %v661
      %v2217 = vmul.f32 %v2212, %v649
      %v2218 = vmul.f32 %v2210, %v653
      %v2219 = vmul.f32 %v2208, %v657
      %v2220 = vmul.f32 %v2206, %v661
      %2221 = vset.pattern.permute.xlu0 16
      %2222 = vperm.xlu0 %2221, %v266
      %v2223 = vpop.permute.xlu0 %2222
      %2225 = vset.pattern.permute.xlu0 16
      %2226 = vperm.xlu0 %2225, %v267
      %v2227 = vpop.permute.xlu0 %2226
      %v2229 = vmul.f32 %v2223, %v2213
      %v2230 = vmul.f32 %v2223, %v2214
      %v2231 = vmul.f32 %v2223, %v2215
      %v2232 = vmul.f32 %v2223, %v2216
      %v2233 = vmul.f32 %v2227, %v2217
      %v2234 = vmul.f32 %v2227, %v2218
      %v2235 = vmul.f32 %v2227, %v2219
      %v2236 = vmul.f32 %v2227, %v2220
      %v2237 = vadd.f32 %v2229, 0.0
      %v2238 = vadd.f32 %v2230, 0.0
      %v2239 = vadd.f32 %v2231, 0.0
      %v2240 = vadd.f32 %v2232, 0.0
      %v2241 = vadd.f32 %v2233, 0.0
      %v2242 = vadd.f32 %v2234, 0.0
      %v2243 = vadd.f32 %v2235, 0.0
      %v2244 = vadd.f32 %v2236, 0.0
      %2245 = vset.pattern.permute.xlu0 17
      %2246 = vperm.xlu0 %2245, %v266
      %v2247 = vpop.permute.xlu0 %2246
      %2249 = vset.pattern.permute.xlu0 17
      %2250 = vperm.xlu0 %2249, %v267
      %v2251 = vpop.permute.xlu0 %2250
      %v2253 = vmul.f32 %v2247, %v2181
      %v2254 = vmul.f32 %v2247, %v2182
      %v2255 = vmul.f32 %v2247, %v2183
      %v2256 = vmul.f32 %v2247, %v2184
      %v2257 = vmul.f32 %v2251, %v2185
      %v2258 = vmul.f32 %v2251, %v2186
      %v2259 = vmul.f32 %v2251, %v2187
      %v2260 = vmul.f32 %v2251, %v2188
      %v2261 = vadd.f32 %v2237, %v2253
      %v2262 = vadd.f32 %v2238, %v2254
      %v2263 = vadd.f32 %v2239, %v2255
      %v2264 = vadd.f32 %v2240, %v2256
      %v2265 = vadd.f32 %v2241, %v2257
      %v2266 = vadd.f32 %v2242, %v2258
      %v2267 = vadd.f32 %v2243, %v2259
      %v2268 = vadd.f32 %v2244, %v2260
      %2269 = vrot.lane.b32.xlu0 %v2181, 127
      %v2270 = vpop.permute.xlu0 %2269
      %2271 = vrot.lane.b32.xlu0 %v2185, 127
      %v2272 = vpop.permute.xlu0 %2271
      %2273 = vrot.lane.b32.xlu0 %v2182, 127
      %v2274 = vpop.permute.xlu0 %2273
      %2275 = vrot.lane.b32.xlu0 %v2186, 127
      %v2276 = vpop.permute.xlu0 %2275
      %2277 = vrot.lane.b32.xlu0 %v2183, 127
      %v2278 = vpop.permute.xlu0 %2277
      %2279 = vrot.lane.b32.xlu0 %v2187, 127
      %v2280 = vpop.permute.xlu0 %2279
      %2281 = vrot.lane.b32.xlu0 %v2184, 127
      %v2282 = vpop.permute.xlu0 %2281
      %2283 = vrot.lane.b32.xlu0 %v2188, 127
      %v2284 = vpop.permute.xlu0 %2283
      %v2285 = vsel %vm698, %v2278, %v2282
      %v2286 = vsel %vm698, %v2280, %v2284
      %v2287 = vsel %vm698, %v2274, %v2278
      %v2288 = vsel %vm698, %v2276, %v2280
      %v2289 = vsel %vm698, %v2270, %v2274
      %v2290 = vsel %vm698, %v2272, %v2276
      %v2291 = vsel %vm698, %v2282, %v2270
      %v2292 = vsel %vm698, %v2284, %v2272
      %v2293 = vmul.f32 %v2289, %v706
      %v2294 = vmul.f32 %v2287, %v710
      %v2295 = vmul.f32 %v2285, %v714
      %v2296 = vmul.f32 %v2291, %v718
      %v2297 = vmul.f32 %v2290, %v706
      %v2298 = vmul.f32 %v2288, %v710
      %v2299 = vmul.f32 %v2286, %v714
      %v2300 = vmul.f32 %v2292, %v718
      %2301 = vset.pattern.permute.xlu0 18
      %2302 = vperm.xlu0 %2301, %v266
      %v2303 = vpop.permute.xlu0 %2302
      %2305 = vset.pattern.permute.xlu0 18
      %2306 = vperm.xlu0 %2305, %v267
      %v2307 = vpop.permute.xlu0 %2306
      %v2309 = vmul.f32 %v2303, %v2293
      %v2310 = vmul.f32 %v2303, %v2294
      %v2311 = vmul.f32 %v2303, %v2295
      %v2312 = vmul.f32 %v2303, %v2296
      %v2313 = vmul.f32 %v2307, %v2297
      %v2314 = vmul.f32 %v2307, %v2298
      %v2315 = vmul.f32 %v2307, %v2299
      %v2316 = vmul.f32 %v2307, %v2300
      %v2317 = vadd.f32 %v2261, %v2309
      %v2318 = vadd.f32 %v2262, %v2310
      %v2319 = vadd.f32 %v2263, %v2311
      %v2320 = vadd.f32 %v2264, %v2312
      %v2321 = vadd.f32 %v2265, %v2313
      %v2322 = vadd.f32 %v2266, %v2314
      %v2323 = vadd.f32 %v2267, %v2315
      %v2324 = vadd.f32 %v2268, %v2316
      %2325 = vrot.lane.b32.xlu0 %v2149, 1
      %v2326 = vpop.permute.xlu0 %2325
      %2327 = vrot.lane.b32.xlu0 %v2153, 1
      %v2328 = vpop.permute.xlu0 %2327
      %2329 = vrot.lane.b32.xlu0 %v2150, 1
      %v2330 = vpop.permute.xlu0 %2329
      %2331 = vrot.lane.b32.xlu0 %v2154, 1
      %v2332 = vpop.permute.xlu0 %2331
      %2333 = vrot.lane.b32.xlu0 %v2151, 1
      %v2334 = vpop.permute.xlu0 %2333
      %2335 = vrot.lane.b32.xlu0 %v2155, 1
      %v2336 = vpop.permute.xlu0 %2335
      %2337 = vrot.lane.b32.xlu0 %v2152, 1
      %v2338 = vpop.permute.xlu0 %2337
      %2339 = vrot.lane.b32.xlu0 %v2156, 1
      %v2340 = vpop.permute.xlu0 %2339
      %v2341 = vsel %vm641, %v2334, %v2338
      %v2342 = vsel %vm641, %v2336, %v2340
      %v2343 = vsel %vm641, %v2330, %v2334
      %v2344 = vsel %vm641, %v2332, %v2336
      %v2345 = vsel %vm641, %v2326, %v2330
      %v2346 = vsel %vm641, %v2328, %v2332
      %v2347 = vsel %vm641, %v2338, %v2326
      %v2348 = vsel %vm641, %v2340, %v2328
      %v2349 = vmul.f32 %v2347, %v649
      %v2350 = vmul.f32 %v2345, %v653
      %v2351 = vmul.f32 %v2343, %v657
      %v2352 = vmul.f32 %v2341, %v661
      %v2353 = vmul.f32 %v2348, %v649
      %v2354 = vmul.f32 %v2346, %v653
      %v2355 = vmul.f32 %v2344, %v657
      %v2356 = vmul.f32 %v2342, %v661
      %2357 = vset.pattern.permute.xlu0 19
      %2358 = vperm.xlu0 %2357, %v266
      %v2359 = vpop.permute.xlu0 %2358
      %2361 = vset.pattern.permute.xlu0 19
      %2362 = vperm.xlu0 %2361, %v267
      %v2363 = vpop.permute.xlu0 %2362
      %v2365 = vmul.f32 %v2359, %v2349
      %v2366 = vmul.f32 %v2359, %v2350
      %v2367 = vmul.f32 %v2359, %v2351
      %v2368 = vmul.f32 %v2359, %v2352
      %v2369 = vmul.f32 %v2363, %v2353
      %v2370 = vmul.f32 %v2363, %v2354
      %v2371 = vmul.f32 %v2363, %v2355
      %v2372 = vmul.f32 %v2363, %v2356
      %v2373 = vadd.f32 %v2317, %v2365
      %v2374 = vadd.f32 %v2318, %v2366
      %v2375 = vadd.f32 %v2319, %v2367
      %v2376 = vadd.f32 %v2320, %v2368
      %v2377 = vadd.f32 %v2321, %v2369
      %v2378 = vadd.f32 %v2322, %v2370
      %v2379 = vadd.f32 %v2323, %v2371
      %v2380 = vadd.f32 %v2324, %v2372
      %2381 = vset.pattern.permute.xlu0 20
      %2382 = vperm.xlu0 %2381, %v266
      %v2383 = vpop.permute.xlu0 %2382
      %2385 = vset.pattern.permute.xlu0 20
      %2386 = vperm.xlu0 %2385, %v267
      %v2387 = vpop.permute.xlu0 %2386
      %v2389 = vmul.f32 %v2383, %v2149
      %v2390 = vmul.f32 %v2383, %v2150
      %v2391 = vmul.f32 %v2383, %v2151
      %v2392 = vmul.f32 %v2383, %v2152
      %v2393 = vmul.f32 %v2387, %v2153
      %v2394 = vmul.f32 %v2387, %v2154
      %v2395 = vmul.f32 %v2387, %v2155
      %v2396 = vmul.f32 %v2387, %v2156
      %v2397 = vadd.f32 %v2373, %v2389
      %v2398 = vadd.f32 %v2374, %v2390
      %v2399 = vadd.f32 %v2375, %v2391
      %v2400 = vadd.f32 %v2376, %v2392
      %v2401 = vadd.f32 %v2377, %v2393
      %v2402 = vadd.f32 %v2378, %v2394
      %v2403 = vadd.f32 %v2379, %v2395
      %v2404 = vadd.f32 %v2380, %v2396
      %2405 = vrot.lane.b32.xlu0 %v2149, 127
      %v2406 = vpop.permute.xlu0 %2405
      %2407 = vrot.lane.b32.xlu0 %v2153, 127
      %v2408 = vpop.permute.xlu0 %2407
      %2409 = vrot.lane.b32.xlu0 %v2150, 127
      %v2410 = vpop.permute.xlu0 %2409
      %2411 = vrot.lane.b32.xlu0 %v2154, 127
      %v2412 = vpop.permute.xlu0 %2411
      %2413 = vrot.lane.b32.xlu0 %v2151, 127
      %v2414 = vpop.permute.xlu0 %2413
      %2415 = vrot.lane.b32.xlu0 %v2155, 127
      %v2416 = vpop.permute.xlu0 %2415
      %2417 = vrot.lane.b32.xlu0 %v2152, 127
      %v2418 = vpop.permute.xlu0 %2417
      %2419 = vrot.lane.b32.xlu0 %v2156, 127
      %v2420 = vpop.permute.xlu0 %2419
      %v2421 = vsel %vm698, %v2414, %v2418
      %v2422 = vsel %vm698, %v2416, %v2420
      %v2423 = vsel %vm698, %v2410, %v2414
      %v2424 = vsel %vm698, %v2412, %v2416
      %v2425 = vsel %vm698, %v2406, %v2410
      %v2426 = vsel %vm698, %v2408, %v2412
      %v2427 = vsel %vm698, %v2418, %v2406
      %v2428 = vsel %vm698, %v2420, %v2408
      %v2429 = vmul.f32 %v2425, %v706
      %v2430 = vmul.f32 %v2423, %v710
      %v2431 = vmul.f32 %v2421, %v714
      %v2432 = vmul.f32 %v2427, %v718
      %v2433 = vmul.f32 %v2426, %v706
      %v2434 = vmul.f32 %v2424, %v710
      %v2435 = vmul.f32 %v2422, %v714
      %v2436 = vmul.f32 %v2428, %v718
      %2437 = vset.pattern.permute.xlu0 21
      %2438 = vperm.xlu0 %2437, %v266
      %v2439 = vpop.permute.xlu0 %2438
      %2441 = vset.pattern.permute.xlu0 21
      %2442 = vperm.xlu0 %2441, %v267
      %v2443 = vpop.permute.xlu0 %2442
      %v2445 = vmul.f32 %v2439, %v2429
      %v2446 = vmul.f32 %v2439, %v2430
      %v2447 = vmul.f32 %v2439, %v2431
      %v2448 = vmul.f32 %v2439, %v2432
      %v2449 = vmul.f32 %v2443, %v2433
      %v2450 = vmul.f32 %v2443, %v2434
      %v2451 = vmul.f32 %v2443, %v2435
      %v2452 = vmul.f32 %v2443, %v2436
      %v2453 = vadd.f32 %v2397, %v2445
      %v2454 = vadd.f32 %v2398, %v2446
      %v2455 = vadd.f32 %v2399, %v2447
      %v2456 = vadd.f32 %v2400, %v2448
      %v2457 = vadd.f32 %v2401, %v2449
      %v2458 = vadd.f32 %v2402, %v2450
      %v2459 = vadd.f32 %v2403, %v2451
      %v2460 = vadd.f32 %v2404, %v2452
      %2461 = vrot.lane.b32.xlu0 %v2149, 120
      %v2462 = vpop.permute.xlu0 %2461
      %2463 = vrot.lane.b32.xlu0 %v2153, 120
      %v2464 = vpop.permute.xlu0 %2463
      %2465 = vrot.lane.b32.xlu0 %v2150, 120
      %v2466 = vpop.permute.xlu0 %2465
      %2467 = vrot.lane.b32.xlu0 %v2154, 120
      %v2468 = vpop.permute.xlu0 %2467
      %2469 = vrot.lane.b32.xlu0 %v2151, 120
      %v2470 = vpop.permute.xlu0 %2469
      %2471 = vrot.lane.b32.xlu0 %v2155, 120
      %v2472 = vpop.permute.xlu0 %2471
      %2473 = vrot.lane.b32.xlu0 %v2152, 120
      %v2474 = vpop.permute.xlu0 %2473
      %2475 = vrot.lane.b32.xlu0 %v2156, 120
      %v2476 = vpop.permute.xlu0 %2475
      %v2477 = vsel %vm811, %v2470, %v2474
      %v2478 = vsel %vm811, %v2472, %v2476
      %v2479 = vsel %vm811, %v2466, %v2470
      %v2480 = vsel %vm811, %v2468, %v2472
      %v2481 = vsel %vm811, %v2462, %v2466
      %v2482 = vsel %vm811, %v2464, %v2468
      %v2483 = vsel %vm811, %v2474, %v2462
      %v2484 = vsel %vm811, %v2476, %v2464
      %v2485 = vmul.f32 %v2481, %v819
      %v2486 = vmul.f32 %v2479, %v823
      %v2487 = vmul.f32 %v2477, %v827
      %v2488 = vmul.f32 %v2483, %v831
      %v2489 = vmul.f32 %v2482, %v819
      %v2490 = vmul.f32 %v2480, %v823
      %v2491 = vmul.f32 %v2478, %v827
      %v2492 = vmul.f32 %v2484, %v831
      %2493 = vrot.lane.b32.xlu0 %v2485, 1
      %v2494 = vpop.permute.xlu0 %2493
      %2495 = vrot.lane.b32.xlu0 %v2489, 1
      %v2496 = vpop.permute.xlu0 %2495
      %2497 = vrot.lane.b32.xlu0 %v2486, 1
      %v2498 = vpop.permute.xlu0 %2497
      %2499 = vrot.lane.b32.xlu0 %v2490, 1
      %v2500 = vpop.permute.xlu0 %2499
      %2501 = vrot.lane.b32.xlu0 %v2487, 1
      %v2502 = vpop.permute.xlu0 %2501
      %2503 = vrot.lane.b32.xlu0 %v2491, 1
      %v2504 = vpop.permute.xlu0 %2503
      %2505 = vrot.lane.b32.xlu0 %v2488, 1
      %v2506 = vpop.permute.xlu0 %2505
      %2507 = vrot.lane.b32.xlu0 %v2492, 1
      %v2508 = vpop.permute.xlu0 %2507
      %v2509 = vsel %vm641, %v2502, %v2506
      %v2510 = vsel %vm641, %v2504, %v2508
      %v2511 = vsel %vm641, %v2498, %v2502
      %v2512 = vsel %vm641, %v2500, %v2504
      %v2513 = vsel %vm641, %v2494, %v2498
      %v2514 = vsel %vm641, %v2496, %v2500
      %v2515 = vsel %vm641, %v2506, %v2494
      %v2516 = vsel %vm641, %v2508, %v2496
      %v2517 = vmul.f32 %v2515, %v649
      %v2518 = vmul.f32 %v2513, %v653
      %v2519 = vmul.f32 %v2511, %v657
      %v2520 = vmul.f32 %v2509, %v661
      %v2521 = vmul.f32 %v2516, %v649
      %v2522 = vmul.f32 %v2514, %v653
      %v2523 = vmul.f32 %v2512, %v657
      %v2524 = vmul.f32 %v2510, %v661
      %2525 = vset.pattern.permute.xlu0 22
      %2526 = vperm.xlu0 %2525, %v266
      %v2527 = vpop.permute.xlu0 %2526
      %2529 = vset.pattern.permute.xlu0 22
      %2530 = vperm.xlu0 %2529, %v267
      %v2531 = vpop.permute.xlu0 %2530
      %v2533 = vmul.f32 %v2527, %v2517
      %v2534 = vmul.f32 %v2527, %v2518
      %v2535 = vmul.f32 %v2527, %v2519
      %v2536 = vmul.f32 %v2527, %v2520
      %v2537 = vmul.f32 %v2531, %v2521
      %v2538 = vmul.f32 %v2531, %v2522
      %v2539 = vmul.f32 %v2531, %v2523
      %v2540 = vmul.f32 %v2531, %v2524
      %v2541 = vadd.f32 %v2453, %v2533
      %v2542 = vadd.f32 %v2454, %v2534
      %v2543 = vadd.f32 %v2455, %v2535
      %v2544 = vadd.f32 %v2456, %v2536
      %v2545 = vadd.f32 %v2457, %v2537
      %v2546 = vadd.f32 %v2458, %v2538
      %v2547 = vadd.f32 %v2459, %v2539
      %v2548 = vadd.f32 %v2460, %v2540
      %2549 = vset.pattern.permute.xlu0 23
      %2550 = vperm.xlu0 %2549, %v266
      %v2551 = vpop.permute.xlu0 %2550
      %2553 = vset.pattern.permute.xlu0 23
      %2554 = vperm.xlu0 %2553, %v267
      %v2555 = vpop.permute.xlu0 %2554
      %v2557 = vmul.f32 %v2551, %v2485
      %v2558 = vmul.f32 %v2551, %v2486
      %v2559 = vmul.f32 %v2551, %v2487
      %v2560 = vmul.f32 %v2551, %v2488
      %v2561 = vmul.f32 %v2555, %v2489
      %v2562 = vmul.f32 %v2555, %v2490
      %v2563 = vmul.f32 %v2555, %v2491
      %v2564 = vmul.f32 %v2555, %v2492
      %v2565 = vadd.f32 %v2541, %v2557
      %v2566 = vadd.f32 %v2542, %v2558
      %v2567 = vadd.f32 %v2543, %v2559
      %v2568 = vadd.f32 %v2544, %v2560
      %v2569 = vadd.f32 %v2545, %v2561
      %v2570 = vadd.f32 %v2546, %v2562
      %v2571 = vadd.f32 %v2547, %v2563
      %v2572 = vadd.f32 %v2548, %v2564
      %2573 = vrot.lane.b32.xlu0 %v2485, 127
      %v2574 = vpop.permute.xlu0 %2573
      %2575 = vrot.lane.b32.xlu0 %v2489, 127
      %v2576 = vpop.permute.xlu0 %2575
      %2577 = vrot.lane.b32.xlu0 %v2486, 127
      %v2578 = vpop.permute.xlu0 %2577
      %2579 = vrot.lane.b32.xlu0 %v2490, 127
      %v2580 = vpop.permute.xlu0 %2579
      %2581 = vrot.lane.b32.xlu0 %v2487, 127
      %v2582 = vpop.permute.xlu0 %2581
      %2583 = vrot.lane.b32.xlu0 %v2491, 127
      %v2584 = vpop.permute.xlu0 %2583
      %2585 = vrot.lane.b32.xlu0 %v2488, 127
      %v2586 = vpop.permute.xlu0 %2585
      %2587 = vrot.lane.b32.xlu0 %v2492, 127
      %v2588 = vpop.permute.xlu0 %2587
      %v2589 = vsel %vm698, %v2582, %v2586
      %v2590 = vsel %vm698, %v2584, %v2588
      %v2591 = vsel %vm698, %v2578, %v2582
      %v2592 = vsel %vm698, %v2580, %v2584
      %v2593 = vsel %vm698, %v2574, %v2578
      %v2594 = vsel %vm698, %v2576, %v2580
      %v2595 = vsel %vm698, %v2586, %v2574
      %v2596 = vsel %vm698, %v2588, %v2576
      %v2597 = vmul.f32 %v2593, %v706
      %v2598 = vmul.f32 %v2591, %v710
      %v2599 = vmul.f32 %v2589, %v714
      %v2600 = vmul.f32 %v2595, %v718
      %v2601 = vmul.f32 %v2594, %v706
      %v2602 = vmul.f32 %v2592, %v710
      %v2603 = vmul.f32 %v2590, %v714
      %v2604 = vmul.f32 %v2596, %v718
      %2605 = vset.pattern.permute.xlu0 24
      %2606 = vperm.xlu0 %2605, %v266
      %v2607 = vpop.permute.xlu0 %2606
      %2609 = vset.pattern.permute.xlu0 24
      %2610 = vperm.xlu0 %2609, %v267
      %v2611 = vpop.permute.xlu0 %2610
      %v2613 = vmul.f32 %v2607, %v2597
      %v2614 = vmul.f32 %v2607, %v2598
      %v2615 = vmul.f32 %v2607, %v2599
      %v2616 = vmul.f32 %v2607, %v2600
      %v2617 = vmul.f32 %v2611, %v2601
      %v2618 = vmul.f32 %v2611, %v2602
      %v2619 = vmul.f32 %v2611, %v2603
      %v2620 = vmul.f32 %v2611, %v2604
      %v2621 = vadd.f32 %v2565, %v2613
      %v2622 = vadd.f32 %v2566, %v2614
      %v2623 = vadd.f32 %v2567, %v2615
      %v2624 = vadd.f32 %v2568, %v2616
      %v2625 = vadd.f32 %v2569, %v2617
      %v2626 = vadd.f32 %v2570, %v2618
      %v2627 = vadd.f32 %v2571, %v2619
      %v2628 = vadd.f32 %v2572, %v2620
      %2629 = vrot.lane.b32.xlu0 %v2117, 8
      %v2630 = vpop.permute.xlu0 %2629
      %2631 = vrot.lane.b32.xlu0 %v2121, 8
      %v2632 = vpop.permute.xlu0 %2631
      %2633 = vrot.lane.b32.xlu0 %v2118, 8
      %v2634 = vpop.permute.xlu0 %2633
      %2635 = vrot.lane.b32.xlu0 %v2122, 8
      %v2636 = vpop.permute.xlu0 %2635
      %2637 = vrot.lane.b32.xlu0 %v2119, 8
      %v2638 = vpop.permute.xlu0 %2637
      %2639 = vrot.lane.b32.xlu0 %v2123, 8
      %v2640 = vpop.permute.xlu0 %2639
      %2641 = vrot.lane.b32.xlu0 %v2120, 8
      %v2642 = vpop.permute.xlu0 %2641
      %2643 = vrot.lane.b32.xlu0 %v2124, 8
      %v2644 = vpop.permute.xlu0 %2643
      %v2645 = vsel %vm608, %v2638, %v2642
      %v2646 = vsel %vm608, %v2640, %v2644
      %v2647 = vsel %vm608, %v2634, %v2638
      %v2648 = vsel %vm608, %v2636, %v2640
      %v2649 = vsel %vm608, %v2630, %v2634
      %v2650 = vsel %vm608, %v2632, %v2636
      %v2651 = vsel %vm608, %v2642, %v2630
      %v2652 = vsel %vm608, %v2644, %v2632
      %v2653 = vmul.f32 %v2651, %v616
      %v2654 = vmul.f32 %v2649, %v620
      %v2655 = vmul.f32 %v2647, %v624
      %v2656 = vmul.f32 %v2645, %v628
      %v2657 = vmul.f32 %v2652, %v616
      %v2658 = vmul.f32 %v2650, %v620
      %v2659 = vmul.f32 %v2648, %v624
      %v2660 = vmul.f32 %v2646, %v628
      %2661 = vrot.lane.b32.xlu0 %v2653, 1
      %v2662 = vpop.permute.xlu0 %2661
      %2663 = vrot.lane.b32.xlu0 %v2657, 1
      %v2664 = vpop.permute.xlu0 %2663
      %2665 = vrot.lane.b32.xlu0 %v2654, 1
      %v2666 = vpop.permute.xlu0 %2665
      %2667 = vrot.lane.b32.xlu0 %v2658, 1
      %v2668 = vpop.permute.xlu0 %2667
      %2669 = vrot.lane.b32.xlu0 %v2655, 1
      %v2670 = vpop.permute.xlu0 %2669
      %2671 = vrot.lane.b32.xlu0 %v2659, 1
      %v2672 = vpop.permute.xlu0 %2671
      %2673 = vrot.lane.b32.xlu0 %v2656, 1
      %v2674 = vpop.permute.xlu0 %2673
      %2675 = vrot.lane.b32.xlu0 %v2660, 1
      %v2676 = vpop.permute.xlu0 %2675
      %v2677 = vsel %vm641, %v2670, %v2674
      %v2678 = vsel %vm641, %v2672, %v2676
      %v2679 = vsel %vm641, %v2666, %v2670
      %v2680 = vsel %vm641, %v2668, %v2672
      %v2681 = vsel %vm641, %v2662, %v2666
      %v2682 = vsel %vm641, %v2664, %v2668
      %v2683 = vsel %vm641, %v2674, %v2662
      %v2684 = vsel %vm641, %v2676, %v2664
      %v2685 = vmul.f32 %v2683, %v649
      %v2686 = vmul.f32 %v2681, %v653
      %v2687 = vmul.f32 %v2679, %v657
      %v2688 = vmul.f32 %v2677, %v661
      %v2689 = vmul.f32 %v2684, %v649
      %v2690 = vmul.f32 %v2682, %v653
      %v2691 = vmul.f32 %v2680, %v657
      %v2692 = vmul.f32 %v2678, %v661
      %2693 = vset.pattern.permute.xlu0 25
      %2694 = vperm.xlu0 %2693, %v266
      %v2695 = vpop.permute.xlu0 %2694
      %2697 = vset.pattern.permute.xlu0 25
      %2698 = vperm.xlu0 %2697, %v267
      %v2699 = vpop.permute.xlu0 %2698
      %v2701 = vmul.f32 %v2695, %v2685
      %v2702 = vmul.f32 %v2695, %v2686
      %v2703 = vmul.f32 %v2695, %v2687
      %v2704 = vmul.f32 %v2695, %v2688
      %v2705 = vmul.f32 %v2699, %v2689
      %v2706 = vmul.f32 %v2699, %v2690
      %v2707 = vmul.f32 %v2699, %v2691
      %v2708 = vmul.f32 %v2699, %v2692
      %v2709 = vadd.f32 %v2621, %v2701
      %v2710 = vadd.f32 %v2622, %v2702
      %v2711 = vadd.f32 %v2623, %v2703
      %v2712 = vadd.f32 %v2624, %v2704
      %v2713 = vadd.f32 %v2625, %v2705
      %v2714 = vadd.f32 %v2626, %v2706
      %v2715 = vadd.f32 %v2627, %v2707
      %v2716 = vadd.f32 %v2628, %v2708
      %2717 = vset.pattern.permute.xlu0 26
      %2718 = vperm.xlu0 %2717, %v266
      %v2719 = vpop.permute.xlu0 %2718
      %2721 = vset.pattern.permute.xlu0 26
      %2722 = vperm.xlu0 %2721, %v267
      %v2723 = vpop.permute.xlu0 %2722
      %v2725 = vmul.f32 %v2719, %v2653
      %v2726 = vmul.f32 %v2719, %v2654
      %v2727 = vmul.f32 %v2719, %v2655
      %v2728 = vmul.f32 %v2719, %v2656
      %v2729 = vmul.f32 %v2723, %v2657
      %v2730 = vmul.f32 %v2723, %v2658
      %v2731 = vmul.f32 %v2723, %v2659
      %v2732 = vmul.f32 %v2723, %v2660
      %v2733 = vadd.f32 %v2709, %v2725
      %v2734 = vadd.f32 %v2710, %v2726
      %v2735 = vadd.f32 %v2711, %v2727
      %v2736 = vadd.f32 %v2712, %v2728
      %v2737 = vadd.f32 %v2713, %v2729
      %v2738 = vadd.f32 %v2714, %v2730
      %v2739 = vadd.f32 %v2715, %v2731
      %v2740 = vadd.f32 %v2716, %v2732
      %2741 = vrot.lane.b32.xlu0 %v2653, 127
      %v2742 = vpop.permute.xlu0 %2741
      %2743 = vrot.lane.b32.xlu0 %v2657, 127
      %v2744 = vpop.permute.xlu0 %2743
      %2745 = vrot.lane.b32.xlu0 %v2654, 127
      %v2746 = vpop.permute.xlu0 %2745
      %2747 = vrot.lane.b32.xlu0 %v2658, 127
      %v2748 = vpop.permute.xlu0 %2747
      %2749 = vrot.lane.b32.xlu0 %v2655, 127
      %v2750 = vpop.permute.xlu0 %2749
      %2751 = vrot.lane.b32.xlu0 %v2659, 127
      %v2752 = vpop.permute.xlu0 %2751
      %2753 = vrot.lane.b32.xlu0 %v2656, 127
      %v2754 = vpop.permute.xlu0 %2753
      %2755 = vrot.lane.b32.xlu0 %v2660, 127
      %v2756 = vpop.permute.xlu0 %2755
      %v2757 = vsel %vm698, %v2750, %v2754
      %v2758 = vsel %vm698, %v2752, %v2756
      %v2759 = vsel %vm698, %v2746, %v2750
      %v2760 = vsel %vm698, %v2748, %v2752
      %v2761 = vsel %vm698, %v2742, %v2746
      %v2762 = vsel %vm698, %v2744, %v2748
      %v2763 = vsel %vm698, %v2754, %v2742
      %v2764 = vsel %vm698, %v2756, %v2744
      %v2765 = vmul.f32 %v2761, %v706
      %v2766 = vmul.f32 %v2759, %v710
      %v2767 = vmul.f32 %v2757, %v714
      %v2768 = vmul.f32 %v2763, %v718
      %v2769 = vmul.f32 %v2762, %v706
      %v2770 = vmul.f32 %v2760, %v710
      %v2771 = vmul.f32 %v2758, %v714
      %v2772 = vmul.f32 %v2764, %v718
      %2773 = vset.pattern.permute.xlu0 27
      %2774 = vperm.xlu0 %2773, %v266
      %v2775 = vpop.permute.xlu0 %2774
      %2777 = vset.pattern.permute.xlu0 27
      %2778 = vperm.xlu0 %2777, %v267
      %v2779 = vpop.permute.xlu0 %2778
      %v2781 = vmul.f32 %v2775, %v2765
      %v2782 = vmul.f32 %v2775, %v2766
      %v2783 = vmul.f32 %v2775, %v2767
      %v2784 = vmul.f32 %v2775, %v2768
      %v2785 = vmul.f32 %v2779, %v2769
      %v2786 = vmul.f32 %v2779, %v2770
      %v2787 = vmul.f32 %v2779, %v2771
      %v2788 = vmul.f32 %v2779, %v2772
      %v2789 = vadd.f32 %v2733, %v2781
      %v2790 = vadd.f32 %v2734, %v2782
      %v2791 = vadd.f32 %v2735, %v2783
      %v2792 = vadd.f32 %v2736, %v2784
      %v2793 = vadd.f32 %v2737, %v2785
      %v2794 = vadd.f32 %v2738, %v2786
      %v2795 = vadd.f32 %v2739, %v2787
      %v2796 = vadd.f32 %v2740, %v2788
      %2797 = vrot.lane.b32.xlu0 %v2117, 1
      %v2798 = vpop.permute.xlu0 %2797
      %2799 = vrot.lane.b32.xlu0 %v2121, 1
      %v2800 = vpop.permute.xlu0 %2799
      %2801 = vrot.lane.b32.xlu0 %v2118, 1
      %v2802 = vpop.permute.xlu0 %2801
      %2803 = vrot.lane.b32.xlu0 %v2122, 1
      %v2804 = vpop.permute.xlu0 %2803
      %2805 = vrot.lane.b32.xlu0 %v2119, 1
      %v2806 = vpop.permute.xlu0 %2805
      %2807 = vrot.lane.b32.xlu0 %v2123, 1
      %v2808 = vpop.permute.xlu0 %2807
      %2809 = vrot.lane.b32.xlu0 %v2120, 1
      %v2810 = vpop.permute.xlu0 %2809
      %2811 = vrot.lane.b32.xlu0 %v2124, 1
      %v2812 = vpop.permute.xlu0 %2811
      %v2813 = vsel %vm641, %v2806, %v2810
      %v2814 = vsel %vm641, %v2808, %v2812
      %v2815 = vsel %vm641, %v2802, %v2806
      %v2816 = vsel %vm641, %v2804, %v2808
      %v2817 = vsel %vm641, %v2798, %v2802
      %v2818 = vsel %vm641, %v2800, %v2804
      %v2819 = vsel %vm641, %v2810, %v2798
      %v2820 = vsel %vm641, %v2812, %v2800
      %v2821 = vmul.f32 %v2819, %v649
      %v2822 = vmul.f32 %v2817, %v653
      %v2823 = vmul.f32 %v2815, %v657
      %v2824 = vmul.f32 %v2813, %v661
      %v2825 = vmul.f32 %v2820, %v649
      %v2826 = vmul.f32 %v2818, %v653
      %v2827 = vmul.f32 %v2816, %v657
      %v2828 = vmul.f32 %v2814, %v661
      %2829 = vset.pattern.permute.xlu0 28
      %2830 = vperm.xlu0 %2829, %v266
      %v2831 = vpop.permute.xlu0 %2830
      %2833 = vset.pattern.permute.xlu0 28
      %2834 = vperm.xlu0 %2833, %v267
      %v2835 = vpop.permute.xlu0 %2834
      %v2837 = vmul.f32 %v2831, %v2821
      %v2838 = vmul.f32 %v2831, %v2822
      %v2839 = vmul.f32 %v2831, %v2823
      %v2840 = vmul.f32 %v2831, %v2824
      %v2841 = vmul.f32 %v2835, %v2825
      %v2842 = vmul.f32 %v2835, %v2826
      %v2843 = vmul.f32 %v2835, %v2827
      %v2844 = vmul.f32 %v2835, %v2828
      %v2845 = vadd.f32 %v2789, %v2837
      %v2846 = vadd.f32 %v2790, %v2838
      %v2847 = vadd.f32 %v2791, %v2839
      %v2848 = vadd.f32 %v2792, %v2840
      %v2849 = vadd.f32 %v2793, %v2841
      %v2850 = vadd.f32 %v2794, %v2842
      %v2851 = vadd.f32 %v2795, %v2843
      %v2852 = vadd.f32 %v2796, %v2844
      %2853 = vset.pattern.permute.xlu0 29
      %2854 = vperm.xlu0 %2853, %v266
      %v2855 = vpop.permute.xlu0 %2854
      %2857 = vset.pattern.permute.xlu0 29
      %2858 = vperm.xlu0 %2857, %v267
      %v2859 = vpop.permute.xlu0 %2858
      %v2861 = vmul.f32 %v2855, %v2117
      %v2862 = vmul.f32 %v2855, %v2118
      %v2863 = vmul.f32 %v2855, %v2119
      %v2864 = vmul.f32 %v2855, %v2120
      %v2865 = vmul.f32 %v2859, %v2121
      %v2866 = vmul.f32 %v2859, %v2122
      %v2867 = vmul.f32 %v2859, %v2123
      %v2868 = vmul.f32 %v2859, %v2124
      %v2869 = vadd.f32 %v2845, %v2861
      %v2870 = vadd.f32 %v2846, %v2862
      %v2871 = vadd.f32 %v2847, %v2863
      %v2872 = vadd.f32 %v2848, %v2864
      %v2873 = vadd.f32 %v2849, %v2865
      %v2874 = vadd.f32 %v2850, %v2866
      %v2875 = vadd.f32 %v2851, %v2867
      %v2876 = vadd.f32 %v2852, %v2868
      %2877 = vrot.lane.b32.xlu0 %v2117, 127
      %v2878 = vpop.permute.xlu0 %2877
      %2879 = vrot.lane.b32.xlu0 %v2121, 127
      %v2880 = vpop.permute.xlu0 %2879
      %2881 = vrot.lane.b32.xlu0 %v2118, 127
      %v2882 = vpop.permute.xlu0 %2881
      %2883 = vrot.lane.b32.xlu0 %v2122, 127
      %v2884 = vpop.permute.xlu0 %2883
      %2885 = vrot.lane.b32.xlu0 %v2119, 127
      %v2886 = vpop.permute.xlu0 %2885
      %2887 = vrot.lane.b32.xlu0 %v2123, 127
      %v2888 = vpop.permute.xlu0 %2887
      %2889 = vrot.lane.b32.xlu0 %v2120, 127
      %v2890 = vpop.permute.xlu0 %2889
      %2891 = vrot.lane.b32.xlu0 %v2124, 127
      %v2892 = vpop.permute.xlu0 %2891
      %v2893 = vsel %vm698, %v2886, %v2890
      %v2894 = vsel %vm698, %v2888, %v2892
      %v2895 = vsel %vm698, %v2882, %v2886
      %v2896 = vsel %vm698, %v2884, %v2888
      %v2897 = vsel %vm698, %v2878, %v2882
      %v2898 = vsel %vm698, %v2880, %v2884
      %v2899 = vsel %vm698, %v2890, %v2878
      %v2900 = vsel %vm698, %v2892, %v2880
      %v2901 = vmul.f32 %v2897, %v706
      %v2902 = vmul.f32 %v2895, %v710
      %v2903 = vmul.f32 %v2893, %v714
      %v2904 = vmul.f32 %v2899, %v718
      %v2905 = vmul.f32 %v2898, %v706
      %v2906 = vmul.f32 %v2896, %v710
      %v2907 = vmul.f32 %v2894, %v714
      %v2908 = vmul.f32 %v2900, %v718
      %2909 = vset.pattern.permute.xlu0 30
      %2910 = vperm.xlu0 %2909, %v266
      %v2911 = vpop.permute.xlu0 %2910
      %2913 = vset.pattern.permute.xlu0 30
      %2914 = vperm.xlu0 %2913, %v267
      %v2915 = vpop.permute.xlu0 %2914
      %v2917 = vmul.f32 %v2911, %v2901
      %v2918 = vmul.f32 %v2911, %v2902
      %v2919 = vmul.f32 %v2911, %v2903
      %v2920 = vmul.f32 %v2911, %v2904
      %v2921 = vmul.f32 %v2915, %v2905
      %v2922 = vmul.f32 %v2915, %v2906
      %v2923 = vmul.f32 %v2915, %v2907
      %v2924 = vmul.f32 %v2915, %v2908
      %v2925 = vadd.f32 %v2869, %v2917
      %v2926 = vadd.f32 %v2870, %v2918
      %v2927 = vadd.f32 %v2871, %v2919
      %v2928 = vadd.f32 %v2872, %v2920
      %v2929 = vadd.f32 %v2873, %v2921
      %v2930 = vadd.f32 %v2874, %v2922
      %v2931 = vadd.f32 %v2875, %v2923
      %v2932 = vadd.f32 %v2876, %v2924
      %2933 = vrot.lane.b32.xlu0 %v2117, 120
      %v2934 = vpop.permute.xlu0 %2933
      %2935 = vrot.lane.b32.xlu0 %v2121, 120
      %v2936 = vpop.permute.xlu0 %2935
      %2937 = vrot.lane.b32.xlu0 %v2118, 120
      %v2938 = vpop.permute.xlu0 %2937
      %2939 = vrot.lane.b32.xlu0 %v2122, 120
      %v2940 = vpop.permute.xlu0 %2939
      %2941 = vrot.lane.b32.xlu0 %v2119, 120
      %v2942 = vpop.permute.xlu0 %2941
      %2943 = vrot.lane.b32.xlu0 %v2123, 120
      %v2944 = vpop.permute.xlu0 %2943
      %2945 = vrot.lane.b32.xlu0 %v2120, 120
      %v2946 = vpop.permute.xlu0 %2945
      %2947 = vrot.lane.b32.xlu0 %v2124, 120
      %v2948 = vpop.permute.xlu0 %2947
      %v2949 = vsel %vm811, %v2942, %v2946
      %v2950 = vsel %vm811, %v2944, %v2948
      %v2951 = vsel %vm811, %v2938, %v2942
      %v2952 = vsel %vm811, %v2940, %v2944
      %v2953 = vsel %vm811, %v2934, %v2938
      %v2954 = vsel %vm811, %v2936, %v2940
      %v2955 = vsel %vm811, %v2946, %v2934
      %v2956 = vsel %vm811, %v2948, %v2936
      %v2957 = vmul.f32 %v2953, %v819
      %v2958 = vmul.f32 %v2951, %v823
      %v2959 = vmul.f32 %v2949, %v827
      %v2960 = vmul.f32 %v2955, %v831
      %v2961 = vmul.f32 %v2954, %v819
      %v2962 = vmul.f32 %v2952, %v823
      %v2963 = vmul.f32 %v2950, %v827
      %v2964 = vmul.f32 %v2956, %v831
      %2965 = vrot.lane.b32.xlu0 %v2957, 1
      %v2966 = vpop.permute.xlu0 %2965
      %2967 = vrot.lane.b32.xlu0 %v2961, 1
      %v2968 = vpop.permute.xlu0 %2967
      %2969 = vrot.lane.b32.xlu0 %v2958, 1
      %v2970 = vpop.permute.xlu0 %2969
      %2971 = vrot.lane.b32.xlu0 %v2962, 1
      %v2972 = vpop.permute.xlu0 %2971
      %2973 = vrot.lane.b32.xlu0 %v2959, 1
      %v2974 = vpop.permute.xlu0 %2973
      %2975 = vrot.lane.b32.xlu0 %v2963, 1
      %v2976 = vpop.permute.xlu0 %2975
      %2977 = vrot.lane.b32.xlu0 %v2960, 1
      %v2978 = vpop.permute.xlu0 %2977
      %2979 = vrot.lane.b32.xlu0 %v2964, 1
      %v2980 = vpop.permute.xlu0 %2979
      %v2981 = vsel %vm641, %v2974, %v2978
      %v2982 = vsel %vm641, %v2976, %v2980
      %v2983 = vsel %vm641, %v2970, %v2974
      %v2984 = vsel %vm641, %v2972, %v2976
      %v2985 = vsel %vm641, %v2966, %v2970
      %v2986 = vsel %vm641, %v2968, %v2972
      %v2987 = vsel %vm641, %v2978, %v2966
      %v2988 = vsel %vm641, %v2980, %v2968
      %v2989 = vmul.f32 %v2987, %v649
      %v2990 = vmul.f32 %v2985, %v653
      %v2991 = vmul.f32 %v2983, %v657
      %v2992 = vmul.f32 %v2981, %v661
      %v2993 = vmul.f32 %v2988, %v649
      %v2994 = vmul.f32 %v2986, %v653
      %v2995 = vmul.f32 %v2984, %v657
      %v2996 = vmul.f32 %v2982, %v661
      %2997 = vset.pattern.permute.xlu0 31
      %2998 = vperm.xlu0 %2997, %v266
      %v2999 = vpop.permute.xlu0 %2998
      %3001 = vset.pattern.permute.xlu0 31
      %3002 = vperm.xlu0 %3001, %v267
      %v3003 = vpop.permute.xlu0 %3002
      %v3005 = vmul.f32 %v2999, %v2989
      %v3006 = vmul.f32 %v2999, %v2990
      %v3007 = vmul.f32 %v2999, %v2991
      %v3008 = vmul.f32 %v2999, %v2992
      %v3009 = vmul.f32 %v3003, %v2993
      %v3010 = vmul.f32 %v3003, %v2994
      %v3011 = vmul.f32 %v3003, %v2995
      %v3012 = vmul.f32 %v3003, %v2996
      %v3013 = vadd.f32 %v2925, %v3005
      %v3014 = vadd.f32 %v2926, %v3006
      %v3015 = vadd.f32 %v2927, %v3007
      %v3016 = vadd.f32 %v2928, %v3008
      %v3017 = vadd.f32 %v2929, %v3009
      %v3018 = vadd.f32 %v2930, %v3010
      %v3019 = vadd.f32 %v2931, %v3011
      %v3020 = vadd.f32 %v2932, %v3012
      %3021 = vset.pattern.permute.xlu0 32
      %3022 = vperm.xlu0 %3021, %v266
      %v3023 = vpop.permute.xlu0 %3022
      %3025 = vset.pattern.permute.xlu0 32
      %3026 = vperm.xlu0 %3025, %v267
      %v3027 = vpop.permute.xlu0 %3026
      %v3029 = vmul.f32 %v3023, %v2957
      %v3030 = vmul.f32 %v3023, %v2958
      %v3031 = vmul.f32 %v3023, %v2959
      %v3032 = vmul.f32 %v3023, %v2960
      %v3033 = vmul.f32 %v3027, %v2961
      %v3034 = vmul.f32 %v3027, %v2962
      %v3035 = vmul.f32 %v3027, %v2963
      %v3036 = vmul.f32 %v3027, %v2964
      %v3037 = vadd.f32 %v3013, %v3029
      %v3038 = vadd.f32 %v3014, %v3030
      %v3039 = vadd.f32 %v3015, %v3031
      %v3040 = vadd.f32 %v3016, %v3032
      %v3041 = vadd.f32 %v3017, %v3033
      %v3042 = vadd.f32 %v3018, %v3034
      %v3043 = vadd.f32 %v3019, %v3035
      %v3044 = vadd.f32 %v3020, %v3036
      %3045 = vrot.lane.b32.xlu0 %v2957, 127
      %v3046 = vpop.permute.xlu0 %3045
      %3047 = vrot.lane.b32.xlu0 %v2961, 127
      %v3048 = vpop.permute.xlu0 %3047
      %3049 = vrot.lane.b32.xlu0 %v2958, 127
      %v3050 = vpop.permute.xlu0 %3049
      %3051 = vrot.lane.b32.xlu0 %v2962, 127
      %v3052 = vpop.permute.xlu0 %3051
      %3053 = vrot.lane.b32.xlu0 %v2959, 127
      %v3054 = vpop.permute.xlu0 %3053
      %3055 = vrot.lane.b32.xlu0 %v2963, 127
      %v3056 = vpop.permute.xlu0 %3055
      %3057 = vrot.lane.b32.xlu0 %v2960, 127
      %v3058 = vpop.permute.xlu0 %3057
      %3059 = vrot.lane.b32.xlu0 %v2964, 127
      %v3060 = vpop.permute.xlu0 %3059
      %v3061 = vsel %vm698, %v3054, %v3058
      %v3062 = vsel %vm698, %v3056, %v3060
      %v3063 = vsel %vm698, %v3050, %v3054
      %v3064 = vsel %vm698, %v3052, %v3056
      %v3065 = vsel %vm698, %v3046, %v3050
      %v3066 = vsel %vm698, %v3048, %v3052
      %v3067 = vsel %vm698, %v3058, %v3046
      %v3068 = vsel %vm698, %v3060, %v3048
      %v3069 = vmul.f32 %v3065, %v706
      %v3070 = vmul.f32 %v3063, %v710
      %v3071 = vmul.f32 %v3061, %v714
      %v3072 = vmul.f32 %v3067, %v718
      %v3073 = vmul.f32 %v3066, %v706
      %v3074 = vmul.f32 %v3064, %v710
      %v3075 = vmul.f32 %v3062, %v714
      %v3076 = vmul.f32 %v3068, %v718
      %3077 = vset.pattern.permute.xlu0 33
      %3078 = vperm.xlu0 %3077, %v266
      %v3079 = vpop.permute.xlu0 %3078
      %3081 = vset.pattern.permute.xlu0 33
      %3082 = vperm.xlu0 %3081, %v267
      %v3083 = vpop.permute.xlu0 %3082
      %v3085 = vmul.f32 %v3079, %v3069
      %v3086 = vmul.f32 %v3079, %v3070
      %v3087 = vmul.f32 %v3079, %v3071
      %v3088 = vmul.f32 %v3079, %v3072
      %v3089 = vmul.f32 %v3083, %v3073
      %v3090 = vmul.f32 %v3083, %v3074
      %v3091 = vmul.f32 %v3083, %v3075
      %v3092 = vmul.f32 %v3083, %v3076
      %v3093 = vadd.f32 %v3037, %v3085
      %v3094 = vadd.f32 %v3038, %v3086
      %v3095 = vadd.f32 %v3039, %v3087
      %v3096 = vadd.f32 %v3040, %v3088
      %v3097 = vadd.f32 %v3041, %v3089
      %v3098 = vadd.f32 %v3042, %v3090
      %v3099 = vadd.f32 %v3043, %v3091
      %v3100 = vadd.f32 %v3044, %v3092
      %v3101 = vmul.f32 %v2145, %v1143
      %v3102 = vmul.f32 %v2143, %v1147
      %v3103 = vmul.f32 %v2141, %v1151
      %v3104 = vmul.f32 %v2147, %v1155
      %v3105 = vmul.f32 %v2146, %v1143
      %v3106 = vmul.f32 %v2144, %v1147
      %v3107 = vmul.f32 %v2142, %v1151
      %v3108 = vmul.f32 %v2148, %v1155
      %3109 = vrot.lane.b32.xlu0 %v3101, 8
      %v3110 = vpop.permute.xlu0 %3109
      %3111 = vrot.lane.b32.xlu0 %v3105, 8
      %v3112 = vpop.permute.xlu0 %3111
      %3113 = vrot.lane.b32.xlu0 %v3102, 8
      %v3114 = vpop.permute.xlu0 %3113
      %3115 = vrot.lane.b32.xlu0 %v3106, 8
      %v3116 = vpop.permute.xlu0 %3115
      %3117 = vrot.lane.b32.xlu0 %v3103, 8
      %v3118 = vpop.permute.xlu0 %3117
      %3119 = vrot.lane.b32.xlu0 %v3107, 8
      %v3120 = vpop.permute.xlu0 %3119
      %3121 = vrot.lane.b32.xlu0 %v3104, 8
      %v3122 = vpop.permute.xlu0 %3121
      %3123 = vrot.lane.b32.xlu0 %v3108, 8
      %v3124 = vpop.permute.xlu0 %3123
      %v3125 = vsel %vm608, %v3118, %v3122
      %v3126 = vsel %vm608, %v3120, %v3124
      %v3127 = vsel %vm608, %v3114, %v3118
      %v3128 = vsel %vm608, %v3116, %v3120
      %v3129 = vsel %vm608, %v3110, %v3114
      %v3130 = vsel %vm608, %v3112, %v3116
      %v3131 = vsel %vm608, %v3122, %v3110
      %v3132 = vsel %vm608, %v3124, %v3112
      %v3133 = vmul.f32 %v3131, %v616
      %v3134 = vmul.f32 %v3129, %v620
      %v3135 = vmul.f32 %v3127, %v624
      %v3136 = vmul.f32 %v3125, %v628
      %v3137 = vmul.f32 %v3132, %v616
      %v3138 = vmul.f32 %v3130, %v620
      %v3139 = vmul.f32 %v3128, %v624
      %v3140 = vmul.f32 %v3126, %v628
      %3141 = vrot.lane.b32.xlu0 %v3133, 1
      %v3142 = vpop.permute.xlu0 %3141
      %3143 = vrot.lane.b32.xlu0 %v3137, 1
      %v3144 = vpop.permute.xlu0 %3143
      %3145 = vrot.lane.b32.xlu0 %v3134, 1
      %v3146 = vpop.permute.xlu0 %3145
      %3147 = vrot.lane.b32.xlu0 %v3138, 1
      %v3148 = vpop.permute.xlu0 %3147
      %3149 = vrot.lane.b32.xlu0 %v3135, 1
      %v3150 = vpop.permute.xlu0 %3149
      %3151 = vrot.lane.b32.xlu0 %v3139, 1
      %v3152 = vpop.permute.xlu0 %3151
      %3153 = vrot.lane.b32.xlu0 %v3136, 1
      %v3154 = vpop.permute.xlu0 %3153
      %3155 = vrot.lane.b32.xlu0 %v3140, 1
      %v3156 = vpop.permute.xlu0 %3155
      %v3157 = vsel %vm641, %v3150, %v3154
      %v3158 = vsel %vm641, %v3152, %v3156
      %v3159 = vsel %vm641, %v3146, %v3150
      %v3160 = vsel %vm641, %v3148, %v3152
      %v3161 = vsel %vm641, %v3142, %v3146
      %v3162 = vsel %vm641, %v3144, %v3148
      %v3163 = vsel %vm641, %v3154, %v3142
      %v3164 = vsel %vm641, %v3156, %v3144
      %v3165 = vmul.f32 %v3163, %v649
      %v3166 = vmul.f32 %v3161, %v653
      %v3167 = vmul.f32 %v3159, %v657
      %v3168 = vmul.f32 %v3157, %v661
      %v3169 = vmul.f32 %v3164, %v649
      %v3170 = vmul.f32 %v3162, %v653
      %v3171 = vmul.f32 %v3160, %v657
      %v3172 = vmul.f32 %v3158, %v661
      %3173 = vset.pattern.permute.xlu0 34
      %3174 = vperm.xlu0 %3173, %v266
      %v3175 = vpop.permute.xlu0 %3174
      %3177 = vset.pattern.permute.xlu0 34
      %3178 = vperm.xlu0 %3177, %v267
      %v3179 = vpop.permute.xlu0 %3178
      %v3181 = vmul.f32 %v3175, %v3165
      %v3182 = vmul.f32 %v3175, %v3166
      %v3183 = vmul.f32 %v3175, %v3167
      %v3184 = vmul.f32 %v3175, %v3168
      %v3185 = vmul.f32 %v3179, %v3169
      %v3186 = vmul.f32 %v3179, %v3170
      %v3187 = vmul.f32 %v3179, %v3171
      %v3188 = vmul.f32 %v3179, %v3172
      %v3189 = vadd.f32 %v3093, %v3181
      %v3190 = vadd.f32 %v3094, %v3182
      %v3191 = vadd.f32 %v3095, %v3183
      %v3192 = vadd.f32 %v3096, %v3184
      %v3193 = vadd.f32 %v3097, %v3185
      %v3194 = vadd.f32 %v3098, %v3186
      %v3195 = vadd.f32 %v3099, %v3187
      %v3196 = vadd.f32 %v3100, %v3188
      %3197 = vset.pattern.permute.xlu0 35
      %3198 = vperm.xlu0 %3197, %v266
      %v3199 = vpop.permute.xlu0 %3198
      %3201 = vset.pattern.permute.xlu0 35
      %3202 = vperm.xlu0 %3201, %v267
      %v3203 = vpop.permute.xlu0 %3202
      %v3205 = vmul.f32 %v3199, %v3133
      %v3206 = vmul.f32 %v3199, %v3134
      %v3207 = vmul.f32 %v3199, %v3135
      %v3208 = vmul.f32 %v3199, %v3136
      %v3209 = vmul.f32 %v3203, %v3137
      %v3210 = vmul.f32 %v3203, %v3138
      %v3211 = vmul.f32 %v3203, %v3139
      %v3212 = vmul.f32 %v3203, %v3140
      %v3213 = vadd.f32 %v3189, %v3205
      %v3214 = vadd.f32 %v3190, %v3206
      %v3215 = vadd.f32 %v3191, %v3207
      %v3216 = vadd.f32 %v3192, %v3208
      %v3217 = vadd.f32 %v3193, %v3209
      %v3218 = vadd.f32 %v3194, %v3210
      %v3219 = vadd.f32 %v3195, %v3211
      %v3220 = vadd.f32 %v3196, %v3212
      %3221 = vrot.lane.b32.xlu0 %v3133, 127
      %v3222 = vpop.permute.xlu0 %3221
      %3223 = vrot.lane.b32.xlu0 %v3137, 127
      %v3224 = vpop.permute.xlu0 %3223
      %3225 = vrot.lane.b32.xlu0 %v3134, 127
      %v3226 = vpop.permute.xlu0 %3225
      %3227 = vrot.lane.b32.xlu0 %v3138, 127
      %v3228 = vpop.permute.xlu0 %3227
      %3229 = vrot.lane.b32.xlu0 %v3135, 127
      %v3230 = vpop.permute.xlu0 %3229
      %3231 = vrot.lane.b32.xlu0 %v3139, 127
      %v3232 = vpop.permute.xlu0 %3231
      %3233 = vrot.lane.b32.xlu0 %v3136, 127
      %v3234 = vpop.permute.xlu0 %3233
      %3235 = vrot.lane.b32.xlu0 %v3140, 127
      %v3236 = vpop.permute.xlu0 %3235
      %v3237 = vsel %vm698, %v3230, %v3234
      %v3238 = vsel %vm698, %v3232, %v3236
      %v3239 = vsel %vm698, %v3226, %v3230
      %v3240 = vsel %vm698, %v3228, %v3232
      %v3241 = vsel %vm698, %v3222, %v3226
      %v3242 = vsel %vm698, %v3224, %v3228
      %v3243 = vsel %vm698, %v3234, %v3222
      %v3244 = vsel %vm698, %v3236, %v3224
      %v3245 = vmul.f32 %v3241, %v706
      %v3246 = vmul.f32 %v3239, %v710
      %v3247 = vmul.f32 %v3237, %v714
      %v3248 = vmul.f32 %v3243, %v718
      %v3249 = vmul.f32 %v3242, %v706
      %v3250 = vmul.f32 %v3240, %v710
      %v3251 = vmul.f32 %v3238, %v714
      %v3252 = vmul.f32 %v3244, %v718
      %3253 = vset.pattern.permute.xlu0 36
      %3254 = vperm.xlu0 %3253, %v266
      %v3255 = vpop.permute.xlu0 %3254
      %3257 = vset.pattern.permute.xlu0 36
      %3258 = vperm.xlu0 %3257, %v267
      %v3259 = vpop.permute.xlu0 %3258
      %v3261 = vmul.f32 %v3255, %v3245
      %v3262 = vmul.f32 %v3255, %v3246
      %v3263 = vmul.f32 %v3255, %v3247
      %v3264 = vmul.f32 %v3255, %v3248
      %v3265 = vmul.f32 %v3259, %v3249
      %v3266 = vmul.f32 %v3259, %v3250
      %v3267 = vmul.f32 %v3259, %v3251
      %v3268 = vmul.f32 %v3259, %v3252
      %v3269 = vadd.f32 %v3213, %v3261
      %v3270 = vadd.f32 %v3214, %v3262
      %v3271 = vadd.f32 %v3215, %v3263
      %v3272 = vadd.f32 %v3216, %v3264
      %v3273 = vadd.f32 %v3217, %v3265
      %v3274 = vadd.f32 %v3218, %v3266
      %v3275 = vadd.f32 %v3219, %v3267
      %v3276 = vadd.f32 %v3220, %v3268
      %3277 = vrot.lane.b32.xlu0 %v3101, 1
      %v3278 = vpop.permute.xlu0 %3277
      %3279 = vrot.lane.b32.xlu0 %v3105, 1
      %v3280 = vpop.permute.xlu0 %3279
      %3281 = vrot.lane.b32.xlu0 %v3102, 1
      %v3282 = vpop.permute.xlu0 %3281
      %3283 = vrot.lane.b32.xlu0 %v3106, 1
      %v3284 = vpop.permute.xlu0 %3283
      %3285 = vrot.lane.b32.xlu0 %v3103, 1
      %v3286 = vpop.permute.xlu0 %3285
      %3287 = vrot.lane.b32.xlu0 %v3107, 1
      %v3288 = vpop.permute.xlu0 %3287
      %3289 = vrot.lane.b32.xlu0 %v3104, 1
      %v3290 = vpop.permute.xlu0 %3289
      %3291 = vrot.lane.b32.xlu0 %v3108, 1
      %v3292 = vpop.permute.xlu0 %3291
      %v3293 = vsel %vm641, %v3286, %v3290
      %v3294 = vsel %vm641, %v3288, %v3292
      %v3295 = vsel %vm641, %v3282, %v3286
      %v3296 = vsel %vm641, %v3284, %v3288
      %v3297 = vsel %vm641, %v3278, %v3282
      %v3298 = vsel %vm641, %v3280, %v3284
      %v3299 = vsel %vm641, %v3290, %v3278
      %v3300 = vsel %vm641, %v3292, %v3280
      %v3301 = vmul.f32 %v3299, %v649
      %v3302 = vmul.f32 %v3297, %v653
      %v3303 = vmul.f32 %v3295, %v657
      %v3304 = vmul.f32 %v3293, %v661
      %v3305 = vmul.f32 %v3300, %v649
      %v3306 = vmul.f32 %v3298, %v653
      %v3307 = vmul.f32 %v3296, %v657
      %v3308 = vmul.f32 %v3294, %v661
      %3309 = vset.pattern.permute.xlu0 37
      %3310 = vperm.xlu0 %3309, %v266
      %v3311 = vpop.permute.xlu0 %3310
      %3313 = vset.pattern.permute.xlu0 37
      %3314 = vperm.xlu0 %3313, %v267
      %v3315 = vpop.permute.xlu0 %3314
      %v3317 = vmul.f32 %v3311, %v3301
      %v3318 = vmul.f32 %v3311, %v3302
      %v3319 = vmul.f32 %v3311, %v3303
      %v3320 = vmul.f32 %v3311, %v3304
      %v3321 = vmul.f32 %v3315, %v3305
      %v3322 = vmul.f32 %v3315, %v3306
      %v3323 = vmul.f32 %v3315, %v3307
      %v3324 = vmul.f32 %v3315, %v3308
      %v3325 = vadd.f32 %v3269, %v3317
      %v3326 = vadd.f32 %v3270, %v3318
      %v3327 = vadd.f32 %v3271, %v3319
      %v3328 = vadd.f32 %v3272, %v3320
      %v3329 = vadd.f32 %v3273, %v3321
      %v3330 = vadd.f32 %v3274, %v3322
      %v3331 = vadd.f32 %v3275, %v3323
      %v3332 = vadd.f32 %v3276, %v3324
      %3333 = vset.pattern.permute.xlu0 38
      %3334 = vperm.xlu0 %3333, %v266
      %v3335 = vpop.permute.xlu0 %3334
      %3337 = vset.pattern.permute.xlu0 38
      %3338 = vperm.xlu0 %3337, %v267
      %v3339 = vpop.permute.xlu0 %3338
      %v3341 = vmul.f32 %v3335, %v3101
      %v3342 = vmul.f32 %v3335, %v3102
      %v3343 = vmul.f32 %v3335, %v3103
      %v3344 = vmul.f32 %v3335, %v3104
      %v3345 = vmul.f32 %v3339, %v3105
      %v3346 = vmul.f32 %v3339, %v3106
      %v3347 = vmul.f32 %v3339, %v3107
      %v3348 = vmul.f32 %v3339, %v3108
      %v3349 = vadd.f32 %v3325, %v3341
      %v3350 = vadd.f32 %v3326, %v3342
      %v3351 = vadd.f32 %v3327, %v3343
      %v3352 = vadd.f32 %v3328, %v3344
      %v3353 = vadd.f32 %v3329, %v3345
      %v3354 = vadd.f32 %v3330, %v3346
      %v3355 = vadd.f32 %v3331, %v3347
      %v3356 = vadd.f32 %v3332, %v3348
      %3357 = vrot.lane.b32.xlu0 %v3101, 127
      %v3358 = vpop.permute.xlu0 %3357
      %3359 = vrot.lane.b32.xlu0 %v3105, 127
      %v3360 = vpop.permute.xlu0 %3359
      %3361 = vrot.lane.b32.xlu0 %v3102, 127
      %v3362 = vpop.permute.xlu0 %3361
      %3363 = vrot.lane.b32.xlu0 %v3106, 127
      %v3364 = vpop.permute.xlu0 %3363
      %3365 = vrot.lane.b32.xlu0 %v3103, 127
      %v3366 = vpop.permute.xlu0 %3365
      %3367 = vrot.lane.b32.xlu0 %v3107, 127
      %v3368 = vpop.permute.xlu0 %3367
      %3369 = vrot.lane.b32.xlu0 %v3104, 127
      %v3370 = vpop.permute.xlu0 %3369
      %3371 = vrot.lane.b32.xlu0 %v3108, 127
      %v3372 = vpop.permute.xlu0 %3371
      %v3373 = vsel %vm698, %v3366, %v3370
      %v3374 = vsel %vm698, %v3368, %v3372
      %v3375 = vsel %vm698, %v3362, %v3366
      %v3376 = vsel %vm698, %v3364, %v3368
      %v3377 = vsel %vm698, %v3358, %v3362
      %v3378 = vsel %vm698, %v3360, %v3364
      %v3379 = vsel %vm698, %v3370, %v3358
      %v3380 = vsel %vm698, %v3372, %v3360
      %v3381 = vmul.f32 %v3377, %v706
      %v3382 = vmul.f32 %v3375, %v710
      %v3383 = vmul.f32 %v3373, %v714
      %v3384 = vmul.f32 %v3379, %v718
      %v3385 = vmul.f32 %v3378, %v706
      %v3386 = vmul.f32 %v3376, %v710
      %v3387 = vmul.f32 %v3374, %v714
      %v3388 = vmul.f32 %v3380, %v718
      %3389 = vset.pattern.permute.xlu0 39
      %3390 = vperm.xlu0 %3389, %v266
      %v3391 = vpop.permute.xlu0 %3390
      %3393 = vset.pattern.permute.xlu0 39
      %3394 = vperm.xlu0 %3393, %v267
      %v3395 = vpop.permute.xlu0 %3394
      %v3397 = vmul.f32 %v3391, %v3381
      %v3398 = vmul.f32 %v3391, %v3382
      %v3399 = vmul.f32 %v3391, %v3383
      %v3400 = vmul.f32 %v3391, %v3384
      %v3401 = vmul.f32 %v3395, %v3385
      %v3402 = vmul.f32 %v3395, %v3386
      %v3403 = vmul.f32 %v3395, %v3387
      %v3404 = vmul.f32 %v3395, %v3388
      %v3405 = vadd.f32 %v3349, %v3397
      %v3406 = vadd.f32 %v3350, %v3398
      %v3407 = vadd.f32 %v3351, %v3399
      %v3408 = vadd.f32 %v3352, %v3400
      %v3409 = vadd.f32 %v3353, %v3401
      %v3410 = vadd.f32 %v3354, %v3402
      %v3411 = vadd.f32 %v3355, %v3403
      %v3412 = vadd.f32 %v3356, %v3404
      %3413 = vrot.lane.b32.xlu0 %v3101, 120
      %v3414 = vpop.permute.xlu0 %3413
      %3415 = vrot.lane.b32.xlu0 %v3105, 120
      %v3416 = vpop.permute.xlu0 %3415
      %3417 = vrot.lane.b32.xlu0 %v3102, 120
      %v3418 = vpop.permute.xlu0 %3417
      %3419 = vrot.lane.b32.xlu0 %v3106, 120
      %v3420 = vpop.permute.xlu0 %3419
      %3421 = vrot.lane.b32.xlu0 %v3103, 120
      %v3422 = vpop.permute.xlu0 %3421
      %3423 = vrot.lane.b32.xlu0 %v3107, 120
      %v3424 = vpop.permute.xlu0 %3423
      %3425 = vrot.lane.b32.xlu0 %v3104, 120
      %v3426 = vpop.permute.xlu0 %3425
      %3427 = vrot.lane.b32.xlu0 %v3108, 120
      %v3428 = vpop.permute.xlu0 %3427
      %v3429 = vsel %vm811, %v3422, %v3426
      %v3430 = vsel %vm811, %v3424, %v3428
      %v3431 = vsel %vm811, %v3418, %v3422
      %v3432 = vsel %vm811, %v3420, %v3424
      %v3433 = vsel %vm811, %v3414, %v3418
      %v3434 = vsel %vm811, %v3416, %v3420
      %v3435 = vsel %vm811, %v3426, %v3414
      %v3436 = vsel %vm811, %v3428, %v3416
      %v3437 = vmul.f32 %v3433, %v819
      %v3438 = vmul.f32 %v3431, %v823
      %v3439 = vmul.f32 %v3429, %v827
      %v3440 = vmul.f32 %v3435, %v831
      %v3441 = vmul.f32 %v3434, %v819
      %v3442 = vmul.f32 %v3432, %v823
      %v3443 = vmul.f32 %v3430, %v827
      %v3444 = vmul.f32 %v3436, %v831
      %3445 = vrot.lane.b32.xlu0 %v3437, 1
      %v3446 = vpop.permute.xlu0 %3445
      %3447 = vrot.lane.b32.xlu0 %v3441, 1
      %v3448 = vpop.permute.xlu0 %3447
      %3449 = vrot.lane.b32.xlu0 %v3438, 1
      %v3450 = vpop.permute.xlu0 %3449
      %3451 = vrot.lane.b32.xlu0 %v3442, 1
      %v3452 = vpop.permute.xlu0 %3451
      %3453 = vrot.lane.b32.xlu0 %v3439, 1
      %v3454 = vpop.permute.xlu0 %3453
      %3455 = vrot.lane.b32.xlu0 %v3443, 1
      %v3456 = vpop.permute.xlu0 %3455
      %3457 = vrot.lane.b32.xlu0 %v3440, 1
      %v3458 = vpop.permute.xlu0 %3457
      %3459 = vrot.lane.b32.xlu0 %v3444, 1
      %v3460 = vpop.permute.xlu0 %3459
      %v3461 = vsel %vm641, %v3454, %v3458
      %v3462 = vsel %vm641, %v3456, %v3460
      %v3463 = vsel %vm641, %v3450, %v3454
      %v3464 = vsel %vm641, %v3452, %v3456
      %v3465 = vsel %vm641, %v3446, %v3450
      %v3466 = vsel %vm641, %v3448, %v3452
      %v3467 = vsel %vm641, %v3458, %v3446
      %v3468 = vsel %vm641, %v3460, %v3448
      %v3469 = vmul.f32 %v3467, %v649
      %v3470 = vmul.f32 %v3465, %v653
      %v3471 = vmul.f32 %v3463, %v657
      %v3472 = vmul.f32 %v3461, %v661
      %v3473 = vmul.f32 %v3468, %v649
      %v3474 = vmul.f32 %v3466, %v653
      %v3475 = vmul.f32 %v3464, %v657
      %v3476 = vmul.f32 %v3462, %v661
      %3477 = vset.pattern.permute.xlu0 40
      %3478 = vperm.xlu0 %3477, %v266
      %v3479 = vpop.permute.xlu0 %3478
      %3481 = vset.pattern.permute.xlu0 40
      %3482 = vperm.xlu0 %3481, %v267
      %v3483 = vpop.permute.xlu0 %3482
      %v3485 = vmul.f32 %v3479, %v3469
      %v3486 = vmul.f32 %v3479, %v3470
      %v3487 = vmul.f32 %v3479, %v3471
      %v3488 = vmul.f32 %v3479, %v3472
      %v3489 = vmul.f32 %v3483, %v3473
      %v3490 = vmul.f32 %v3483, %v3474
      %v3491 = vmul.f32 %v3483, %v3475
      %v3492 = vmul.f32 %v3483, %v3476
      %v3493 = vadd.f32 %v3405, %v3485
      %v3494 = vadd.f32 %v3406, %v3486
      %v3495 = vadd.f32 %v3407, %v3487
      %v3496 = vadd.f32 %v3408, %v3488
      %v3497 = vadd.f32 %v3409, %v3489
      %v3498 = vadd.f32 %v3410, %v3490
      %v3499 = vadd.f32 %v3411, %v3491
      %v3500 = vadd.f32 %v3412, %v3492
      %3501 = vset.pattern.permute.xlu0 41
      %3502 = vperm.xlu0 %3501, %v266
      %v3503 = vpop.permute.xlu0 %3502
      %3505 = vset.pattern.permute.xlu0 41
      %3506 = vperm.xlu0 %3505, %v267
      %v3507 = vpop.permute.xlu0 %3506
      %v3509 = vmul.f32 %v3503, %v3437
      %v3510 = vmul.f32 %v3503, %v3438
      %v3511 = vmul.f32 %v3503, %v3439
      %v3512 = vmul.f32 %v3503, %v3440
      %v3513 = vmul.f32 %v3507, %v3441
      %v3514 = vmul.f32 %v3507, %v3442
      %v3515 = vmul.f32 %v3507, %v3443
      %v3516 = vmul.f32 %v3507, %v3444
      %v3517 = vadd.f32 %v3493, %v3509
      %v3518 = vadd.f32 %v3494, %v3510
      %v3519 = vadd.f32 %v3495, %v3511
      %v3520 = vadd.f32 %v3496, %v3512
      %v3521 = vadd.f32 %v3497, %v3513
      %v3522 = vadd.f32 %v3498, %v3514
      %v3523 = vadd.f32 %v3499, %v3515
      %v3524 = vadd.f32 %v3500, %v3516
      %3525 = vrot.lane.b32.xlu0 %v3437, 127
      %v3526 = vpop.permute.xlu0 %3525
      %3527 = vrot.lane.b32.xlu0 %v3441, 127
      %v3528 = vpop.permute.xlu0 %3527
      %3529 = vrot.lane.b32.xlu0 %v3438, 127
      %v3530 = vpop.permute.xlu0 %3529
      %3531 = vrot.lane.b32.xlu0 %v3442, 127
      %v3532 = vpop.permute.xlu0 %3531
      %3533 = vrot.lane.b32.xlu0 %v3439, 127
      %v3534 = vpop.permute.xlu0 %3533
      %3535 = vrot.lane.b32.xlu0 %v3443, 127
      %v3536 = vpop.permute.xlu0 %3535
      %3537 = vrot.lane.b32.xlu0 %v3440, 127
      %v3538 = vpop.permute.xlu0 %3537
      %3539 = vrot.lane.b32.xlu0 %v3444, 127
      %v3540 = vpop.permute.xlu0 %3539
      %v3541 = vsel %vm698, %v3534, %v3538
      %v3542 = vsel %vm698, %v3536, %v3540
      %v3543 = vsel %vm698, %v3530, %v3534
      %v3544 = vsel %vm698, %v3532, %v3536
      %v3545 = vsel %vm698, %v3526, %v3530
      %v3546 = vsel %vm698, %v3528, %v3532
      %v3547 = vsel %vm698, %v3538, %v3526
      %v3548 = vsel %vm698, %v3540, %v3528
      %v3549 = vmul.f32 %v3545, %v706
      %v3550 = vmul.f32 %v3543, %v710
      %v3551 = vmul.f32 %v3541, %v714
      %v3552 = vmul.f32 %v3547, %v718
      %v3553 = vmul.f32 %v3546, %v706
      %v3554 = vmul.f32 %v3544, %v710
      %v3555 = vmul.f32 %v3542, %v714
      %v3556 = vmul.f32 %v3548, %v718
      %3557 = vset.pattern.permute.xlu0 42
      %3558 = vperm.xlu0 %3557, %v266
      %v3559 = vpop.permute.xlu0 %3558
      %3561 = vset.pattern.permute.xlu0 42
      %3562 = vperm.xlu0 %3561, %v267
      %v3563 = vpop.permute.xlu0 %3562
      %v3565 = vmul.f32 %v3559, %v3549
      %v3566 = vmul.f32 %v3559, %v3550
      %v3567 = vmul.f32 %v3559, %v3551
      %v3568 = vmul.f32 %v3559, %v3552
      %v3569 = vmul.f32 %v3563, %v3553
      %v3570 = vmul.f32 %v3563, %v3554
      %v3571 = vmul.f32 %v3563, %v3555
      %v3572 = vmul.f32 %v3563, %v3556
      %v3573 = vadd.f32 %v3517, %v3565
      %v3574 = vadd.f32 %v3518, %v3566
      %v3575 = vadd.f32 %v3519, %v3567
      %v3576 = vadd.f32 %v3520, %v3568
      %v3577 = vadd.f32 %v3521, %v3569
      %v3578 = vadd.f32 %v3522, %v3570
      %v3579 = vadd.f32 %v3523, %v3571
      %v3580 = vadd.f32 %v3524, %v3572
      %3581 = vset.pattern.permute.xlu0 46
      %3582 = vperm.xlu0 %3581, %v266
      %v3583 = vpop.permute.xlu0 %3582
      %3585 = vset.pattern.permute.xlu0 46
      %3586 = vperm.xlu0 %3585, %v267
      %v3587 = vpop.permute.xlu0 %3586
      %v3589 = vadd.f32 %v3573, %v3583
      %v3590 = vadd.f32 %v3574, %v3583
      %v3591 = vadd.f32 %v3575, %v3583
      %v3592 = vadd.f32 %v3576, %v3583
      %v3593 = vadd.f32 %v3577, %v3587
      %v3594 = vadd.f32 %v3578, %v3587
      %v3595 = vadd.f32 %v3579, %v3587
      %v3596 = vadd.f32 %v3580, %v3587
      %v3597 = vadd.f32 %v3589, %v3593
      %v3598 = vrot.slane %v3597, 4
      %v3599 = vadd.f32 %v3597, %v3598
      %v3600 = vrot.slane %v3599, 2
      %v3601 = vadd.f32 %v3599, %v3600
      %v3602 = vrot.slane %v3601, 1
      %v3603 = vadd.f32 %v3601, %v3602
      %v3604 = vadd.f32 %v3590, %v3594
      %v3605 = vrot.slane %v3604, 4
      %v3606 = vadd.f32 %v3604, %v3605
      %v3607 = vrot.slane %v3606, 2
      %v3608 = vadd.f32 %v3606, %v3607
      %v3609 = vrot.slane %v3608, 1
      %v3610 = vadd.f32 %v3608, %v3609
      %v3611 = vadd.f32 %v3591, %v3595
      %v3612 = vrot.slane %v3611, 4
      %v3613 = vadd.f32 %v3611, %v3612
      %v3614 = vrot.slane %v3613, 2
      %v3615 = vadd.f32 %v3613, %v3614
      %v3616 = vrot.slane %v3615, 1
      %v3617 = vadd.f32 %v3615, %v3616
      %v3618 = vadd.f32 %v3592, %v3596
      %v3619 = vrot.slane %v3618, 4
      %v3620 = vadd.f32 %v3618, %v3619
      %v3621 = vrot.slane %v3620, 2
      %v3622 = vadd.f32 %v3620, %v3621
      %v3623 = vrot.slane %v3622, 1
      %v3624 = vadd.f32 %v3622, %v3623
      %v3625 = vmul.f32 %v3603, %v1984
      %v3626 = vmul.f32 %v3610, %v1984
      %v3627 = vmul.f32 %v3617, %v1984
      %v3628 = vmul.f32 %v3624, %v1984
      %v3629 = vsub.f32 %v3589, %v3625
      %v3630 = vsub.f32 %v3590, %v3626
      %v3631 = vsub.f32 %v3591, %v3627
      %v3632 = vsub.f32 %v3592, %v3628
      %v3633 = vsub.f32 %v3593, %v3625
      %v3634 = vsub.f32 %v3594, %v3626
      %v3635 = vsub.f32 %v3595, %v3627
      %v3636 = vsub.f32 %v3596, %v3628
      %v3637 = vmul.f32 %v3629, %v3629
      %v3638 = vmul.f32 %v3630, %v3630
      %v3639 = vmul.f32 %v3631, %v3631
      %v3640 = vmul.f32 %v3632, %v3632
      %v3641 = vmul.f32 %v3633, %v3633
      %v3642 = vmul.f32 %v3634, %v3634
      %v3643 = vmul.f32 %v3635, %v3635
      %v3644 = vmul.f32 %v3636, %v3636
      %v3645 = vadd.f32 %v3637, %v3641
      %v3646 = vrot.slane %v3645, 4
      %v3647 = vadd.f32 %v3645, %v3646
      %v3648 = vrot.slane %v3647, 2
      %v3649 = vadd.f32 %v3647, %v3648
      %v3650 = vrot.slane %v3649, 1
      %v3651 = vadd.f32 %v3649, %v3650
      %v3652 = vadd.f32 %v3638, %v3642
      %v3653 = vrot.slane %v3652, 4
      %v3654 = vadd.f32 %v3652, %v3653
      %v3655 = vrot.slane %v3654, 2
      %v3656 = vadd.f32 %v3654, %v3655
      %v3657 = vrot.slane %v3656, 1
      %v3658 = vadd.f32 %v3656, %v3657
      %v3659 = vadd.f32 %v3639, %v3643
      %v3660 = vrot.slane %v3659, 4
      %v3661 = vadd.f32 %v3659, %v3660
      %v3662 = vrot.slane %v3661, 2
      %v3663 = vadd.f32 %v3661, %v3662
      %v3664 = vrot.slane %v3663, 1
      %v3665 = vadd.f32 %v3663, %v3664
      %v3666 = vadd.f32 %v3640, %v3644
      %v3667 = vrot.slane %v3666, 4
      %v3668 = vadd.f32 %v3666, %v3667
      %v3669 = vrot.slane %v3668, 2
      %v3670 = vadd.f32 %v3668, %v3669
      %v3671 = vrot.slane %v3670, 1
      %v3672 = vadd.f32 %v3670, %v3671
      %v3673 = vmul.f32 %v3651, %v1984
      %v3674 = vmul.f32 %v3658, %v1984
      %v3675 = vmul.f32 %v3665, %v1984
      %v3676 = vmul.f32 %v3672, %v1984
      %v3677 = vadd.f32 %v3673, 1e-06
      %v3678 = vadd.f32 %v3674, 1e-06
      %v3679 = vadd.f32 %v3675, 1e-06
      %v3680 = vadd.f32 %v3676, 1e-06
      %v3681 = vrsqrt.pop %v3677
      %v3682 = vrsqrt.pop %v3678
      %v3683 = vrsqrt.pop %v3679
      %v3684 = vrsqrt.pop %v3680
      %v3685 = vmul.f32 %v3629, %v3681
      %v3686 = vmul.f32 %v3630, %v3682
      %v3687 = vmul.f32 %v3631, %v3683
      %v3688 = vmul.f32 %v3632, %v3684
      %v3689 = vmul.f32 %v3633, %v3681
      %v3690 = vmul.f32 %v3634, %v3682
      %v3691 = vmul.f32 %v3635, %v3683
      %v3692 = vmul.f32 %v3636, %v3684
      %3693 = vset.pattern.permute.xlu0 47
      %3694 = vperm.xlu0 %3693, %v266
      %v3695 = vpop.permute.xlu0 %3694
      %3697 = vset.pattern.permute.xlu0 47
      %3698 = vperm.xlu0 %3697, %v267
      %v3699 = vpop.permute.xlu0 %3698
      %v3701 = vmul.f32 %v3685, %v3695
      %v3702 = vmul.f32 %v3686, %v3695
      %v3703 = vmul.f32 %v3687, %v3695
      %v3704 = vmul.f32 %v3688, %v3695
      %v3705 = vmul.f32 %v3689, %v3699
      %v3706 = vmul.f32 %v3690, %v3699
      %v3707 = vmul.f32 %v3691, %v3699
      %v3708 = vmul.f32 %v3692, %v3699
      %3709 = vset.pattern.permute.xlu0 48
      %3710 = vperm.xlu0 %3709, %v266
      %v3711 = vpop.permute.xlu0 %3710
      %3713 = vset.pattern.permute.xlu0 48
      %3714 = vperm.xlu0 %3713, %v267
      %v3715 = vpop.permute.xlu0 %3714
      %v3717 = vadd.f32 %v3701, %v3711
      %v3718 = vadd.f32 %v3702, %v3711
      %v3719 = vadd.f32 %v3703, %v3711
      %v3720 = vadd.f32 %v3704, %v3711
      %v3721 = vadd.f32 %v3705, %v3715
      %v3722 = vadd.f32 %v3706, %v3715
      %v3723 = vadd.f32 %v3707, %v3715
      %v3724 = vadd.f32 %v3708, %v3715
      %v3725 = vmul.f32 %v3717, 0.5
      %v3726 = vmul.f32 %v3718, 0.5
      %v3727 = vmul.f32 %v3719, 0.5
      %v3728 = vmul.f32 %v3720, 0.5
      %v3729 = vmul.f32 %v3721, 0.5
      %v3730 = vmul.f32 %v3722, 0.5
      %v3731 = vmul.f32 %v3723, 0.5
      %v3732 = vmul.f32 %v3724, 0.5
      %v3733 = vmul.f32 %v3717, 0.70710677
      %v3734 = vmul.f32 %v3718, 0.70710677
      %v3735 = vmul.f32 %v3719, 0.70710677
      %v3736 = vmul.f32 %v3720, 0.70710677
      %v3737 = vmul.f32 %v3721, 0.70710677
      %v3738 = vmul.f32 %v3722, 0.70710677
      %v3739 = vmul.f32 %v3723, 0.70710677
      %v3740 = vmul.f32 %v3724, 0.70710677
      %v3741 = verf.f32.pop %v3733
      %v3742 = verf.f32.pop %v3734
      %v3743 = verf.f32.pop %v3735
      %v3744 = verf.f32.pop %v3736
      %v3745 = verf.f32.pop %v3737
      %v3746 = verf.f32.pop %v3738
      %v3747 = verf.f32.pop %v3739
      %v3748 = verf.f32.pop %v3740
      %v3749 = vadd.f32 %v3741, 1.0
      %v3750 = vadd.f32 %v3742, 1.0
      %v3751 = vadd.f32 %v3743, 1.0
      %v3752 = vadd.f32 %v3744, 1.0
      %v3753 = vadd.f32 %v3745, 1.0
      %v3754 = vadd.f32 %v3746, 1.0
      %v3755 = vadd.f32 %v3747, 1.0
      %v3756 = vadd.f32 %v3748, 1.0
      %v3757 = vmul.f32 %v3725, %v3749
      %v3758 = vmul.f32 %v3726, %v3750
      %v3759 = vmul.f32 %v3727, %v3751
      %v3760 = vmul.f32 %v3728, %v3752
      %v3761 = vmul.f32 %v3729, %v3753
      %v3762 = vmul.f32 %v3730, %v3754
      %v3763 = vmul.f32 %v3731, %v3755
      %v3764 = vmul.f32 %v3732, %v3756
      %3766 = vset.pattern.permute.xlu0 16
      %3767 = vperm.xlu0 %3766, %v268
      %v3768 = vpop.permute.xlu0 %3767
      %3771 = vset.pattern.permute.xlu0 16
      %3772 = vperm.xlu0 %3771, %v269
      %v3773 = vpop.permute.xlu0 %3772
      %v3775 = vsel %vm1797, %v268, 0
      %v3777 = vsel %vm1797, %v269, 0
      %3779 = vmatprep.subr.mxu0 0.0
      %3780 = vmatpush1.msra.mxu0 0.0
      %3781 = vmatprep.subr.mxu0 0.0
      %3782 = vmatpush1.msra.mxu0 0.0
      %3783 = vmatprep.subr.mxu0 0.0
      %3784 = vmatpush1.msra.mxu0 0.0
      %3785 = vmatprep.subr.mxu0 0.0
      %3786 = vmatpush1.msra.mxu0 0.0
      %3787 = vmatprep.subr.mxu0 0.0
      %3788 = vmatpush1.msra.mxu0 0.0
      %3789 = vmatprep.subr.mxu0 0.0
      %3790 = vmatpush1.msra.mxu0 0.0
      %3791 = vmatprep.subr.mxu0 0.0
      %3792 = vmatpush1.msra.mxu0 0.0
      %3793 = vmatprep.subr.mxu0 0.0
      %3794 = vmatpush1.msra.mxu0 0.0
      %3795 = vmatprep.subr.mxu0 0.0
      %3796 = vmatpush1.msra.mxu0 0.0
      %3797 = vmatprep.subr.mxu0 0.0
      %3798 = vmatpush1.msra.mxu0 0.0
      %3799 = vmatprep.subr.mxu0 0.0
      %3800 = vmatpush1.msra.mxu0 0.0
      %3801 = vmatprep.subr.mxu0 0.0
      %3802 = vmatpush1.msra.mxu0 0.0
      %3803 = vmatprep.subr.mxu0 0.0
      %3804 = vmatpush1.msra.mxu0 0.0
      %3805 = vmatprep.subr.mxu0 0.0
      %3806 = vmatpush1.msra.mxu0 0.0
      %3807 = vmatprep.subr.mxu0 %v3762
      %3808 = vmatpush1.msra.mxu0 %v3761
      %3809 = vmatprep.subr.mxu0 %v3758
      %3810 = vmatpush1.msra.mxu0 %v3757
      %3811 = vmatprep.subr.mxu0 0.0
      %3812 = vmatpush2.msra.mxu0 0.0
      %3813 = vmatprep.subr.mxu0 0.0
      %3814 = vmatpush2.msra.mxu0 0.0
      %3815 = vmatprep.subr.mxu0 0.0
      %3816 = vmatpush2.msra.mxu0 0.0
      %3817 = vmatprep.subr.mxu0 0.0
      %3818 = vmatpush2.msra.mxu0 0.0
      %3819 = vmatprep.subr.mxu0 0.0
      %3820 = vmatpush2.msra.mxu0 0.0
      %3821 = vmatprep.subr.mxu0 0.0
      %3822 = vmatpush2.msra.mxu0 0.0
      %3823 = vmatprep.subr.mxu0 0.0
      %3824 = vmatpush2.msra.mxu0 0.0
      %3825 = vmatprep.subr.mxu0 0.0
      %3826 = vmatpush2.msra.mxu0 0.0
      %3827 = vmatprep.subr.mxu0 0.0
      %3828 = vmatpush2.msra.mxu0 0.0
      %3829 = vmatprep.subr.mxu0 0.0
      %3830 = vmatpush2.msra.mxu0 0.0
      %3831 = vmatprep.subr.mxu0 0.0
      %3832 = vmatpush2.msra.mxu0 0.0
      %3833 = vmatprep.subr.mxu0 0.0
      %3834 = vmatpush2.msra.mxu0 0.0
      %3835 = vmatprep.subr.mxu0 0.0
      %3836 = vmatpush2.msra.mxu0 0.0
      %3837 = vmatprep.subr.mxu0 0.0
      %3838 = vmatpush2.msra.mxu0 0.0
      %3839 = vmatprep.subr.mxu0 0.0
      %3840 = vmatpush2.msra.mxu0 0.0
      %3841 = vmatprep.subr.mxu0 0.0
      %3842 = vmatpush2.msra.mxu0 0.0
      %3843 = vmatprep.mubr.f32.mxu0 0.0
      %3844 = vmatmul.mubr.f32.gmra.mxu0 %v3775
      %v3845 = vpop.f32.mrf.mxu0
      %v3846 = vadd.f32 %v3768, %v3845
      %v3847 = vpop.f32.mrf.mxu0
      %v3848 = vadd.f32 %v3768, %v3847
      %3849 = vmatprep.mubr.f32.mxu0 0.0
      %3850 = vmatmul.mubr.f32.gmra.mxu0 %v3777
      %v3851 = vpop.f32.mrf.mxu0
      %v3852 = vadd.f32 %v3773, %v3851
      %v3853 = vpop.f32.mrf.mxu0
      %v3854 = vadd.f32 %v3773, %v3853
      %3855 = vdwg.mxu0
      %3856 = vmatprep.subr.mxu0 0.0
      %3857 = vmatpush1.msra.mxu0 0.0
      %3858 = vmatprep.subr.mxu0 0.0
      %3859 = vmatpush1.msra.mxu0 0.0
      %3860 = vmatprep.subr.mxu0 0.0
      %3861 = vmatpush1.msra.mxu0 0.0
      %3862 = vmatprep.subr.mxu0 0.0
      %3863 = vmatpush1.msra.mxu0 0.0
      %3864 = vmatprep.subr.mxu0 0.0
      %3865 = vmatpush1.msra.mxu0 0.0
      %3866 = vmatprep.subr.mxu0 0.0
      %3867 = vmatpush1.msra.mxu0 0.0
      %3868 = vmatprep.subr.mxu0 0.0
      %3869 = vmatpush1.msra.mxu0 0.0
      %3870 = vmatprep.subr.mxu0 0.0
      %3871 = vmatpush1.msra.mxu0 0.0
      %3872 = vmatprep.subr.mxu0 0.0
      %3873 = vmatpush1.msra.mxu0 0.0
      %3874 = vmatprep.subr.mxu0 0.0
      %3875 = vmatpush1.msra.mxu0 0.0
      %3876 = vmatprep.subr.mxu0 0.0
      %3877 = vmatpush1.msra.mxu0 0.0
      %3878 = vmatprep.subr.mxu0 0.0
      %3879 = vmatpush1.msra.mxu0 0.0
      %3880 = vmatprep.subr.mxu0 0.0
      %3881 = vmatpush1.msra.mxu0 0.0
      %3882 = vmatprep.subr.mxu0 0.0
      %3883 = vmatpush1.msra.mxu0 0.0
      %3884 = vmatprep.subr.mxu0 %v3764
      %3885 = vmatpush1.msra.mxu0 %v3763
      %3886 = vmatprep.subr.mxu0 %v3760
      %3887 = vmatpush1.msra.mxu0 %v3759
      %3888 = vmatprep.subr.mxu0 0.0
      %3889 = vmatpush2.msra.mxu0 0.0
      %3890 = vmatprep.subr.mxu0 0.0
      %3891 = vmatpush2.msra.mxu0 0.0
      %3892 = vmatprep.subr.mxu0 0.0
      %3893 = vmatpush2.msra.mxu0 0.0
      %3894 = vmatprep.subr.mxu0 0.0
      %3895 = vmatpush2.msra.mxu0 0.0
      %3896 = vmatprep.subr.mxu0 0.0
      %3897 = vmatpush2.msra.mxu0 0.0
      %3898 = vmatprep.subr.mxu0 0.0
      %3899 = vmatpush2.msra.mxu0 0.0
      %3900 = vmatprep.subr.mxu0 0.0
      %3901 = vmatpush2.msra.mxu0 0.0
      %3902 = vmatprep.subr.mxu0 0.0
      %3903 = vmatpush2.msra.mxu0 0.0
      %3904 = vmatprep.subr.mxu0 0.0
      %3905 = vmatpush2.msra.mxu0 0.0
      %3906 = vmatprep.subr.mxu0 0.0
      %3907 = vmatpush2.msra.mxu0 0.0
      %3908 = vmatprep.subr.mxu0 0.0
      %3909 = vmatpush2.msra.mxu0 0.0
      %3910 = vmatprep.subr.mxu0 0.0
      %3911 = vmatpush2.msra.mxu0 0.0
      %3912 = vmatprep.subr.mxu0 0.0
      %3913 = vmatpush2.msra.mxu0 0.0
      %3914 = vmatprep.subr.mxu0 0.0
      %3915 = vmatpush2.msra.mxu0 0.0
      %3916 = vmatprep.subr.mxu0 0.0
      %3917 = vmatpush2.msra.mxu0 0.0
      %3918 = vmatprep.subr.mxu0 0.0
      %3919 = vmatpush2.msra.mxu0 0.0
      %3920 = vmatprep.mubr.f32.mxu0 0.0
      %3921 = vmatmul.mubr.f32.gmra.mxu0 %v3775
      %v3922 = vpop.f32.mrf.mxu0
      %v3923 = vadd.f32 %v3768, %v3922
      %v3924 = vpop.f32.mrf.mxu0
      %v3925 = vadd.f32 %v3768, %v3924
      %3926 = vmatprep.mubr.f32.mxu0 0.0
      %3927 = vmatmul.mubr.f32.gmra.mxu0 %v3777
      %v3928 = vpop.f32.mrf.mxu0
      %v3929 = vadd.f32 %v3773, %v3928
      %v3930 = vpop.f32.mrf.mxu0
      %v3931 = vadd.f32 %v3773, %v3930
      %3932 = vdwg.mxu0
      %v3933 = vadd.f32 %v3846, %v3852
      %v3934 = vrot.slane %v3933, 4
      %v3935 = vadd.f32 %v3933, %v3934
      %v3936 = vrot.slane %v3935, 2
      %v3937 = vadd.f32 %v3935, %v3936
      %v3938 = vrot.slane %v3937, 1
      %v3939 = vadd.f32 %v3937, %v3938
      %v3940 = vadd.f32 %v3848, %v3854
      %v3941 = vrot.slane %v3940, 4
      %v3942 = vadd.f32 %v3940, %v3941
      %v3943 = vrot.slane %v3942, 2
      %v3944 = vadd.f32 %v3942, %v3943
      %v3945 = vrot.slane %v3944, 1
      %v3946 = vadd.f32 %v3944, %v3945
      %v3947 = vadd.f32 %v3923, %v3929
      %v3948 = vrot.slane %v3947, 4
      %v3949 = vadd.f32 %v3947, %v3948
      %v3950 = vrot.slane %v3949, 2
      %v3951 = vadd.f32 %v3949, %v3950
      %v3952 = vrot.slane %v3951, 1
      %v3953 = vadd.f32 %v3951, %v3952
      %v3954 = vadd.f32 %v3925, %v3931
      %v3955 = vrot.slane %v3954, 4
      %v3956 = vadd.f32 %v3954, %v3955
      %v3957 = vrot.slane %v3956, 2
      %v3958 = vadd.f32 %v3956, %v3957
      %v3959 = vrot.slane %v3958, 1
      %v3960 = vadd.f32 %v3958, %v3959
      %v3961 = vmul.f32 %v3939, %v1984
      %v3962 = vmul.f32 %v3946, %v1984
      %v3963 = vmul.f32 %v3953, %v1984
      %v3964 = vmul.f32 %v3960, %v1984
      %v3965 = vsub.f32 %v3846, %v3961
      %v3966 = vsub.f32 %v3848, %v3962
      %v3967 = vsub.f32 %v3923, %v3963
      %v3968 = vsub.f32 %v3925, %v3964
      %v3969 = vsub.f32 %v3852, %v3961
      %v3970 = vsub.f32 %v3854, %v3962
      %v3971 = vsub.f32 %v3929, %v3963
      %v3972 = vsub.f32 %v3931, %v3964
      %v3973 = vmul.f32 %v3965, %v3965
      %v3974 = vmul.f32 %v3966, %v3966
      %v3975 = vmul.f32 %v3967, %v3967
      %v3976 = vmul.f32 %v3968, %v3968
      %v3977 = vmul.f32 %v3969, %v3969
      %v3978 = vmul.f32 %v3970, %v3970
      %v3979 = vmul.f32 %v3971, %v3971
      %v3980 = vmul.f32 %v3972, %v3972
      %v3981 = vadd.f32 %v3973, %v3977
      %v3982 = vrot.slane %v3981, 4
      %v3983 = vadd.f32 %v3981, %v3982
      %v3984 = vrot.slane %v3983, 2
      %v3985 = vadd.f32 %v3983, %v3984
      %v3986 = vrot.slane %v3985, 1
      %v3987 = vadd.f32 %v3985, %v3986
      %v3988 = vadd.f32 %v3974, %v3978
      %v3989 = vrot.slane %v3988, 4
      %v3990 = vadd.f32 %v3988, %v3989
      %v3991 = vrot.slane %v3990, 2
      %v3992 = vadd.f32 %v3990, %v3991
      %v3993 = vrot.slane %v3992, 1
      %v3994 = vadd.f32 %v3992, %v3993
      %v3995 = vadd.f32 %v3975, %v3979
      %v3996 = vrot.slane %v3995, 4
      %v3997 = vadd.f32 %v3995, %v3996
      %v3998 = vrot.slane %v3997, 2
      %v3999 = vadd.f32 %v3997, %v3998
      %v4000 = vrot.slane %v3999, 1
      %v4001 = vadd.f32 %v3999, %v4000
      %v4002 = vadd.f32 %v3976, %v3980
      %v4003 = vrot.slane %v4002, 4
      %v4004 = vadd.f32 %v4002, %v4003
      %v4005 = vrot.slane %v4004, 2
      %v4006 = vadd.f32 %v4004, %v4005
      %v4007 = vrot.slane %v4006, 1
      %v4008 = vadd.f32 %v4006, %v4007
      %v4009 = vmul.f32 %v3987, %v1984
      %v4010 = vmul.f32 %v3994, %v1984
      %v4011 = vmul.f32 %v4001, %v1984
      %v4012 = vmul.f32 %v4008, %v1984
      %v4013 = vadd.f32 %v4009, 1e-06
      %v4014 = vadd.f32 %v4010, 1e-06
      %v4015 = vadd.f32 %v4011, 1e-06
      %v4016 = vadd.f32 %v4012, 1e-06
      %v4017 = vrsqrt.pop %v4013
      %v4018 = vrsqrt.pop %v4014
      %v4019 = vrsqrt.pop %v4015
      %v4020 = vrsqrt.pop %v4016
      %v4021 = vmul.f32 %v3965, %v4017
      %v4022 = vmul.f32 %v3966, %v4018
      %v4023 = vmul.f32 %v3967, %v4019
      %v4024 = vmul.f32 %v3968, %v4020
      %v4025 = vmul.f32 %v3969, %v4017
      %v4026 = vmul.f32 %v3970, %v4018
      %v4027 = vmul.f32 %v3971, %v4019
      %v4028 = vmul.f32 %v3972, %v4020
      %4029 = vset.pattern.permute.xlu0 17
      %4030 = vperm.xlu0 %4029, %v268
      %v4031 = vpop.permute.xlu0 %4030
      %4033 = vset.pattern.permute.xlu0 17
      %4034 = vperm.xlu0 %4033, %v269
      %v4035 = vpop.permute.xlu0 %4034
      %v4037 = vmul.f32 %v4021, %v4031
      %v4038 = vmul.f32 %v4022, %v4031
      %v4039 = vmul.f32 %v4023, %v4031
      %v4040 = vmul.f32 %v4024, %v4031
      %v4041 = vmul.f32 %v4025, %v4035
      %v4042 = vmul.f32 %v4026, %v4035
      %v4043 = vmul.f32 %v4027, %v4035
      %v4044 = vmul.f32 %v4028, %v4035
      %4045 = vset.pattern.permute.xlu0 18
      %4046 = vperm.xlu0 %4045, %v268
      %v4047 = vpop.permute.xlu0 %4046
      %4049 = vset.pattern.permute.xlu0 18
      %4050 = vperm.xlu0 %4049, %v269
      %v4051 = vpop.permute.xlu0 %4050
      %v4053 = vadd.f32 %v4037, %v4047
      %v4054 = vadd.f32 %v4038, %v4047
      %v4055 = vadd.f32 %v4039, %v4047
      %v4056 = vadd.f32 %v4040, %v4047
      %v4057 = vadd.f32 %v4041, %v4051
      %v4058 = vadd.f32 %v4042, %v4051
      %v4059 = vadd.f32 %v4043, %v4051
      %v4060 = vadd.f32 %v4044, %v4051
      %4061 = vmatprep.subr.mxu0 0.0
      %4062 = vmatpush1.xpose.msra.mxu0 0.0
      %4063 = vmatprep.subr.mxu0 0.0
      %4064 = vmatpush1.xpose.msra.mxu0 0.0
      %4065 = vmatprep.subr.mxu0 0.0
      %4066 = vmatpush1.xpose.msra.mxu0 0.0
      %4067 = vmatprep.subr.mxu0 0.0
      %4068 = vmatpush1.xpose.msra.mxu0 0.0
      %4069 = vmatprep.subr.mxu0 0.0
      %4070 = vmatpush1.xpose.msra.mxu0 0.0
      %4071 = vmatprep.subr.mxu0 0.0
      %4072 = vmatpush1.xpose.msra.mxu0 0.0
      %4073 = vmatprep.subr.mxu0 0.0
      %4074 = vmatpush1.xpose.msra.mxu0 0.0
      %4075 = vmatprep.subr.mxu0 0.0
      %4076 = vmatpush1.xpose.msra.mxu0 0.0
      %4077 = vmatprep.subr.mxu0 0.0
      %4078 = vmatpush1.xpose.msra.mxu0 0.0
      %4079 = vmatprep.subr.mxu0 0.0
      %4080 = vmatpush1.xpose.msra.mxu0 0.0
      %4081 = vmatprep.subr.mxu0 0.0
      %4082 = vmatpush1.xpose.msra.mxu0 0.0
      %4083 = vmatprep.subr.mxu0 0.0
      %4084 = vmatpush1.xpose.msra.mxu0 0.0
      %4085 = vmatprep.subr.mxu0 0.0
      %4086 = vmatpush1.xpose.msra.mxu0 0.0
      %4087 = vmatprep.subr.mxu0 0.0
      %4088 = vmatpush1.xpose.msra.mxu0 0.0
      %4089 = vmatprep.subr.mxu0 %v4058
      %4090 = vmatpush1.xpose.msra.mxu0 %v4057
      %4091 = vmatprep.subr.mxu0 %v4054
      %4092 = vmatpush1.xpose.msra.mxu0 %v4053
      %4093 = vmatprep.subr.mxu0 0.0
      %4094 = vmatpush2.xpose.msra.mxu0 0.0
      %4095 = vmatprep.subr.mxu0 0.0
      %4096 = vmatpush2.xpose.msra.mxu0 0.0
      %4097 = vmatprep.subr.mxu0 0.0
      %4098 = vmatpush2.xpose.msra.mxu0 0.0
      %4099 = vmatprep.subr.mxu0 0.0
      %4100 = vmatpush2.xpose.msra.mxu0 0.0
      %4101 = vmatprep.subr.mxu0 0.0
      %4102 = vmatpush2.xpose.msra.mxu0 0.0
      %4103 = vmatprep.subr.mxu0 0.0
      %4104 = vmatpush2.xpose.msra.mxu0 0.0
      %4105 = vmatprep.subr.mxu0 0.0
      %4106 = vmatpush2.xpose.msra.mxu0 0.0
      %4107 = vmatprep.subr.mxu0 0.0
      %4108 = vmatpush2.xpose.msra.mxu0 0.0
      %4109 = vmatprep.subr.mxu0 0.0
      %4110 = vmatpush2.xpose.msra.mxu0 0.0
      %4111 = vmatprep.subr.mxu0 0.0
      %4112 = vmatpush2.xpose.msra.mxu0 0.0
      %4113 = vmatprep.subr.mxu0 0.0
      %4114 = vmatpush2.xpose.msra.mxu0 0.0
      %4115 = vmatprep.subr.mxu0 0.0
      %4116 = vmatpush2.xpose.msra.mxu0 0.0
      %4117 = vmatprep.subr.mxu0 0.0
      %4118 = vmatpush2.xpose.msra.mxu0 0.0
      %4119 = vmatprep.subr.mxu0 0.0
      %4120 = vmatpush2.xpose.msra.mxu0 0.0
      %4121 = vmatprep.subr.mxu0 0.0
      %4122 = vmatpush2.xpose.msra.mxu0 0.0
      %4123 = vmatprep.subr.mxu0 0.0
      %4124 = vmatpush2.xpose.msra.mxu0 0.0
      %4125 = vmatprep.mubr.f32.mxu0 %v1776
      %4126 = vmatmul.mubr.f32.gmra.mxu0 %v1775
      %v4127 = vpop.f32.mrf.mxu0
      %v4128 = vadd.f32 0.0, %v4127
      %v4129 = vpop.f32.mrf.mxu0
      %4130 = vdwg.mxu0
      %4131 = vmatprep.subr.mxu0 0.0
      %4132 = vmatpush1.xpose.msra.mxu0 0.0
      %4133 = vmatprep.subr.mxu0 0.0
      %4134 = vmatpush1.xpose.msra.mxu0 0.0
      %4135 = vmatprep.subr.mxu0 0.0
      %4136 = vmatpush1.xpose.msra.mxu0 0.0
      %4137 = vmatprep.subr.mxu0 0.0
      %4138 = vmatpush1.xpose.msra.mxu0 0.0
      %4139 = vmatprep.subr.mxu0 0.0
      %4140 = vmatpush1.xpose.msra.mxu0 0.0
      %4141 = vmatprep.subr.mxu0 0.0
      %4142 = vmatpush1.xpose.msra.mxu0 0.0
      %4143 = vmatprep.subr.mxu0 0.0
      %4144 = vmatpush1.xpose.msra.mxu0 0.0
      %4145 = vmatprep.subr.mxu0 0.0
      %4146 = vmatpush1.xpose.msra.mxu0 0.0
      %4147 = vmatprep.subr.mxu0 0.0
      %4148 = vmatpush1.xpose.msra.mxu0 0.0
      %4149 = vmatprep.subr.mxu0 0.0
      %4150 = vmatpush1.xpose.msra.mxu0 0.0
      %4151 = vmatprep.subr.mxu0 0.0
      %4152 = vmatpush1.xpose.msra.mxu0 0.0
      %4153 = vmatprep.subr.mxu0 0.0
      %4154 = vmatpush1.xpose.msra.mxu0 0.0
      %4155 = vmatprep.subr.mxu0 0.0
      %4156 = vmatpush1.xpose.msra.mxu0 0.0
      %4157 = vmatprep.subr.mxu0 0.0
      %4158 = vmatpush1.xpose.msra.mxu0 0.0
      %4159 = vmatprep.subr.mxu0 %v4060
      %4160 = vmatpush1.xpose.msra.mxu0 %v4059
      %4161 = vmatprep.subr.mxu0 %v4056
      %4162 = vmatpush1.xpose.msra.mxu0 %v4055
      %4163 = vmatprep.subr.mxu0 0.0
      %4164 = vmatpush2.xpose.msra.mxu0 0.0
      %4165 = vmatprep.subr.mxu0 0.0
      %4166 = vmatpush2.xpose.msra.mxu0 0.0
      %4167 = vmatprep.subr.mxu0 0.0
      %4168 = vmatpush2.xpose.msra.mxu0 0.0
      %4169 = vmatprep.subr.mxu0 0.0
      %4170 = vmatpush2.xpose.msra.mxu0 0.0
      %4171 = vmatprep.subr.mxu0 0.0
      %4172 = vmatpush2.xpose.msra.mxu0 0.0
      %4173 = vmatprep.subr.mxu0 0.0
      %4174 = vmatpush2.xpose.msra.mxu0 0.0
      %4175 = vmatprep.subr.mxu0 0.0
      %4176 = vmatpush2.xpose.msra.mxu0 0.0
      %4177 = vmatprep.subr.mxu0 0.0
      %4178 = vmatpush2.xpose.msra.mxu0 0.0
      %4179 = vmatprep.subr.mxu0 0.0
      %4180 = vmatpush2.xpose.msra.mxu0 0.0
      %4181 = vmatprep.subr.mxu0 0.0
      %4182 = vmatpush2.xpose.msra.mxu0 0.0
      %4183 = vmatprep.subr.mxu0 0.0
      %4184 = vmatpush2.xpose.msra.mxu0 0.0
      %4185 = vmatprep.subr.mxu0 0.0
      %4186 = vmatpush2.xpose.msra.mxu0 0.0
      %4187 = vmatprep.subr.mxu0 0.0
      %4188 = vmatpush2.xpose.msra.mxu0 0.0
      %4189 = vmatprep.subr.mxu0 0.0
      %4190 = vmatpush2.xpose.msra.mxu0 0.0
      %4191 = vmatprep.subr.mxu0 0.0
      %4192 = vmatpush2.xpose.msra.mxu0 0.0
      %4193 = vmatprep.subr.mxu0 0.0
      %4194 = vmatpush2.xpose.msra.mxu0 0.0
      %4195 = vmatprep.mubr.f32.mxu0 %v1778
      %4196 = vmatmul.mubr.f32.gmra.mxu0 %v1777
      %v4197 = vpop.f32.mrf.mxu0
      %v4198 = vadd.f32 %v4128, %v4197
      %v4199 = vpop.f32.mrf.mxu0
      %4200 = vdwg.mxu0
      %v4201 = vmul.f32 %v4198, 0.044194173
      %vm4202 = vcmask 125952
      %v4203 = vsel %vm4202, %v4201, -inf
      %4204 = vmax.xlane.f32.xlu0 %v4203
      %v4205 = vpop.xlane.xlu0 %4204
      %v4206 = vsub.f32 %v4201, %v4205
      %v4207 = vmul.f32 %v4206, 1.442695
      %v4208 = vpow.pop %v4207
      %v4209 = vsel %vm4202, %v4208, 0.0
      %4210 = vadd.xlane.f32.xlu0 %v4209
      %v4211 = vpop.xlane.xlu0 %4210
      %v4212 = vrcp.pop %v4211
      %v4213 = vmul.f32 %v4208, %v4212
      %v4214 = vld [vmem:[%s259] sm:$0xff]
      %v4215 = vld [vmem:[%s259 + $0x8] sm:$0xff]
      %v4216 = vld [vmem:[%s259 + $0x10] sm:$0xff]
      %v4217 = vld [vmem:[%s259 + $0x18] sm:$0xff]
      %v4218 = vld [vmem:[%s259 + $0x20] sm:$0xff]
      %v4219 = vld [vmem:[%s259 + $0x28] sm:$0xff]
      %v4220 = vld [vmem:[%s259 + $0x30] sm:$0xff]
      %v4221 = vld [vmem:[%s259 + $0x38] sm:$0xff]
      %4223 = vset.pattern.permute.xlu0 43
      %4224 = vperm.xlu0 %4223, %v270
      %v4225 = vpop.permute.xlu0 %4224
      %4228 = vset.pattern.permute.xlu0 43
      %4229 = vperm.xlu0 %4228, %v271
      %v4230 = vpop.permute.xlu0 %4229
      %v4232 = vsel %vm1797, %v270, 0
      %v4234 = vsel %vm1797, %v271, 0
      %4236 = vmatprep.subr.mxu0 0.0
      %4237 = vmatpush1.msra.mxu0 0.0
      %4238 = vmatprep.subr.mxu0 0.0
      %4239 = vmatpush1.msra.mxu0 0.0
      %4240 = vmatprep.subr.mxu0 0.0
      %4241 = vmatpush1.msra.mxu0 0.0
      %4242 = vmatprep.subr.mxu0 0.0
      %4243 = vmatpush1.msra.mxu0 0.0
      %4244 = vmatprep.subr.mxu0 0.0
      %4245 = vmatpush1.msra.mxu0 0.0
      %4246 = vmatprep.subr.mxu0 0.0
      %4247 = vmatpush1.msra.mxu0 0.0
      %4248 = vmatprep.subr.mxu0 0.0
      %4249 = vmatpush1.msra.mxu0 0.0
      %4250 = vmatprep.subr.mxu0 0.0
      %4251 = vmatpush1.msra.mxu0 0.0
      %4252 = vmatprep.subr.mxu0 0.0
      %4253 = vmatpush1.msra.mxu0 0.0
      %4254 = vmatprep.subr.mxu0 0.0
      %4255 = vmatpush1.msra.mxu0 0.0
      %4256 = vmatprep.subr.mxu0 0.0
      %4257 = vmatpush1.msra.mxu0 0.0
      %4258 = vmatprep.subr.mxu0 0.0
      %4259 = vmatpush1.msra.mxu0 0.0
      %4260 = vmatprep.subr.mxu0 0.0
      %4261 = vmatpush1.msra.mxu0 0.0
      %4262 = vmatprep.subr.mxu0 0.0
      %4263 = vmatpush1.msra.mxu0 0.0
      %4264 = vmatprep.subr.mxu0 %v4219
      %4265 = vmatpush1.msra.mxu0 %v4218
      %4266 = vmatprep.subr.mxu0 %v4215
      %4267 = vmatpush1.msra.mxu0 %v4214
      %4268 = vmatprep.subr.mxu0 0.0
      %4269 = vmatpush2.msra.mxu0 0.0
      %4270 = vmatprep.subr.mxu0 0.0
      %4271 = vmatpush2.msra.mxu0 0.0
      %4272 = vmatprep.subr.mxu0 0.0
      %4273 = vmatpush2.msra.mxu0 0.0
      %4274 = vmatprep.subr.mxu0 0.0
      %4275 = vmatpush2.msra.mxu0 0.0
      %4276 = vmatprep.subr.mxu0 0.0
      %4277 = vmatpush2.msra.mxu0 0.0
      %4278 = vmatprep.subr.mxu0 0.0
      %4279 = vmatpush2.msra.mxu0 0.0
      %4280 = vmatprep.subr.mxu0 0.0
      %4281 = vmatpush2.msra.mxu0 0.0
      %4282 = vmatprep.subr.mxu0 0.0
      %4283 = vmatpush2.msra.mxu0 0.0
      %4284 = vmatprep.subr.mxu0 0.0
      %4285 = vmatpush2.msra.mxu0 0.0
      %4286 = vmatprep.subr.mxu0 0.0
      %4287 = vmatpush2.msra.mxu0 0.0
      %4288 = vmatprep.subr.mxu0 0.0
      %4289 = vmatpush2.msra.mxu0 0.0
      %4290 = vmatprep.subr.mxu0 0.0
      %4291 = vmatpush2.msra.mxu0 0.0
      %4292 = vmatprep.subr.mxu0 0.0
      %4293 = vmatpush2.msra.mxu0 0.0
      %4294 = vmatprep.subr.mxu0 0.0
      %4295 = vmatpush2.msra.mxu0 0.0
      %4296 = vmatprep.subr.mxu0 0.0
      %4297 = vmatpush2.msra.mxu0 0.0
      %4298 = vmatprep.subr.mxu0 0.0
      %4299 = vmatpush2.msra.mxu0 0.0
      %4300 = vmatprep.mubr.f32.mxu0 0.0
      %4301 = vmatmul.mubr.f32.gmra.mxu0 %v4232
      %v4302 = vpop.f32.mrf.mxu0
      %v4303 = vadd.f32 %v4225, %v4302
      %v4304 = vpop.f32.mrf.mxu0
      %v4305 = vadd.f32 %v4225, %v4304
      %4306 = vmatprep.mubr.f32.mxu0 0.0
      %4307 = vmatmul.mubr.f32.gmra.mxu0 %v4234
      %v4308 = vpop.f32.mrf.mxu0
      %v4309 = vadd.f32 %v4230, %v4308
      %v4310 = vpop.f32.mrf.mxu0
      %v4311 = vadd.f32 %v4230, %v4310
      %4312 = vdwg.mxu0
      %4313 = vmatprep.subr.mxu0 0.0
      %4314 = vmatpush1.msra.mxu0 0.0
      %4315 = vmatprep.subr.mxu0 0.0
      %4316 = vmatpush1.msra.mxu0 0.0
      %4317 = vmatprep.subr.mxu0 0.0
      %4318 = vmatpush1.msra.mxu0 0.0
      %4319 = vmatprep.subr.mxu0 0.0
      %4320 = vmatpush1.msra.mxu0 0.0
      %4321 = vmatprep.subr.mxu0 0.0
      %4322 = vmatpush1.msra.mxu0 0.0
      %4323 = vmatprep.subr.mxu0 0.0
      %4324 = vmatpush1.msra.mxu0 0.0
      %4325 = vmatprep.subr.mxu0 0.0
      %4326 = vmatpush1.msra.mxu0 0.0
      %4327 = vmatprep.subr.mxu0 0.0
      %4328 = vmatpush1.msra.mxu0 0.0
      %4329 = vmatprep.subr.mxu0 0.0
      %4330 = vmatpush1.msra.mxu0 0.0
      %4331 = vmatprep.subr.mxu0 0.0
      %4332 = vmatpush1.msra.mxu0 0.0
      %4333 = vmatprep.subr.mxu0 0.0
      %4334 = vmatpush1.msra.mxu0 0.0
      %4335 = vmatprep.subr.mxu0 0.0
      %4336 = vmatpush1.msra.mxu0 0.0
      %4337 = vmatprep.subr.mxu0 0.0
      %4338 = vmatpush1.msra.mxu0 0.0
      %4339 = vmatprep.subr.mxu0 0.0
      %4340 = vmatpush1.msra.mxu0 0.0
      %4341 = vmatprep.subr.mxu0 %v4221
      %4342 = vmatpush1.msra.mxu0 %v4220
      %4343 = vmatprep.subr.mxu0 %v4217
      %4344 = vmatpush1.msra.mxu0 %v4216
      %4345 = vmatprep.subr.mxu0 0.0
      %4346 = vmatpush2.msra.mxu0 0.0
      %4347 = vmatprep.subr.mxu0 0.0
      %4348 = vmatpush2.msra.mxu0 0.0
      %4349 = vmatprep.subr.mxu0 0.0
      %4350 = vmatpush2.msra.mxu0 0.0
      %4351 = vmatprep.subr.mxu0 0.0
      %4352 = vmatpush2.msra.mxu0 0.0
      %4353 = vmatprep.subr.mxu0 0.0
      %4354 = vmatpush2.msra.mxu0 0.0
      %4355 = vmatprep.subr.mxu0 0.0
      %4356 = vmatpush2.msra.mxu0 0.0
      %4357 = vmatprep.subr.mxu0 0.0
      %4358 = vmatpush2.msra.mxu0 0.0
      %4359 = vmatprep.subr.mxu0 0.0
      %4360 = vmatpush2.msra.mxu0 0.0
      %4361 = vmatprep.subr.mxu0 0.0
      %4362 = vmatpush2.msra.mxu0 0.0
      %4363 = vmatprep.subr.mxu0 0.0
      %4364 = vmatpush2.msra.mxu0 0.0
      %4365 = vmatprep.subr.mxu0 0.0
      %4366 = vmatpush2.msra.mxu0 0.0
      %4367 = vmatprep.subr.mxu0 0.0
      %4368 = vmatpush2.msra.mxu0 0.0
      %4369 = vmatprep.subr.mxu0 0.0
      %4370 = vmatpush2.msra.mxu0 0.0
      %4371 = vmatprep.subr.mxu0 0.0
      %4372 = vmatpush2.msra.mxu0 0.0
      %4373 = vmatprep.subr.mxu0 0.0
      %4374 = vmatpush2.msra.mxu0 0.0
      %4375 = vmatprep.subr.mxu0 0.0
      %4376 = vmatpush2.msra.mxu0 0.0
      %4377 = vmatprep.mubr.f32.mxu0 0.0
      %4378 = vmatmul.mubr.f32.gmra.mxu0 %v4232
      %v4379 = vpop.f32.mrf.mxu0
      %v4380 = vadd.f32 %v4225, %v4379
      %v4381 = vpop.f32.mrf.mxu0
      %v4382 = vadd.f32 %v4225, %v4381
      %4383 = vmatprep.mubr.f32.mxu0 0.0
      %4384 = vmatmul.mubr.f32.gmra.mxu0 %v4234
      %v4385 = vpop.f32.mrf.mxu0
      %v4386 = vadd.f32 %v4230, %v4385
      %v4387 = vpop.f32.mrf.mxu0
      %v4388 = vadd.f32 %v4230, %v4387
      %4389 = vdwg.mxu0
      %v4390 = vadd.f32 %v4303, %v4309
      %v4391 = vrot.slane %v4390, 4
      %v4392 = vadd.f32 %v4390, %v4391
      %v4393 = vrot.slane %v4392, 2
      %v4394 = vadd.f32 %v4392, %v4393
      %v4395 = vrot.slane %v4394, 1
      %v4396 = vadd.f32 %v4394, %v4395
      %v4397 = vadd.f32 %v4305, %v4311
      %v4398 = vrot.slane %v4397, 4
      %v4399 = vadd.f32 %v4397, %v4398
      %v4400 = vrot.slane %v4399, 2
      %v4401 = vadd.f32 %v4399, %v4400
      %v4402 = vrot.slane %v4401, 1
      %v4403 = vadd.f32 %v4401, %v4402
      %v4404 = vadd.f32 %v4380, %v4386
      %v4405 = vrot.slane %v4404, 4
      %v4406 = vadd.f32 %v4404, %v4405
      %v4407 = vrot.slane %v4406, 2
      %v4408 = vadd.f32 %v4406, %v4407
      %v4409 = vrot.slane %v4408, 1
      %v4410 = vadd.f32 %v4408, %v4409
      %v4411 = vadd.f32 %v4382, %v4388
      %v4412 = vrot.slane %v4411, 4
      %v4413 = vadd.f32 %v4411, %v4412
      %v4414 = vrot.slane %v4413, 2
      %v4415 = vadd.f32 %v4413, %v4414
      %v4416 = vrot.slane %v4415, 1
      %v4417 = vadd.f32 %v4415, %v4416
      %v4418 = vmul.f32 %v4396, %v1984
      %v4419 = vmul.f32 %v4403, %v1984
      %v4420 = vmul.f32 %v4410, %v1984
      %v4421 = vmul.f32 %v4417, %v1984
      %v4422 = vsub.f32 %v4303, %v4418
      %v4423 = vsub.f32 %v4305, %v4419
      %v4424 = vsub.f32 %v4380, %v4420
      %v4425 = vsub.f32 %v4382, %v4421
      %v4426 = vsub.f32 %v4309, %v4418
      %v4427 = vsub.f32 %v4311, %v4419
      %v4428 = vsub.f32 %v4386, %v4420
      %v4429 = vsub.f32 %v4388, %v4421
      %v4430 = vmul.f32 %v4422, %v4422
      %v4431 = vmul.f32 %v4423, %v4423
      %v4432 = vmul.f32 %v4424, %v4424
      %v4433 = vmul.f32 %v4425, %v4425
      %v4434 = vmul.f32 %v4426, %v4426
      %v4435 = vmul.f32 %v4427, %v4427
      %v4436 = vmul.f32 %v4428, %v4428
      %v4437 = vmul.f32 %v4429, %v4429
      %v4438 = vadd.f32 %v4430, %v4434
      %v4439 = vrot.slane %v4438, 4
      %v4440 = vadd.f32 %v4438, %v4439
      %v4441 = vrot.slane %v4440, 2
      %v4442 = vadd.f32 %v4440, %v4441
      %v4443 = vrot.slane %v4442, 1
      %v4444 = vadd.f32 %v4442, %v4443
      %v4445 = vadd.f32 %v4431, %v4435
      %v4446 = vrot.slane %v4445, 4
      %v4447 = vadd.f32 %v4445, %v4446
      %v4448 = vrot.slane %v4447, 2
      %v4449 = vadd.f32 %v4447, %v4448
      %v4450 = vrot.slane %v4449, 1
      %v4451 = vadd.f32 %v4449, %v4450
      %v4452 = vadd.f32 %v4432, %v4436
      %v4453 = vrot.slane %v4452, 4
      %v4454 = vadd.f32 %v4452, %v4453
      %v4455 = vrot.slane %v4454, 2
      %v4456 = vadd.f32 %v4454, %v4455
      %v4457 = vrot.slane %v4456, 1
      %v4458 = vadd.f32 %v4456, %v4457
      %v4459 = vadd.f32 %v4433, %v4437
      %v4460 = vrot.slane %v4459, 4
      %v4461 = vadd.f32 %v4459, %v4460
      %v4462 = vrot.slane %v4461, 2
      %v4463 = vadd.f32 %v4461, %v4462
      %v4464 = vrot.slane %v4463, 1
      %v4465 = vadd.f32 %v4463, %v4464
      %v4466 = vmul.f32 %v4444, %v1984
      %v4467 = vmul.f32 %v4451, %v1984
      %v4468 = vmul.f32 %v4458, %v1984
      %v4469 = vmul.f32 %v4465, %v1984
      %v4470 = vadd.f32 %v4466, 1e-06
      %v4471 = vadd.f32 %v4467, 1e-06
      %v4472 = vadd.f32 %v4468, 1e-06
      %v4473 = vadd.f32 %v4469, 1e-06
      %v4474 = vrsqrt.pop %v4470
      %v4475 = vrsqrt.pop %v4471
      %v4476 = vrsqrt.pop %v4472
      %v4477 = vrsqrt.pop %v4473
      %v4478 = vmul.f32 %v4422, %v4474
      %v4479 = vmul.f32 %v4423, %v4475
      %v4480 = vmul.f32 %v4424, %v4476
      %v4481 = vmul.f32 %v4425, %v4477
      %v4482 = vmul.f32 %v4426, %v4474
      %v4483 = vmul.f32 %v4427, %v4475
      %v4484 = vmul.f32 %v4428, %v4476
      %v4485 = vmul.f32 %v4429, %v4477
      %4486 = vset.pattern.permute.xlu0 44
      %4487 = vperm.xlu0 %4486, %v270
      %v4488 = vpop.permute.xlu0 %4487
      %4490 = vset.pattern.permute.xlu0 44
      %4491 = vperm.xlu0 %4490, %v271
      %v4492 = vpop.permute.xlu0 %4491
      %v4494 = vmul.f32 %v4478, %v4488
      %v4495 = vmul.f32 %v4479, %v4488
      %v4496 = vmul.f32 %v4480, %v4488
      %v4497 = vmul.f32 %v4481, %v4488
      %v4498 = vmul.f32 %v4482, %v4492
      %v4499 = vmul.f32 %v4483, %v4492
      %v4500 = vmul.f32 %v4484, %v4492
      %v4501 = vmul.f32 %v4485, %v4492
      %4502 = vset.pattern.permute.xlu0 45
      %4503 = vperm.xlu0 %4502, %v270
      %v4504 = vpop.permute.xlu0 %4503
      %4506 = vset.pattern.permute.xlu0 45
      %4507 = vperm.xlu0 %4506, %v271
      %v4508 = vpop.permute.xlu0 %4507
      %v4510 = vadd.f32 %v4494, %v4504
      %v4511 = vadd.f32 %v4495, %v4504
      %v4512 = vadd.f32 %v4496, %v4504
      %v4513 = vadd.f32 %v4497, %v4504
      %v4514 = vadd.f32 %v4498, %v4508
      %v4515 = vadd.f32 %v4499, %v4508
      %v4516 = vadd.f32 %v4500, %v4508
      %v4517 = vadd.f32 %v4501, %v4508
      %v4518 = vmul.f32 %v4510, 0.5
      %v4519 = vmul.f32 %v4511, 0.5
      %v4520 = vmul.f32 %v4512, 0.5
      %v4521 = vmul.f32 %v4513, 0.5
      %v4522 = vmul.f32 %v4514, 0.5
      %v4523 = vmul.f32 %v4515, 0.5
      %v4524 = vmul.f32 %v4516, 0.5
      %v4525 = vmul.f32 %v4517, 0.5
      %v4526 = vmul.f32 %v4510, 0.70710677
      %v4527 = vmul.f32 %v4511, 0.70710677
      %v4528 = vmul.f32 %v4512, 0.70710677
      %v4529 = vmul.f32 %v4513, 0.70710677
      %v4530 = vmul.f32 %v4514, 0.70710677
      %v4531 = vmul.f32 %v4515, 0.70710677
      %v4532 = vmul.f32 %v4516, 0.70710677
      %v4533 = vmul.f32 %v4517, 0.70710677
      %v4534 = verf.f32.pop %v4526
      %v4535 = verf.f32.pop %v4527
      %v4536 = verf.f32.pop %v4528
      %v4537 = verf.f32.pop %v4529
      %v4538 = verf.f32.pop %v4530
      %v4539 = verf.f32.pop %v4531
      %v4540 = verf.f32.pop %v4532
      %v4541 = verf.f32.pop %v4533
      %v4542 = vadd.f32 %v4534, 1.0
      %v4543 = vadd.f32 %v4535, 1.0
      %v4544 = vadd.f32 %v4536, 1.0
      %v4545 = vadd.f32 %v4537, 1.0
      %v4546 = vadd.f32 %v4538, 1.0
      %v4547 = vadd.f32 %v4539, 1.0
      %v4548 = vadd.f32 %v4540, 1.0
      %v4549 = vadd.f32 %v4541, 1.0
      %v4550 = vmul.f32 %v4518, %v4542
      %v4551 = vmul.f32 %v4519, %v4543
      %v4552 = vmul.f32 %v4520, %v4544
      %v4553 = vmul.f32 %v4521, %v4545
      %v4554 = vmul.f32 %v4522, %v4546
      %v4555 = vmul.f32 %v4523, %v4547
      %v4556 = vmul.f32 %v4524, %v4548
      %v4557 = vmul.f32 %v4525, %v4549
      %4558 = vrot.lane.b32.xlu0 %v4550, 64
      %v4559 = vpop.permute.xlu0 %4558
      %4560 = vrot.lane.b32.xlu0 %v4554, 64
      %v4561 = vpop.permute.xlu0 %4560
      %4562 = vrot.lane.b32.xlu0 %v4551, 64
      %v4563 = vpop.permute.xlu0 %4562
      %4564 = vrot.lane.b32.xlu0 %v4555, 64
      %v4565 = vpop.permute.xlu0 %4564
      %4566 = vrot.lane.b32.xlu0 %v4552, 64
      %v4567 = vpop.permute.xlu0 %4566
      %4568 = vrot.lane.b32.xlu0 %v4556, 64
      %v4569 = vpop.permute.xlu0 %4568
      %4570 = vrot.lane.b32.xlu0 %v4553, 64
      %v4571 = vpop.permute.xlu0 %4570
      %4572 = vrot.lane.b32.xlu0 %v4557, 64
      %v4573 = vpop.permute.xlu0 %4572
      %v4574 = vsel %vm575, %v4567, %v4571
      %v4575 = vsel %vm575, %v4569, %v4573
      %v4576 = vsel %vm575, %v4563, %v4567
      %v4577 = vsel %vm575, %v4565, %v4569
      %v4578 = vsel %vm575, %v4559, %v4563
      %v4579 = vsel %vm575, %v4561, %v4565
      %v4580 = vsel %vm575, %v4571, %v4559
      %v4581 = vsel %vm575, %v4573, %v4561
      %v4582 = vmul.f32 %v4580, %v583
      %v4583 = vmul.f32 %v4578, %v587
      %v4584 = vmul.f32 %v4576, %v591
      %v4585 = vmul.f32 %v4574, %v595
      %v4586 = vmul.f32 %v4581, %v583
      %v4587 = vmul.f32 %v4579, %v587
      %v4588 = vmul.f32 %v4577, %v591
      %v4589 = vmul.f32 %v4575, %v595
      %4590 = vrot.lane.b32.xlu0 %v4582, 8
      %v4591 = vpop.permute.xlu0 %4590
      %4592 = vrot.lane.b32.xlu0 %v4586, 8
      %v4593 = vpop.permute.xlu0 %4592
      %4594 = vrot.lane.b32.xlu0 %v4583, 8
      %v4595 = vpop.permute.xlu0 %4594
      %4596 = vrot.lane.b32.xlu0 %v4587, 8
      %v4597 = vpop.permute.xlu0 %4596
      %4598 = vrot.lane.b32.xlu0 %v4584, 8
      %v4599 = vpop.permute.xlu0 %4598
      %4600 = vrot.lane.b32.xlu0 %v4588, 8
      %v4601 = vpop.permute.xlu0 %4600
      %4602 = vrot.lane.b32.xlu0 %v4585, 8
      %v4603 = vpop.permute.xlu0 %4602
      %4604 = vrot.lane.b32.xlu0 %v4589, 8
      %v4605 = vpop.permute.xlu0 %4604
      %v4606 = vsel %vm608, %v4599, %v4603
      %v4607 = vsel %vm608, %v4601, %v4605
      %v4608 = vsel %vm608, %v4595, %v4599
      %v4609 = vsel %vm608, %v4597, %v4601
      %v4610 = vsel %vm608, %v4591, %v4595
      %v4611 = vsel %vm608, %v4593, %v4597
      %v4612 = vsel %vm608, %v4603, %v4591
      %v4613 = vsel %vm608, %v4605, %v4593
      %v4614 = vmul.f32 %v4612, %v616
      %v4615 = vmul.f32 %v4610, %v620
      %v4616 = vmul.f32 %v4608, %v624
      %v4617 = vmul.f32 %v4606, %v628
      %v4618 = vmul.f32 %v4613, %v616
      %v4619 = vmul.f32 %v4611, %v620
      %v4620 = vmul.f32 %v4609, %v624
      %v4621 = vmul.f32 %v4607, %v628
      %4622 = vrot.lane.b32.xlu0 %v4614, 1
      %v4623 = vpop.permute.xlu0 %4622
      %4624 = vrot.lane.b32.xlu0 %v4618, 1
      %v4625 = vpop.permute.xlu0 %4624
      %4626 = vrot.lane.b32.xlu0 %v4615, 1
      %v4627 = vpop.permute.xlu0 %4626
      %4628 = vrot.lane.b32.xlu0 %v4619, 1
      %v4629 = vpop.permute.xlu0 %4628
      %4630 = vrot.lane.b32.xlu0 %v4616, 1
      %v4631 = vpop.permute.xlu0 %4630
      %4632 = vrot.lane.b32.xlu0 %v4620, 1
      %v4633 = vpop.permute.xlu0 %4632
      %4634 = vrot.lane.b32.xlu0 %v4617, 1
      %v4635 = vpop.permute.xlu0 %4634
      %4636 = vrot.lane.b32.xlu0 %v4621, 1
      %v4637 = vpop.permute.xlu0 %4636
      %v4638 = vsel %vm641, %v4631, %v4635
      %v4639 = vsel %vm641, %v4633, %v4637
      %v4640 = vsel %vm641, %v4627, %v4631
      %v4641 = vsel %vm641, %v4629, %v4633
      %v4642 = vsel %vm641, %v4623, %v4627
      %v4643 = vsel %vm641, %v4625, %v4629
      %v4644 = vsel %vm641, %v4635, %v4623
      %v4645 = vsel %vm641, %v4637, %v4625
      %v4646 = vmul.f32 %v4644, %v649
      %v4647 = vmul.f32 %v4642, %v653
      %v4648 = vmul.f32 %v4640, %v657
      %v4649 = vmul.f32 %v4638, %v661
      %v4650 = vmul.f32 %v4645, %v649
      %v4651 = vmul.f32 %v4643, %v653
      %v4652 = vmul.f32 %v4641, %v657
      %v4653 = vmul.f32 %v4639, %v661
      %4654 = vset.pattern.permute.xlu0 16
      %4655 = vperm.xlu0 %4654, %v270
      %v4656 = vpop.permute.xlu0 %4655
      %4658 = vset.pattern.permute.xlu0 16
      %4659 = vperm.xlu0 %4658, %v271
      %v4660 = vpop.permute.xlu0 %4659
      %v4662 = vmul.f32 %v4656, %v4646
      %v4663 = vmul.f32 %v4656, %v4647
      %v4664 = vmul.f32 %v4656, %v4648
      %v4665 = vmul.f32 %v4656, %v4649
      %v4666 = vmul.f32 %v4660, %v4650
      %v4667 = vmul.f32 %v4660, %v4651
      %v4668 = vmul.f32 %v4660, %v4652
      %v4669 = vmul.f32 %v4660, %v4653
      %v4670 = vadd.f32 %v4662, 0.0
      %v4671 = vadd.f32 %v4663, 0.0
      %v4672 = vadd.f32 %v4664, 0.0
      %v4673 = vadd.f32 %v4665, 0.0
      %v4674 = vadd.f32 %v4666, 0.0
      %v4675 = vadd.f32 %v4667, 0.0
      %v4676 = vadd.f32 %v4668, 0.0
      %v4677 = vadd.f32 %v4669, 0.0
      %4678 = vset.pattern.permute.xlu0 17
      %4679 = vperm.xlu0 %4678, %v270
      %v4680 = vpop.permute.xlu0 %4679
      %4682 = vset.pattern.permute.xlu0 17
      %4683 = vperm.xlu0 %4682, %v271
      %v4684 = vpop.permute.xlu0 %4683
      %v4686 = vmul.f32 %v4680, %v4614
      %v4687 = vmul.f32 %v4680, %v4615
      %v4688 = vmul.f32 %v4680, %v4616
      %v4689 = vmul.f32 %v4680, %v4617
      %v4690 = vmul.f32 %v4684, %v4618
      %v4691 = vmul.f32 %v4684, %v4619
      %v4692 = vmul.f32 %v4684, %v4620
      %v4693 = vmul.f32 %v4684, %v4621
      %v4694 = vadd.f32 %v4670, %v4686
      %v4695 = vadd.f32 %v4671, %v4687
      %v4696 = vadd.f32 %v4672, %v4688
      %v4697 = vadd.f32 %v4673, %v4689
      %v4698 = vadd.f32 %v4674, %v4690
      %v4699 = vadd.f32 %v4675, %v4691
      %v4700 = vadd.f32 %v4676, %v4692
      %v4701 = vadd.f32 %v4677, %v4693
      %4702 = vrot.lane.b32.xlu0 %v4614, 127
      %v4703 = vpop.permute.xlu0 %4702
      %4704 = vrot.lane.b32.xlu0 %v4618, 127
      %v4705 = vpop.permute.xlu0 %4704
      %4706 = vrot.lane.b32.xlu0 %v4615, 127
      %v4707 = vpop.permute.xlu0 %4706
      %4708 = vrot.lane.b32.xlu0 %v4619, 127
      %v4709 = vpop.permute.xlu0 %4708
      %4710 = vrot.lane.b32.xlu0 %v4616, 127
      %v4711 = vpop.permute.xlu0 %4710
      %4712 = vrot.lane.b32.xlu0 %v4620, 127
      %v4713 = vpop.permute.xlu0 %4712
      %4714 = vrot.lane.b32.xlu0 %v4617, 127
      %v4715 = vpop.permute.xlu0 %4714
      %4716 = vrot.lane.b32.xlu0 %v4621, 127
      %v4717 = vpop.permute.xlu0 %4716
      %v4718 = vsel %vm698, %v4711, %v4715
      %v4719 = vsel %vm698, %v4713, %v4717
      %v4720 = vsel %vm698, %v4707, %v4711
      %v4721 = vsel %vm698, %v4709, %v4713
      %v4722 = vsel %vm698, %v4703, %v4707
      %v4723 = vsel %vm698, %v4705, %v4709
      %v4724 = vsel %vm698, %v4715, %v4703
      %v4725 = vsel %vm698, %v4717, %v4705
      %v4726 = vmul.f32 %v4722, %v706
      %v4727 = vmul.f32 %v4720, %v710
      %v4728 = vmul.f32 %v4718, %v714
      %v4729 = vmul.f32 %v4724, %v718
      %v4730 = vmul.f32 %v4723, %v706
      %v4731 = vmul.f32 %v4721, %v710
      %v4732 = vmul.f32 %v4719, %v714
      %v4733 = vmul.f32 %v4725, %v718
      %4734 = vset.pattern.permute.xlu0 18
      %4735 = vperm.xlu0 %4734, %v270
      %v4736 = vpop.permute.xlu0 %4735
      %4738 = vset.pattern.permute.xlu0 18
      %4739 = vperm.xlu0 %4738, %v271
      %v4740 = vpop.permute.xlu0 %4739
      %v4742 = vmul.f32 %v4736, %v4726
      %v4743 = vmul.f32 %v4736, %v4727
      %v4744 = vmul.f32 %v4736, %v4728
      %v4745 = vmul.f32 %v4736, %v4729
      %v4746 = vmul.f32 %v4740, %v4730
      %v4747 = vmul.f32 %v4740, %v4731
      %v4748 = vmul.f32 %v4740, %v4732
      %v4749 = vmul.f32 %v4740, %v4733
      %v4750 = vadd.f32 %v4694, %v4742
      %v4751 = vadd.f32 %v4695, %v4743
      %v4752 = vadd.f32 %v4696, %v4744
      %v4753 = vadd.f32 %v4697, %v4745
      %v4754 = vadd.f32 %v4698, %v4746
      %v4755 = vadd.f32 %v4699, %v4747
      %v4756 = vadd.f32 %v4700, %v4748
      %v4757 = vadd.f32 %v4701, %v4749
      %4758 = vrot.lane.b32.xlu0 %v4582, 1
      %v4759 = vpop.permute.xlu0 %4758
      %4760 = vrot.lane.b32.xlu0 %v4586, 1
      %v4761 = vpop.permute.xlu0 %4760
      %4762 = vrot.lane.b32.xlu0 %v4583, 1
      %v4763 = vpop.permute.xlu0 %4762
      %4764 = vrot.lane.b32.xlu0 %v4587, 1
      %v4765 = vpop.permute.xlu0 %4764
      %4766 = vrot.lane.b32.xlu0 %v4584, 1
      %v4767 = vpop.permute.xlu0 %4766
      %4768 = vrot.lane.b32.xlu0 %v4588, 1
      %v4769 = vpop.permute.xlu0 %4768
      %4770 = vrot.lane.b32.xlu0 %v4585, 1
      %v4771 = vpop.permute.xlu0 %4770
      %4772 = vrot.lane.b32.xlu0 %v4589, 1
      %v4773 = vpop.permute.xlu0 %4772
      %v4774 = vsel %vm641, %v4767, %v4771
      %v4775 = vsel %vm641, %v4769, %v4773
      %v4776 = vsel %vm641, %v4763, %v4767
      %v4777 = vsel %vm641, %v4765, %v4769
      %v4778 = vsel %vm641, %v4759, %v4763
      %v4779 = vsel %vm641, %v4761, %v4765
      %v4780 = vsel %vm641, %v4771, %v4759
      %v4781 = vsel %vm641, %v4773, %v4761
      %v4782 = vmul.f32 %v4780, %v649
      %v4783 = vmul.f32 %v4778, %v653
      %v4784 = vmul.f32 %v4776, %v657
      %v4785 = vmul.f32 %v4774, %v661
      %v4786 = vmul.f32 %v4781, %v649
      %v4787 = vmul.f32 %v4779, %v653
      %v4788 = vmul.f32 %v4777, %v657
      %v4789 = vmul.f32 %v4775, %v661
      %4790 = vset.pattern.permute.xlu0 19
      %4791 = vperm.xlu0 %4790, %v270
      %v4792 = vpop.permute.xlu0 %4791
      %4794 = vset.pattern.permute.xlu0 19
      %4795 = vperm.xlu0 %4794, %v271
      %v4796 = vpop.permute.xlu0 %4795
      %v4798 = vmul.f32 %v4792, %v4782
      %v4799 = vmul.f32 %v4792, %v4783
      %v4800 = vmul.f32 %v4792, %v4784
      %v4801 = vmul.f32 %v4792, %v4785
      %v4802 = vmul.f32 %v4796, %v4786
      %v4803 = vmul.f32 %v4796, %v4787
      %v4804 = vmul.f32 %v4796, %v4788
      %v4805 = vmul.f32 %v4796, %v4789
      %v4806 = vadd.f32 %v4750, %v4798
      %v4807 = vadd.f32 %v4751, %v4799
      %v4808 = vadd.f32 %v4752, %v4800
      %v4809 = vadd.f32 %v4753, %v4801
      %v4810 = vadd.f32 %v4754, %v4802
      %v4811 = vadd.f32 %v4755, %v4803
      %v4812 = vadd.f32 %v4756, %v4804
      %v4813 = vadd.f32 %v4757, %v4805
      %4814 = vset.pattern.permute.xlu0 20
      %4815 = vperm.xlu0 %4814, %v270
      %v4816 = vpop.permute.xlu0 %4815
      %4818 = vset.pattern.permute.xlu0 20
      %4819 = vperm.xlu0 %4818, %v271
      %v4820 = vpop.permute.xlu0 %4819
      %v4822 = vmul.f32 %v4816, %v4582
      %v4823 = vmul.f32 %v4816, %v4583
      %v4824 = vmul.f32 %v4816, %v4584
      %v4825 = vmul.f32 %v4816, %v4585
      %v4826 = vmul.f32 %v4820, %v4586
      %v4827 = vmul.f32 %v4820, %v4587
      %v4828 = vmul.f32 %v4820, %v4588
      %v4829 = vmul.f32 %v4820, %v4589
      %v4830 = vadd.f32 %v4806, %v4822
      %v4831 = vadd.f32 %v4807, %v4823
      %v4832 = vadd.f32 %v4808, %v4824
      %v4833 = vadd.f32 %v4809, %v4825
      %v4834 = vadd.f32 %v4810, %v4826
      %v4835 = vadd.f32 %v4811, %v4827
      %v4836 = vadd.f32 %v4812, %v4828
      %v4837 = vadd.f32 %v4813, %v4829
      %4838 = vrot.lane.b32.xlu0 %v4582, 127
      %v4839 = vpop.permute.xlu0 %4838
      %4840 = vrot.lane.b32.xlu0 %v4586, 127
      %v4841 = vpop.permute.xlu0 %4840
      %4842 = vrot.lane.b32.xlu0 %v4583, 127
      %v4843 = vpop.permute.xlu0 %4842
      %4844 = vrot.lane.b32.xlu0 %v4587, 127
      %v4845 = vpop.permute.xlu0 %4844
      %4846 = vrot.lane.b32.xlu0 %v4584, 127
      %v4847 = vpop.permute.xlu0 %4846
      %4848 = vrot.lane.b32.xlu0 %v4588, 127
      %v4849 = vpop.permute.xlu0 %4848
      %4850 = vrot.lane.b32.xlu0 %v4585, 127
      %v4851 = vpop.permute.xlu0 %4850
      %4852 = vrot.lane.b32.xlu0 %v4589, 127
      %v4853 = vpop.permute.xlu0 %4852
      %v4854 = vsel %vm698, %v4847, %v4851
      %v4855 = vsel %vm698, %v4849, %v4853
      %v4856 = vsel %vm698, %v4843, %v4847
      %v4857 = vsel %vm698, %v4845, %v4849
      %v4858 = vsel %vm698, %v4839, %v4843
      %v4859 = vsel %vm698, %v4841, %v4845
      %v4860 = vsel %vm698, %v4851, %v4839
      %v4861 = vsel %vm698, %v4853, %v4841
      %v4862 = vmul.f32 %v4858, %v706
      %v4863 = vmul.f32 %v4856, %v710
      %v4864 = vmul.f32 %v4854, %v714
      %v4865 = vmul.f32 %v4860, %v718
      %v4866 = vmul.f32 %v4859, %v706
      %v4867 = vmul.f32 %v4857, %v710
      %v4868 = vmul.f32 %v4855, %v714
      %v4869 = vmul.f32 %v4861, %v718
      %4870 = vset.pattern.permute.xlu0 21
      %4871 = vperm.xlu0 %4870, %v270
      %v4872 = vpop.permute.xlu0 %4871
      %4874 = vset.pattern.permute.xlu0 21
      %4875 = vperm.xlu0 %4874, %v271
      %v4876 = vpop.permute.xlu0 %4875
      %v4878 = vmul.f32 %v4872, %v4862
      %v4879 = vmul.f32 %v4872, %v4863
      %v4880 = vmul.f32 %v4872, %v4864
      %v4881 = vmul.f32 %v4872, %v4865
      %v4882 = vmul.f32 %v4876, %v4866
      %v4883 = vmul.f32 %v4876, %v4867
      %v4884 = vmul.f32 %v4876, %v4868
      %v4885 = vmul.f32 %v4876, %v4869
      %v4886 = vadd.f32 %v4830, %v4878
      %v4887 = vadd.f32 %v4831, %v4879
      %v4888 = vadd.f32 %v4832, %v4880
      %v4889 = vadd.f32 %v4833, %v4881
      %v4890 = vadd.f32 %v4834, %v4882
      %v4891 = vadd.f32 %v4835, %v4883
      %v4892 = vadd.f32 %v4836, %v4884
      %v4893 = vadd.f32 %v4837, %v4885
      %4894 = vrot.lane.b32.xlu0 %v4582, 120
      %v4895 = vpop.permute.xlu0 %4894
      %4896 = vrot.lane.b32.xlu0 %v4586, 120
      %v4897 = vpop.permute.xlu0 %4896
      %4898 = vrot.lane.b32.xlu0 %v4583, 120
      %v4899 = vpop.permute.xlu0 %4898
      %4900 = vrot.lane.b32.xlu0 %v4587, 120
      %v4901 = vpop.permute.xlu0 %4900
      %4902 = vrot.lane.b32.xlu0 %v4584, 120
      %v4903 = vpop.permute.xlu0 %4902
      %4904 = vrot.lane.b32.xlu0 %v4588, 120
      %v4905 = vpop.permute.xlu0 %4904
      %4906 = vrot.lane.b32.xlu0 %v4585, 120
      %v4907 = vpop.permute.xlu0 %4906
      %4908 = vrot.lane.b32.xlu0 %v4589, 120
      %v4909 = vpop.permute.xlu0 %4908
      %v4910 = vsel %vm811, %v4903, %v4907
      %v4911 = vsel %vm811, %v4905, %v4909
      %v4912 = vsel %vm811, %v4899, %v4903
      %v4913 = vsel %vm811, %v4901, %v4905
      %v4914 = vsel %vm811, %v4895, %v4899
      %v4915 = vsel %vm811, %v4897, %v4901
      %v4916 = vsel %vm811, %v4907, %v4895
      %v4917 = vsel %vm811, %v4909, %v4897
      %v4918 = vmul.f32 %v4914, %v819
      %v4919 = vmul.f32 %v4912, %v823
      %v4920 = vmul.f32 %v4910, %v827
      %v4921 = vmul.f32 %v4916, %v831
      %v4922 = vmul.f32 %v4915, %v819
      %v4923 = vmul.f32 %v4913, %v823
      %v4924 = vmul.f32 %v4911, %v827
      %v4925 = vmul.f32 %v4917, %v831
      %4926 = vrot.lane.b32.xlu0 %v4918, 1
      %v4927 = vpop.permute.xlu0 %4926
      %4928 = vrot.lane.b32.xlu0 %v4922, 1
      %v4929 = vpop.permute.xlu0 %4928
      %4930 = vrot.lane.b32.xlu0 %v4919, 1
      %v4931 = vpop.permute.xlu0 %4930
      %4932 = vrot.lane.b32.xlu0 %v4923, 1
      %v4933 = vpop.permute.xlu0 %4932
      %4934 = vrot.lane.b32.xlu0 %v4920, 1
      %v4935 = vpop.permute.xlu0 %4934
      %4936 = vrot.lane.b32.xlu0 %v4924, 1
      %v4937 = vpop.permute.xlu0 %4936
      %4938 = vrot.lane.b32.xlu0 %v4921, 1
      %v4939 = vpop.permute.xlu0 %4938
      %4940 = vrot.lane.b32.xlu0 %v4925, 1
      %v4941 = vpop.permute.xlu0 %4940
      %v4942 = vsel %vm641, %v4935, %v4939
      %v4943 = vsel %vm641, %v4937, %v4941
      %v4944 = vsel %vm641, %v4931, %v4935
      %v4945 = vsel %vm641, %v4933, %v4937
      %v4946 = vsel %vm641, %v4927, %v4931
      %v4947 = vsel %vm641, %v4929, %v4933
      %v4948 = vsel %vm641, %v4939, %v4927
      %v4949 = vsel %vm641, %v4941, %v4929
      %v4950 = vmul.f32 %v4948, %v649
      %v4951 = vmul.f32 %v4946, %v653
      %v4952 = vmul.f32 %v4944, %v657
      %v4953 = vmul.f32 %v4942, %v661
      %v4954 = vmul.f32 %v4949, %v649
      %v4955 = vmul.f32 %v4947, %v653
      %v4956 = vmul.f32 %v4945, %v657
      %v4957 = vmul.f32 %v4943, %v661
      %4958 = vset.pattern.permute.xlu0 22
      %4959 = vperm.xlu0 %4958, %v270
      %v4960 = vpop.permute.xlu0 %4959
      %4962 = vset.pattern.permute.xlu0 22
      %4963 = vperm.xlu0 %4962, %v271
      %v4964 = vpop.permute.xlu0 %4963
      %v4966 = vmul.f32 %v4960, %v4950
      %v4967 = vmul.f32 %v4960, %v4951
      %v4968 = vmul.f32 %v4960, %v4952
      %v4969 = vmul.f32 %v4960, %v4953
      %v4970 = vmul.f32 %v4964, %v4954
      %v4971 = vmul.f32 %v4964, %v4955
      %v4972 = vmul.f32 %v4964, %v4956
      %v4973 = vmul.f32 %v4964, %v4957
      %v4974 = vadd.f32 %v4886, %v4966
      %v4975 = vadd.f32 %v4887, %v4967
      %v4976 = vadd.f32 %v4888, %v4968
      %v4977 = vadd.f32 %v4889, %v4969
      %v4978 = vadd.f32 %v4890, %v4970
      %v4979 = vadd.f32 %v4891, %v4971
      %v4980 = vadd.f32 %v4892, %v4972
      %v4981 = vadd.f32 %v4893, %v4973
      %4982 = vset.pattern.permute.xlu0 23
      %4983 = vperm.xlu0 %4982, %v270
      %v4984 = vpop.permute.xlu0 %4983
      %4986 = vset.pattern.permute.xlu0 23
      %4987 = vperm.xlu0 %4986, %v271
      %v4988 = vpop.permute.xlu0 %4987
      %v4990 = vmul.f32 %v4984, %v4918
      %v4991 = vmul.f32 %v4984, %v4919
      %v4992 = vmul.f32 %v4984, %v4920
      %v4993 = vmul.f32 %v4984, %v4921
      %v4994 = vmul.f32 %v4988, %v4922
      %v4995 = vmul.f32 %v4988, %v4923
      %v4996 = vmul.f32 %v4988, %v4924
      %v4997 = vmul.f32 %v4988, %v4925
      %v4998 = vadd.f32 %v4974, %v4990
      %v4999 = vadd.f32 %v4975, %v4991
      %v5000 = vadd.f32 %v4976, %v4992
      %v5001 = vadd.f32 %v4977, %v4993
      %v5002 = vadd.f32 %v4978, %v4994
      %v5003 = vadd.f32 %v4979, %v4995
      %v5004 = vadd.f32 %v4980, %v4996
      %v5005 = vadd.f32 %v4981, %v4997
      %5006 = vrot.lane.b32.xlu0 %v4918, 127
      %v5007 = vpop.permute.xlu0 %5006
      %5008 = vrot.lane.b32.xlu0 %v4922, 127
      %v5009 = vpop.permute.xlu0 %5008
      %5010 = vrot.lane.b32.xlu0 %v4919, 127
      %v5011 = vpop.permute.xlu0 %5010
      %5012 = vrot.lane.b32.xlu0 %v4923, 127
      %v5013 = vpop.permute.xlu0 %5012
      %5014 = vrot.lane.b32.xlu0 %v4920, 127
      %v5015 = vpop.permute.xlu0 %5014
      %5016 = vrot.lane.b32.xlu0 %v4924, 127
      %v5017 = vpop.permute.xlu0 %5016
      %5018 = vrot.lane.b32.xlu0 %v4921, 127
      %v5019 = vpop.permute.xlu0 %5018
      %5020 = vrot.lane.b32.xlu0 %v4925, 127
      %v5021 = vpop.permute.xlu0 %5020
      %v5022 = vsel %vm698, %v5015, %v5019
      %v5023 = vsel %vm698, %v5017, %v5021
      %v5024 = vsel %vm698, %v5011, %v5015
      %v5025 = vsel %vm698, %v5013, %v5017
      %v5026 = vsel %vm698, %v5007, %v5011
      %v5027 = vsel %vm698, %v5009, %v5013
      %v5028 = vsel %vm698, %v5019, %v5007
      %v5029 = vsel %vm698, %v5021, %v5009
      %v5030 = vmul.f32 %v5026, %v706
      %v5031 = vmul.f32 %v5024, %v710
      %v5032 = vmul.f32 %v5022, %v714
      %v5033 = vmul.f32 %v5028, %v718
      %v5034 = vmul.f32 %v5027, %v706
      %v5035 = vmul.f32 %v5025, %v710
      %v5036 = vmul.f32 %v5023, %v714
      %v5037 = vmul.f32 %v5029, %v718
      %5038 = vset.pattern.permute.xlu0 24
      %5039 = vperm.xlu0 %5038, %v270
      %v5040 = vpop.permute.xlu0 %5039
      %5042 = vset.pattern.permute.xlu0 24
      %5043 = vperm.xlu0 %5042, %v271
      %v5044 = vpop.permute.xlu0 %5043
      %v5046 = vmul.f32 %v5040, %v5030
      %v5047 = vmul.f32 %v5040, %v5031
      %v5048 = vmul.f32 %v5040, %v5032
      %v5049 = vmul.f32 %v5040, %v5033
      %v5050 = vmul.f32 %v5044, %v5034
      %v5051 = vmul.f32 %v5044, %v5035
      %v5052 = vmul.f32 %v5044, %v5036
      %v5053 = vmul.f32 %v5044, %v5037
      %v5054 = vadd.f32 %v4998, %v5046
      %v5055 = vadd.f32 %v4999, %v5047
      %v5056 = vadd.f32 %v5000, %v5048
      %v5057 = vadd.f32 %v5001, %v5049
      %v5058 = vadd.f32 %v5002, %v5050
      %v5059 = vadd.f32 %v5003, %v5051
      %v5060 = vadd.f32 %v5004, %v5052
      %v5061 = vadd.f32 %v5005, %v5053
      %5062 = vrot.lane.b32.xlu0 %v4550, 8
      %v5063 = vpop.permute.xlu0 %5062
      %5064 = vrot.lane.b32.xlu0 %v4554, 8
      %v5065 = vpop.permute.xlu0 %5064
      %5066 = vrot.lane.b32.xlu0 %v4551, 8
      %v5067 = vpop.permute.xlu0 %5066
      %5068 = vrot.lane.b32.xlu0 %v4555, 8
      %v5069 = vpop.permute.xlu0 %5068
      %5070 = vrot.lane.b32.xlu0 %v4552, 8
      %v5071 = vpop.permute.xlu0 %5070
      %5072 = vrot.lane.b32.xlu0 %v4556, 8
      %v5073 = vpop.permute.xlu0 %5072
      %5074 = vrot.lane.b32.xlu0 %v4553, 8
      %v5075 = vpop.permute.xlu0 %5074
      %5076 = vrot.lane.b32.xlu0 %v4557, 8
      %v5077 = vpop.permute.xlu0 %5076
      %v5078 = vsel %vm608, %v5071, %v5075
      %v5079 = vsel %vm608, %v5073, %v5077
      %v5080 = vsel %vm608, %v5067, %v5071
      %v5081 = vsel %vm608, %v5069, %v5073
      %v5082 = vsel %vm608, %v5063, %v5067
      %v5083 = vsel %vm608, %v5065, %v5069
      %v5084 = vsel %vm608, %v5075, %v5063
      %v5085 = vsel %vm608, %v5077, %v5065
      %v5086 = vmul.f32 %v5084, %v616
      %v5087 = vmul.f32 %v5082, %v620
      %v5088 = vmul.f32 %v5080, %v624
      %v5089 = vmul.f32 %v5078, %v628
      %v5090 = vmul.f32 %v5085, %v616
      %v5091 = vmul.f32 %v5083, %v620
      %v5092 = vmul.f32 %v5081, %v624
      %v5093 = vmul.f32 %v5079, %v628
      %5094 = vrot.lane.b32.xlu0 %v5086, 1
      %v5095 = vpop.permute.xlu0 %5094
      %5096 = vrot.lane.b32.xlu0 %v5090, 1
      %v5097 = vpop.permute.xlu0 %5096
      %5098 = vrot.lane.b32.xlu0 %v5087, 1
      %v5099 = vpop.permute.xlu0 %5098
      %5100 = vrot.lane.b32.xlu0 %v5091, 1
      %v5101 = vpop.permute.xlu0 %5100
      %5102 = vrot.lane.b32.xlu0 %v5088, 1
      %v5103 = vpop.permute.xlu0 %5102
      %5104 = vrot.lane.b32.xlu0 %v5092, 1
      %v5105 = vpop.permute.xlu0 %5104
      %5106 = vrot.lane.b32.xlu0 %v5089, 1
      %v5107 = vpop.permute.xlu0 %5106
      %5108 = vrot.lane.b32.xlu0 %v5093, 1
      %v5109 = vpop.permute.xlu0 %5108
      %v5110 = vsel %vm641, %v5103, %v5107
      %v5111 = vsel %vm641, %v5105, %v5109
      %v5112 = vsel %vm641, %v5099, %v5103
      %v5113 = vsel %vm641, %v5101, %v5105
      %v5114 = vsel %vm641, %v5095, %v5099
      %v5115 = vsel %vm641, %v5097, %v5101
      %v5116 = vsel %vm641, %v5107, %v5095
      %v5117 = vsel %vm641, %v5109, %v5097
      %v5118 = vmul.f32 %v5116, %v649
      %v5119 = vmul.f32 %v5114, %v653
      %v5120 = vmul.f32 %v5112, %v657
      %v5121 = vmul.f32 %v5110, %v661
      %v5122 = vmul.f32 %v5117, %v649
      %v5123 = vmul.f32 %v5115, %v653
      %v5124 = vmul.f32 %v5113, %v657
      %v5125 = vmul.f32 %v5111, %v661
      %5126 = vset.pattern.permute.xlu0 25
      %5127 = vperm.xlu0 %5126, %v270
      %v5128 = vpop.permute.xlu0 %5127
      %5130 = vset.pattern.permute.xlu0 25
      %5131 = vperm.xlu0 %5130, %v271
      %v5132 = vpop.permute.xlu0 %5131
      %v5134 = vmul.f32 %v5128, %v5118
      %v5135 = vmul.f32 %v5128, %v5119
      %v5136 = vmul.f32 %v5128, %v5120
      %v5137 = vmul.f32 %v5128, %v5121
      %v5138 = vmul.f32 %v5132, %v5122
      %v5139 = vmul.f32 %v5132, %v5123
      %v5140 = vmul.f32 %v5132, %v5124
      %v5141 = vmul.f32 %v5132, %v5125
      %v5142 = vadd.f32 %v5054, %v5134
      %v5143 = vadd.f32 %v5055, %v5135
      %v5144 = vadd.f32 %v5056, %v5136
      %v5145 = vadd.f32 %v5057, %v5137
      %v5146 = vadd.f32 %v5058, %v5138
      %v5147 = vadd.f32 %v5059, %v5139
      %v5148 = vadd.f32 %v5060, %v5140
      %v5149 = vadd.f32 %v5061, %v5141
      %5150 = vset.pattern.permute.xlu0 26
      %5151 = vperm.xlu0 %5150, %v270
      %v5152 = vpop.permute.xlu0 %5151
      %5154 = vset.pattern.permute.xlu0 26
      %5155 = vperm.xlu0 %5154, %v271
      %v5156 = vpop.permute.xlu0 %5155
      %v5158 = vmul.f32 %v5152, %v5086
      %v5159 = vmul.f32 %v5152, %v5087
      %v5160 = vmul.f32 %v5152, %v5088
      %v5161 = vmul.f32 %v5152, %v5089
      %v5162 = vmul.f32 %v5156, %v5090
      %v5163 = vmul.f32 %v5156, %v5091
      %v5164 = vmul.f32 %v5156, %v5092
      %v5165 = vmul.f32 %v5156, %v5093
      %v5166 = vadd.f32 %v5142, %v5158
      %v5167 = vadd.f32 %v5143, %v5159
      %v5168 = vadd.f32 %v5144, %v5160
      %v5169 = vadd.f32 %v5145, %v5161
      %v5170 = vadd.f32 %v5146, %v5162
      %v5171 = vadd.f32 %v5147, %v5163
      %v5172 = vadd.f32 %v5148, %v5164
      %v5173 = vadd.f32 %v5149, %v5165
      %5174 = vrot.lane.b32.xlu0 %v5086, 127
      %v5175 = vpop.permute.xlu0 %5174
      %5176 = vrot.lane.b32.xlu0 %v5090, 127
      %v5177 = vpop.permute.xlu0 %5176
      %5178 = vrot.lane.b32.xlu0 %v5087, 127
      %v5179 = vpop.permute.xlu0 %5178
      %5180 = vrot.lane.b32.xlu0 %v5091, 127
      %v5181 = vpop.permute.xlu0 %5180
      %5182 = vrot.lane.b32.xlu0 %v5088, 127
      %v5183 = vpop.permute.xlu0 %5182
      %5184 = vrot.lane.b32.xlu0 %v5092, 127
      %v5185 = vpop.permute.xlu0 %5184
      %5186 = vrot.lane.b32.xlu0 %v5089, 127
      %v5187 = vpop.permute.xlu0 %5186
      %5188 = vrot.lane.b32.xlu0 %v5093, 127
      %v5189 = vpop.permute.xlu0 %5188
      %v5190 = vsel %vm698, %v5183, %v5187
      %v5191 = vsel %vm698, %v5185, %v5189
      %v5192 = vsel %vm698, %v5179, %v5183
      %v5193 = vsel %vm698, %v5181, %v5185
      %v5194 = vsel %vm698, %v5175, %v5179
      %v5195 = vsel %vm698, %v5177, %v5181
      %v5196 = vsel %vm698, %v5187, %v5175
      %v5197 = vsel %vm698, %v5189, %v5177
      %v5198 = vmul.f32 %v5194, %v706
      %v5199 = vmul.f32 %v5192, %v710
      %v5200 = vmul.f32 %v5190, %v714
      %v5201 = vmul.f32 %v5196, %v718
      %v5202 = vmul.f32 %v5195, %v706
      %v5203 = vmul.f32 %v5193, %v710
      %v5204 = vmul.f32 %v5191, %v714
      %v5205 = vmul.f32 %v5197, %v718
      %5206 = vset.pattern.permute.xlu0 27
      %5207 = vperm.xlu0 %5206, %v270
      %v5208 = vpop.permute.xlu0 %5207
      %5210 = vset.pattern.permute.xlu0 27
      %5211 = vperm.xlu0 %5210, %v271
      %v5212 = vpop.permute.xlu0 %5211
      %v5214 = vmul.f32 %v5208, %v5198
      %v5215 = vmul.f32 %v5208, %v5199
      %v5216 = vmul.f32 %v5208, %v5200
      %v5217 = vmul.f32 %v5208, %v5201
      %v5218 = vmul.f32 %v5212, %v5202
      %v5219 = vmul.f32 %v5212, %v5203
      %v5220 = vmul.f32 %v5212, %v5204
      %v5221 = vmul.f32 %v5212, %v5205
      %v5222 = vadd.f32 %v5166, %v5214
      %v5223 = vadd.f32 %v5167, %v5215
      %v5224 = vadd.f32 %v5168, %v5216
      %v5225 = vadd.f32 %v5169, %v5217
      %v5226 = vadd.f32 %v5170, %v5218
      %v5227 = vadd.f32 %v5171, %v5219
      %v5228 = vadd.f32 %v5172, %v5220
      %v5229 = vadd.f32 %v5173, %v5221
      %5230 = vrot.lane.b32.xlu0 %v4550, 1
      %v5231 = vpop.permute.xlu0 %5230
      %5232 = vrot.lane.b32.xlu0 %v4554, 1
      %v5233 = vpop.permute.xlu0 %5232
      %5234 = vrot.lane.b32.xlu0 %v4551, 1
      %v5235 = vpop.permute.xlu0 %5234
      %5236 = vrot.lane.b32.xlu0 %v4555, 1
      %v5237 = vpop.permute.xlu0 %5236
      %5238 = vrot.lane.b32.xlu0 %v4552, 1
      %v5239 = vpop.permute.xlu0 %5238
      %5240 = vrot.lane.b32.xlu0 %v4556, 1
      %v5241 = vpop.permute.xlu0 %5240
      %5242 = vrot.lane.b32.xlu0 %v4553, 1
      %v5243 = vpop.permute.xlu0 %5242
      %5244 = vrot.lane.b32.xlu0 %v4557, 1
      %v5245 = vpop.permute.xlu0 %5244
      %v5246 = vsel %vm641, %v5239, %v5243
      %v5247 = vsel %vm641, %v5241, %v5245
      %v5248 = vsel %vm641, %v5235, %v5239
      %v5249 = vsel %vm641, %v5237, %v5241
      %v5250 = vsel %vm641, %v5231, %v5235
      %v5251 = vsel %vm641, %v5233, %v5237
      %v5252 = vsel %vm641, %v5243, %v5231
      %v5253 = vsel %vm641, %v5245, %v5233
      %v5254 = vmul.f32 %v5252, %v649
      %v5255 = vmul.f32 %v5250, %v653
      %v5256 = vmul.f32 %v5248, %v657
      %v5257 = vmul.f32 %v5246, %v661
      %v5258 = vmul.f32 %v5253, %v649
      %v5259 = vmul.f32 %v5251, %v653
      %v5260 = vmul.f32 %v5249, %v657
      %v5261 = vmul.f32 %v5247, %v661
      %5262 = vset.pattern.permute.xlu0 28
      %5263 = vperm.xlu0 %5262, %v270
      %v5264 = vpop.permute.xlu0 %5263
      %5266 = vset.pattern.permute.xlu0 28
      %5267 = vperm.xlu0 %5266, %v271
      %v5268 = vpop.permute.xlu0 %5267
      %v5270 = vmul.f32 %v5264, %v5254
      %v5271 = vmul.f32 %v5264, %v5255
      %v5272 = vmul.f32 %v5264, %v5256
      %v5273 = vmul.f32 %v5264, %v5257
      %v5274 = vmul.f32 %v5268, %v5258
      %v5275 = vmul.f32 %v5268, %v5259
      %v5276 = vmul.f32 %v5268, %v5260
      %v5277 = vmul.f32 %v5268, %v5261
      %v5278 = vadd.f32 %v5222, %v5270
      %v5279 = vadd.f32 %v5223, %v5271
      %v5280 = vadd.f32 %v5224, %v5272
      %v5281 = vadd.f32 %v5225, %v5273
      %v5282 = vadd.f32 %v5226, %v5274
      %v5283 = vadd.f32 %v5227, %v5275
      %v5284 = vadd.f32 %v5228, %v5276
      %v5285 = vadd.f32 %v5229, %v5277
      %5286 = vset.pattern.permute.xlu0 29
      %5287 = vperm.xlu0 %5286, %v270
      %v5288 = vpop.permute.xlu0 %5287
      %5290 = vset.pattern.permute.xlu0 29
      %5291 = vperm.xlu0 %5290, %v271
      %v5292 = vpop.permute.xlu0 %5291
      %v5294 = vmul.f32 %v5288, %v4550
      %v5295 = vmul.f32 %v5288, %v4551
      %v5296 = vmul.f32 %v5288, %v4552
      %v5297 = vmul.f32 %v5288, %v4553
      %v5298 = vmul.f32 %v5292, %v4554
      %v5299 = vmul.f32 %v5292, %v4555
      %v5300 = vmul.f32 %v5292, %v4556
      %v5301 = vmul.f32 %v5292, %v4557
      %v5302 = vadd.f32 %v5278, %v5294
      %v5303 = vadd.f32 %v5279, %v5295
      %v5304 = vadd.f32 %v5280, %v5296
      %v5305 = vadd.f32 %v5281, %v5297
      %v5306 = vadd.f32 %v5282, %v5298
      %v5307 = vadd.f32 %v5283, %v5299
      %v5308 = vadd.f32 %v5284, %v5300
      %v5309 = vadd.f32 %v5285, %v5301
      %5310 = vrot.lane.b32.xlu0 %v4550, 127
      %v5311 = vpop.permute.xlu0 %5310
      %5312 = vrot.lane.b32.xlu0 %v4554, 127
      %v5313 = vpop.permute.xlu0 %5312
      %5314 = vrot.lane.b32.xlu0 %v4551, 127
      %v5315 = vpop.permute.xlu0 %5314
      %5316 = vrot.lane.b32.xlu0 %v4555, 127
      %v5317 = vpop.permute.xlu0 %5316
      %5318 = vrot.lane.b32.xlu0 %v4552, 127
      %v5319 = vpop.permute.xlu0 %5318
      %5320 = vrot.lane.b32.xlu0 %v4556, 127
      %v5321 = vpop.permute.xlu0 %5320
      %5322 = vrot.lane.b32.xlu0 %v4553, 127
      %v5323 = vpop.permute.xlu0 %5322
      %5324 = vrot.lane.b32.xlu0 %v4557, 127
      %v5325 = vpop.permute.xlu0 %5324
      %v5326 = vsel %vm698, %v5319, %v5323
      %v5327 = vsel %vm698, %v5321, %v5325
      %v5328 = vsel %vm698, %v5315, %v5319
      %v5329 = vsel %vm698, %v5317, %v5321
      %v5330 = vsel %vm698, %v5311, %v5315
      %v5331 = vsel %vm698, %v5313, %v5317
      %v5332 = vsel %vm698, %v5323, %v5311
      %v5333 = vsel %vm698, %v5325, %v5313
      %v5334 = vmul.f32 %v5330, %v706
      %v5335 = vmul.f32 %v5328, %v710
      %v5336 = vmul.f32 %v5326, %v714
      %v5337 = vmul.f32 %v5332, %v718
      %v5338 = vmul.f32 %v5331, %v706
      %v5339 = vmul.f32 %v5329, %v710
      %v5340 = vmul.f32 %v5327, %v714
      %v5341 = vmul.f32 %v5333, %v718
      %5342 = vset.pattern.permute.xlu0 30
      %5343 = vperm.xlu0 %5342, %v270
      %v5344 = vpop.permute.xlu0 %5343
      %5346 = vset.pattern.permute.xlu0 30
      %5347 = vperm.xlu0 %5346, %v271
      %v5348 = vpop.permute.xlu0 %5347
      %v5350 = vmul.f32 %v5344, %v5334
      %v5351 = vmul.f32 %v5344, %v5335
      %v5352 = vmul.f32 %v5344, %v5336
      %v5353 = vmul.f32 %v5344, %v5337
      %v5354 = vmul.f32 %v5348, %v5338
      %v5355 = vmul.f32 %v5348, %v5339
      %v5356 = vmul.f32 %v5348, %v5340
      %v5357 = vmul.f32 %v5348, %v5341
      %v5358 = vadd.f32 %v5302, %v5350
      %v5359 = vadd.f32 %v5303, %v5351
      %v5360 = vadd.f32 %v5304, %v5352
      %v5361 = vadd.f32 %v5305, %v5353
      %v5362 = vadd.f32 %v5306, %v5354
      %v5363 = vadd.f32 %v5307, %v5355
      %v5364 = vadd.f32 %v5308, %v5356
      %v5365 = vadd.f32 %v5309, %v5357
      %5366 = vrot.lane.b32.xlu0 %v4550, 120
      %v5367 = vpop.permute.xlu0 %5366
      %5368 = vrot.lane.b32.xlu0 %v4554, 120
      %v5369 = vpop.permute.xlu0 %5368
      %5370 = vrot.lane.b32.xlu0 %v4551, 120
      %v5371 = vpop.permute.xlu0 %5370
      %5372 = vrot.lane.b32.xlu0 %v4555, 120
      %v5373 = vpop.permute.xlu0 %5372
      %5374 = vrot.lane.b32.xlu0 %v4552, 120
      %v5375 = vpop.permute.xlu0 %5374
      %5376 = vrot.lane.b32.xlu0 %v4556, 120
      %v5377 = vpop.permute.xlu0 %5376
      %5378 = vrot.lane.b32.xlu0 %v4553, 120
      %v5379 = vpop.permute.xlu0 %5378
      %5380 = vrot.lane.b32.xlu0 %v4557, 120
      %v5381 = vpop.permute.xlu0 %5380
      %v5382 = vsel %vm811, %v5375, %v5379
      %v5383 = vsel %vm811, %v5377, %v5381
      %v5384 = vsel %vm811, %v5371, %v5375
      %v5385 = vsel %vm811, %v5373, %v5377
      %v5386 = vsel %vm811, %v5367, %v5371
      %v5387 = vsel %vm811, %v5369, %v5373
      %v5388 = vsel %vm811, %v5379, %v5367
      %v5389 = vsel %vm811, %v5381, %v5369
      %v5390 = vmul.f32 %v5386, %v819
      %v5391 = vmul.f32 %v5384, %v823
      %v5392 = vmul.f32 %v5382, %v827
      %v5393 = vmul.f32 %v5388, %v831
      %v5394 = vmul.f32 %v5387, %v819
      %v5395 = vmul.f32 %v5385, %v823
      %v5396 = vmul.f32 %v5383, %v827
      %v5397 = vmul.f32 %v5389, %v831
      %5398 = vrot.lane.b32.xlu0 %v5390, 1
      %v5399 = vpop.permute.xlu0 %5398
      %5400 = vrot.lane.b32.xlu0 %v5394, 1
      %v5401 = vpop.permute.xlu0 %5400
      %5402 = vrot.lane.b32.xlu0 %v5391, 1
      %v5403 = vpop.permute.xlu0 %5402
      %5404 = vrot.lane.b32.xlu0 %v5395, 1
      %v5405 = vpop.permute.xlu0 %5404
      %5406 = vrot.lane.b32.xlu0 %v5392, 1
      %v5407 = vpop.permute.xlu0 %5406
      %5408 = vrot.lane.b32.xlu0 %v5396, 1
      %v5409 = vpop.permute.xlu0 %5408
      %5410 = vrot.lane.b32.xlu0 %v5393, 1
      %v5411 = vpop.permute.xlu0 %5410
      %5412 = vrot.lane.b32.xlu0 %v5397, 1
      %v5413 = vpop.permute.xlu0 %5412
      %v5414 = vsel %vm641, %v5407, %v5411
      %v5415 = vsel %vm641, %v5409, %v5413
      %v5416 = vsel %vm641, %v5403, %v5407
      %v5417 = vsel %vm641, %v5405, %v5409
      %v5418 = vsel %vm641, %v5399, %v5403
      %v5419 = vsel %vm641, %v5401, %v5405
      %v5420 = vsel %vm641, %v5411, %v5399
      %v5421 = vsel %vm641, %v5413, %v5401
      %v5422 = vmul.f32 %v5420, %v649
      %v5423 = vmul.f32 %v5418, %v653
      %v5424 = vmul.f32 %v5416, %v657
      %v5425 = vmul.f32 %v5414, %v661
      %v5426 = vmul.f32 %v5421, %v649
      %v5427 = vmul.f32 %v5419, %v653
      %v5428 = vmul.f32 %v5417, %v657
      %v5429 = vmul.f32 %v5415, %v661
      %5430 = vset.pattern.permute.xlu0 31
      %5431 = vperm.xlu0 %5430, %v270
      %v5432 = vpop.permute.xlu0 %5431
      %5434 = vset.pattern.permute.xlu0 31
      %5435 = vperm.xlu0 %5434, %v271
      %v5436 = vpop.permute.xlu0 %5435
      %v5438 = vmul.f32 %v5432, %v5422
      %v5439 = vmul.f32 %v5432, %v5423
      %v5440 = vmul.f32 %v5432, %v5424
      %v5441 = vmul.f32 %v5432, %v5425
      %v5442 = vmul.f32 %v5436, %v5426
      %v5443 = vmul.f32 %v5436, %v5427
      %v5444 = vmul.f32 %v5436, %v5428
      %v5445 = vmul.f32 %v5436, %v5429
      %v5446 = vadd.f32 %v5358, %v5438
      %v5447 = vadd.f32 %v5359, %v5439
      %v5448 = vadd.f32 %v5360, %v5440
      %v5449 = vadd.f32 %v5361, %v5441
      %v5450 = vadd.f32 %v5362, %v5442
      %v5451 = vadd.f32 %v5363, %v5443
      %v5452 = vadd.f32 %v5364, %v5444
      %v5453 = vadd.f32 %v5365, %v5445
      %5454 = vset.pattern.permute.xlu0 32
      %5455 = vperm.xlu0 %5454, %v270
      %v5456 = vpop.permute.xlu0 %5455
      %5458 = vset.pattern.permute.xlu0 32
      %5459 = vperm.xlu0 %5458, %v271
      %v5460 = vpop.permute.xlu0 %5459
      %v5462 = vmul.f32 %v5456, %v5390
      %v5463 = vmul.f32 %v5456, %v5391
      %v5464 = vmul.f32 %v5456, %v5392
      %v5465 = vmul.f32 %v5456, %v5393
      %v5466 = vmul.f32 %v5460, %v5394
      %v5467 = vmul.f32 %v5460, %v5395
      %v5468 = vmul.f32 %v5460, %v5396
      %v5469 = vmul.f32 %v5460, %v5397
      %v5470 = vadd.f32 %v5446, %v5462
      %v5471 = vadd.f32 %v5447, %v5463
      %v5472 = vadd.f32 %v5448, %v5464
      %v5473 = vadd.f32 %v5449, %v5465
      %v5474 = vadd.f32 %v5450, %v5466
      %v5475 = vadd.f32 %v5451, %v5467
      %v5476 = vadd.f32 %v5452, %v5468
      %v5477 = vadd.f32 %v5453, %v5469
      %5478 = vrot.lane.b32.xlu0 %v5390, 127
      %v5479 = vpop.permute.xlu0 %5478
      %5480 = vrot.lane.b32.xlu0 %v5394, 127
      %v5481 = vpop.permute.xlu0 %5480
      %5482 = vrot.lane.b32.xlu0 %v5391, 127
      %v5483 = vpop.permute.xlu0 %5482
      %5484 = vrot.lane.b32.xlu0 %v5395, 127
      %v5485 = vpop.permute.xlu0 %5484
      %5486 = vrot.lane.b32.xlu0 %v5392, 127
      %v5487 = vpop.permute.xlu0 %5486
      %5488 = vrot.lane.b32.xlu0 %v5396, 127
      %v5489 = vpop.permute.xlu0 %5488
      %5490 = vrot.lane.b32.xlu0 %v5393, 127
      %v5491 = vpop.permute.xlu0 %5490
      %5492 = vrot.lane.b32.xlu0 %v5397, 127
      %v5493 = vpop.permute.xlu0 %5492
      %v5494 = vsel %vm698, %v5487, %v5491
      %v5495 = vsel %vm698, %v5489, %v5493
      %v5496 = vsel %vm698, %v5483, %v5487
      %v5497 = vsel %vm698, %v5485, %v5489
      %v5498 = vsel %vm698, %v5479, %v5483
      %v5499 = vsel %vm698, %v5481, %v5485
      %v5500 = vsel %vm698, %v5491, %v5479
      %v5501 = vsel %vm698, %v5493, %v5481
      %v5502 = vmul.f32 %v5498, %v706
      %v5503 = vmul.f32 %v5496, %v710
      %v5504 = vmul.f32 %v5494, %v714
      %v5505 = vmul.f32 %v5500, %v718
      %v5506 = vmul.f32 %v5499, %v706
      %v5507 = vmul.f32 %v5497, %v710
      %v5508 = vmul.f32 %v5495, %v714
      %v5509 = vmul.f32 %v5501, %v718
      %5510 = vset.pattern.permute.xlu0 33
      %5511 = vperm.xlu0 %5510, %v270
      %v5512 = vpop.permute.xlu0 %5511
      %5514 = vset.pattern.permute.xlu0 33
      %5515 = vperm.xlu0 %5514, %v271
      %v5516 = vpop.permute.xlu0 %5515
      %v5518 = vmul.f32 %v5512, %v5502
      %v5519 = vmul.f32 %v5512, %v5503
      %v5520 = vmul.f32 %v5512, %v5504
      %v5521 = vmul.f32 %v5512, %v5505
      %v5522 = vmul.f32 %v5516, %v5506
      %v5523 = vmul.f32 %v5516, %v5507
      %v5524 = vmul.f32 %v5516, %v5508
      %v5525 = vmul.f32 %v5516, %v5509
      %v5526 = vadd.f32 %v5470, %v5518
      %v5527 = vadd.f32 %v5471, %v5519
      %v5528 = vadd.f32 %v5472, %v5520
      %v5529 = vadd.f32 %v5473, %v5521
      %v5530 = vadd.f32 %v5474, %v5522
      %v5531 = vadd.f32 %v5475, %v5523
      %v5532 = vadd.f32 %v5476, %v5524
      %v5533 = vadd.f32 %v5477, %v5525
      %v5534 = vmul.f32 %v4578, %v1143
      %v5535 = vmul.f32 %v4576, %v1147
      %v5536 = vmul.f32 %v4574, %v1151
      %v5537 = vmul.f32 %v4580, %v1155
      %v5538 = vmul.f32 %v4579, %v1143
      %v5539 = vmul.f32 %v4577, %v1147
      %v5540 = vmul.f32 %v4575, %v1151
      %v5541 = vmul.f32 %v4581, %v1155
      %5542 = vrot.lane.b32.xlu0 %v5534, 8
      %v5543 = vpop.permute.xlu0 %5542
      %5544 = vrot.lane.b32.xlu0 %v5538, 8
      %v5545 = vpop.permute.xlu0 %5544
      %5546 = vrot.lane.b32.xlu0 %v5535, 8
      %v5547 = vpop.permute.xlu0 %5546
      %5548 = vrot.lane.b32.xlu0 %v5539, 8
      %v5549 = vpop.permute.xlu0 %5548
      %5550 = vrot.lane.b32.xlu0 %v5536, 8
      %v5551 = vpop.permute.xlu0 %5550
      %5552 = vrot.lane.b32.xlu0 %v5540, 8
      %v5553 = vpop.permute.xlu0 %5552
      %5554 = vrot.lane.b32.xlu0 %v5537, 8
      %v5555 = vpop.permute.xlu0 %5554
      %5556 = vrot.lane.b32.xlu0 %v5541, 8
      %v5557 = vpop.permute.xlu0 %5556
      %v5558 = vsel %vm608, %v5551, %v5555
      %v5559 = vsel %vm608, %v5553, %v5557
      %v5560 = vsel %vm608, %v5547, %v5551
      %v5561 = vsel %vm608, %v5549, %v5553
      %v5562 = vsel %vm608, %v5543, %v5547
      %v5563 = vsel %vm608, %v5545, %v5549
      %v5564 = vsel %vm608, %v5555, %v5543
      %v5565 = vsel %vm608, %v5557, %v5545
      %v5566 = vmul.f32 %v5564, %v616
      %v5567 = vmul.f32 %v5562, %v620
      %v5568 = vmul.f32 %v5560, %v624
      %v5569 = vmul.f32 %v5558, %v628
      %v5570 = vmul.f32 %v5565, %v616
      %v5571 = vmul.f32 %v5563, %v620
      %v5572 = vmul.f32 %v5561, %v624
      %v5573 = vmul.f32 %v5559, %v628
      %5574 = vrot.lane.b32.xlu0 %v5566, 1
      %v5575 = vpop.permute.xlu0 %5574
      %5576 = vrot.lane.b32.xlu0 %v5570, 1
      %v5577 = vpop.permute.xlu0 %5576
      %5578 = vrot.lane.b32.xlu0 %v5567, 1
      %v5579 = vpop.permute.xlu0 %5578
      %5580 = vrot.lane.b32.xlu0 %v5571, 1
      %v5581 = vpop.permute.xlu0 %5580
      %5582 = vrot.lane.b32.xlu0 %v5568, 1
      %v5583 = vpop.permute.xlu0 %5582
      %5584 = vrot.lane.b32.xlu0 %v5572, 1
      %v5585 = vpop.permute.xlu0 %5584
      %5586 = vrot.lane.b32.xlu0 %v5569, 1
      %v5587 = vpop.permute.xlu0 %5586
      %5588 = vrot.lane.b32.xlu0 %v5573, 1
      %v5589 = vpop.permute.xlu0 %5588
      %v5590 = vsel %vm641, %v5583, %v5587
      %v5591 = vsel %vm641, %v5585, %v5589
      %v5592 = vsel %vm641, %v5579, %v5583
      %v5593 = vsel %vm641, %v5581, %v5585
      %v5594 = vsel %vm641, %v5575, %v5579
      %v5595 = vsel %vm641, %v5577, %v5581
      %v5596 = vsel %vm641, %v5587, %v5575
      %v5597 = vsel %vm641, %v5589, %v5577
      %v5598 = vmul.f32 %v5596, %v649
      %v5599 = vmul.f32 %v5594, %v653
      %v5600 = vmul.f32 %v5592, %v657
      %v5601 = vmul.f32 %v5590, %v661
      %v5602 = vmul.f32 %v5597, %v649
      %v5603 = vmul.f32 %v5595, %v653
      %v5604 = vmul.f32 %v5593, %v657
      %v5605 = vmul.f32 %v5591, %v661
      %5606 = vset.pattern.permute.xlu0 34
      %5607 = vperm.xlu0 %5606, %v270
      %v5608 = vpop.permute.xlu0 %5607
      %5610 = vset.pattern.permute.xlu0 34
      %5611 = vperm.xlu0 %5610, %v271
      %v5612 = vpop.permute.xlu0 %5611
      %v5614 = vmul.f32 %v5608, %v5598
      %v5615 = vmul.f32 %v5608, %v5599
      %v5616 = vmul.f32 %v5608, %v5600
      %v5617 = vmul.f32 %v5608, %v5601
      %v5618 = vmul.f32 %v5612, %v5602
      %v5619 = vmul.f32 %v5612, %v5603
      %v5620 = vmul.f32 %v5612, %v5604
      %v5621 = vmul.f32 %v5612, %v5605
      %v5622 = vadd.f32 %v5526, %v5614
      %v5623 = vadd.f32 %v5527, %v5615
      %v5624 = vadd.f32 %v5528, %v5616
      %v5625 = vadd.f32 %v5529, %v5617
      %v5626 = vadd.f32 %v5530, %v5618
      %v5627 = vadd.f32 %v5531, %v5619
      %v5628 = vadd.f32 %v5532, %v5620
      %v5629 = vadd.f32 %v5533, %v5621
      %5630 = vset.pattern.permute.xlu0 35
      %5631 = vperm.xlu0 %5630, %v270
      %v5632 = vpop.permute.xlu0 %5631
      %5634 = vset.pattern.permute.xlu0 35
      %5635 = vperm.xlu0 %5634, %v271
      %v5636 = vpop.permute.xlu0 %5635
      %v5638 = vmul.f32 %v5632, %v5566
      %v5639 = vmul.f32 %v5632, %v5567
      %v5640 = vmul.f32 %v5632, %v5568
      %v5641 = vmul.f32 %v5632, %v5569
      %v5642 = vmul.f32 %v5636, %v5570
      %v5643 = vmul.f32 %v5636, %v5571
      %v5644 = vmul.f32 %v5636, %v5572
      %v5645 = vmul.f32 %v5636, %v5573
      %v5646 = vadd.f32 %v5622, %v5638
      %v5647 = vadd.f32 %v5623, %v5639
      %v5648 = vadd.f32 %v5624, %v5640
      %v5649 = vadd.f32 %v5625, %v5641
      %v5650 = vadd.f32 %v5626, %v5642
      %v5651 = vadd.f32 %v5627, %v5643
      %v5652 = vadd.f32 %v5628, %v5644
      %v5653 = vadd.f32 %v5629, %v5645
      %5654 = vrot.lane.b32.xlu0 %v5566, 127
      %v5655 = vpop.permute.xlu0 %5654
      %5656 = vrot.lane.b32.xlu0 %v5570, 127
      %v5657 = vpop.permute.xlu0 %5656
      %5658 = vrot.lane.b32.xlu0 %v5567, 127
      %v5659 = vpop.permute.xlu0 %5658
      %5660 = vrot.lane.b32.xlu0 %v5571, 127
      %v5661 = vpop.permute.xlu0 %5660
      %5662 = vrot.lane.b32.xlu0 %v5568, 127
      %v5663 = vpop.permute.xlu0 %5662
      %5664 = vrot.lane.b32.xlu0 %v5572, 127
      %v5665 = vpop.permute.xlu0 %5664
      %5666 = vrot.lane.b32.xlu0 %v5569, 127
      %v5667 = vpop.permute.xlu0 %5666
      %5668 = vrot.lane.b32.xlu0 %v5573, 127
      %v5669 = vpop.permute.xlu0 %5668
      %v5670 = vsel %vm698, %v5663, %v5667
      %v5671 = vsel %vm698, %v5665, %v5669
      %v5672 = vsel %vm698, %v5659, %v5663
      %v5673 = vsel %vm698, %v5661, %v5665
      %v5674 = vsel %vm698, %v5655, %v5659
      %v5675 = vsel %vm698, %v5657, %v5661
      %v5676 = vsel %vm698, %v5667, %v5655
      %v5677 = vsel %vm698, %v5669, %v5657
      %v5678 = vmul.f32 %v5674, %v706
      %v5679 = vmul.f32 %v5672, %v710
      %v5680 = vmul.f32 %v5670, %v714
      %v5681 = vmul.f32 %v5676, %v718
      %v5682 = vmul.f32 %v5675, %v706
      %v5683 = vmul.f32 %v5673, %v710
      %v5684 = vmul.f32 %v5671, %v714
      %v5685 = vmul.f32 %v5677, %v718
      %5686 = vset.pattern.permute.xlu0 36
      %5687 = vperm.xlu0 %5686, %v270
      %v5688 = vpop.permute.xlu0 %5687
      %5690 = vset.pattern.permute.xlu0 36
      %5691 = vperm.xlu0 %5690, %v271
      %v5692 = vpop.permute.xlu0 %5691
      %v5694 = vmul.f32 %v5688, %v5678
      %v5695 = vmul.f32 %v5688, %v5679
      %v5696 = vmul.f32 %v5688, %v5680
      %v5697 = vmul.f32 %v5688, %v5681
      %v5698 = vmul.f32 %v5692, %v5682
      %v5699 = vmul.f32 %v5692, %v5683
      %v5700 = vmul.f32 %v5692, %v5684
      %v5701 = vmul.f32 %v5692, %v5685
      %v5702 = vadd.f32 %v5646, %v5694
      %v5703 = vadd.f32 %v5647, %v5695
      %v5704 = vadd.f32 %v5648, %v5696
      %v5705 = vadd.f32 %v5649, %v5697
      %v5706 = vadd.f32 %v5650, %v5698
      %v5707 = vadd.f32 %v5651, %v5699
      %v5708 = vadd.f32 %v5652, %v5700
      %v5709 = vadd.f32 %v5653, %v5701
      %5710 = vrot.lane.b32.xlu0 %v5534, 1
      %v5711 = vpop.permute.xlu0 %5710
      %5712 = vrot.lane.b32.xlu0 %v5538, 1
      %v5713 = vpop.permute.xlu0 %5712
      %5714 = vrot.lane.b32.xlu0 %v5535, 1
      %v5715 = vpop.permute.xlu0 %5714
      %5716 = vrot.lane.b32.xlu0 %v5539, 1
      %v5717 = vpop.permute.xlu0 %5716
      %5718 = vrot.lane.b32.xlu0 %v5536, 1
      %v5719 = vpop.permute.xlu0 %5718
      %5720 = vrot.lane.b32.xlu0 %v5540, 1
      %v5721 = vpop.permute.xlu0 %5720
      %5722 = vrot.lane.b32.xlu0 %v5537, 1
      %v5723 = vpop.permute.xlu0 %5722
      %5724 = vrot.lane.b32.xlu0 %v5541, 1
      %v5725 = vpop.permute.xlu0 %5724
      %v5726 = vsel %vm641, %v5719, %v5723
      %v5727 = vsel %vm641, %v5721, %v5725
      %v5728 = vsel %vm641, %v5715, %v5719
      %v5729 = vsel %vm641, %v5717, %v5721
      %v5730 = vsel %vm641, %v5711, %v5715
      %v5731 = vsel %vm641, %v5713, %v5717
      %v5732 = vsel %vm641, %v5723, %v5711
      %v5733 = vsel %vm641, %v5725, %v5713
      %v5734 = vmul.f32 %v5732, %v649
      %v5735 = vmul.f32 %v5730, %v653
      %v5736 = vmul.f32 %v5728, %v657
      %v5737 = vmul.f32 %v5726, %v661
      %v5738 = vmul.f32 %v5733, %v649
      %v5739 = vmul.f32 %v5731, %v653
      %v5740 = vmul.f32 %v5729, %v657
      %v5741 = vmul.f32 %v5727, %v661
      %5742 = vset.pattern.permute.xlu0 37
      %5743 = vperm.xlu0 %5742, %v270
      %v5744 = vpop.permute.xlu0 %5743
      %5746 = vset.pattern.permute.xlu0 37
      %5747 = vperm.xlu0 %5746, %v271
      %v5748 = vpop.permute.xlu0 %5747
      %v5750 = vmul.f32 %v5744, %v5734
      %v5751 = vmul.f32 %v5744, %v5735
      %v5752 = vmul.f32 %v5744, %v5736
      %v5753 = vmul.f32 %v5744, %v5737
      %v5754 = vmul.f32 %v5748, %v5738
      %v5755 = vmul.f32 %v5748, %v5739
      %v5756 = vmul.f32 %v5748, %v5740
      %v5757 = vmul.f32 %v5748, %v5741
      %v5758 = vadd.f32 %v5702, %v5750
      %v5759 = vadd.f32 %v5703, %v5751
      %v5760 = vadd.f32 %v5704, %v5752
      %v5761 = vadd.f32 %v5705, %v5753
      %v5762 = vadd.f32 %v5706, %v5754
      %v5763 = vadd.f32 %v5707, %v5755
      %v5764 = vadd.f32 %v5708, %v5756
      %v5765 = vadd.f32 %v5709, %v5757
      %5766 = vset.pattern.permute.xlu0 38
      %5767 = vperm.xlu0 %5766, %v270
      %v5768 = vpop.permute.xlu0 %5767
      %5770 = vset.pattern.permute.xlu0 38
      %5771 = vperm.xlu0 %5770, %v271
      %v5772 = vpop.permute.xlu0 %5771
      %v5774 = vmul.f32 %v5768, %v5534
      %v5775 = vmul.f32 %v5768, %v5535
      %v5776 = vmul.f32 %v5768, %v5536
      %v5777 = vmul.f32 %v5768, %v5537
      %v5778 = vmul.f32 %v5772, %v5538
      %v5779 = vmul.f32 %v5772, %v5539
      %v5780 = vmul.f32 %v5772, %v5540
      %v5781 = vmul.f32 %v5772, %v5541
      %v5782 = vadd.f32 %v5758, %v5774
      %v5783 = vadd.f32 %v5759, %v5775
      %v5784 = vadd.f32 %v5760, %v5776
      %v5785 = vadd.f32 %v5761, %v5777
      %v5786 = vadd.f32 %v5762, %v5778
      %v5787 = vadd.f32 %v5763, %v5779
      %v5788 = vadd.f32 %v5764, %v5780
      %v5789 = vadd.f32 %v5765, %v5781
      %5790 = vrot.lane.b32.xlu0 %v5534, 127
      %v5791 = vpop.permute.xlu0 %5790
      %5792 = vrot.lane.b32.xlu0 %v5538, 127
      %v5793 = vpop.permute.xlu0 %5792
      %5794 = vrot.lane.b32.xlu0 %v5535, 127
      %v5795 = vpop.permute.xlu0 %5794
      %5796 = vrot.lane.b32.xlu0 %v5539, 127
      %v5797 = vpop.permute.xlu0 %5796
      %5798 = vrot.lane.b32.xlu0 %v5536, 127
      %v5799 = vpop.permute.xlu0 %5798
      %5800 = vrot.lane.b32.xlu0 %v5540, 127
      %v5801 = vpop.permute.xlu0 %5800
      %5802 = vrot.lane.b32.xlu0 %v5537, 127
      %v5803 = vpop.permute.xlu0 %5802
      %5804 = vrot.lane.b32.xlu0 %v5541, 127
      %v5805 = vpop.permute.xlu0 %5804
      %v5806 = vsel %vm698, %v5799, %v5803
      %v5807 = vsel %vm698, %v5801, %v5805
      %v5808 = vsel %vm698, %v5795, %v5799
      %v5809 = vsel %vm698, %v5797, %v5801
      %v5810 = vsel %vm698, %v5791, %v5795
      %v5811 = vsel %vm698, %v5793, %v5797
      %v5812 = vsel %vm698, %v5803, %v5791
      %v5813 = vsel %vm698, %v5805, %v5793
      %v5814 = vmul.f32 %v5810, %v706
      %v5815 = vmul.f32 %v5808, %v710
      %v5816 = vmul.f32 %v5806, %v714
      %v5817 = vmul.f32 %v5812, %v718
      %v5818 = vmul.f32 %v5811, %v706
      %v5819 = vmul.f32 %v5809, %v710
      %v5820 = vmul.f32 %v5807, %v714
      %v5821 = vmul.f32 %v5813, %v718
      %5822 = vset.pattern.permute.xlu0 39
      %5823 = vperm.xlu0 %5822, %v270
      %v5824 = vpop.permute.xlu0 %5823
      %5826 = vset.pattern.permute.xlu0 39
      %5827 = vperm.xlu0 %5826, %v271
      %v5828 = vpop.permute.xlu0 %5827
      %v5830 = vmul.f32 %v5824, %v5814
      %v5831 = vmul.f32 %v5824, %v5815
      %v5832 = vmul.f32 %v5824, %v5816
      %v5833 = vmul.f32 %v5824, %v5817
      %v5834 = vmul.f32 %v5828, %v5818
      %v5835 = vmul.f32 %v5828, %v5819
      %v5836 = vmul.f32 %v5828, %v5820
      %v5837 = vmul.f32 %v5828, %v5821
      %v5838 = vadd.f32 %v5782, %v5830
      %v5839 = vadd.f32 %v5783, %v5831
      %v5840 = vadd.f32 %v5784, %v5832
      %v5841 = vadd.f32 %v5785, %v5833
      %v5842 = vadd.f32 %v5786, %v5834
      %v5843 = vadd.f32 %v5787, %v5835
      %v5844 = vadd.f32 %v5788, %v5836
      %v5845 = vadd.f32 %v5789, %v5837
      %5846 = vrot.lane.b32.xlu0 %v5534, 120
      %v5847 = vpop.permute.xlu0 %5846
      %5848 = vrot.lane.b32.xlu0 %v5538, 120
      %v5849 = vpop.permute.xlu0 %5848
      %5850 = vrot.lane.b32.xlu0 %v5535, 120
      %v5851 = vpop.permute.xlu0 %5850
      %5852 = vrot.lane.b32.xlu0 %v5539, 120
      %v5853 = vpop.permute.xlu0 %5852
      %5854 = vrot.lane.b32.xlu0 %v5536, 120
      %v5855 = vpop.permute.xlu0 %5854
      %5856 = vrot.lane.b32.xlu0 %v5540, 120
      %v5857 = vpop.permute.xlu0 %5856
      %5858 = vrot.lane.b32.xlu0 %v5537, 120
      %v5859 = vpop.permute.xlu0 %5858
      %5860 = vrot.lane.b32.xlu0 %v5541, 120
      %v5861 = vpop.permute.xlu0 %5860
      %v5862 = vsel %vm811, %v5855, %v5859
      %v5863 = vsel %vm811, %v5857, %v5861
      %v5864 = vsel %vm811, %v5851, %v5855
      %v5865 = vsel %vm811, %v5853, %v5857
      %v5866 = vsel %vm811, %v5847, %v5851
      %v5867 = vsel %vm811, %v5849, %v5853
      %v5868 = vsel %vm811, %v5859, %v5847
      %v5869 = vsel %vm811, %v5861, %v5849
      %v5870 = vmul.f32 %v5866, %v819
      %v5871 = vmul.f32 %v5864, %v823
      %v5872 = vmul.f32 %v5862, %v827
      %v5873 = vmul.f32 %v5868, %v831
      %v5874 = vmul.f32 %v5867, %v819
      %v5875 = vmul.f32 %v5865, %v823
      %v5876 = vmul.f32 %v5863, %v827
      %v5877 = vmul.f32 %v5869, %v831
      %5878 = vrot.lane.b32.xlu0 %v5870, 1
      %v5879 = vpop.permute.xlu0 %5878
      %5880 = vrot.lane.b32.xlu0 %v5874, 1
      %v5881 = vpop.permute.xlu0 %5880
      %5882 = vrot.lane.b32.xlu0 %v5871, 1
      %v5883 = vpop.permute.xlu0 %5882
      %5884 = vrot.lane.b32.xlu0 %v5875, 1
      %v5885 = vpop.permute.xlu0 %5884
      %5886 = vrot.lane.b32.xlu0 %v5872, 1
      %v5887 = vpop.permute.xlu0 %5886
      %5888 = vrot.lane.b32.xlu0 %v5876, 1
      %v5889 = vpop.permute.xlu0 %5888
      %5890 = vrot.lane.b32.xlu0 %v5873, 1
      %v5891 = vpop.permute.xlu0 %5890
      %5892 = vrot.lane.b32.xlu0 %v5877, 1
      %v5893 = vpop.permute.xlu0 %5892
      %v5894 = vsel %vm641, %v5887, %v5891
      %v5895 = vsel %vm641, %v5889, %v5893
      %v5896 = vsel %vm641, %v5883, %v5887
      %v5897 = vsel %vm641, %v5885, %v5889
      %v5898 = vsel %vm641, %v5879, %v5883
      %v5899 = vsel %vm641, %v5881, %v5885
      %v5900 = vsel %vm641, %v5891, %v5879
      %v5901 = vsel %vm641, %v5893, %v5881
      %v5902 = vmul.f32 %v5900, %v649
      %v5903 = vmul.f32 %v5898, %v653
      %v5904 = vmul.f32 %v5896, %v657
      %v5905 = vmul.f32 %v5894, %v661
      %v5906 = vmul.f32 %v5901, %v649
      %v5907 = vmul.f32 %v5899, %v653
      %v5908 = vmul.f32 %v5897, %v657
      %v5909 = vmul.f32 %v5895, %v661
      %5910 = vset.pattern.permute.xlu0 40
      %5911 = vperm.xlu0 %5910, %v270
      %v5912 = vpop.permute.xlu0 %5911
      %5914 = vset.pattern.permute.xlu0 40
      %5915 = vperm.xlu0 %5914, %v271
      %v5916 = vpop.permute.xlu0 %5915
      %v5918 = vmul.f32 %v5912, %v5902
      %v5919 = vmul.f32 %v5912, %v5903
      %v5920 = vmul.f32 %v5912, %v5904
      %v5921 = vmul.f32 %v5912, %v5905
      %v5922 = vmul.f32 %v5916, %v5906
      %v5923 = vmul.f32 %v5916, %v5907
      %v5924 = vmul.f32 %v5916, %v5908
      %v5925 = vmul.f32 %v5916, %v5909
      %v5926 = vadd.f32 %v5838, %v5918
      %v5927 = vadd.f32 %v5839, %v5919
      %v5928 = vadd.f32 %v5840, %v5920
      %v5929 = vadd.f32 %v5841, %v5921
      %v5930 = vadd.f32 %v5842, %v5922
      %v5931 = vadd.f32 %v5843, %v5923
      %v5932 = vadd.f32 %v5844, %v5924
      %v5933 = vadd.f32 %v5845, %v5925
      %5934 = vset.pattern.permute.xlu0 41
      %5935 = vperm.xlu0 %5934, %v270
      %v5936 = vpop.permute.xlu0 %5935
      %5938 = vset.pattern.permute.xlu0 41
      %5939 = vperm.xlu0 %5938, %v271
      %v5940 = vpop.permute.xlu0 %5939
      %v5942 = vmul.f32 %v5936, %v5870
      %v5943 = vmul.f32 %v5936, %v5871
      %v5944 = vmul.f32 %v5936, %v5872
      %v5945 = vmul.f32 %v5936, %v5873
      %v5946 = vmul.f32 %v5940, %v5874
      %v5947 = vmul.f32 %v5940, %v5875
      %v5948 = vmul.f32 %v5940, %v5876
      %v5949 = vmul.f32 %v5940, %v5877
      %v5950 = vadd.f32 %v5926, %v5942
      %v5951 = vadd.f32 %v5927, %v5943
      %v5952 = vadd.f32 %v5928, %v5944
      %v5953 = vadd.f32 %v5929, %v5945
      %v5954 = vadd.f32 %v5930, %v5946
      %v5955 = vadd.f32 %v5931, %v5947
      %v5956 = vadd.f32 %v5932, %v5948
      %v5957 = vadd.f32 %v5933, %v5949
      %5958 = vrot.lane.b32.xlu0 %v5870, 127
      %v5959 = vpop.permute.xlu0 %5958
      %5960 = vrot.lane.b32.xlu0 %v5874, 127
      %v5961 = vpop.permute.xlu0 %5960
      %5962 = vrot.lane.b32.xlu0 %v5871, 127
      %v5963 = vpop.permute.xlu0 %5962
      %5964 = vrot.lane.b32.xlu0 %v5875, 127
      %v5965 = vpop.permute.xlu0 %5964
      %5966 = vrot.lane.b32.xlu0 %v5872, 127
      %v5967 = vpop.permute.xlu0 %5966
      %5968 = vrot.lane.b32.xlu0 %v5876, 127
      %v5969 = vpop.permute.xlu0 %5968
      %5970 = vrot.lane.b32.xlu0 %v5873, 127
      %v5971 = vpop.permute.xlu0 %5970
      %5972 = vrot.lane.b32.xlu0 %v5877, 127
      %v5973 = vpop.permute.xlu0 %5972
      %v5974 = vsel %vm698, %v5967, %v5971
      %v5975 = vsel %vm698, %v5969, %v5973
      %v5976 = vsel %vm698, %v5963, %v5967
      %v5977 = vsel %vm698, %v5965, %v5969
      %v5978 = vsel %vm698, %v5959, %v5963
      %v5979 = vsel %vm698, %v5961, %v5965
      %v5980 = vsel %vm698, %v5971, %v5959
      %v5981 = vsel %vm698, %v5973, %v5961
      %v5982 = vmul.f32 %v5978, %v706
      %v5983 = vmul.f32 %v5976, %v710
      %v5984 = vmul.f32 %v5974, %v714
      %v5985 = vmul.f32 %v5980, %v718
      %v5986 = vmul.f32 %v5979, %v706
      %v5987 = vmul.f32 %v5977, %v710
      %v5988 = vmul.f32 %v5975, %v714
      %v5989 = vmul.f32 %v5981, %v718
      %5990 = vset.pattern.permute.xlu0 42
      %5991 = vperm.xlu0 %5990, %v270
      %v5992 = vpop.permute.xlu0 %5991
      %5994 = vset.pattern.permute.xlu0 42
      %5995 = vperm.xlu0 %5994, %v271
      %v5996 = vpop.permute.xlu0 %5995
      %v5998 = vmul.f32 %v5992, %v5982
      %v5999 = vmul.f32 %v5992, %v5983
      %v6000 = vmul.f32 %v5992, %v5984
      %v6001 = vmul.f32 %v5992, %v5985
      %v6002 = vmul.f32 %v5996, %v5986
      %v6003 = vmul.f32 %v5996, %v5987
      %v6004 = vmul.f32 %v5996, %v5988
      %v6005 = vmul.f32 %v5996, %v5989
      %v6006 = vadd.f32 %v5950, %v5998
      %v6007 = vadd.f32 %v5951, %v5999
      %v6008 = vadd.f32 %v5952, %v6000
      %v6009 = vadd.f32 %v5953, %v6001
      %v6010 = vadd.f32 %v5954, %v6002
      %v6011 = vadd.f32 %v5955, %v6003
      %v6012 = vadd.f32 %v5956, %v6004
      %v6013 = vadd.f32 %v5957, %v6005
      %6014 = vset.pattern.permute.xlu0 46
      %6015 = vperm.xlu0 %6014, %v270
      %v6016 = vpop.permute.xlu0 %6015
      %6018 = vset.pattern.permute.xlu0 46
      %6019 = vperm.xlu0 %6018, %v271
      %v6020 = vpop.permute.xlu0 %6019
      %v6022 = vadd.f32 %v6006, %v6016
      %v6023 = vadd.f32 %v6007, %v6016
      %v6024 = vadd.f32 %v6008, %v6016
      %v6025 = vadd.f32 %v6009, %v6016
      %v6026 = vadd.f32 %v6010, %v6020
      %v6027 = vadd.f32 %v6011, %v6020
      %v6028 = vadd.f32 %v6012, %v6020
      %v6029 = vadd.f32 %v6013, %v6020
      %v6030 = vadd.f32 %v6022, %v6026
      %v6031 = vrot.slane %v6030, 4
      %v6032 = vadd.f32 %v6030, %v6031
      %v6033 = vrot.slane %v6032, 2
      %v6034 = vadd.f32 %v6032, %v6033
      %v6035 = vrot.slane %v6034, 1
      %v6036 = vadd.f32 %v6034, %v6035
      %v6037 = vadd.f32 %v6023, %v6027
      %v6038 = vrot.slane %v6037, 4
      %v6039 = vadd.f32 %v6037, %v6038
      %v6040 = vrot.slane %v6039, 2
      %v6041 = vadd.f32 %v6039, %v6040
      %v6042 = vrot.slane %v6041, 1
      %v6043 = vadd.f32 %v6041, %v6042
      %v6044 = vadd.f32 %v6024, %v6028
      %v6045 = vrot.slane %v6044, 4
      %v6046 = vadd.f32 %v6044, %v6045
      %v6047 = vrot.slane %v6046, 2
      %v6048 = vadd.f32 %v6046, %v6047
      %v6049 = vrot.slane %v6048, 1
      %v6050 = vadd.f32 %v6048, %v6049
      %v6051 = vadd.f32 %v6025, %v6029
      %v6052 = vrot.slane %v6051, 4
      %v6053 = vadd.f32 %v6051, %v6052
      %v6054 = vrot.slane %v6053, 2
      %v6055 = vadd.f32 %v6053, %v6054
      %v6056 = vrot.slane %v6055, 1
      %v6057 = vadd.f32 %v6055, %v6056
      %v6058 = vmul.f32 %v6036, %v1984
      %v6059 = vmul.f32 %v6043, %v1984
      %v6060 = vmul.f32 %v6050, %v1984
      %v6061 = vmul.f32 %v6057, %v1984
      %v6062 = vsub.f32 %v6022, %v6058
      %v6063 = vsub.f32 %v6023, %v6059
      %v6064 = vsub.f32 %v6024, %v6060
      %v6065 = vsub.f32 %v6025, %v6061
      %v6066 = vsub.f32 %v6026, %v6058
      %v6067 = vsub.f32 %v6027, %v6059
      %v6068 = vsub.f32 %v6028, %v6060
      %v6069 = vsub.f32 %v6029, %v6061
      %v6070 = vmul.f32 %v6062, %v6062
      %v6071 = vmul.f32 %v6063, %v6063
      %v6072 = vmul.f32 %v6064, %v6064
      %v6073 = vmul.f32 %v6065, %v6065
      %v6074 = vmul.f32 %v6066, %v6066
      %v6075 = vmul.f32 %v6067, %v6067
      %v6076 = vmul.f32 %v6068, %v6068
      %v6077 = vmul.f32 %v6069, %v6069
      %v6078 = vadd.f32 %v6070, %v6074
      %v6079 = vrot.slane %v6078, 4
      %v6080 = vadd.f32 %v6078, %v6079
      %v6081 = vrot.slane %v6080, 2
      %v6082 = vadd.f32 %v6080, %v6081
      %v6083 = vrot.slane %v6082, 1
      %v6084 = vadd.f32 %v6082, %v6083
      %v6085 = vadd.f32 %v6071, %v6075
      %v6086 = vrot.slane %v6085, 4
      %v6087 = vadd.f32 %v6085, %v6086
      %v6088 = vrot.slane %v6087, 2
      %v6089 = vadd.f32 %v6087, %v6088
      %v6090 = vrot.slane %v6089, 1
      %v6091 = vadd.f32 %v6089, %v6090
      %v6092 = vadd.f32 %v6072, %v6076
      %v6093 = vrot.slane %v6092, 4
      %v6094 = vadd.f32 %v6092, %v6093
      %v6095 = vrot.slane %v6094, 2
      %v6096 = vadd.f32 %v6094, %v6095
      %v6097 = vrot.slane %v6096, 1
      %v6098 = vadd.f32 %v6096, %v6097
      %v6099 = vadd.f32 %v6073, %v6077
      %v6100 = vrot.slane %v6099, 4
      %v6101 = vadd.f32 %v6099, %v6100
      %v6102 = vrot.slane %v6101, 2
      %v6103 = vadd.f32 %v6101, %v6102
      %v6104 = vrot.slane %v6103, 1
      %v6105 = vadd.f32 %v6103, %v6104
      %v6106 = vmul.f32 %v6084, %v1984
      %v6107 = vmul.f32 %v6091, %v1984
      %v6108 = vmul.f32 %v6098, %v1984
      %v6109 = vmul.f32 %v6105, %v1984
      %v6110 = vadd.f32 %v6106, 1e-06
      %v6111 = vadd.f32 %v6107, 1e-06
      %v6112 = vadd.f32 %v6108, 1e-06
      %v6113 = vadd.f32 %v6109, 1e-06
      %v6114 = vrsqrt.pop %v6110
      %v6115 = vrsqrt.pop %v6111
      %v6116 = vrsqrt.pop %v6112
      %v6117 = vrsqrt.pop %v6113
      %v6118 = vmul.f32 %v6062, %v6114
      %v6119 = vmul.f32 %v6063, %v6115
      %v6120 = vmul.f32 %v6064, %v6116
      %v6121 = vmul.f32 %v6065, %v6117
      %v6122 = vmul.f32 %v6066, %v6114
      %v6123 = vmul.f32 %v6067, %v6115
      %v6124 = vmul.f32 %v6068, %v6116
      %v6125 = vmul.f32 %v6069, %v6117
      %6126 = vset.pattern.permute.xlu0 47
      %6127 = vperm.xlu0 %6126, %v270
      %v6128 = vpop.permute.xlu0 %6127
      %6130 = vset.pattern.permute.xlu0 47
      %6131 = vperm.xlu0 %6130, %v271
      %v6132 = vpop.permute.xlu0 %6131
      %v6134 = vmul.f32 %v6118, %v6128
      %v6135 = vmul.f32 %v6119, %v6128
      %v6136 = vmul.f32 %v6120, %v6128
      %v6137 = vmul.f32 %v6121, %v6128
      %v6138 = vmul.f32 %v6122, %v6132
      %v6139 = vmul.f32 %v6123, %v6132
      %v6140 = vmul.f32 %v6124, %v6132
      %v6141 = vmul.f32 %v6125, %v6132
      %6142 = vset.pattern.permute.xlu0 48
      %6143 = vperm.xlu0 %6142, %v270
      %v6144 = vpop.permute.xlu0 %6143
      %6146 = vset.pattern.permute.xlu0 48
      %6147 = vperm.xlu0 %6146, %v271
      %v6148 = vpop.permute.xlu0 %6147
      %v6150 = vadd.f32 %v6134, %v6144
      %v6151 = vadd.f32 %v6135, %v6144
      %v6152 = vadd.f32 %v6136, %v6144
      %v6153 = vadd.f32 %v6137, %v6144
      %v6154 = vadd.f32 %v6138, %v6148
      %v6155 = vadd.f32 %v6139, %v6148
      %v6156 = vadd.f32 %v6140, %v6148
      %v6157 = vadd.f32 %v6141, %v6148
      %v6158 = vmul.f32 %v6150, 0.5
      %v6159 = vmul.f32 %v6151, 0.5
      %v6160 = vmul.f32 %v6152, 0.5
      %v6161 = vmul.f32 %v6153, 0.5
      %v6162 = vmul.f32 %v6154, 0.5
      %v6163 = vmul.f32 %v6155, 0.5
      %v6164 = vmul.f32 %v6156, 0.5
      %v6165 = vmul.f32 %v6157, 0.5
      %v6166 = vmul.f32 %v6150, 0.70710677
      %v6167 = vmul.f32 %v6151, 0.70710677
      %v6168 = vmul.f32 %v6152, 0.70710677
      %v6169 = vmul.f32 %v6153, 0.70710677
      %v6170 = vmul.f32 %v6154, 0.70710677
      %v6171 = vmul.f32 %v6155, 0.70710677
      %v6172 = vmul.f32 %v6156, 0.70710677
      %v6173 = vmul.f32 %v6157, 0.70710677
      %v6174 = verf.f32.pop %v6166
      %v6175 = verf.f32.pop %v6167
      %v6176 = verf.f32.pop %v6168
      %v6177 = verf.f32.pop %v6169
      %v6178 = verf.f32.pop %v6170
      %v6179 = verf.f32.pop %v6171
      %v6180 = verf.f32.pop %v6172
      %v6181 = verf.f32.pop %v6173
      %v6182 = vadd.f32 %v6174, 1.0
      %v6183 = vadd.f32 %v6175, 1.0
      %v6184 = vadd.f32 %v6176, 1.0
      %v6185 = vadd.f32 %v6177, 1.0
      %v6186 = vadd.f32 %v6178, 1.0
      %v6187 = vadd.f32 %v6179, 1.0
      %v6188 = vadd.f32 %v6180, 1.0
      %v6189 = vadd.f32 %v6181, 1.0
      %v6190 = vmul.f32 %v6158, %v6182
      %v6191 = vmul.f32 %v6159, %v6183
      %v6192 = vmul.f32 %v6160, %v6184
      %v6193 = vmul.f32 %v6161, %v6185
      %v6194 = vmul.f32 %v6162, %v6186
      %v6195 = vmul.f32 %v6163, %v6187
      %v6196 = vmul.f32 %v6164, %v6188
      %v6197 = vmul.f32 %v6165, %v6189
      %6199 = vset.pattern.permute.xlu0 16
      %6200 = vperm.xlu0 %6199, %v272
      %v6201 = vpop.permute.xlu0 %6200
      %6204 = vset.pattern.permute.xlu0 16
      %6205 = vperm.xlu0 %6204, %v273
      %v6206 = vpop.permute.xlu0 %6205
      %v6208 = vsel %vm1797, %v272, 0
      %v6210 = vsel %vm1797, %v273, 0
      %6212 = vmatprep.subr.mxu0 0.0
      %6213 = vmatpush1.msra.mxu0 0.0
      %6214 = vmatprep.subr.mxu0 0.0
      %6215 = vmatpush1.msra.mxu0 0.0
      %6216 = vmatprep.subr.mxu0 0.0
      %6217 = vmatpush1.msra.mxu0 0.0
      %6218 = vmatprep.subr.mxu0 0.0
      %6219 = vmatpush1.msra.mxu0 0.0
      %6220 = vmatprep.subr.mxu0 0.0
      %6221 = vmatpush1.msra.mxu0 0.0
      %6222 = vmatprep.subr.mxu0 0.0
      %6223 = vmatpush1.msra.mxu0 0.0
      %6224 = vmatprep.subr.mxu0 0.0
      %6225 = vmatpush1.msra.mxu0 0.0
      %6226 = vmatprep.subr.mxu0 0.0
      %6227 = vmatpush1.msra.mxu0 0.0
      %6228 = vmatprep.subr.mxu0 0.0
      %6229 = vmatpush1.msra.mxu0 0.0
      %6230 = vmatprep.subr.mxu0 0.0
      %6231 = vmatpush1.msra.mxu0 0.0
      %6232 = vmatprep.subr.mxu0 0.0
      %6233 = vmatpush1.msra.mxu0 0.0
      %6234 = vmatprep.subr.mxu0 0.0
      %6235 = vmatpush1.msra.mxu0 0.0
      %6236 = vmatprep.subr.mxu0 0.0
      %6237 = vmatpush1.msra.mxu0 0.0
      %6238 = vmatprep.subr.mxu0 0.0
      %6239 = vmatpush1.msra.mxu0 0.0
      %6240 = vmatprep.subr.mxu0 %v6195
      %6241 = vmatpush1.msra.mxu0 %v6194
      %6242 = vmatprep.subr.mxu0 %v6191
      %6243 = vmatpush1.msra.mxu0 %v6190
      %6244 = vmatprep.subr.mxu0 0.0
      %6245 = vmatpush2.msra.mxu0 0.0
      %6246 = vmatprep.subr.mxu0 0.0
      %6247 = vmatpush2.msra.mxu0 0.0
      %6248 = vmatprep.subr.mxu0 0.0
      %6249 = vmatpush2.msra.mxu0 0.0
      %6250 = vmatprep.subr.mxu0 0.0
      %6251 = vmatpush2.msra.mxu0 0.0
      %6252 = vmatprep.subr.mxu0 0.0
      %6253 = vmatpush2.msra.mxu0 0.0
      %6254 = vmatprep.subr.mxu0 0.0
      %6255 = vmatpush2.msra.mxu0 0.0
      %6256 = vmatprep.subr.mxu0 0.0
      %6257 = vmatpush2.msra.mxu0 0.0
      %6258 = vmatprep.subr.mxu0 0.0
      %6259 = vmatpush2.msra.mxu0 0.0
      %6260 = vmatprep.subr.mxu0 0.0
      %6261 = vmatpush2.msra.mxu0 0.0
      %6262 = vmatprep.subr.mxu0 0.0
      %6263 = vmatpush2.msra.mxu0 0.0
      %6264 = vmatprep.subr.mxu0 0.0
      %6265 = vmatpush2.msra.mxu0 0.0
      %6266 = vmatprep.subr.mxu0 0.0
      %6267 = vmatpush2.msra.mxu0 0.0
      %6268 = vmatprep.subr.mxu0 0.0
      %6269 = vmatpush2.msra.mxu0 0.0
      %6270 = vmatprep.subr.mxu0 0.0
      %6271 = vmatpush2.msra.mxu0 0.0
      %6272 = vmatprep.subr.mxu0 0.0
      %6273 = vmatpush2.msra.mxu0 0.0
      %6274 = vmatprep.subr.mxu0 0.0
      %6275 = vmatpush2.msra.mxu0 0.0
      %6276 = vmatprep.mubr.f32.mxu0 0.0
      %6277 = vmatmul.mubr.f32.gmra.mxu0 %v6208
      %v6278 = vpop.f32.mrf.mxu0
      %v6279 = vadd.f32 %v6201, %v6278
      %v6280 = vpop.f32.mrf.mxu0
      %v6281 = vadd.f32 %v6201, %v6280
      %6282 = vmatprep.mubr.f32.mxu0 0.0
      %6283 = vmatmul.mubr.f32.gmra.mxu0 %v6210
      %v6284 = vpop.f32.mrf.mxu0
      %v6285 = vadd.f32 %v6206, %v6284
      %v6286 = vpop.f32.mrf.mxu0
      %v6287 = vadd.f32 %v6206, %v6286
      %6288 = vdwg.mxu0
      %6289 = vmatprep.subr.mxu0 0.0
      %6290 = vmatpush1.msra.mxu0 0.0
      %6291 = vmatprep.subr.mxu0 0.0
      %6292 = vmatpush1.msra.mxu0 0.0
      %6293 = vmatprep.subr.mxu0 0.0
      %6294 = vmatpush1.msra.mxu0 0.0
      %6295 = vmatprep.subr.mxu0 0.0
      %6296 = vmatpush1.msra.mxu0 0.0
      %6297 = vmatprep.subr.mxu0 0.0
      %6298 = vmatpush1.msra.mxu0 0.0
      %6299 = vmatprep.subr.mxu0 0.0
      %6300 = vmatpush1.msra.mxu0 0.0
      %6301 = vmatprep.subr.mxu0 0.0
      %6302 = vmatpush1.msra.mxu0 0.0
      %6303 = vmatprep.subr.mxu0 0.0
      %6304 = vmatpush1.msra.mxu0 0.0
      %6305 = vmatprep.subr.mxu0 0.0
      %6306 = vmatpush1.msra.mxu0 0.0
      %6307 = vmatprep.subr.mxu0 0.0
      %6308 = vmatpush1.msra.mxu0 0.0
      %6309 = vmatprep.subr.mxu0 0.0
      %6310 = vmatpush1.msra.mxu0 0.0
      %6311 = vmatprep.subr.mxu0 0.0
      %6312 = vmatpush1.msra.mxu0 0.0
      %6313 = vmatprep.subr.mxu0 0.0
      %6314 = vmatpush1.msra.mxu0 0.0
      %6315 = vmatprep.subr.mxu0 0.0
      %6316 = vmatpush1.msra.mxu0 0.0
      %6317 = vmatprep.subr.mxu0 %v6197
      %6318 = vmatpush1.msra.mxu0 %v6196
      %6319 = vmatprep.subr.mxu0 %v6193
      %6320 = vmatpush1.msra.mxu0 %v6192
      %6321 = vmatprep.subr.mxu0 0.0
      %6322 = vmatpush2.msra.mxu0 0.0
      %6323 = vmatprep.subr.mxu0 0.0
      %6324 = vmatpush2.msra.mxu0 0.0
      %6325 = vmatprep.subr.mxu0 0.0
      %6326 = vmatpush2.msra.mxu0 0.0
      %6327 = vmatprep.subr.mxu0 0.0
      %6328 = vmatpush2.msra.mxu0 0.0
      %6329 = vmatprep.subr.mxu0 0.0
      %6330 = vmatpush2.msra.mxu0 0.0
      %6331 = vmatprep.subr.mxu0 0.0
      %6332 = vmatpush2.msra.mxu0 0.0
      %6333 = vmatprep.subr.mxu0 0.0
      %6334 = vmatpush2.msra.mxu0 0.0
      %6335 = vmatprep.subr.mxu0 0.0
      %6336 = vmatpush2.msra.mxu0 0.0
      %6337 = vmatprep.subr.mxu0 0.0
      %6338 = vmatpush2.msra.mxu0 0.0
      %6339 = vmatprep.subr.mxu0 0.0
      %6340 = vmatpush2.msra.mxu0 0.0
      %6341 = vmatprep.subr.mxu0 0.0
      %6342 = vmatpush2.msra.mxu0 0.0
      %6343 = vmatprep.subr.mxu0 0.0
      %6344 = vmatpush2.msra.mxu0 0.0
      %6345 = vmatprep.subr.mxu0 0.0
      %6346 = vmatpush2.msra.mxu0 0.0
      %6347 = vmatprep.subr.mxu0 0.0
      %6348 = vmatpush2.msra.mxu0 0.0
      %6349 = vmatprep.subr.mxu0 0.0
      %6350 = vmatpush2.msra.mxu0 0.0
      %6351 = vmatprep.subr.mxu0 0.0
      %6352 = vmatpush2.msra.mxu0 0.0
      %6353 = vmatprep.mubr.f32.mxu0 0.0
      %6354 = vmatmul.mubr.f32.gmra.mxu0 %v6208
      %v6355 = vpop.f32.mrf.mxu0
      %v6356 = vadd.f32 %v6201, %v6355
      %v6357 = vpop.f32.mrf.mxu0
      %v6358 = vadd.f32 %v6201, %v6357
      %6359 = vmatprep.mubr.f32.mxu0 0.0
      %6360 = vmatmul.mubr.f32.gmra.mxu0 %v6210
      %v6361 = vpop.f32.mrf.mxu0
      %v6362 = vadd.f32 %v6206, %v6361
      %v6363 = vpop.f32.mrf.mxu0
      %v6364 = vadd.f32 %v6206, %v6363
      %6365 = vdwg.mxu0
      %v6366 = vadd.f32 %v6279, %v6285
      %v6367 = vrot.slane %v6366, 4
      %v6368 = vadd.f32 %v6366, %v6367
      %v6369 = vrot.slane %v6368, 2
      %v6370 = vadd.f32 %v6368, %v6369
      %v6371 = vrot.slane %v6370, 1
      %v6372 = vadd.f32 %v6370, %v6371
      %v6373 = vadd.f32 %v6281, %v6287
      %v6374 = vrot.slane %v6373, 4
      %v6375 = vadd.f32 %v6373, %v6374
      %v6376 = vrot.slane %v6375, 2
      %v6377 = vadd.f32 %v6375, %v6376
      %v6378 = vrot.slane %v6377, 1
      %v6379 = vadd.f32 %v6377, %v6378
      %v6380 = vadd.f32 %v6356, %v6362
      %v6381 = vrot.slane %v6380, 4
      %v6382 = vadd.f32 %v6380, %v6381
      %v6383 = vrot.slane %v6382, 2
      %v6384 = vadd.f32 %v6382, %v6383
      %v6385 = vrot.slane %v6384, 1
      %v6386 = vadd.f32 %v6384, %v6385
      %v6387 = vadd.f32 %v6358, %v6364
      %v6388 = vrot.slane %v6387, 4
      %v6389 = vadd.f32 %v6387, %v6388
      %v6390 = vrot.slane %v6389, 2
      %v6391 = vadd.f32 %v6389, %v6390
      %v6392 = vrot.slane %v6391, 1
      %v6393 = vadd.f32 %v6391, %v6392
      %v6394 = vmul.f32 %v6372, %v1984
      %v6395 = vmul.f32 %v6379, %v1984
      %v6396 = vmul.f32 %v6386, %v1984
      %v6397 = vmul.f32 %v6393, %v1984
      %v6398 = vsub.f32 %v6279, %v6394
      %v6399 = vsub.f32 %v6281, %v6395
      %v6400 = vsub.f32 %v6356, %v6396
      %v6401 = vsub.f32 %v6358, %v6397
      %v6402 = vsub.f32 %v6285, %v6394
      %v6403 = vsub.f32 %v6287, %v6395
      %v6404 = vsub.f32 %v6362, %v6396
      %v6405 = vsub.f32 %v6364, %v6397
      %v6406 = vmul.f32 %v6398, %v6398
      %v6407 = vmul.f32 %v6399, %v6399
      %v6408 = vmul.f32 %v6400, %v6400
      %v6409 = vmul.f32 %v6401, %v6401
      %v6410 = vmul.f32 %v6402, %v6402
      %v6411 = vmul.f32 %v6403, %v6403
      %v6412 = vmul.f32 %v6404, %v6404
      %v6413 = vmul.f32 %v6405, %v6405
      %v6414 = vadd.f32 %v6406, %v6410
      %v6415 = vrot.slane %v6414, 4
      %v6416 = vadd.f32 %v6414, %v6415
      %v6417 = vrot.slane %v6416, 2
      %v6418 = vadd.f32 %v6416, %v6417
      %v6419 = vrot.slane %v6418, 1
      %v6420 = vadd.f32 %v6418, %v6419
      %v6421 = vadd.f32 %v6407, %v6411
      %v6422 = vrot.slane %v6421, 4
      %v6423 = vadd.f32 %v6421, %v6422
      %v6424 = vrot.slane %v6423, 2
      %v6425 = vadd.f32 %v6423, %v6424
      %v6426 = vrot.slane %v6425, 1
      %v6427 = vadd.f32 %v6425, %v6426
      %v6428 = vadd.f32 %v6408, %v6412
      %v6429 = vrot.slane %v6428, 4
      %v6430 = vadd.f32 %v6428, %v6429
      %v6431 = vrot.slane %v6430, 2
      %v6432 = vadd.f32 %v6430, %v6431
      %v6433 = vrot.slane %v6432, 1
      %v6434 = vadd.f32 %v6432, %v6433
      %v6435 = vadd.f32 %v6409, %v6413
      %v6436 = vrot.slane %v6435, 4
      %v6437 = vadd.f32 %v6435, %v6436
      %v6438 = vrot.slane %v6437, 2
      %v6439 = vadd.f32 %v6437, %v6438
      %v6440 = vrot.slane %v6439, 1
      %v6441 = vadd.f32 %v6439, %v6440
      %v6442 = vmul.f32 %v6420, %v1984
      %v6443 = vmul.f32 %v6427, %v1984
      %v6444 = vmul.f32 %v6434, %v1984
      %v6445 = vmul.f32 %v6441, %v1984
      %v6446 = vadd.f32 %v6442, 1e-06
      %v6447 = vadd.f32 %v6443, 1e-06
      %v6448 = vadd.f32 %v6444, 1e-06
      %v6449 = vadd.f32 %v6445, 1e-06
      %v6450 = vrsqrt.pop %v6446
      %v6451 = vrsqrt.pop %v6447
      %v6452 = vrsqrt.pop %v6448
      %v6453 = vrsqrt.pop %v6449
      %v6454 = vmul.f32 %v6398, %v6450
      %v6455 = vmul.f32 %v6399, %v6451
      %v6456 = vmul.f32 %v6400, %v6452
      %v6457 = vmul.f32 %v6401, %v6453
      %v6458 = vmul.f32 %v6402, %v6450
      %v6459 = vmul.f32 %v6403, %v6451
      %v6460 = vmul.f32 %v6404, %v6452
      %v6461 = vmul.f32 %v6405, %v6453
      %6462 = vset.pattern.permute.xlu0 17
      %6463 = vperm.xlu0 %6462, %v272
      %v6464 = vpop.permute.xlu0 %6463
      %6466 = vset.pattern.permute.xlu0 17
      %6467 = vperm.xlu0 %6466, %v273
      %v6468 = vpop.permute.xlu0 %6467
      %v6470 = vmul.f32 %v6454, %v6464
      %v6471 = vmul.f32 %v6455, %v6464
      %v6472 = vmul.f32 %v6456, %v6464
      %v6473 = vmul.f32 %v6457, %v6464
      %v6474 = vmul.f32 %v6458, %v6468
      %v6475 = vmul.f32 %v6459, %v6468
      %v6476 = vmul.f32 %v6460, %v6468
      %v6477 = vmul.f32 %v6461, %v6468
      %6478 = vset.pattern.permute.xlu0 18
      %6479 = vperm.xlu0 %6478, %v272
      %v6480 = vpop.permute.xlu0 %6479
      %6482 = vset.pattern.permute.xlu0 18
      %6483 = vperm.xlu0 %6482, %v273
      %v6484 = vpop.permute.xlu0 %6483
      %v6486 = vadd.f32 %v6470, %v6480
      %v6487 = vadd.f32 %v6471, %v6480
      %v6488 = vadd.f32 %v6472, %v6480
      %v6489 = vadd.f32 %v6473, %v6480
      %v6490 = vadd.f32 %v6474, %v6484
      %v6491 = vadd.f32 %v6475, %v6484
      %v6492 = vadd.f32 %v6476, %v6484
      %v6493 = vadd.f32 %v6477, %v6484
      %v6495 = vsel %vm1797, %v4213, 0
      %6497 = vmatprep.subr.mxu0 0.0
      %6498 = vmatpush1.msra.mxu0 0.0
      %6499 = vmatprep.subr.mxu0 0.0
      %6500 = vmatpush1.msra.mxu0 0.0
      %6501 = vmatprep.subr.mxu0 0.0
      %6502 = vmatpush1.msra.mxu0 0.0
      %6503 = vmatprep.subr.mxu0 0.0
      %6504 = vmatpush1.msra.mxu0 0.0
      %6505 = vmatprep.subr.mxu0 0.0
      %6506 = vmatpush1.msra.mxu0 0.0
      %6507 = vmatprep.subr.mxu0 0.0
      %6508 = vmatpush1.msra.mxu0 0.0
      %6509 = vmatprep.subr.mxu0 0.0
      %6510 = vmatpush1.msra.mxu0 0.0
      %6511 = vmatprep.subr.mxu0 0.0
      %6512 = vmatpush1.msra.mxu0 0.0
      %6513 = vmatprep.subr.mxu0 0.0
      %6514 = vmatpush1.msra.mxu0 0.0
      %6515 = vmatprep.subr.mxu0 0.0
      %6516 = vmatpush1.msra.mxu0 0.0
      %6517 = vmatprep.subr.mxu0 0.0
      %6518 = vmatpush1.msra.mxu0 0.0
      %6519 = vmatprep.subr.mxu0 0.0
      %6520 = vmatpush1.msra.mxu0 0.0
      %6521 = vmatprep.subr.mxu0 0.0
      %6522 = vmatpush1.msra.mxu0 0.0
      %6523 = vmatprep.subr.mxu0 0.0
      %6524 = vmatpush1.msra.mxu0 0.0
      %6525 = vmatprep.subr.mxu0 %v6491
      %6526 = vmatpush1.msra.mxu0 %v6490
      %6527 = vmatprep.subr.mxu0 %v6487
      %6528 = vmatpush1.msra.mxu0 %v6486
      %6529 = vmatprep.subr.mxu0 0.0
      %6530 = vmatpush2.msra.mxu0 0.0
      %6531 = vmatprep.subr.mxu0 0.0
      %6532 = vmatpush2.msra.mxu0 0.0
      %6533 = vmatprep.subr.mxu0 0.0
      %6534 = vmatpush2.msra.mxu0 0.0
      %6535 = vmatprep.subr.mxu0 0.0
      %6536 = vmatpush2.msra.mxu0 0.0
      %6537 = vmatprep.subr.mxu0 0.0
      %6538 = vmatpush2.msra.mxu0 0.0
      %6539 = vmatprep.subr.mxu0 0.0
      %6540 = vmatpush2.msra.mxu0 0.0
      %6541 = vmatprep.subr.mxu0 0.0
      %6542 = vmatpush2.msra.mxu0 0.0
      %6543 = vmatprep.subr.mxu0 0.0
      %6544 = vmatpush2.msra.mxu0 0.0
      %6545 = vmatprep.subr.mxu0 0.0
      %6546 = vmatpush2.msra.mxu0 0.0
      %6547 = vmatprep.subr.mxu0 0.0
      %6548 = vmatpush2.msra.mxu0 0.0
      %6549 = vmatprep.subr.mxu0 0.0
      %6550 = vmatpush2.msra.mxu0 0.0
      %6551 = vmatprep.subr.mxu0 0.0
      %6552 = vmatpush2.msra.mxu0 0.0
      %6553 = vmatprep.subr.mxu0 0.0
      %6554 = vmatpush2.msra.mxu0 0.0
      %6555 = vmatprep.subr.mxu0 0.0
      %6556 = vmatpush2.msra.mxu0 0.0
      %6557 = vmatprep.subr.mxu0 0.0
      %6558 = vmatpush2.msra.mxu0 0.0
      %6559 = vmatprep.subr.mxu0 0.0
      %6560 = vmatpush2.msra.mxu0 0.0
      %6561 = vmatprep.mubr.f32.mxu0 0.0
      %6562 = vmatmul.mubr.f32.gmra.mxu0 %v6495
      %v6563 = vpop.f32.mrf.mxu0
      %v6564 = vadd.f32 0.0, %v6563
      %v6565 = vpop.f32.mrf.mxu0
      %v6566 = vadd.f32 0.0, %v6565
      %6567 = vdwg.mxu0
      %6568 = vmatprep.subr.mxu0 0.0
      %6569 = vmatpush1.msra.mxu0 0.0
      %6570 = vmatprep.subr.mxu0 0.0
      %6571 = vmatpush1.msra.mxu0 0.0
      %6572 = vmatprep.subr.mxu0 0.0
      %6573 = vmatpush1.msra.mxu0 0.0
      %6574 = vmatprep.subr.mxu0 0.0
      %6575 = vmatpush1.msra.mxu0 0.0
      %6576 = vmatprep.subr.mxu0 0.0
      %6577 = vmatpush1.msra.mxu0 0.0
      %6578 = vmatprep.subr.mxu0 0.0
      %6579 = vmatpush1.msra.mxu0 0.0
      %6580 = vmatprep.subr.mxu0 0.0
      %6581 = vmatpush1.msra.mxu0 0.0
      %6582 = vmatprep.subr.mxu0 0.0
      %6583 = vmatpush1.msra.mxu0 0.0
      %6584 = vmatprep.subr.mxu0 0.0
      %6585 = vmatpush1.msra.mxu0 0.0
      %6586 = vmatprep.subr.mxu0 0.0
      %6587 = vmatpush1.msra.mxu0 0.0
      %6588 = vmatprep.subr.mxu0 0.0
      %6589 = vmatpush1.msra.mxu0 0.0
      %6590 = vmatprep.subr.mxu0 0.0
      %6591 = vmatpush1.msra.mxu0 0.0
      %6592 = vmatprep.subr.mxu0 0.0
      %6593 = vmatpush1.msra.mxu0 0.0
      %6594 = vmatprep.subr.mxu0 0.0
      %6595 = vmatpush1.msra.mxu0 0.0
      %6596 = vmatprep.subr.mxu0 %v6493
      %6597 = vmatpush1.msra.mxu0 %v6492
      %6598 = vmatprep.subr.mxu0 %v6489
      %6599 = vmatpush1.msra.mxu0 %v6488
      %6600 = vmatprep.subr.mxu0 0.0
      %6601 = vmatpush2.msra.mxu0 0.0
      %6602 = vmatprep.subr.mxu0 0.0
      %6603 = vmatpush2.msra.mxu0 0.0
      %6604 = vmatprep.subr.mxu0 0.0
      %6605 = vmatpush2.msra.mxu0 0.0
      %6606 = vmatprep.subr.mxu0 0.0
      %6607 = vmatpush2.msra.mxu0 0.0
      %6608 = vmatprep.subr.mxu0 0.0
      %6609 = vmatpush2.msra.mxu0 0.0
      %6610 = vmatprep.subr.mxu0 0.0
      %6611 = vmatpush2.msra.mxu0 0.0
      %6612 = vmatprep.subr.mxu0 0.0
      %6613 = vmatpush2.msra.mxu0 0.0
      %6614 = vmatprep.subr.mxu0 0.0
      %6615 = vmatpush2.msra.mxu0 0.0
      %6616 = vmatprep.subr.mxu0 0.0
      %6617 = vmatpush2.msra.mxu0 0.0
      %6618 = vmatprep.subr.mxu0 0.0
      %6619 = vmatpush2.msra.mxu0 0.0
      %6620 = vmatprep.subr.mxu0 0.0
      %6621 = vmatpush2.msra.mxu0 0.0
      %6622 = vmatprep.subr.mxu0 0.0
      %6623 = vmatpush2.msra.mxu0 0.0
      %6624 = vmatprep.subr.mxu0 0.0
      %6625 = vmatpush2.msra.mxu0 0.0
      %6626 = vmatprep.subr.mxu0 0.0
      %6627 = vmatpush2.msra.mxu0 0.0
      %6628 = vmatprep.subr.mxu0 0.0
      %6629 = vmatpush2.msra.mxu0 0.0
      %6630 = vmatprep.subr.mxu0 0.0
      %6631 = vmatpush2.msra.mxu0 0.0
      %6632 = vmatprep.mubr.f32.mxu0 0.0
      %6633 = vmatmul.mubr.f32.gmra.mxu0 %v6495
      %v6634 = vpop.f32.mrf.mxu0
      %v6635 = vadd.f32 0.0, %v6634
      %v6636 = vpop.f32.mrf.mxu0
      %v6637 = vadd.f32 0.0, %v6636
      %6638 = vdwg.mxu0
      %6640 = vset.pattern.permute.xlu0 31
      %6641 = vperm.xlu0 %6640, %v274
      %v6642 = vpop.permute.xlu0 %6641
      %v6644 = vsel %vm290, %v274, 0
      %v6647 = vsel %vm293, %v6564, 0
      %v6650 = vsel %vm293, %v6566, 0
      %v6653 = vsel %vm293, %v6635, 0
      %v6656 = vsel %vm293, %v6637, 0
      %6658 = vmatprep.subr.mxu0 0.0
      %6659 = vmatpush1.msra.mxu0 0.0
      %6660 = vmatprep.subr.mxu0 0.0
      %6661 = vmatpush1.msra.mxu0 0.0
      %6662 = vmatprep.subr.mxu0 0.0
      %6663 = vmatpush1.msra.mxu0 0.0
      %6664 = vmatprep.subr.mxu0 0.0
      %6665 = vmatpush1.msra.mxu0 0.0
      %6666 = vmatprep.subr.mxu0 0.0
      %6667 = vmatpush1.msra.mxu0 0.0
      %6668 = vmatprep.subr.mxu0 0.0
      %6669 = vmatpush1.msra.mxu0 0.0
      %6670 = vmatprep.subr.mxu0 0.0
      %6671 = vmatpush1.msra.mxu0 0.0
      %6672 = vmatprep.subr.mxu0 0.0
      %6673 = vmatpush1.msra.mxu0 0.0
      %6674 = vmatprep.subr.mxu0 0.0
      %6675 = vmatpush1.msra.mxu0 0.0
      %6676 = vmatprep.subr.mxu0 0.0
      %6677 = vmatpush1.msra.mxu0 0.0
      %6678 = vmatprep.subr.mxu0 0.0
      %6679 = vmatpush1.msra.mxu0 0.0
      %6680 = vmatprep.subr.mxu0 0.0
      %6681 = vmatpush1.msra.mxu0 0.0
      %6682 = vmatprep.subr.mxu0 0.0
      %6683 = vmatpush1.msra.mxu0 0.0
      %6684 = vmatprep.subr.mxu0 0.0
      %6685 = vmatpush1.msra.mxu0 0.0
      %6686 = vmatprep.subr.mxu0 0.0
      %6687 = vmatpush1.msra.mxu0 0.0
      %6688 = vmatprep.subr.mxu0 %v6650
      %6689 = vmatpush1.msra.mxu0 %v6647
      %6690 = vmatprep.subr.mxu0 0.0
      %6691 = vmatpush2.msra.mxu0 0.0
      %6692 = vmatprep.subr.mxu0 0.0
      %6693 = vmatpush2.msra.mxu0 0.0
      %6694 = vmatprep.subr.mxu0 0.0
      %6695 = vmatpush2.msra.mxu0 0.0
      %6696 = vmatprep.subr.mxu0 0.0
      %6697 = vmatpush2.msra.mxu0 0.0
      %6698 = vmatprep.subr.mxu0 0.0
      %6699 = vmatpush2.msra.mxu0 0.0
      %6700 = vmatprep.subr.mxu0 0.0
      %6701 = vmatpush2.msra.mxu0 0.0
      %6702 = vmatprep.subr.mxu0 0.0
      %6703 = vmatpush2.msra.mxu0 0.0
      %6704 = vmatprep.subr.mxu0 0.0
      %6705 = vmatpush2.msra.mxu0 0.0
      %6706 = vmatprep.subr.mxu0 0.0
      %6707 = vmatpush2.msra.mxu0 0.0
      %6708 = vmatprep.subr.mxu0 0.0
      %6709 = vmatpush2.msra.mxu0 0.0
      %6710 = vmatprep.subr.mxu0 0.0
      %6711 = vmatpush2.msra.mxu0 0.0
      %6712 = vmatprep.subr.mxu0 0.0
      %6713 = vmatpush2.msra.mxu0 0.0
      %6714 = vmatprep.subr.mxu0 0.0
      %6715 = vmatpush2.msra.mxu0 0.0
      %6716 = vmatprep.subr.mxu0 0.0
      %6717 = vmatpush2.msra.mxu0 0.0
      %6718 = vmatprep.subr.mxu0 0.0
      %6719 = vmatpush2.msra.mxu0 0.0
      %6720 = vmatprep.subr.mxu0 0.0
      %6721 = vmatpush2.msra.mxu0 0.0
      %6722 = vmatprep.mubr.f32.mxu0 0.0
      %6723 = vmatmul.mubr.f32.gmra.mxu0 %v6644
      %v6724 = vpop.f32.mrf.mxu0
      %v6725 = vadd.f32 %v6642, %v6724
      %v6726 = vpop.f32.mrf.mxu0
      %v6727 = vadd.f32 %v6642, %v6726
      %6728 = vdwg.mxu0
      %6729 = vmatprep.subr.mxu0 0.0
      %6730 = vmatpush1.msra.mxu0 0.0
      %6731 = vmatprep.subr.mxu0 0.0
      %6732 = vmatpush1.msra.mxu0 0.0
      %6733 = vmatprep.subr.mxu0 0.0
      %6734 = vmatpush1.msra.mxu0 0.0
      %6735 = vmatprep.subr.mxu0 0.0
      %6736 = vmatpush1.msra.mxu0 0.0
      %6737 = vmatprep.subr.mxu0 0.0
      %6738 = vmatpush1.msra.mxu0 0.0
      %6739 = vmatprep.subr.mxu0 0.0
      %6740 = vmatpush1.msra.mxu0 0.0
      %6741 = vmatprep.subr.mxu0 0.0
      %6742 = vmatpush1.msra.mxu0 0.0
      %6743 = vmatprep.subr.mxu0 0.0
      %6744 = vmatpush1.msra.mxu0 0.0
      %6745 = vmatprep.subr.mxu0 0.0
      %6746 = vmatpush1.msra.mxu0 0.0
      %6747 = vmatprep.subr.mxu0 0.0
      %6748 = vmatpush1.msra.mxu0 0.0
      %6749 = vmatprep.subr.mxu0 0.0
      %6750 = vmatpush1.msra.mxu0 0.0
      %6751 = vmatprep.subr.mxu0 0.0
      %6752 = vmatpush1.msra.mxu0 0.0
      %6753 = vmatprep.subr.mxu0 0.0
      %6754 = vmatpush1.msra.mxu0 0.0
      %6755 = vmatprep.subr.mxu0 0.0
      %6756 = vmatpush1.msra.mxu0 0.0
      %6757 = vmatprep.subr.mxu0 0.0
      %6758 = vmatpush1.msra.mxu0 0.0
      %6759 = vmatprep.subr.mxu0 %v6656
      %6760 = vmatpush1.msra.mxu0 %v6653
      %6761 = vmatprep.subr.mxu0 0.0
      %6762 = vmatpush2.msra.mxu0 0.0
      %6763 = vmatprep.subr.mxu0 0.0
      %6764 = vmatpush2.msra.mxu0 0.0
      %6765 = vmatprep.subr.mxu0 0.0
      %6766 = vmatpush2.msra.mxu0 0.0
      %6767 = vmatprep.subr.mxu0 0.0
      %6768 = vmatpush2.msra.mxu0 0.0
      %6769 = vmatprep.subr.mxu0 0.0
      %6770 = vmatpush2.msra.mxu0 0.0
      %6771 = vmatprep.subr.mxu0 0.0
      %6772 = vmatpush2.msra.mxu0 0.0
      %6773 = vmatprep.subr.mxu0 0.0
      %6774 = vmatpush2.msra.mxu0 0.0
      %6775 = vmatprep.subr.mxu0 0.0
      %6776 = vmatpush2.msra.mxu0 0.0
      %6777 = vmatprep.subr.mxu0 0.0
      %6778 = vmatpush2.msra.mxu0 0.0
      %6779 = vmatprep.subr.mxu0 0.0
      %6780 = vmatpush2.msra.mxu0 0.0
      %6781 = vmatprep.subr.mxu0 0.0
      %6782 = vmatpush2.msra.mxu0 0.0
      %6783 = vmatprep.subr.mxu0 0.0
      %6784 = vmatpush2.msra.mxu0 0.0
      %6785 = vmatprep.subr.mxu0 0.0
      %6786 = vmatpush2.msra.mxu0 0.0
      %6787 = vmatprep.subr.mxu0 0.0
      %6788 = vmatpush2.msra.mxu0 0.0
      %6789 = vmatprep.subr.mxu0 0.0
      %6790 = vmatpush2.msra.mxu0 0.0
      %6791 = vmatprep.subr.mxu0 0.0
      %6792 = vmatpush2.msra.mxu0 0.0
      %6793 = vmatprep.mubr.f32.mxu0 0.0
      %6794 = vmatmul.mubr.f32.gmra.mxu0 %v6644
      %v6795 = vpop.f32.mrf.mxu0
      %v6796 = vadd.f32 %v6642, %v6795
      %v6797 = vpop.f32.mrf.mxu0
      %v6798 = vadd.f32 %v6642, %v6797
      %6799 = vdwg.mxu0
      %v6800 = vsel %vm293, %v6725, 0.0
      %v6801 = vrot.slane %v6800, 4
      %v6802 = vadd.f32 %v6800, %v6801
      %v6803 = vrot.slane %v6802, 2
      %v6804 = vadd.f32 %v6802, %v6803
      %v6805 = vrot.slane %v6804, 1
      %v6806 = vadd.f32 %v6804, %v6805
      %v6807 = vsel %vm293, %v6727, 0.0
      %v6808 = vrot.slane %v6807, 4
      %v6809 = vadd.f32 %v6807, %v6808
      %v6810 = vrot.slane %v6809, 2
      %v6811 = vadd.f32 %v6809, %v6810
      %v6812 = vrot.slane %v6811, 1
      %v6813 = vadd.f32 %v6811, %v6812
      %v6814 = vsel %vm293, %v6796, 0.0
      %v6815 = vrot.slane %v6814, 4
      %v6816 = vadd.f32 %v6814, %v6815
      %v6817 = vrot.slane %v6816, 2
      %v6818 = vadd.f32 %v6816, %v6817
      %v6819 = vrot.slane %v6818, 1
      %v6820 = vadd.f32 %v6818, %v6819
      %v6821 = vsel %vm293, %v6798, 0.0
      %v6822 = vrot.slane %v6821, 4
      %v6823 = vadd.f32 %v6821, %v6822
      %v6824 = vrot.slane %v6823, 2
      %v6825 = vadd.f32 %v6823, %v6824
      %v6826 = vrot.slane %v6825, 1
      %v6827 = vadd.f32 %v6825, %v6826
      %v6828 = vmul.f32 %v6806, %v472
      %v6829 = vmul.f32 %v6813, %v472
      %v6830 = vmul.f32 %v6820, %v472
      %v6831 = vmul.f32 %v6827, %v472
      %v6832 = vsub.f32 %v6725, %v6828
      %v6833 = vsub.f32 %v6727, %v6829
      %v6834 = vsub.f32 %v6796, %v6830
      %v6835 = vsub.f32 %v6798, %v6831
      %v6836 = vmul.f32 %v6832, %v6832
      %v6837 = vmul.f32 %v6833, %v6833
      %v6838 = vmul.f32 %v6834, %v6834
      %v6839 = vmul.f32 %v6835, %v6835
      %v6840 = vsel %vm293, %v6836, 0.0
      %v6841 = vrot.slane %v6840, 4
      %v6842 = vadd.f32 %v6840, %v6841
      %v6843 = vrot.slane %v6842, 2
      %v6844 = vadd.f32 %v6842, %v6843
      %v6845 = vrot.slane %v6844, 1
      %v6846 = vadd.f32 %v6844, %v6845
      %v6847 = vsel %vm293, %v6837, 0.0
      %v6848 = vrot.slane %v6847, 4
      %v6849 = vadd.f32 %v6847, %v6848
      %v6850 = vrot.slane %v6849, 2
      %v6851 = vadd.f32 %v6849, %v6850
      %v6852 = vrot.slane %v6851, 1
      %v6853 = vadd.f32 %v6851, %v6852
      %v6854 = vsel %vm293, %v6838, 0.0
      %v6855 = vrot.slane %v6854, 4
      %v6856 = vadd.f32 %v6854, %v6855
      %v6857 = vrot.slane %v6856, 2
      %v6858 = vadd.f32 %v6856, %v6857
      %v6859 = vrot.slane %v6858, 1
      %v6860 = vadd.f32 %v6858, %v6859
      %v6861 = vsel %vm293, %v6839, 0.0
      %v6862 = vrot.slane %v6861, 4
      %v6863 = vadd.f32 %v6861, %v6862
      %v6864 = vrot.slane %v6863, 2
      %v6865 = vadd.f32 %v6863, %v6864
      %v6866 = vrot.slane %v6865, 1
      %v6867 = vadd.f32 %v6865, %v6866
      %v6868 = vmul.f32 %v6846, %v472
      %v6869 = vmul.f32 %v6853, %v472
      %v6870 = vmul.f32 %v6860, %v472
      %v6871 = vmul.f32 %v6867, %v472
      %v6872 = vadd.f32 %v6868, 1e-06
      %v6873 = vadd.f32 %v6869, 1e-06
      %v6874 = vadd.f32 %v6870, 1e-06
      %v6875 = vadd.f32 %v6871, 1e-06
      %v6876 = vrsqrt.pop %v6872
      %v6877 = vrsqrt.pop %v6873
      %v6878 = vrsqrt.pop %v6874
      %v6879 = vrsqrt.pop %v6875
      %v6880 = vmul.f32 %v6832, %v6876
      %v6881 = vmul.f32 %v6833, %v6877
      %v6882 = vmul.f32 %v6834, %v6878
      %v6883 = vmul.f32 %v6835, %v6879
      %6884 = vset.pattern.permute.xlu0 32
      %6885 = vperm.xlu0 %6884, %v274
      %v6886 = vpop.permute.xlu0 %6885
      %v6888 = vmul.f32 %v6880, %v6886
      %v6889 = vmul.f32 %v6881, %v6886
      %v6890 = vmul.f32 %v6882, %v6886
      %v6891 = vmul.f32 %v6883, %v6886
      %6892 = vset.pattern.permute.xlu0 33
      %6893 = vperm.xlu0 %6892, %v274
      %v6894 = vpop.permute.xlu0 %6893
      %v6896 = vadd.f32 %v6888, %v6894
      %v6897 = vadd.f32 %v6889, %v6894
      %v6898 = vadd.f32 %v6890, %v6894
      %v6899 = vadd.f32 %v6891, %v6894
      %v6900 = vmul.f32 %v6896, 0.5
      %v6901 = vmul.f32 %v6897, 0.5
      %v6902 = vmul.f32 %v6898, 0.5
      %v6903 = vmul.f32 %v6899, 0.5
      %v6904 = vmul.f32 %v6896, 0.70710677
      %v6905 = vmul.f32 %v6897, 0.70710677
      %v6906 = vmul.f32 %v6898, 0.70710677
      %v6907 = vmul.f32 %v6899, 0.70710677
      %v6908 = verf.f32.pop %v6904
      %v6909 = verf.f32.pop %v6905
      %v6910 = verf.f32.pop %v6906
      %v6911 = verf.f32.pop %v6907
      %v6912 = vadd.f32 %v6908, 1.0
      %v6913 = vadd.f32 %v6909, 1.0
      %v6914 = vadd.f32 %v6910, 1.0
      %v6915 = vadd.f32 %v6911, 1.0
      %v6916 = vmul.f32 %v6900, %v6912
      %v6917 = vmul.f32 %v6901, %v6913
      %v6918 = vmul.f32 %v6902, %v6914
      %v6919 = vmul.f32 %v6903, %v6915
      %6920 = vrot.lane.b32.xlu0 %v6916, 64
      %v6921 = vpop.permute.xlu0 %6920
      %6922 = vrot.lane.b32.xlu0 %v6917, 64
      %v6923 = vpop.permute.xlu0 %6922
      %6924 = vrot.lane.b32.xlu0 %v6918, 64
      %v6925 = vpop.permute.xlu0 %6924
      %6926 = vrot.lane.b32.xlu0 %v6919, 64
      %v6927 = vpop.permute.xlu0 %6926
      %v6928 = vsel %vm575, %v6925, %v6927
      %v6929 = vsel %vm575, %v6923, %v6925
      %v6930 = vsel %vm575, %v6921, %v6923
      %v6931 = vsel %vm575, %v6927, %v6921
      %v6932 = vmul.f32 %v6931, %v583
      %v6933 = vmul.f32 %v6930, %v587
      %v6934 = vmul.f32 %v6929, %v591
      %v6935 = vmul.f32 %v6928, %v595
      %6936 = vrot.lane.b32.xlu0 %v6932, 8
      %v6937 = vpop.permute.xlu0 %6936
      %6938 = vrot.lane.b32.xlu0 %v6933, 8
      %v6939 = vpop.permute.xlu0 %6938
      %6940 = vrot.lane.b32.xlu0 %v6934, 8
      %v6941 = vpop.permute.xlu0 %6940
      %6942 = vrot.lane.b32.xlu0 %v6935, 8
      %v6943 = vpop.permute.xlu0 %6942
      %v6944 = vsel %vm608, %v6941, %v6943
      %v6945 = vsel %vm608, %v6939, %v6941
      %v6946 = vsel %vm608, %v6937, %v6939
      %v6947 = vsel %vm608, %v6943, %v6937
      %v6948 = vmul.f32 %v6947, %v616
      %v6949 = vmul.f32 %v6946, %v620
      %v6950 = vmul.f32 %v6945, %v624
      %v6951 = vmul.f32 %v6944, %v628
      %6952 = vrot.lane.b32.xlu0 %v6948, 1
      %v6953 = vpop.permute.xlu0 %6952
      %6954 = vrot.lane.b32.xlu0 %v6949, 1
      %v6955 = vpop.permute.xlu0 %6954
      %6956 = vrot.lane.b32.xlu0 %v6950, 1
      %v6957 = vpop.permute.xlu0 %6956
      %6958 = vrot.lane.b32.xlu0 %v6951, 1
      %v6959 = vpop.permute.xlu0 %6958
      %v6960 = vsel %vm641, %v6957, %v6959
      %v6961 = vsel %vm641, %v6955, %v6957
      %v6962 = vsel %vm641, %v6953, %v6955
      %v6963 = vsel %vm641, %v6959, %v6953
      %v6964 = vmul.f32 %v6963, %v649
      %v6965 = vmul.f32 %v6962, %v653
      %v6966 = vmul.f32 %v6961, %v657
      %v6967 = vmul.f32 %v6960, %v661
      %6968 = vset.pattern.permute.xlu0 4
      %6969 = vperm.xlu0 %6968, %v274
      %v6970 = vpop.permute.xlu0 %6969
      %v6972 = vmul.f32 %v6970, %v6964
      %v6973 = vmul.f32 %v6970, %v6965
      %v6974 = vmul.f32 %v6970, %v6966
      %v6975 = vmul.f32 %v6970, %v6967
      %v6976 = vadd.f32 %v6972, 0.0
      %v6977 = vadd.f32 %v6973, 0.0
      %v6978 = vadd.f32 %v6974, 0.0
      %v6979 = vadd.f32 %v6975, 0.0
      %6980 = vset.pattern.permute.xlu0 5
      %6981 = vperm.xlu0 %6980, %v274
      %v6982 = vpop.permute.xlu0 %6981
      %v6984 = vmul.f32 %v6982, %v6948
      %v6985 = vmul.f32 %v6982, %v6949
      %v6986 = vmul.f32 %v6982, %v6950
      %v6987 = vmul.f32 %v6982, %v6951
      %v6988 = vadd.f32 %v6976, %v6984
      %v6989 = vadd.f32 %v6977, %v6985
      %v6990 = vadd.f32 %v6978, %v6986
      %v6991 = vadd.f32 %v6979, %v6987
      %6992 = vrot.lane.b32.xlu0 %v6948, 127
      %v6993 = vpop.permute.xlu0 %6992
      %6994 = vrot.lane.b32.xlu0 %v6949, 127
      %v6995 = vpop.permute.xlu0 %6994
      %6996 = vrot.lane.b32.xlu0 %v6950, 127
      %v6997 = vpop.permute.xlu0 %6996
      %6998 = vrot.lane.b32.xlu0 %v6951, 127
      %v6999 = vpop.permute.xlu0 %6998
      %v7000 = vsel %vm698, %v6997, %v6999
      %v7001 = vsel %vm698, %v6995, %v6997
      %v7002 = vsel %vm698, %v6993, %v6995
      %v7003 = vsel %vm698, %v6999, %v6993
      %v7004 = vmul.f32 %v7002, %v706
      %v7005 = vmul.f32 %v7001, %v710
      %v7006 = vmul.f32 %v7000, %v714
      %v7007 = vmul.f32 %v7003, %v718
      %7008 = vset.pattern.permute.xlu0 6
      %7009 = vperm.xlu0 %7008, %v274
      %v7010 = vpop.permute.xlu0 %7009
      %v7012 = vmul.f32 %v7010, %v7004
      %v7013 = vmul.f32 %v7010, %v7005
      %v7014 = vmul.f32 %v7010, %v7006
      %v7015 = vmul.f32 %v7010, %v7007
      %v7016 = vadd.f32 %v6988, %v7012
      %v7017 = vadd.f32 %v6989, %v7013
      %v7018 = vadd.f32 %v6990, %v7014
      %v7019 = vadd.f32 %v6991, %v7015
      %7020 = vrot.lane.b32.xlu0 %v6932, 1
      %v7021 = vpop.permute.xlu0 %7020
      %7022 = vrot.lane.b32.xlu0 %v6933, 1
      %v7023 = vpop.permute.xlu0 %7022
      %7024 = vrot.lane.b32.xlu0 %v6934, 1
      %v7025 = vpop.permute.xlu0 %7024
      %7026 = vrot.lane.b32.xlu0 %v6935, 1
      %v7027 = vpop.permute.xlu0 %7026
      %v7028 = vsel %vm641, %v7025, %v7027
      %v7029 = vsel %vm641, %v7023, %v7025
      %v7030 = vsel %vm641, %v7021, %v7023
      %v7031 = vsel %vm641, %v7027, %v7021
      %v7032 = vmul.f32 %v7031, %v649
      %v7033 = vmul.f32 %v7030, %v653
      %v7034 = vmul.f32 %v7029, %v657
      %v7035 = vmul.f32 %v7028, %v661
      %7036 = vset.pattern.permute.xlu0 7
      %7037 = vperm.xlu0 %7036, %v274
      %v7038 = vpop.permute.xlu0 %7037
      %v7040 = vmul.f32 %v7038, %v7032
      %v7041 = vmul.f32 %v7038, %v7033
      %v7042 = vmul.f32 %v7038, %v7034
      %v7043 = vmul.f32 %v7038, %v7035
      %v7044 = vadd.f32 %v7016, %v7040
      %v7045 = vadd.f32 %v7017, %v7041
      %v7046 = vadd.f32 %v7018, %v7042
      %v7047 = vadd.f32 %v7019, %v7043
      %7048 = vset.pattern.permute.xlu0 8
      %7049 = vperm.xlu0 %7048, %v274
      %v7050 = vpop.permute.xlu0 %7049
      %v7052 = vmul.f32 %v7050, %v6932
      %v7053 = vmul.f32 %v7050, %v6933
      %v7054 = vmul.f32 %v7050, %v6934
      %v7055 = vmul.f32 %v7050, %v6935
      %v7056 = vadd.f32 %v7044, %v7052
      %v7057 = vadd.f32 %v7045, %v7053
      %v7058 = vadd.f32 %v7046, %v7054
      %v7059 = vadd.f32 %v7047, %v7055
      %7060 = vrot.lane.b32.xlu0 %v6932, 127
      %v7061 = vpop.permute.xlu0 %7060
      %7062 = vrot.lane.b32.xlu0 %v6933, 127
      %v7063 = vpop.permute.xlu0 %7062
      %7064 = vrot.lane.b32.xlu0 %v6934, 127
      %v7065 = vpop.permute.xlu0 %7064
      %7066 = vrot.lane.b32.xlu0 %v6935, 127
      %v7067 = vpop.permute.xlu0 %7066
      %v7068 = vsel %vm698, %v7065, %v7067
      %v7069 = vsel %vm698, %v7063, %v7065
      %v7070 = vsel %vm698, %v7061, %v7063
      %v7071 = vsel %vm698, %v7067, %v7061
      %v7072 = vmul.f32 %v7070, %v706
      %v7073 = vmul.f32 %v7069, %v710
      %v7074 = vmul.f32 %v7068, %v714
      %v7075 = vmul.f32 %v7071, %v718
      %7076 = vset.pattern.permute.xlu0 9
      %7077 = vperm.xlu0 %7076, %v274
      %v7078 = vpop.permute.xlu0 %7077
      %v7080 = vmul.f32 %v7078, %v7072
      %v7081 = vmul.f32 %v7078, %v7073
      %v7082 = vmul.f32 %v7078, %v7074
      %v7083 = vmul.f32 %v7078, %v7075
      %v7084 = vadd.f32 %v7056, %v7080
      %v7085 = vadd.f32 %v7057, %v7081
      %v7086 = vadd.f32 %v7058, %v7082
      %v7087 = vadd.f32 %v7059, %v7083
      %7088 = vrot.lane.b32.xlu0 %v6932, 120
      %v7089 = vpop.permute.xlu0 %7088
      %7090 = vrot.lane.b32.xlu0 %v6933, 120
      %v7091 = vpop.permute.xlu0 %7090
      %7092 = vrot.lane.b32.xlu0 %v6934, 120
      %v7093 = vpop.permute.xlu0 %7092
      %7094 = vrot.lane.b32.xlu0 %v6935, 120
      %v7095 = vpop.permute.xlu0 %7094
      %v7096 = vsel %vm811, %v7093, %v7095
      %v7097 = vsel %vm811, %v7091, %v7093
      %v7098 = vsel %vm811, %v7089, %v7091
      %v7099 = vsel %vm811, %v7095, %v7089
      %v7100 = vmul.f32 %v7098, %v819
      %v7101 = vmul.f32 %v7097, %v823
      %v7102 = vmul.f32 %v7096, %v827
      %v7103 = vmul.f32 %v7099, %v831
      %7104 = vrot.lane.b32.xlu0 %v7100, 1
      %v7105 = vpop.permute.xlu0 %7104
      %7106 = vrot.lane.b32.xlu0 %v7101, 1
      %v7107 = vpop.permute.xlu0 %7106
      %7108 = vrot.lane.b32.xlu0 %v7102, 1
      %v7109 = vpop.permute.xlu0 %7108
      %7110 = vrot.lane.b32.xlu0 %v7103, 1
      %v7111 = vpop.permute.xlu0 %7110
      %v7112 = vsel %vm641, %v7109, %v7111
      %v7113 = vsel %vm641, %v7107, %v7109
      %v7114 = vsel %vm641, %v7105, %v7107
      %v7115 = vsel %vm641, %v7111, %v7105
      %v7116 = vmul.f32 %v7115, %v649
      %v7117 = vmul.f32 %v7114, %v653
      %v7118 = vmul.f32 %v7113, %v657
      %v7119 = vmul.f32 %v7112, %v661
      %7120 = vset.pattern.permute.xlu0 10
      %7121 = vperm.xlu0 %7120, %v274
      %v7122 = vpop.permute.xlu0 %7121
      %v7124 = vmul.f32 %v7122, %v7116
      %v7125 = vmul.f32 %v7122, %v7117
      %v7126 = vmul.f32 %v7122, %v7118
      %v7127 = vmul.f32 %v7122, %v7119
      %v7128 = vadd.f32 %v7084, %v7124
      %v7129 = vadd.f32 %v7085, %v7125
      %v7130 = vadd.f32 %v7086, %v7126
      %v7131 = vadd.f32 %v7087, %v7127
      %7132 = vset.pattern.permute.xlu0 11
      %7133 = vperm.xlu0 %7132, %v274
      %v7134 = vpop.permute.xlu0 %7133
      %v7136 = vmul.f32 %v7134, %v7100
      %v7137 = vmul.f32 %v7134, %v7101
      %v7138 = vmul.f32 %v7134, %v7102
      %v7139 = vmul.f32 %v7134, %v7103
      %v7140 = vadd.f32 %v7128, %v7136
      %v7141 = vadd.f32 %v7129, %v7137
      %v7142 = vadd.f32 %v7130, %v7138
      %v7143 = vadd.f32 %v7131, %v7139
      %7144 = vrot.lane.b32.xlu0 %v7100, 127
      %v7145 = vpop.permute.xlu0 %7144
      %7146 = vrot.lane.b32.xlu0 %v7101, 127
      %v7147 = vpop.permute.xlu0 %7146
      %7148 = vrot.lane.b32.xlu0 %v7102, 127
      %v7149 = vpop.permute.xlu0 %7148
      %7150 = vrot.lane.b32.xlu0 %v7103, 127
      %v7151 = vpop.permute.xlu0 %7150
      %v7152 = vsel %vm698, %v7149, %v7151
      %v7153 = vsel %vm698, %v7147, %v7149
      %v7154 = vsel %vm698, %v7145, %v7147
      %v7155 = vsel %vm698, %v7151, %v7145
      %v7156 = vmul.f32 %v7154, %v706
      %v7157 = vmul.f32 %v7153, %v710
      %v7158 = vmul.f32 %v7152, %v714
      %v7159 = vmul.f32 %v7155, %v718
      %7160 = vset.pattern.permute.xlu0 12
      %7161 = vperm.xlu0 %7160, %v274
      %v7162 = vpop.permute.xlu0 %7161
      %v7164 = vmul.f32 %v7162, %v7156
      %v7165 = vmul.f32 %v7162, %v7157
      %v7166 = vmul.f32 %v7162, %v7158
      %v7167 = vmul.f32 %v7162, %v7159
      %v7168 = vadd.f32 %v7140, %v7164
      %v7169 = vadd.f32 %v7141, %v7165
      %v7170 = vadd.f32 %v7142, %v7166
      %v7171 = vadd.f32 %v7143, %v7167
      %7172 = vrot.lane.b32.xlu0 %v6916, 8
      %v7173 = vpop.permute.xlu0 %7172
      %7174 = vrot.lane.b32.xlu0 %v6917, 8
      %v7175 = vpop.permute.xlu0 %7174
      %7176 = vrot.lane.b32.xlu0 %v6918, 8
      %v7177 = vpop.permute.xlu0 %7176
      %7178 = vrot.lane.b32.xlu0 %v6919, 8
      %v7179 = vpop.permute.xlu0 %7178
      %v7180 = vsel %vm608, %v7177, %v7179
      %v7181 = vsel %vm608, %v7175, %v7177
      %v7182 = vsel %vm608, %v7173, %v7175
      %v7183 = vsel %vm608, %v7179, %v7173
      %v7184 = vmul.f32 %v7183, %v616
      %v7185 = vmul.f32 %v7182, %v620
      %v7186 = vmul.f32 %v7181, %v624
      %v7187 = vmul.f32 %v7180, %v628
      %7188 = vrot.lane.b32.xlu0 %v7184, 1
      %v7189 = vpop.permute.xlu0 %7188
      %7190 = vrot.lane.b32.xlu0 %v7185, 1
      %v7191 = vpop.permute.xlu0 %7190
      %7192 = vrot.lane.b32.xlu0 %v7186, 1
      %v7193 = vpop.permute.xlu0 %7192
      %7194 = vrot.lane.b32.xlu0 %v7187, 1
      %v7195 = vpop.permute.xlu0 %7194
      %v7196 = vsel %vm641, %v7193, %v7195
      %v7197 = vsel %vm641, %v7191, %v7193
      %v7198 = vsel %vm641, %v7189, %v7191
      %v7199 = vsel %vm641, %v7195, %v7189
      %v7200 = vmul.f32 %v7199, %v649
      %v7201 = vmul.f32 %v7198, %v653
      %v7202 = vmul.f32 %v7197, %v657
      %v7203 = vmul.f32 %v7196, %v661
      %7204 = vset.pattern.permute.xlu0 13
      %7205 = vperm.xlu0 %7204, %v274
      %v7206 = vpop.permute.xlu0 %7205
      %v7208 = vmul.f32 %v7206, %v7200
      %v7209 = vmul.f32 %v7206, %v7201
      %v7210 = vmul.f32 %v7206, %v7202
      %v7211 = vmul.f32 %v7206, %v7203
      %v7212 = vadd.f32 %v7168, %v7208
      %v7213 = vadd.f32 %v7169, %v7209
      %v7214 = vadd.f32 %v7170, %v7210
      %v7215 = vadd.f32 %v7171, %v7211
      %7216 = vset.pattern.permute.xlu0 14
      %7217 = vperm.xlu0 %7216, %v274
      %v7218 = vpop.permute.xlu0 %7217
      %v7220 = vmul.f32 %v7218, %v7184
      %v7221 = vmul.f32 %v7218, %v7185
      %v7222 = vmul.f32 %v7218, %v7186
      %v7223 = vmul.f32 %v7218, %v7187
      %v7224 = vadd.f32 %v7212, %v7220
      %v7225 = vadd.f32 %v7213, %v7221
      %v7226 = vadd.f32 %v7214, %v7222
      %v7227 = vadd.f32 %v7215, %v7223
      %7228 = vrot.lane.b32.xlu0 %v7184, 127
      %v7229 = vpop.permute.xlu0 %7228
      %7230 = vrot.lane.b32.xlu0 %v7185, 127
      %v7231 = vpop.permute.xlu0 %7230
      %7232 = vrot.lane.b32.xlu0 %v7186, 127
      %v7233 = vpop.permute.xlu0 %7232
      %7234 = vrot.lane.b32.xlu0 %v7187, 127
      %v7235 = vpop.permute.xlu0 %7234
      %v7236 = vsel %vm698, %v7233, %v7235
      %v7237 = vsel %vm698, %v7231, %v7233
      %v7238 = vsel %vm698, %v7229, %v7231
      %v7239 = vsel %vm698, %v7235, %v7229
      %v7240 = vmul.f32 %v7238, %v706
      %v7241 = vmul.f32 %v7237, %v710
      %v7242 = vmul.f32 %v7236, %v714
      %v7243 = vmul.f32 %v7239, %v718
      %7244 = vset.pattern.permute.xlu0 15
      %7245 = vperm.xlu0 %7244, %v274
      %v7246 = vpop.permute.xlu0 %7245
      %v7248 = vmul.f32 %v7246, %v7240
      %v7249 = vmul.f32 %v7246, %v7241
      %v7250 = vmul.f32 %v7246, %v7242
      %v7251 = vmul.f32 %v7246, %v7243
      %v7252 = vadd.f32 %v7224, %v7248
      %v7253 = vadd.f32 %v7225, %v7249
      %v7254 = vadd.f32 %v7226, %v7250
      %v7255 = vadd.f32 %v7227, %v7251
      %7256 = vrot.lane.b32.xlu0 %v6916, 1
      %v7257 = vpop.permute.xlu0 %7256
      %7258 = vrot.lane.b32.xlu0 %v6917, 1
      %v7259 = vpop.permute.xlu0 %7258
      %7260 = vrot.lane.b32.xlu0 %v6918, 1
      %v7261 = vpop.permute.xlu0 %7260
      %7262 = vrot.lane.b32.xlu0 %v6919, 1
      %v7263 = vpop.permute.xlu0 %7262
      %v7264 = vsel %vm641, %v7261, %v7263
      %v7265 = vsel %vm641, %v7259, %v7261
      %v7266 = vsel %vm641, %v7257, %v7259
      %v7267 = vsel %vm641, %v7263, %v7257
      %v7268 = vmul.f32 %v7267, %v649
      %v7269 = vmul.f32 %v7266, %v653
      %v7270 = vmul.f32 %v7265, %v657
      %v7271 = vmul.f32 %v7264, %v661
      %7272 = vset.pattern.permute.xlu0 16
      %7273 = vperm.xlu0 %7272, %v274
      %v7274 = vpop.permute.xlu0 %7273
      %v7276 = vmul.f32 %v7274, %v7268
      %v7277 = vmul.f32 %v7274, %v7269
      %v7278 = vmul.f32 %v7274, %v7270
      %v7279 = vmul.f32 %v7274, %v7271
      %v7280 = vadd.f32 %v7252, %v7276
      %v7281 = vadd.f32 %v7253, %v7277
      %v7282 = vadd.f32 %v7254, %v7278
      %v7283 = vadd.f32 %v7255, %v7279
      %7284 = vset.pattern.permute.xlu0 17
      %7285 = vperm.xlu0 %7284, %v274
      %v7286 = vpop.permute.xlu0 %7285
      %v7288 = vmul.f32 %v7286, %v6916
      %v7289 = vmul.f32 %v7286, %v6917
      %v7290 = vmul.f32 %v7286, %v6918
      %v7291 = vmul.f32 %v7286, %v6919
      %v7292 = vadd.f32 %v7280, %v7288
      %v7293 = vadd.f32 %v7281, %v7289
      %v7294 = vadd.f32 %v7282, %v7290
      %v7295 = vadd.f32 %v7283, %v7291
      %7296 = vrot.lane.b32.xlu0 %v6916, 127
      %v7297 = vpop.permute.xlu0 %7296
      %7298 = vrot.lane.b32.xlu0 %v6917, 127
      %v7299 = vpop.permute.xlu0 %7298
      %7300 = vrot.lane.b32.xlu0 %v6918, 127
      %v7301 = vpop.permute.xlu0 %7300
      %7302 = vrot.lane.b32.xlu0 %v6919, 127
      %v7303 = vpop.permute.xlu0 %7302
      %v7304 = vsel %vm698, %v7301, %v7303
      %v7305 = vsel %vm698, %v7299, %v7301
      %v7306 = vsel %vm698, %v7297, %v7299
      %v7307 = vsel %vm698, %v7303, %v7297
      %v7308 = vmul.f32 %v7306, %v706
      %v7309 = vmul.f32 %v7305, %v710
      %v7310 = vmul.f32 %v7304, %v714
      %v7311 = vmul.f32 %v7307, %v718
      %7312 = vset.pattern.permute.xlu0 18
      %7313 = vperm.xlu0 %7312, %v274
      %v7314 = vpop.permute.xlu0 %7313
      %v7316 = vmul.f32 %v7314, %v7308
      %v7317 = vmul.f32 %v7314, %v7309
      %v7318 = vmul.f32 %v7314, %v7310
      %v7319 = vmul.f32 %v7314, %v7311
      %v7320 = vadd.f32 %v7292, %v7316
      %v7321 = vadd.f32 %v7293, %v7317
      %v7322 = vadd.f32 %v7294, %v7318
      %v7323 = vadd.f32 %v7295, %v7319
      %7324 = vrot.lane.b32.xlu0 %v6916, 120
      %v7325 = vpop.permute.xlu0 %7324
      %7326 = vrot.lane.b32.xlu0 %v6917, 120
      %v7327 = vpop.permute.xlu0 %7326
      %7328 = vrot.lane.b32.xlu0 %v6918, 120
      %v7329 = vpop.permute.xlu0 %7328
      %7330 = vrot.lane.b32.xlu0 %v6919, 120
      %v7331 = vpop.permute.xlu0 %7330
      %v7332 = vsel %vm811, %v7329, %v7331
      %v7333 = vsel %vm811, %v7327, %v7329
      %v7334 = vsel %vm811, %v7325, %v7327
      %v7335 = vsel %vm811, %v7331, %v7325
      %v7336 = vmul.f32 %v7334, %v819
      %v7337 = vmul.f32 %v7333, %v823
      %v7338 = vmul.f32 %v7332, %v827
      %v7339 = vmul.f32 %v7335, %v831
      %7340 = vrot.lane.b32.xlu0 %v7336, 1
      %v7341 = vpop.permute.xlu0 %7340
      %7342 = vrot.lane.b32.xlu0 %v7337, 1
      %v7343 = vpop.permute.xlu0 %7342
      %7344 = vrot.lane.b32.xlu0 %v7338, 1
      %v7345 = vpop.permute.xlu0 %7344
      %7346 = vrot.lane.b32.xlu0 %v7339, 1
      %v7347 = vpop.permute.xlu0 %7346
      %v7348 = vsel %vm641, %v7345, %v7347
      %v7349 = vsel %vm641, %v7343, %v7345
      %v7350 = vsel %vm641, %v7341, %v7343
      %v7351 = vsel %vm641, %v7347, %v7341
      %v7352 = vmul.f32 %v7351, %v649
      %v7353 = vmul.f32 %v7350, %v653
      %v7354 = vmul.f32 %v7349, %v657
      %v7355 = vmul.f32 %v7348, %v661
      %7356 = vset.pattern.permute.xlu0 19
      %7357 = vperm.xlu0 %7356, %v274
      %v7358 = vpop.permute.xlu0 %7357
      %v7360 = vmul.f32 %v7358, %v7352
      %v7361 = vmul.f32 %v7358, %v7353
      %v7362 = vmul.f32 %v7358, %v7354
      %v7363 = vmul.f32 %v7358, %v7355
      %v7364 = vadd.f32 %v7320, %v7360
      %v7365 = vadd.f32 %v7321, %v7361
      %v7366 = vadd.f32 %v7322, %v7362
      %v7367 = vadd.f32 %v7323, %v7363
      %7368 = vset.pattern.permute.xlu0 20
      %7369 = vperm.xlu0 %7368, %v274
      %v7370 = vpop.permute.xlu0 %7369
      %v7372 = vmul.f32 %v7370, %v7336
      %v7373 = vmul.f32 %v7370, %v7337
      %v7374 = vmul.f32 %v7370, %v7338
      %v7375 = vmul.f32 %v7370, %v7339
      %v7376 = vadd.f32 %v7364, %v7372
      %v7377 = vadd.f32 %v7365, %v7373
      %v7378 = vadd.f32 %v7366, %v7374
      %v7379 = vadd.f32 %v7367, %v7375
      %7380 = vrot.lane.b32.xlu0 %v7336, 127
      %v7381 = vpop.permute.xlu0 %7380
      %7382 = vrot.lane.b32.xlu0 %v7337, 127
      %v7383 = vpop.permute.xlu0 %7382
      %7384 = vrot.lane.b32.xlu0 %v7338, 127
      %v7385 = vpop.permute.xlu0 %7384
      %7386 = vrot.lane.b32.xlu0 %v7339, 127
      %v7387 = vpop.permute.xlu0 %7386
      %v7388 = vsel %vm698, %v7385, %v7387
      %v7389 = vsel %vm698, %v7383, %v7385
      %v7390 = vsel %vm698, %v7381, %v7383
      %v7391 = vsel %vm698, %v7387, %v7381
      %v7392 = vmul.f32 %v7390, %v706
      %v7393 = vmul.f32 %v7389, %v710
      %v7394 = vmul.f32 %v7388, %v714
      %v7395 = vmul.f32 %v7391, %v718
      %7396 = vset.pattern.permute.xlu0 21
      %7397 = vperm.xlu0 %7396, %v274
      %v7398 = vpop.permute.xlu0 %7397
      %v7400 = vmul.f32 %v7398, %v7392
      %v7401 = vmul.f32 %v7398, %v7393
      %v7402 = vmul.f32 %v7398, %v7394
      %v7403 = vmul.f32 %v7398, %v7395
      %v7404 = vadd.f32 %v7376, %v7400
      %v7405 = vadd.f32 %v7377, %v7401
      %v7406 = vadd.f32 %v7378, %v7402
      %v7407 = vadd.f32 %v7379, %v7403
      %v7408 = vmul.f32 %v6930, %v1143
      %v7409 = vmul.f32 %v6929, %v1147
      %v7410 = vmul.f32 %v6928, %v1151
      %v7411 = vmul.f32 %v6931, %v1155
      %7412 = vrot.lane.b32.xlu0 %v7408, 8
      %v7413 = vpop.permute.xlu0 %7412
      %7414 = vrot.lane.b32.xlu0 %v7409, 8
      %v7415 = vpop.permute.xlu0 %7414
      %7416 = vrot.lane.b32.xlu0 %v7410, 8
      %v7417 = vpop.permute.xlu0 %7416
      %7418 = vrot.lane.b32.xlu0 %v7411, 8
      %v7419 = vpop.permute.xlu0 %7418
      %v7420 = vsel %vm608, %v7417, %v7419
      %v7421 = vsel %vm608, %v7415, %v7417
      %v7422 = vsel %vm608, %v7413, %v7415
      %v7423 = vsel %vm608, %v7419, %v7413
      %v7424 = vmul.f32 %v7423, %v616
      %v7425 = vmul.f32 %v7422, %v620
      %v7426 = vmul.f32 %v7421, %v624
      %v7427 = vmul.f32 %v7420, %v628
      %7428 = vrot.lane.b32.xlu0 %v7424, 1
      %v7429 = vpop.permute.xlu0 %7428
      %7430 = vrot.lane.b32.xlu0 %v7425, 1
      %v7431 = vpop.permute.xlu0 %7430
      %7432 = vrot.lane.b32.xlu0 %v7426, 1
      %v7433 = vpop.permute.xlu0 %7432
      %7434 = vrot.lane.b32.xlu0 %v7427, 1
      %v7435 = vpop.permute.xlu0 %7434
      %v7436 = vsel %vm641, %v7433, %v7435
      %v7437 = vsel %vm641, %v7431, %v7433
      %v7438 = vsel %vm641, %v7429, %v7431
      %v7439 = vsel %vm641, %v7435, %v7429
      %v7440 = vmul.f32 %v7439, %v649
      %v7441 = vmul.f32 %v7438, %v653
      %v7442 = vmul.f32 %v7437, %v657
      %v7443 = vmul.f32 %v7436, %v661
      %7444 = vset.pattern.permute.xlu0 22
      %7445 = vperm.xlu0 %7444, %v274
      %v7446 = vpop.permute.xlu0 %7445
      %v7448 = vmul.f32 %v7446, %v7440
      %v7449 = vmul.f32 %v7446, %v7441
      %v7450 = vmul.f32 %v7446, %v7442
      %v7451 = vmul.f32 %v7446, %v7443
      %v7452 = vadd.f32 %v7404, %v7448
      %v7453 = vadd.f32 %v7405, %v7449
      %v7454 = vadd.f32 %v7406, %v7450
      %v7455 = vadd.f32 %v7407, %v7451
      %7456 = vset.pattern.permute.xlu0 23
      %7457 = vperm.xlu0 %7456, %v274
      %v7458 = vpop.permute.xlu0 %7457
      %v7460 = vmul.f32 %v7458, %v7424
      %v7461 = vmul.f32 %v7458, %v7425
      %v7462 = vmul.f32 %v7458, %v7426
      %v7463 = vmul.f32 %v7458, %v7427
      %v7464 = vadd.f32 %v7452, %v7460
      %v7465 = vadd.f32 %v7453, %v7461
      %v7466 = vadd.f32 %v7454, %v7462
      %v7467 = vadd.f32 %v7455, %v7463
      %7468 = vrot.lane.b32.xlu0 %v7424, 127
      %v7469 = vpop.permute.xlu0 %7468
      %7470 = vrot.lane.b32.xlu0 %v7425, 127
      %v7471 = vpop.permute.xlu0 %7470
      %7472 = vrot.lane.b32.xlu0 %v7426, 127
      %v7473 = vpop.permute.xlu0 %7472
      %7474 = vrot.lane.b32.xlu0 %v7427, 127
      %v7475 = vpop.permute.xlu0 %7474
      %v7476 = vsel %vm698, %v7473, %v7475
      %v7477 = vsel %vm698, %v7471, %v7473
      %v7478 = vsel %vm698, %v7469, %v7471
      %v7479 = vsel %vm698, %v7475, %v7469
      %v7480 = vmul.f32 %v7478, %v706
      %v7481 = vmul.f32 %v7477, %v710
      %v7482 = vmul.f32 %v7476, %v714
      %v7483 = vmul.f32 %v7479, %v718
      %7484 = vset.pattern.permute.xlu0 24
      %7485 = vperm.xlu0 %7484, %v274
      %v7486 = vpop.permute.xlu0 %7485
      %v7488 = vmul.f32 %v7486, %v7480
      %v7489 = vmul.f32 %v7486, %v7481
      %v7490 = vmul.f32 %v7486, %v7482
      %v7491 = vmul.f32 %v7486, %v7483
      %v7492 = vadd.f32 %v7464, %v7488
      %v7493 = vadd.f32 %v7465, %v7489
      %v7494 = vadd.f32 %v7466, %v7490
      %v7495 = vadd.f32 %v7467, %v7491
      %7496 = vrot.lane.b32.xlu0 %v7408, 1
      %v7497 = vpop.permute.xlu0 %7496
      %7498 = vrot.lane.b32.xlu0 %v7409, 1
      %v7499 = vpop.permute.xlu0 %7498
      %7500 = vrot.lane.b32.xlu0 %v7410, 1
      %v7501 = vpop.permute.xlu0 %7500
      %7502 = vrot.lane.b32.xlu0 %v7411, 1
      %v7503 = vpop.permute.xlu0 %7502
      %v7504 = vsel %vm641, %v7501, %v7503
      %v7505 = vsel %vm641, %v7499, %v7501
      %v7506 = vsel %vm641, %v7497, %v7499
      %v7507 = vsel %vm641, %v7503, %v7497
      %v7508 = vmul.f32 %v7507, %v649
      %v7509 = vmul.f32 %v7506, %v653
      %v7510 = vmul.f32 %v7505, %v657
      %v7511 = vmul.f32 %v7504, %v661
      %7512 = vset.pattern.permute.xlu0 25
      %7513 = vperm.xlu0 %7512, %v274
      %v7514 = vpop.permute.xlu0 %7513
      %v7516 = vmul.f32 %v7514, %v7508
      %v7517 = vmul.f32 %v7514, %v7509
      %v7518 = vmul.f32 %v7514, %v7510
      %v7519 = vmul.f32 %v7514, %v7511
      %v7520 = vadd.f32 %v7492, %v7516
      %v7521 = vadd.f32 %v7493, %v7517
      %v7522 = vadd.f32 %v7494, %v7518
      %v7523 = vadd.f32 %v7495, %v7519
      %7524 = vset.pattern.permute.xlu0 26
      %7525 = vperm.xlu0 %7524, %v274
      %v7526 = vpop.permute.xlu0 %7525
      %v7528 = vmul.f32 %v7526, %v7408
      %v7529 = vmul.f32 %v7526, %v7409
      %v7530 = vmul.f32 %v7526, %v7410
      %v7531 = vmul.f32 %v7526, %v7411
      %v7532 = vadd.f32 %v7520, %v7528
      %v7533 = vadd.f32 %v7521, %v7529
      %v7534 = vadd.f32 %v7522, %v7530
      %v7535 = vadd.f32 %v7523, %v7531
      %7536 = vrot.lane.b32.xlu0 %v7408, 127
      %v7537 = vpop.permute.xlu0 %7536
      %7538 = vrot.lane.b32.xlu0 %v7409, 127
      %v7539 = vpop.permute.xlu0 %7538
      %7540 = vrot.lane.b32.xlu0 %v7410, 127
      %v7541 = vpop.permute.xlu0 %7540
      %7542 = vrot.lane.b32.xlu0 %v7411, 127
      %v7543 = vpop.permute.xlu0 %7542
      %v7544 = vsel %vm698, %v7541, %v7543
      %v7545 = vsel %vm698, %v7539, %v7541
      %v7546 = vsel %vm698, %v7537, %v7539
      %v7547 = vsel %vm698, %v7543, %v7537
      %v7548 = vmul.f32 %v7546, %v706
      %v7549 = vmul.f32 %v7545, %v710
      %v7550 = vmul.f32 %v7544, %v714
      %v7551 = vmul.f32 %v7547, %v718
      %7552 = vset.pattern.permute.xlu0 27
      %7553 = vperm.xlu0 %7552, %v274
      %v7554 = vpop.permute.xlu0 %7553
      %v7556 = vmul.f32 %v7554, %v7548
      %v7557 = vmul.f32 %v7554, %v7549
      %v7558 = vmul.f32 %v7554, %v7550
      %v7559 = vmul.f32 %v7554, %v7551
      %v7560 = vadd.f32 %v7532, %v7556
      %v7561 = vadd.f32 %v7533, %v7557
      %v7562 = vadd.f32 %v7534, %v7558
      %v7563 = vadd.f32 %v7535, %v7559
      %7564 = vrot.lane.b32.xlu0 %v7408, 120
      %v7565 = vpop.permute.xlu0 %7564
      %7566 = vrot.lane.b32.xlu0 %v7409, 120
      %v7567 = vpop.permute.xlu0 %7566
      %7568 = vrot.lane.b32.xlu0 %v7410, 120
      %v7569 = vpop.permute.xlu0 %7568
      %7570 = vrot.lane.b32.xlu0 %v7411, 120
      %v7571 = vpop.permute.xlu0 %7570
      %v7572 = vsel %vm811, %v7569, %v7571
      %v7573 = vsel %vm811, %v7567, %v7569
      %v7574 = vsel %vm811, %v7565, %v7567
      %v7575 = vsel %vm811, %v7571, %v7565
      %v7576 = vmul.f32 %v7574, %v819
      %v7577 = vmul.f32 %v7573, %v823
      %v7578 = vmul.f32 %v7572, %v827
      %v7579 = vmul.f32 %v7575, %v831
      %7580 = vrot.lane.b32.xlu0 %v7576, 1
      %v7581 = vpop.permute.xlu0 %7580
      %7582 = vrot.lane.b32.xlu0 %v7577, 1
      %v7583 = vpop.permute.xlu0 %7582
      %7584 = vrot.lane.b32.xlu0 %v7578, 1
      %v7585 = vpop.permute.xlu0 %7584
      %7586 = vrot.lane.b32.xlu0 %v7579, 1
      %v7587 = vpop.permute.xlu0 %7586
      %v7588 = vsel %vm641, %v7585, %v7587
      %v7589 = vsel %vm641, %v7583, %v7585
      %v7590 = vsel %vm641, %v7581, %v7583
      %v7591 = vsel %vm641, %v7587, %v7581
      %v7592 = vmul.f32 %v7591, %v649
      %v7593 = vmul.f32 %v7590, %v653
      %v7594 = vmul.f32 %v7589, %v657
      %v7595 = vmul.f32 %v7588, %v661
      %7596 = vset.pattern.permute.xlu0 28
      %7597 = vperm.xlu0 %7596, %v274
      %v7598 = vpop.permute.xlu0 %7597
      %v7600 = vmul.f32 %v7598, %v7592
      %v7601 = vmul.f32 %v7598, %v7593
      %v7602 = vmul.f32 %v7598, %v7594
      %v7603 = vmul.f32 %v7598, %v7595
      %v7604 = vadd.f32 %v7560, %v7600
      %v7605 = vadd.f32 %v7561, %v7601
      %v7606 = vadd.f32 %v7562, %v7602
      %v7607 = vadd.f32 %v7563, %v7603
      %7608 = vset.pattern.permute.xlu0 29
      %7609 = vperm.xlu0 %7608, %v274
      %v7610 = vpop.permute.xlu0 %7609
      %v7612 = vmul.f32 %v7610, %v7576
      %v7613 = vmul.f32 %v7610, %v7577
      %v7614 = vmul.f32 %v7610, %v7578
      %v7615 = vmul.f32 %v7610, %v7579
      %v7616 = vadd.f32 %v7604, %v7612
      %v7617 = vadd.f32 %v7605, %v7613
      %v7618 = vadd.f32 %v7606, %v7614
      %v7619 = vadd.f32 %v7607, %v7615
      %7620 = vrot.lane.b32.xlu0 %v7576, 127
      %v7621 = vpop.permute.xlu0 %7620
      %7622 = vrot.lane.b32.xlu0 %v7577, 127
      %v7623 = vpop.permute.xlu0 %7622
      %7624 = vrot.lane.b32.xlu0 %v7578, 127
      %v7625 = vpop.permute.xlu0 %7624
      %7626 = vrot.lane.b32.xlu0 %v7579, 127
      %v7627 = vpop.permute.xlu0 %7626
      %v7628 = vsel %vm698, %v7625, %v7627
      %v7629 = vsel %vm698, %v7623, %v7625
      %v7630 = vsel %vm698, %v7621, %v7623
      %v7631 = vsel %vm698, %v7627, %v7621
      %v7632 = vmul.f32 %v7630, %v706
      %v7633 = vmul.f32 %v7629, %v710
      %v7634 = vmul.f32 %v7628, %v714
      %v7635 = vmul.f32 %v7631, %v718
      %7636 = vset.pattern.permute.xlu0 30
      %7637 = vperm.xlu0 %7636, %v274
      %v7638 = vpop.permute.xlu0 %7637
      %v7640 = vmul.f32 %v7638, %v7632
      %v7641 = vmul.f32 %v7638, %v7633
      %v7642 = vmul.f32 %v7638, %v7634
      %v7643 = vmul.f32 %v7638, %v7635
      %v7644 = vadd.f32 %v7616, %v7640
      %v7645 = vadd.f32 %v7617, %v7641
      %v7646 = vadd.f32 %v7618, %v7642
      %v7647 = vadd.f32 %v7619, %v7643
      %7648 = vset.pattern.permute.xlu0 34
      %7649 = vperm.xlu0 %7648, %v274
      %v7650 = vpop.permute.xlu0 %7649
      %v7652 = vadd.f32 %v7644, %v7650
      %v7653 = vadd.f32 %v7645, %v7650
      %v7654 = vadd.f32 %v7646, %v7650
      %v7655 = vadd.f32 %v7647, %v7650
      %v7656 = vsel %vm293, %v7652, 0.0
      %v7657 = vrot.slane %v7656, 4
      %v7658 = vadd.f32 %v7656, %v7657
      %v7659 = vrot.slane %v7658, 2
      %v7660 = vadd.f32 %v7658, %v7659
      %v7661 = vrot.slane %v7660, 1
      %v7662 = vadd.f32 %v7660, %v7661
      %v7663 = vsel %vm293, %v7653, 0.0
      %v7664 = vrot.slane %v7663, 4
      %v7665 = vadd.f32 %v7663, %v7664
      %v7666 = vrot.slane %v7665, 2
      %v7667 = vadd.f32 %v7665, %v7666
      %v7668 = vrot.slane %v7667, 1
      %v7669 = vadd.f32 %v7667, %v7668
      %v7670 = vsel %vm293, %v7654, 0.0
      %v7671 = vrot.slane %v7670, 4
      %v7672 = vadd.f32 %v7670, %v7671
      %v7673 = vrot.slane %v7672, 2
      %v7674 = vadd.f32 %v7672, %v7673
      %v7675 = vrot.slane %v7674, 1
      %v7676 = vadd.f32 %v7674, %v7675
      %v7677 = vsel %vm293, %v7655, 0.0
      %v7678 = vrot.slane %v7677, 4
      %v7679 = vadd.f32 %v7677, %v7678
      %v7680 = vrot.slane %v7679, 2
      %v7681 = vadd.f32 %v7679, %v7680
      %v7682 = vrot.slane %v7681, 1
      %v7683 = vadd.f32 %v7681, %v7682
      %v7684 = vmul.f32 %v7662, %v472
      %v7685 = vmul.f32 %v7669, %v472
      %v7686 = vmul.f32 %v7676, %v472
      %v7687 = vmul.f32 %v7683, %v472
      %v7688 = vsub.f32 %v7652, %v7684
      %v7689 = vsub.f32 %v7653, %v7685
      %v7690 = vsub.f32 %v7654, %v7686
      %v7691 = vsub.f32 %v7655, %v7687
      %v7692 = vmul.f32 %v7688, %v7688
      %v7693 = vmul.f32 %v7689, %v7689
      %v7694 = vmul.f32 %v7690, %v7690
      %v7695 = vmul.f32 %v7691, %v7691
      %v7696 = vsel %vm293, %v7692, 0.0
      %v7697 = vrot.slane %v7696, 4
      %v7698 = vadd.f32 %v7696, %v7697
      %v7699 = vrot.slane %v7698, 2
      %v7700 = vadd.f32 %v7698, %v7699
      %v7701 = vrot.slane %v7700, 1
      %v7702 = vadd.f32 %v7700, %v7701
      %v7703 = vsel %vm293, %v7693, 0.0
      %v7704 = vrot.slane %v7703, 4
      %v7705 = vadd.f32 %v7703, %v7704
      %v7706 = vrot.slane %v7705, 2
      %v7707 = vadd.f32 %v7705, %v7706
      %v7708 = vrot.slane %v7707, 1
      %v7709 = vadd.f32 %v7707, %v7708
      %v7710 = vsel %vm293, %v7694, 0.0
      %v7711 = vrot.slane %v7710, 4
      %v7712 = vadd.f32 %v7710, %v7711
      %v7713 = vrot.slane %v7712, 2
      %v7714 = vadd.f32 %v7712, %v7713
      %v7715 = vrot.slane %v7714, 1
      %v7716 = vadd.f32 %v7714, %v7715
      %v7717 = vsel %vm293, %v7695, 0.0
      %v7718 = vrot.slane %v7717, 4
      %v7719 = vadd.f32 %v7717, %v7718
      %v7720 = vrot.slane %v7719, 2
      %v7721 = vadd.f32 %v7719, %v7720
      %v7722 = vrot.slane %v7721, 1
      %v7723 = vadd.f32 %v7721, %v7722
      %v7724 = vmul.f32 %v7702, %v472
      %v7725 = vmul.f32 %v7709, %v472
      %v7726 = vmul.f32 %v7716, %v472
      %v7727 = vmul.f32 %v7723, %v472
      %v7728 = vadd.f32 %v7724, 1e-06
      %v7729 = vadd.f32 %v7725, 1e-06
      %v7730 = vadd.f32 %v7726, 1e-06
      %v7731 = vadd.f32 %v7727, 1e-06
      %v7732 = vrsqrt.pop %v7728
      %v7733 = vrsqrt.pop %v7729
      %v7734 = vrsqrt.pop %v7730
      %v7735 = vrsqrt.pop %v7731
      %v7736 = vmul.f32 %v7688, %v7732
      %v7737 = vmul.f32 %v7689, %v7733
      %v7738 = vmul.f32 %v7690, %v7734
      %v7739 = vmul.f32 %v7691, %v7735
      %7740 = vset.pattern.permute.xlu0 35
      %7741 = vperm.xlu0 %7740, %v274
      %v7742 = vpop.permute.xlu0 %7741
      %v7744 = vmul.f32 %v7736, %v7742
      %v7745 = vmul.f32 %v7737, %v7742
      %v7746 = vmul.f32 %v7738, %v7742
      %v7747 = vmul.f32 %v7739, %v7742
      %7748 = vset.pattern.permute.xlu0 36
      %7749 = vperm.xlu0 %7748, %v274
      %v7750 = vpop.permute.xlu0 %7749
      %v7752 = vadd.f32 %v7744, %v7750
      %v7753 = vadd.f32 %v7745, %v7750
      %v7754 = vadd.f32 %v7746, %v7750
      %v7755 = vadd.f32 %v7747, %v7750
      %v7756 = vmul.f32 %v7752, 0.5
      %v7757 = vmul.f32 %v7753, 0.5
      %v7758 = vmul.f32 %v7754, 0.5
      %v7759 = vmul.f32 %v7755, 0.5
      %v7760 = vmul.f32 %v7752, 0.70710677
      %v7761 = vmul.f32 %v7753, 0.70710677
      %v7762 = vmul.f32 %v7754, 0.70710677
      %v7763 = vmul.f32 %v7755, 0.70710677
      %v7764 = verf.f32.pop %v7760
      %v7765 = verf.f32.pop %v7761
      %v7766 = verf.f32.pop %v7762
      %v7767 = verf.f32.pop %v7763
      %v7768 = vadd.f32 %v7764, 1.0
      %v7769 = vadd.f32 %v7765, 1.0
      %v7770 = vadd.f32 %v7766, 1.0
      %v7771 = vadd.f32 %v7767, 1.0
      %v7772 = vmul.f32 %v7756, %v7768
      %v7773 = vmul.f32 %v7757, %v7769
      %v7774 = vmul.f32 %v7758, %v7770
      %v7775 = vmul.f32 %v7759, %v7771
      %v7776 = vrot.slane %v274, 4
      %v7777 = vrot.slane %v6970, 4
      %v7779 = vsel %vm290, %v7776, 0
      %v7782 = vsel %vm293, %v7772, 0
      %v7785 = vsel %vm293, %v7773, 0
      %v7788 = vsel %vm293, %v7774, 0
      %v7791 = vsel %vm293, %v7775, 0
      %7793 = vmatprep.subr.mxu0 0.0
      %7794 = vmatpush1.msra.mxu0 0.0
      %7795 = vmatprep.subr.mxu0 0.0
      %7796 = vmatpush1.msra.mxu0 0.0
      %7797 = vmatprep.subr.mxu0 0.0
      %7798 = vmatpush1.msra.mxu0 0.0
      %7799 = vmatprep.subr.mxu0 0.0
      %7800 = vmatpush1.msra.mxu0 0.0
      %7801 = vmatprep.subr.mxu0 0.0
      %7802 = vmatpush1.msra.mxu0 0.0
      %7803 = vmatprep.subr.mxu0 0.0
      %7804 = vmatpush1.msra.mxu0 0.0
      %7805 = vmatprep.subr.mxu0 0.0
      %7806 = vmatpush1.msra.mxu0 0.0
      %7807 = vmatprep.subr.mxu0 0.0
      %7808 = vmatpush1.msra.mxu0 0.0
      %7809 = vmatprep.subr.mxu0 0.0
      %7810 = vmatpush1.msra.mxu0 0.0
      %7811 = vmatprep.subr.mxu0 0.0
      %7812 = vmatpush1.msra.mxu0 0.0
      %7813 = vmatprep.subr.mxu0 0.0
      %7814 = vmatpush1.msra.mxu0 0.0
      %7815 = vmatprep.subr.mxu0 0.0
      %7816 = vmatpush1.msra.mxu0 0.0
      %7817 = vmatprep.subr.mxu0 0.0
      %7818 = vmatpush1.msra.mxu0 0.0
      %7819 = vmatprep.subr.mxu0 0.0
      %7820 = vmatpush1.msra.mxu0 0.0
      %7821 = vmatprep.subr.mxu0 0.0
      %7822 = vmatpush1.msra.mxu0 0.0
      %7823 = vmatprep.subr.mxu0 %v7785
      %7824 = vmatpush1.msra.mxu0 %v7782
      %7825 = vmatprep.subr.mxu0 0.0
      %7826 = vmatpush2.msra.mxu0 0.0
      %7827 = vmatprep.subr.mxu0 0.0
      %7828 = vmatpush2.msra.mxu0 0.0
      %7829 = vmatprep.subr.mxu0 0.0
      %7830 = vmatpush2.msra.mxu0 0.0
      %7831 = vmatprep.subr.mxu0 0.0
      %7832 = vmatpush2.msra.mxu0 0.0
      %7833 = vmatprep.subr.mxu0 0.0
      %7834 = vmatpush2.msra.mxu0 0.0
      %7835 = vmatprep.subr.mxu0 0.0
      %7836 = vmatpush2.msra.mxu0 0.0
      %7837 = vmatprep.subr.mxu0 0.0
      %7838 = vmatpush2.msra.mxu0 0.0
      %7839 = vmatprep.subr.mxu0 0.0
      %7840 = vmatpush2.msra.mxu0 0.0
      %7841 = vmatprep.subr.mxu0 0.0
      %7842 = vmatpush2.msra.mxu0 0.0
      %7843 = vmatprep.subr.mxu0 0.0
      %7844 = vmatpush2.msra.mxu0 0.0
      %7845 = vmatprep.subr.mxu0 0.0
      %7846 = vmatpush2.msra.mxu0 0.0
      %7847 = vmatprep.subr.mxu0 0.0
      %7848 = vmatpush2.msra.mxu0 0.0
      %7849 = vmatprep.subr.mxu0 0.0
      %7850 = vmatpush2.msra.mxu0 0.0
      %7851 = vmatprep.subr.mxu0 0.0
      %7852 = vmatpush2.msra.mxu0 0.0
      %7853 = vmatprep.subr.mxu0 0.0
      %7854 = vmatpush2.msra.mxu0 0.0
      %7855 = vmatprep.subr.mxu0 0.0
      %7856 = vmatpush2.msra.mxu0 0.0
      %7857 = vmatprep.mubr.f32.mxu0 0.0
      %7858 = vmatmul.mubr.f32.gmra.mxu0 %v7779
      %v7859 = vpop.f32.mrf.mxu0
      %v7860 = vadd.f32 %v7777, %v7859
      %v7861 = vpop.f32.mrf.mxu0
      %v7862 = vadd.f32 %v7777, %v7861
      %7863 = vdwg.mxu0
      %7864 = vmatprep.subr.mxu0 0.0
      %7865 = vmatpush1.msra.mxu0 0.0
      %7866 = vmatprep.subr.mxu0 0.0
      %7867 = vmatpush1.msra.mxu0 0.0
      %7868 = vmatprep.subr.mxu0 0.0
      %7869 = vmatpush1.msra.mxu0 0.0
      %7870 = vmatprep.subr.mxu0 0.0
      %7871 = vmatpush1.msra.mxu0 0.0
      %7872 = vmatprep.subr.mxu0 0.0
      %7873 = vmatpush1.msra.mxu0 0.0
      %7874 = vmatprep.subr.mxu0 0.0
      %7875 = vmatpush1.msra.mxu0 0.0
      %7876 = vmatprep.subr.mxu0 0.0
      %7877 = vmatpush1.msra.mxu0 0.0
      %7878 = vmatprep.subr.mxu0 0.0
      %7879 = vmatpush1.msra.mxu0 0.0
      %7880 = vmatprep.subr.mxu0 0.0
      %7881 = vmatpush1.msra.mxu0 0.0
      %7882 = vmatprep.subr.mxu0 0.0
      %7883 = vmatpush1.msra.mxu0 0.0
      %7884 = vmatprep.subr.mxu0 0.0
      %7885 = vmatpush1.msra.mxu0 0.0
      %7886 = vmatprep.subr.mxu0 0.0
      %7887 = vmatpush1.msra.mxu0 0.0
      %7888 = vmatprep.subr.mxu0 0.0
      %7889 = vmatpush1.msra.mxu0 0.0
      %7890 = vmatprep.subr.mxu0 0.0
      %7891 = vmatpush1.msra.mxu0 0.0
      %7892 = vmatprep.subr.mxu0 0.0
      %7893 = vmatpush1.msra.mxu0 0.0
      %7894 = vmatprep.subr.mxu0 %v7791
      %7895 = vmatpush1.msra.mxu0 %v7788
      %7896 = vmatprep.subr.mxu0 0.0
      %7897 = vmatpush2.msra.mxu0 0.0
      %7898 = vmatprep.subr.mxu0 0.0
      %7899 = vmatpush2.msra.mxu0 0.0
      %7900 = vmatprep.subr.mxu0 0.0
      %7901 = vmatpush2.msra.mxu0 0.0
      %7902 = vmatprep.subr.mxu0 0.0
      %7903 = vmatpush2.msra.mxu0 0.0
      %7904 = vmatprep.subr.mxu0 0.0
      %7905 = vmatpush2.msra.mxu0 0.0
      %7906 = vmatprep.subr.mxu0 0.0
      %7907 = vmatpush2.msra.mxu0 0.0
      %7908 = vmatprep.subr.mxu0 0.0
      %7909 = vmatpush2.msra.mxu0 0.0
      %7910 = vmatprep.subr.mxu0 0.0
      %7911 = vmatpush2.msra.mxu0 0.0
      %7912 = vmatprep.subr.mxu0 0.0
      %7913 = vmatpush2.msra.mxu0 0.0
      %7914 = vmatprep.subr.mxu0 0.0
      %7915 = vmatpush2.msra.mxu0 0.0
      %7916 = vmatprep.subr.mxu0 0.0
      %7917 = vmatpush2.msra.mxu0 0.0
      %7918 = vmatprep.subr.mxu0 0.0
      %7919 = vmatpush2.msra.mxu0 0.0
      %7920 = vmatprep.subr.mxu0 0.0
      %7921 = vmatpush2.msra.mxu0 0.0
      %7922 = vmatprep.subr.mxu0 0.0
      %7923 = vmatpush2.msra.mxu0 0.0
      %7924 = vmatprep.subr.mxu0 0.0
      %7925 = vmatpush2.msra.mxu0 0.0
      %7926 = vmatprep.subr.mxu0 0.0
      %7927 = vmatpush2.msra.mxu0 0.0
      %7928 = vmatprep.mubr.f32.mxu0 0.0
      %7929 = vmatmul.mubr.f32.gmra.mxu0 %v7779
      %v7930 = vpop.f32.mrf.mxu0
      %v7931 = vadd.f32 %v7777, %v7930
      %v7932 = vpop.f32.mrf.mxu0
      %v7933 = vadd.f32 %v7777, %v7932
      %7934 = vdwg.mxu0
      %v7935 = vsel %vm293, %v7860, 0.0
      %v7936 = vrot.slane %v7935, 4
      %v7937 = vadd.f32 %v7935, %v7936
      %v7938 = vrot.slane %v7937, 2
      %v7939 = vadd.f32 %v7937, %v7938
      %v7940 = vrot.slane %v7939, 1
      %v7941 = vadd.f32 %v7939, %v7940
      %v7942 = vsel %vm293, %v7862, 0.0
      %v7943 = vrot.slane %v7942, 4
      %v7944 = vadd.f32 %v7942, %v7943
      %v7945 = vrot.slane %v7944, 2
      %v7946 = vadd.f32 %v7944, %v7945
      %v7947 = vrot.slane %v7946, 1
      %v7948 = vadd.f32 %v7946, %v7947
      %v7949 = vsel %vm293, %v7931, 0.0
      %v7950 = vrot.slane %v7949, 4
      %v7951 = vadd.f32 %v7949, %v7950
      %v7952 = vrot.slane %v7951, 2
      %v7953 = vadd.f32 %v7951, %v7952
      %v7954 = vrot.slane %v7953, 1
      %v7955 = vadd.f32 %v7953, %v7954
      %v7956 = vsel %vm293, %v7933, 0.0
      %v7957 = vrot.slane %v7956, 4
      %v7958 = vadd.f32 %v7956, %v7957
      %v7959 = vrot.slane %v7958, 2
      %v7960 = vadd.f32 %v7958, %v7959
      %v7961 = vrot.slane %v7960, 1
      %v7962 = vadd.f32 %v7960, %v7961
      %v7963 = vmul.f32 %v7941, %v472
      %v7964 = vmul.f32 %v7948, %v472
      %v7965 = vmul.f32 %v7955, %v472
      %v7966 = vmul.f32 %v7962, %v472
      %v7967 = vsub.f32 %v7860, %v7963
      %v7968 = vsub.f32 %v7862, %v7964
      %v7969 = vsub.f32 %v7931, %v7965
      %v7970 = vsub.f32 %v7933, %v7966
      %v7971 = vmul.f32 %v7967, %v7967
      %v7972 = vmul.f32 %v7968, %v7968
      %v7973 = vmul.f32 %v7969, %v7969
      %v7974 = vmul.f32 %v7970, %v7970
      %v7975 = vsel %vm293, %v7971, 0.0
      %v7976 = vrot.slane %v7975, 4
      %v7977 = vadd.f32 %v7975, %v7976
      %v7978 = vrot.slane %v7977, 2
      %v7979 = vadd.f32 %v7977, %v7978
      %v7980 = vrot.slane %v7979, 1
      %v7981 = vadd.f32 %v7979, %v7980
      %v7982 = vsel %vm293, %v7972, 0.0
      %v7983 = vrot.slane %v7982, 4
      %v7984 = vadd.f32 %v7982, %v7983
      %v7985 = vrot.slane %v7984, 2
      %v7986 = vadd.f32 %v7984, %v7985
      %v7987 = vrot.slane %v7986, 1
      %v7988 = vadd.f32 %v7986, %v7987
      %v7989 = vsel %vm293, %v7973, 0.0
      %v7990 = vrot.slane %v7989, 4
      %v7991 = vadd.f32 %v7989, %v7990
      %v7992 = vrot.slane %v7991, 2
      %v7993 = vadd.f32 %v7991, %v7992
      %v7994 = vrot.slane %v7993, 1
      %v7995 = vadd.f32 %v7993, %v7994
      %v7996 = vsel %vm293, %v7974, 0.0
      %v7997 = vrot.slane %v7996, 4
      %v7998 = vadd.f32 %v7996, %v7997
      %v7999 = vrot.slane %v7998, 2
      %v8000 = vadd.f32 %v7998, %v7999
      %v8001 = vrot.slane %v8000, 1
      %v8002 = vadd.f32 %v8000, %v8001
      %v8003 = vmul.f32 %v7981, %v472
      %v8004 = vmul.f32 %v7988, %v472
      %v8005 = vmul.f32 %v7995, %v472
      %v8006 = vmul.f32 %v8002, %v472
      %v8007 = vadd.f32 %v8003, 1e-06
      %v8008 = vadd.f32 %v8004, 1e-06
      %v8009 = vadd.f32 %v8005, 1e-06
      %v8010 = vadd.f32 %v8006, 1e-06
      %v8011 = vrsqrt.pop %v8007
      %v8012 = vrsqrt.pop %v8008
      %v8013 = vrsqrt.pop %v8009
      %v8014 = vrsqrt.pop %v8010
      %v8015 = vmul.f32 %v7967, %v8011
      %v8016 = vmul.f32 %v7968, %v8012
      %v8017 = vmul.f32 %v7969, %v8013
      %v8018 = vmul.f32 %v7970, %v8014
      %v8019 = vrot.slane %v6982, 4
      %v8021 = vmul.f32 %v8015, %v8019
      %v8022 = vmul.f32 %v8016, %v8019
      %v8023 = vmul.f32 %v8017, %v8019
      %v8024 = vmul.f32 %v8018, %v8019
      %v8025 = vrot.slane %v7010, 4
      %v8027 = vadd.f32 %v8021, %v8025
      %v8028 = vadd.f32 %v8022, %v8025
      %v8029 = vadd.f32 %v8023, %v8025
      %v8030 = vadd.f32 %v8024, %v8025
      %v8035 = vcombine.low %v8027, %v8028
      %v8036 = vcombine.low %v8029, %v8030
      %v8039 = vadd.f32 %v279, %v8035
      %v8040 = vadd.f32 %v280, %v8036
      %8041 = vst [vmem:[%s264] sm:$0xff] %v8039
      %8042 = vst [vmem:[%s264 + $0x8] sm:$0xff] %v8040
      %p8043 = scmp.lt.s32.totalorder %s16, 1
      %s8044 = scalar_select %p8043, %s16, 1
      %s8045 = smul.addr %s8044, 4
      %s8046 = smul.addr %s8045, 4
      %s8047 = scalar_lea.vmem %s5, %s8046
      // Predicated region
      $region41: #{attention_layer.1} parent=39 // pred_check
        %p8048 = pneg %p154
      $region42: #{attention_layer.1} parent=39 // pred_check_branch
        %8050 = sbr.rel (%p8048) target = $region44
      $region43: #{attention_layer.1} parent=39 // pred_region
        _
      $region44: #{attention_layer.1} parent=39 // pred_fallthru
        _
    $region40: #{attention_layer.1} parent=5 // pred_fallthru
      _
    %p8051 = scmp.le.s32.totalorder 2, %s11
    // Predicated region
    $region45: #{attention_layer.1} parent=5 // pred_check
      %p8052 = pneg %p8051
    $region46: #{attention_layer.1} parent=5 // pred_check_branch
      %8054 = sbr.rel (%p8052) target = $region48
    $region47: #{attention_layer.1} parent=5 // pred_region
      %s8055 = ssub.s32 %s11, 2
      // Predicated region
      $region49: #{attention_layer.1} parent=47 // pred_check
        %p8056 = pneg %p160
      $region50: #{attention_layer.1} parent=47 // pred_check_branch
        %8058 = sbr.rel (%p8056) target = $region52
      $region51: #{attention_layer.1} parent=47 // pred_region
        %p8059 = scmp.lt.s32.totalorder %s17, 1
        %s8060 = scalar_select %p8059, %s17, 1
        %s8061 = smul.addr %s8060, 4
        %s8062 = smul.addr %s8061, 4
        %s8063 = scalar_lea.vmem %s5, %s8062
      $region52: #{attention_layer.1} parent=47 // pred_fallthru
        _
    $region48: #{attention_layer.1} parent=5 // pred_fallthru
      _
  $region6: #{attention_layer.1} parent=0 // loop_footer
    %s15 = sadd.s32 1, %s11
  $region7: #{attention_layer.1} parent=0 // loop_footer_branch
    %10 = sbr.rel target = $region3
  $region8: #{attention_layer.1} parent=0 // loop_exit
    _

</llo_original>
